<compile_context>
chip_gen: v7x
topology: tpu7x:2x2x1
jax: 0.10.0
libtpu: 0.0.40
codegen_flags: <defaults>
</compile_context>

<pallas_src>
import functools

import jax
import jax.numpy as jnp
from jax.experimental import pallas as pl
from jax.experimental.pallas import tpu as pltpu


# ----------------------------- in-kernel math helpers -----------------------------

def _erf(x):
    # Abramowitz & Stegun 7.1.26 polynomial (max abs err ~1.5e-7): matches torch.erf
    # to f32 tolerance, so nn.GELU() (exact / erf form) is reproduced.  The divide is
    # an (otherwise idle) EUP reciprocal instead of a VALU divide.
    a1, a2, a3, a4, a5 = 0.254829592, -0.284496736, 1.421413741, -1.453152027, 1.061405429
    p = 0.3275911
    ax = jnp.abs(x)
    t = pl.reciprocal(1.0 + p * ax, approx=True)
    poly = ((((a5 * t + a4) * t + a3) * t + a2) * t + a1) * t
    y = 1.0 - poly * jnp.exp(-ax * ax)
    return jnp.where(x >= 0.0, y, -y)


def _gelu_exact(x):
    # PyTorch nn.GELU() / F.gelu default is the exact (erf) formulation.
    return 0.5 * x * (1.0 + _erf(x * 0.7071067811865476))


# ----------------------------- fused Down kernel -----------------------------

def _down_kernel(x_ref, wstack_ref, gn_ref, wlT_ref, tb_ref, o_ref, pad_ref,
                 *, B, H2, W2, HW, c_in, c_mid, c_out, eps):
    f32 = jnp.float32
    M = B * HW

    # Zero the padded-activation scratch once per grid step (not once per conv).  Only
    # the 1-px halo ring must stay zero ('same' padding); interior lanes 0:cin are
    # rewritten per conv and stale interior lanes beyond cin are never read.
    pad_ref[...] = jnp.zeros_like(pad_ref)

    def conv3x3(act, conv_idx, cin, cout):
        """3x3 'same' conv, bias=False.  act: (B, H2, W2, cin).
        One interior store into the zero-haloed pad buffer, then 9 shifted-window
        MXU dots accumulated in registers (no im2col scratch)."""
        pad_ref[:, 1:1 + H2, 1:1 + W2, 0:cin] = act
        acc = None
        for dy in range(3):
            for dx in range(3):
                win = pad_ref[:, dy:dy + H2, dx:dx + W2, 0:cin].reshape(M, cin)
                wtap = wstack_ref[conv_idx, dy * 3 + dx, 0:cin, 0:cout]
                term = jnp.dot(win, wtap, preferred_element_type=f32)
                acc = term if acc is None else acc + term
        return acc                                              # (M, cout)

    def groupnorm(h, gamma, beta, cout, apply_gelu):
        """GroupNorm(num_groups=1): per-sample stats over (HW, cout), one pass."""
        h3 = h.reshape(B, HW, cout)
        inv_n = 1.0 / (HW * cout)
        s1 = jnp.sum(h3, axis=(1, 2), keepdims=True)
        s2 = jnp.sum(h3 * h3, axis=(1, 2), keepdims=True)
        mean = s1 * inv_n
        var = s2 * inv_n - mean * mean
        y = (h3 - mean) * jax.lax.rsqrt(var + eps)
        y = y * gamma.reshape(1, 1, cout) + beta.reshape(1, 1, cout)
        if apply_gelu:
            y = _gelu_exact(y)
        return y.reshape(M, cout)

    # ---- nn.MaxPool2d(2): block is (B, H, W2, 2*c_in), w-parity folded into channels ----
    xb = x_ref[...].reshape(B, H2, 2, W2, 2 * c_in)
    xh = jnp.maximum(xb[:, :, 0], xb[:, :, 1])                  # pool over h parity
    pooled = jnp.maximum(xh[..., :c_in], xh[..., c_in:])        # pool over w parity -> (B,H2,W2,c_in)

    # ---- DoubleConv(in, out, mid, residual=True): gelu(x + GN(conv(gelu(GN(conv(x)))))) ----
    h = conv3x3(pooled, 0, c_in, c_mid)
    h = groupnorm(h, gn_ref[0:1, 0:c_mid], gn_ref[1:2, 0:c_mid], c_mid, True)
    h = conv3x3(h.reshape(B, H2, W2, c_mid), 1, c_mid, c_out)
    h = groupnorm(h, gn_ref[2:3, 0:c_out], gn_ref[3:4, 0:c_out], c_out, False)
    # TODO(synk): reference also does a debug `print(x.shape, res_x.shape)` here; omitted.
    x1 = _gelu_exact(pooled.reshape(M, c_in) + h)               # residual (needs c_in == c_out)

    # ---- DoubleConv(out, out, mid, residual=False) ----
    h = conv3x3(x1.reshape(B, H2, W2, c_out), 2, c_out, c_mid)
    h = groupnorm(h, gn_ref[4:5, 0:c_mid], gn_ref[5:6, 0:c_mid], c_mid, True)
    h = conv3x3(h.reshape(B, H2, W2, c_mid), 3, c_mid, c_out)
    x2 = groupnorm(h, gn_ref[6:7, 0:c_out], gn_ref[7:8, 0:c_out], c_out, False)

    # ---- embed_layer: Linear(SiLU(t)) as a (1, E) row; broadcasts along the width axis ----
    trow = tb_ref[0:1, :]
    s = trow * jax.nn.sigmoid(trow)
    te = jnp.dot(s, wlT_ref[...], preferred_element_type=f32) + tb_ref[1:2, :]   # (1, E)

    # ---- x + t, then channel-major store: lane width of the store is HW, not c_out ----
    out4 = x2.reshape(B, H2, W2, c_out) + te.reshape(1, 1, W2, 1)
    x2e = out4.reshape(M, c_out)
    cpad = -(-c_out // 8) * 8
    if cpad != c_out:   # pad channels to a sublane multiple so the 2-D transpose is tile-friendly
        x2e = jnp.concatenate([x2e, jnp.zeros((M, cpad - c_out), f32)], axis=-1)
    xT = jnp.transpose(x2e, (1, 0))                             # (cpad, B*HW): one XLU transpose
    for b in range(B):                                          # static unroll (B is small)
        o_ref[b] = xT[0:c_out, b * HW:(b + 1) * HW].astype(o_ref.dtype)


# ----------------------------- wrapper -----------------------------

def down_forward(params, x_nchw, t):
    """Down.forward(x, t).  x_nchw: (N, in_ch, H, W); t: (embed_dim,).
    The reference's `x + t` (NCHW) broadcasts t along the width axis, which requires
    W//2 == embed_dim; the residual DoubleConv requires in_ch == out_ch."""
    N, c_in, H, W = x_nchw.shape
    H2, W2 = H // 2, W // 2
    HW = H2 * W2
    c_mid = params["w1a"].shape[0]
    c_out = params["w1b"].shape[0]
    E = params["wl"].shape[0]
    assert c_in == c_out, "residual DoubleConv requires in_ch == out_ch"
    assert W2 == E, "PyTorch broadcast `x + t` requires pooled width == embed_dim"
    c_max = max(c_in, c_mid, c_out)

    # Samples per grid step: fold B samples into the matmul M dimension to amortize the
    # ~0.35us/step overhead, but keep >= 2 grid steps whenever N >= 2 so the "parallel"
    # batch axis can still shard across v7x's two TensorCores.
    B = 1
    for b in range(1, N + 1):
        if N % b:
            continue
        if N >= 2 and N // b < 2:
            continue
        if b * HW > 512:
            continue
        B = b
    G = N // B

    # NHWC, then fold the w-parity into the channel axis (both reshapes are free views).
    x_nhwc = jnp.transpose(x_nchw, (0, 2, 3, 1)).astype(jnp.float32)
    x4 = x_nhwc.reshape(N, H, W2, 2 * c_in)

    # Pack the 4 conv weights into one (4, 9, c_max, c_max) stack.  Pads are never read:
    # the kernel slices [0:cin, 0:cout] statically per conv/tap.
    def pad_w(w):
        cout, cin = w.shape[0], w.shape[1]
        wk = jnp.transpose(w, (2, 3, 1, 0)).reshape(9, cin, cout).astype(jnp.float32)
        return jnp.pad(wk, ((0, 0), (0, c_max - cin), (0, c_max - cout)))
    wstack = jnp.stack([pad_w(params["w1a"]), pad_w(params["w1b"]),
                        pad_w(params["w2a"]), pad_w(params["w2b"])])

    # Pack the 8 GroupNorm gamma/beta vectors into one (8, c_max) stack.
    def pad_v(v):
        return jnp.pad(v.astype(jnp.float32), (0, c_max - v.shape[0]))
    gnstack = jnp.stack([pad_v(params[k]) for k in
                         ("g1a", "b1a", "g1b", "b1b", "g2a", "b2a", "g2b", "b2b")])

    wlT = jnp.transpose(params["wl"]).astype(jnp.float32)               # row @ wlT == Linear
    tb = jnp.stack([t.astype(jnp.float32), params["bl"].astype(jnp.float32)])   # (2, E)

    kernel = functools.partial(_down_kernel, B=B, H2=H2, W2=W2, HW=HW,
                               c_in=c_in, c_mid=c_mid, c_out=c_out, eps=1e-5)

    out_cf = pl.pallas_call(
        kernel,
        out_shape=jax.ShapeDtypeStruct((N, c_out, HW), jnp.float32),
        grid=(G,),
        in_specs=[
            pl.BlockSpec((B, H, W2, 2 * c_in), lambda n: (n, 0, 0, 0)),
            pl.BlockSpec((4, 9, c_max, c_max), lambda n: (0, 0, 0, 0)),
            pl.BlockSpec((8, c_max), lambda n: (0, 0)),
            pl.BlockSpec((E, E), lambda n: (0, 0)),
            pl.BlockSpec((2, E), lambda n: (0, 0)),
        ],
        out_specs=pl.BlockSpec((B, c_out, HW), lambda n: (n, 0, 0)),
        scratch_shapes=[
            pltpu.VMEM((B, H2 + 2, W2 + 2, c_max), jnp.float32),   # zero-haloed pad buffer
        ],
        compiler_params=pltpu.CompilerParams(
            dimension_semantics=("parallel",),
            # Explicit VMEM budget (review item for v7x): everything here is tiny, but
            # keep the scoped limit well under v7x's 64 MiB physical VMEM.
            vmem_limit_bytes=32 * 1024 * 1024,
        ),
    )(x4, wstack, gnstack, wlT, tb)

    # Channel-major kernel output -> NCHW is a pure reshape (no final transpose).
    return out_cf.reshape(N, c_out, H2, W2).astype(x_nchw.dtype)


# ----------------------------- parameters -----------------------------

def init_down_params(key, in_ch, out_ch, embed_dim):
    ks = jax.random.split(key, 14)

    def conv_w(k, cout, cin):
        return jax.random.normal(k, (cout, cin, 3, 3), jnp.float32) / jnp.sqrt(cin * 9.0)

    def gn(kg, kb, c):
        return (1.0 + 0.1 * jax.random.normal(kg, (c,), jnp.float32),
                0.05 * jax.random.normal(kb, (c,), jnp.float32))

    p = {}
    # DoubleConv #1 (in_ch -> out_ch, mid=embed_dim, residual=True)
    p["w1a"] = conv_w(ks[0], embed_dim, in_ch)
    p["g1a"], p["b1a"] = gn(ks[1], ks[2], embed_dim)
    p["w1b"] = conv_w(ks[3], out_ch, embed_dim)
    p["g1b"], p["b1b"] = gn(ks[4], ks[5], out_ch)
    # DoubleConv #2 (out_ch -> out_ch, mid=embed_dim, residual=False)
    p["w2a"] = conv_w(ks[6], embed_dim, out_ch)
    p["g2a"], p["b2a"] = gn(ks[7], ks[8], embed_dim)
    p["w2b"] = conv_w(ks[9], out_ch, embed_dim)
    p["g2b"], p["b2b"] = gn(ks[10], ks[11], out_ch)
    # embed_layer: Linear(embed_dim, embed_dim)
    p["wl"] = jax.random.normal(ks[12], (embed_dim, embed_dim), jnp.float32) / jnp.sqrt(1.0 * embed_dim)
    p["bl"] = 0.01 * jax.random.normal(ks[13], (embed_dim,), jnp.float32)
    return p


if __name__ == "__main__":
    N, H, W = 2, 16, 16
    in_ch = out_ch = 4        # residual DoubleConv requires in_ch == out_ch
    embed_dim = 8             # == W // 2 so the reference's `x + t` broadcast is valid

    key = jax.random.PRNGKey(0)
    kx, kt, kp = jax.random.split(key, 3)
    x = jax.random.normal(kx, (N, in_ch, H, W), jnp.float32)
    t = jax.random.normal(kt, (embed_dim,), jnp.float32)
    params = init_down_params(kp, in_ch, out_ch, embed_dim)

    fwd = jax.jit(down_forward)
    out = jax.block_until_ready(fwd(params, x, t))
    assert out.shape == (N, out_ch, H // 2, W // 2)
    assert out.dtype == jnp.float32
    assert bool(jnp.all(jnp.isfinite(out)))
    print("KERNEL_OK")
</pallas_src>

<mosaic_0001>
module attributes {stable_mosaic.version = 11 : i64} {
  func.func @_down_kernel(%arg0: i32, %arg1: memref<1x16x8x8xf32, #tpu.memory_space<vmem>>, %arg2: memref<4x9x8x8xf32, #tpu.memory_space<vmem>>, %arg3: memref<8x8xf32, #tpu.memory_space<vmem>>, %arg4: memref<8x8xf32, #tpu.memory_space<vmem>>, %arg5: memref<2x8xf32, #tpu.memory_space<vmem>>, %arg6: memref<1x4x64xf32, #tpu.memory_space<vmem>>, %arg7: memref<1x10x10x8xf32, #tpu.memory_space<vmem>>) attributes {dimension_semantics = [#tpu.dimension_semantics<parallel>], iteration_bounds = array<i64: 2>, scalar_prefetch = 0 : i64, scratch_operands = 1 : i64, tpu.core_type = #tpu.core_type<tc>, window_params = [{transform_indices = @transform_0, window_bounds = array<i64: 1, 16, 8, 8>}, {pipeline_mode = #tpu.pipeline_mode<synchronous>, transform_indices = @transform_1, window_bounds = array<i64: 4, 9, 8, 8>}, {pipeline_mode = #tpu.pipeline_mode<synchronous>, transform_indices = @transform_2, window_bounds = array<i64: 8, 8>}, {pipeline_mode = #tpu.pipeline_mode<synchronous>, transform_indices = @transform_3, window_bounds = array<i64: 8, 8>}, {pipeline_mode = #tpu.pipeline_mode<synchronous>, transform_indices = @transform_4, window_bounds = array<i64: 2, 8>}, {transform_indices = @transform_5, window_bounds = array<i64: 1, 4, 64>}]} {
    %cst = arith.constant 0.000000e+00 : f32
    %0 = vector.broadcast %cst : f32 to vector<1x10x10x8xf32>
    %c0 = arith.constant 0 : index
    %c0_0 = arith.constant 0 : index
    %c0_1 = arith.constant 0 : index
    %c0_2 = arith.constant 0 : index
    %1 = vector.load %arg7[%c0, %c0_0, %c0_1, %c0_2] : memref<1x10x10x8xf32, #tpu.memory_space<vmem>>, vector<1x10x10x8xf32>
    tpu.vector_store %arg7[%c0, %c0_0, %c0_1, %c0_2], %0 {strides = array<i32>} : memref<1x10x10x8xf32, #tpu.memory_space<vmem>>, vector<1x10x10x8xf32>,
    %c0_3 = arith.constant 0 : index
    %c0_4 = arith.constant 0 : index
    %c0_5 = arith.constant 0 : index
    %c0_6 = arith.constant 0 : index
    %2 = vector.load %arg1[%c0_3, %c0_4, %c0_5, %c0_6] : memref<1x16x8x8xf32, #tpu.memory_space<vmem>>, vector<1x16x8x8xf32>
    %3 = vector.shape_cast %2 : vector<1x16x8x8xf32> to vector<1x8x2x8x8xf32>
    %4 = vector.extract_strided_slice %3 {offsets = [0, 0, 0, 0, 0], sizes = [1, 8, 1, 8, 8], strides = [1, 1, 1, 1, 1]} : vector<1x8x2x8x8xf32> to vector<1x8x1x8x8xf32>
    %5 = vector.shape_cast %4 : vector<1x8x1x8x8xf32> to vector<1x8x8x8xf32>
    %6 = vector.extract_strided_slice %3 {offsets = [0, 0, 1, 0, 0], sizes = [1, 8, 1, 8, 8], strides = [1, 1, 1, 1, 1]} : vector<1x8x2x8x8xf32> to vector<1x8x1x8x8xf32>
    %7 = vector.shape_cast %6 : vector<1x8x1x8x8xf32> to vector<1x8x8x8xf32>
    %8 = arith.maximumf %5, %7 : vector<1x8x8x8xf32>
    %9 = vector.extract_strided_slice %8 {offsets = [0, 0, 0, 0], sizes = [1, 8, 8, 4], strides = [1, 1, 1, 1]} : vector<1x8x8x8xf32> to vector<1x8x8x4xf32>
    %10 = vector.extract_strided_slice %8 {offsets = [0, 0, 0, 4], sizes = [1, 8, 8, 4], strides = [1, 1, 1, 1]} : vector<1x8x8x8xf32> to vector<1x8x8x4xf32>
    %11 = arith.maximumf %9, %10 : vector<1x8x8x4xf32>
    %c0_7 = arith.constant 0 : index
    %c1 = arith.constant 1 : index
    %c1_8 = arith.constant 1 : index
    %c0_9 = arith.constant 0 : index
    %12 = vector.load %arg7[%c0_7, %c1, %c1_8, %c0_9] : memref<1x10x10x8xf32, #tpu.memory_space<vmem>>, vector<1x8x8x4xf32>
    tpu.vector_store %arg7[%c0_7, %c1, %c1_8, %c0_9], %11 {strides = array<i32>} : memref<1x10x10x8xf32, #tpu.memory_space<vmem>>, vector<1x8x8x4xf32>,
    %c0_10 = arith.constant 0 : index
    %c0_11 = arith.constant 0 : index
    %c0_12 = arith.constant 0 : index
    %c0_13 = arith.constant 0 : index
    %13 = vector.load %arg7[%c0_10, %c0_11, %c0_12, %c0_13] : memref<1x10x10x8xf32, #tpu.memory_space<vmem>>, vector<1x8x8x4xf32>
    %14 = vector.shape_cast %13 : vector<1x8x8x4xf32> to vector<64x4xf32>
    %c0_14 = arith.constant 0 : index
    %c0_15 = arith.constant 0 : index
    %c0_16 = arith.constant 0 : index
    %c0_17 = arith.constant 0 : index
    %15 = vector.load %arg2[%c0_14, %c0_15, %c0_16, %c0_17] : memref<4x9x8x8xf32, #tpu.memory_space<vmem>>, vector<1x1x4x8xf32>
    %16 = vector.shape_cast %15 : vector<1x1x4x8xf32> to vector<4x8xf32>
    %cst_18 = arith.constant dense<0.000000e+00> : vector<64x8xf32>
    %17 = tpu.matmul %14, %16, %cst_18 {dimension_numbers = #tpu.dot_dimension_numbers<[1], [0], [0], [1], [0, 0, 1, 1], [], []>} : vector<64x4xf32>, vector<4x8xf32>, vector<64x8xf32> -> vector<64x8xf32>
    %c0_19 = arith.constant 0 : index
    %c0_20 = arith.constant 0 : index
    %c1_21 = arith.constant 1 : index
    %c0_22 = arith.constant 0 : index
    %18 = vector.load %arg7[%c0_19, %c0_20, %c1_21, %c0_22] : memref<1x10x10x8xf32, #tpu.memory_space<vmem>>, vector<1x8x8x4xf32>
    %19 = vector.shape_cast %18 : vector<1x8x8x4xf32> to vector<64x4xf32>
    %c0_23 = arith.constant 0 : index
    %c1_24 = arith.constant 1 : index
    %c0_25 = arith.constant 0 : index
    %c0_26 = arith.constant 0 : index
    %20 = vector.load %arg2[%c0_23, %c1_24, %c0_25, %c0_26] : memref<4x9x8x8xf32, #tpu.memory_space<vmem>>, vector<1x1x4x8xf32>
    %21 = vector.shape_cast %20 : vector<1x1x4x8xf32> to vector<4x8xf32>
    %cst_27 = arith.constant dense<0.000000e+00> : vector<64x8xf32>
    %22 = tpu.matmul %19, %21, %cst_27 {dimension_numbers = #tpu.dot_dimension_numbers<[1], [0], [0], [1], [0, 0, 1, 1], [], []>} : vector<64x4xf32>, vector<4x8xf32>, vector<64x8xf32> -> vector<64x8xf32>
    %23 = arith.addf %17, %22 : vector<64x8xf32>
    %c0_28 = arith.constant 0 : index
    %c0_29 = arith.constant 0 : index
    %c2 = arith.constant 2 : index
    %c0_30 = arith.constant 0 : index
    %24 = vector.load %arg7[%c0_28, %c0_29, %c2, %c0_30] : memref<1x10x10x8xf32, #tpu.memory_space<vmem>>, vector<1x8x8x4xf32>
    %25 = vector.shape_cast %24 : vector<1x8x8x4xf32> to vector<64x4xf32>
    %c0_31 = arith.constant 0 : index
    %c2_32 = arith.constant 2 : index
    %c0_33 = arith.constant 0 : index
    %c0_34 = arith.constant 0 : index
    %26 = vector.load %arg2[%c0_31, %c2_32, %c0_33, %c0_34] : memref<4x9x8x8xf32, #tpu.memory_space<vmem>>, vector<1x1x4x8xf32>
    %27 = vector.shape_cast %26 : vector<1x1x4x8xf32> to vector<4x8xf32>
    %cst_35 = arith.constant dense<0.000000e+00> : vector<64x8xf32>
    %28 = tpu.matmul %25, %27, %cst_35 {dimension_numbers = #tpu.dot_dimension_numbers<[1], [0], [0], [1], [0, 0, 1, 1], [], []>} : vector<64x4xf32>, vector<4x8xf32>, vector<64x8xf32> -> vector<64x8xf32>
    %29 = arith.addf %23, %28 : vector<64x8xf32>
    %c0_36 = arith.constant 0 : index
    %c1_37 = arith.constant 1 : index
    %c0_38 = arith.constant 0 : index
    %c0_39 = arith.constant 0 : index
    %30 = vector.load %arg7[%c0_36, %c1_37, %c0_38, %c0_39] : memref<1x10x10x8xf32, #tpu.memory_space<vmem>>, vector<1x8x8x4xf32>
    %31 = vector.shape_cast %30 : vector<1x8x8x4xf32> to vector<64x4xf32>
    %c0_40 = arith.constant 0 : index
    %c3 = arith.constant 3 : index
    %c0_41 = arith.constant 0 : index
    %c0_42 = arith.constant 0 : index
    %32 = vector.load %arg2[%c0_40, %c3, %c0_41, %c0_42] : memref<4x9x8x8xf32, #tpu.memory_space<vmem>>, vector<1x1x4x8xf32>
    %33 = vector.shape_cast %32 : vector<1x1x4x8xf32> to vector<4x8xf32>
    %cst_43 = arith.constant dense<0.000000e+00> : vector<64x8xf32>
    %34 = tpu.matmul %31, %33, %cst_43 {dimension_numbers = #tpu.dot_dimension_numbers<[1], [0], [0], [1], [0, 0, 1, 1], [], []>} : vector<64x4xf32>, vector<4x8xf32>, vector<64x8xf32> -> vector<64x8xf32>
    %35 = arith.addf %29, %34 : vector<64x8xf32>
    %c0_44 = arith.constant 0 : index
    %c1_45 = arith.constant 1 : index
    %c1_46 = arith.constant 1 : index
    %c0_47 = arith.constant 0 : index
    %36 = vector.load %arg7[%c0_44, %c1_45, %c1_46, %c0_47] : memref<1x10x10x8xf32, #tpu.memory_space<vmem>>, vector<1x8x8x4xf32>
    %37 = vector.shape_cast %36 : vector<1x8x8x4xf32> to vector<64x4xf32>
    %c0_48 = arith.constant 0 : index
    %c4 = arith.constant 4 : index
    %c0_49 = arith.constant 0 : index
    %c0_50 = arith.constant 0 : index
    %38 = vector.load %arg2[%c0_48, %c4, %c0_49, %c0_50] : memref<4x9x8x8xf32, #tpu.memory_space<vmem>>, vector<1x1x4x8xf32>
    %39 = vector.shape_cast %38 : vector<1x1x4x8xf32> to vector<4x8xf32>
    %cst_51 = arith.constant dense<0.000000e+00> : vector<64x8xf32>
    %40 = tpu.matmul %37, %39, %cst_51 {dimension_numbers = #tpu.dot_dimension_numbers<[1], [0], [0], [1], [0, 0, 1, 1], [], []>} : vector<64x4xf32>, vector<4x8xf32>, vector<64x8xf32> -> vector<64x8xf32>
    %41 = arith.addf %35, %40 : vector<64x8xf32>
    %c0_52 = arith.constant 0 : index
    %c1_53 = arith.constant 1 : index
    %c2_54 = arith.constant 2 : index
    %c0_55 = arith.constant 0 : index
    %42 = vector.load %arg7[%c0_52, %c1_53, %c2_54, %c0_55] : memref<1x10x10x8xf32, #tpu.memory_space<vmem>>, vector<1x8x8x4xf32>
    %43 = vector.shape_cast %42 : vector<1x8x8x4xf32> to vector<64x4xf32>
    %c0_56 = arith.constant 0 : index
    %c5 = arith.constant 5 : index
    %c0_57 = arith.constant 0 : index
    %c0_58 = arith.constant 0 : index
    %44 = vector.load %arg2[%c0_56, %c5, %c0_57, %c0_58] : memref<4x9x8x8xf32, #tpu.memory_space<vmem>>, vector<1x1x4x8xf32>
    %45 = vector.shape_cast %44 : vector<1x1x4x8xf32> to vector<4x8xf32>
    %cst_59 = arith.constant dense<0.000000e+00> : vector<64x8xf32>
    %46 = tpu.matmul %43, %45, %cst_59 {dimension_numbers = #tpu.dot_dimension_numbers<[1], [0], [0], [1], [0, 0, 1, 1], [], []>} : vector<64x4xf32>, vector<4x8xf32>, vector<64x8xf32> -> vector<64x8xf32>
    %47 = arith.addf %41, %46 : vector<64x8xf32>
    %c0_60 = arith.constant 0 : index
    %c2_61 = arith.constant 2 : index
    %c0_62 = arith.constant 0 : index
    %c0_63 = arith.constant 0 : index
    %48 = vector.load %arg7[%c0_60, %c2_61, %c0_62, %c0_63] : memref<1x10x10x8xf32, #tpu.memory_space<vmem>>, vector<1x8x8x4xf32>
    %49 = vector.shape_cast %48 : vector<1x8x8x4xf32> to vector<64x4xf32>
    %c0_64 = arith.constant 0 : index
    %c6 = arith.constant 6 : index
    %c0_65 = arith.constant 0 : index
    %c0_66 = arith.constant 0 : index
    %50 = vector.load %arg2[%c0_64, %c6, %c0_65, %c0_66] : memref<4x9x8x8xf32, #tpu.memory_space<vmem>>, vector<1x1x4x8xf32>
    %51 = vector.shape_cast %50 : vector<1x1x4x8xf32> to vector<4x8xf32>
    %cst_67 = arith.constant dense<0.000000e+00> : vector<64x8xf32>
    %52 = tpu.matmul %49, %51, %cst_67 {dimension_numbers = #tpu.dot_dimension_numbers<[1], [0], [0], [1], [0, 0, 1, 1], [], []>} : vector<64x4xf32>, vector<4x8xf32>, vector<64x8xf32> -> vector<64x8xf32>
    %53 = arith.addf %47, %52 : vector<64x8xf32>
    %c0_68 = arith.constant 0 : index
    %c2_69 = arith.constant 2 : index
    %c1_70 = arith.constant 1 : index
    %c0_71 = arith.constant 0 : index
    %54 = vector.load %arg7[%c0_68, %c2_69, %c1_70, %c0_71] : memref<1x10x10x8xf32, #tpu.memory_space<vmem>>, vector<1x8x8x4xf32>
    %55 = vector.shape_cast %54 : vector<1x8x8x4xf32> to vector<64x4xf32>
    %c0_72 = arith.constant 0 : index
    %c7 = arith.constant 7 : index
    %c0_73 = arith.constant 0 : index
    %c0_74 = arith.constant 0 : index
    %56 = vector.load %arg2[%c0_72, %c7, %c0_73, %c0_74] : memref<4x9x8x8xf32, #tpu.memory_space<vmem>>, vector<1x1x4x8xf32>
    %57 = vector.shape_cast %56 : vector<1x1x4x8xf32> to vector<4x8xf32>
    %cst_75 = arith.constant dense<0.000000e+00> : vector<64x8xf32>
    %58 = tpu.matmul %55, %57, %cst_75 {dimension_numbers = #tpu.dot_dimension_numbers<[1], [0], [0], [1], [0, 0, 1, 1], [], []>} : vector<64x4xf32>, vector<4x8xf32>, vector<64x8xf32> -> vector<64x8xf32>
    %59 = arith.addf %53, %58 : vector<64x8xf32>
    %c0_76 = arith.constant 0 : index
    %c2_77 = arith.constant 2 : index
    %c2_78 = arith.constant 2 : index
    %c0_79 = arith.constant 0 : index
    %60 = vector.load %arg7[%c0_76, %c2_77, %c2_78, %c0_79] : memref<1x10x10x8xf32, #tpu.memory_space<vmem>>, vector<1x8x8x4xf32>
    %61 = vector.shape_cast %60 : vector<1x8x8x4xf32> to vector<64x4xf32>
    %c0_80 = arith.constant 0 : index
    %c8 = arith.constant 8 : index
    %c0_81 = arith.constant 0 : index
    %c0_82 = arith.constant 0 : index
    %62 = vector.load %arg2[%c0_80, %c8, %c0_81, %c0_82] : memref<4x9x8x8xf32, #tpu.memory_space<vmem>>, vector<1x1x4x8xf32>
    %63 = vector.shape_cast %62 : vector<1x1x4x8xf32> to vector<4x8xf32>
    %cst_83 = arith.constant dense<0.000000e+00> : vector<64x8xf32>
    %64 = tpu.matmul %61, %63, %cst_83 {dimension_numbers = #tpu.dot_dimension_numbers<[1], [0], [0], [1], [0, 0, 1, 1], [], []>} : vector<64x4xf32>, vector<4x8xf32>, vector<64x8xf32> -> vector<64x8xf32>
    %65 = arith.addf %59, %64 : vector<64x8xf32>
    %c0_84 = arith.constant 0 : index
    %c0_85 = arith.constant 0 : index
    %66 = vector.load %arg3[%c0_84, %c0_85] : memref<8x8xf32, #tpu.memory_space<vmem>>, vector<1x8xf32>
    %c1_86 = arith.constant 1 : index
    %c0_87 = arith.constant 0 : index
    %67 = vector.load %arg3[%c1_86, %c0_87] : memref<8x8xf32, #tpu.memory_space<vmem>>, vector<1x8xf32>
    %68 = vector.shape_cast %65 : vector<64x8xf32> to vector<1x64x8xf32>
    %cst_88 = arith.constant dense<0.000000e+00> : vector<1xf32>
    %69 = vector.multi_reduction <add>, %68, %cst_88 [1, 2] : vector<1x64x8xf32> to vector<1xf32>
    %70 = vector.shape_cast %69 : vector<1xf32> to vector<1x1x1xf32>
    %71 = arith.mulf %68, %68 : vector<1x64x8xf32>
    %cst_89 = arith.constant dense<0.000000e+00> : vector<1xf32>
    %72 = vector.multi_reduction <add>, %71, %cst_89 [1, 2] : vector<1x64x8xf32> to vector<1xf32>
    %73 = vector.shape_cast %72 : vector<1xf32> to vector<1x1x1xf32>
    %cst_90 = arith.constant 0.001953125 : f32
    %74 = vector.broadcast %cst_90 : f32 to vector<1x1x1xf32>
    %75 = arith.mulf %70, %74 : vector<1x1x1xf32>
    %cst_91 = arith.constant 0.001953125 : f32
    %76 = vector.broadcast %cst_91 : f32 to vector<1x1x1xf32>
    %77 = arith.mulf %73, %76 : vector<1x1x1xf32>
    %78 = arith.mulf %75, %75 : vector<1x1x1xf32>
    %79 = arith.subf %77, %78 : vector<1x1x1xf32>
    %80 = vector.broadcast %75 : vector<1x1x1xf32> to vector<1x64x8xf32>
    %81 = arith.subf %68, %80 : vector<1x64x8xf32>
    %cst_92 = arith.constant 9.99999974E-6 : f32
    %82 = vector.broadcast %cst_92 : f32 to vector<1x1x1xf32>
    %83 = arith.addf %79, %82 : vector<1x1x1xf32>
    %84 = math.rsqrt %83 : vector<1x1x1xf32>
    %85 = vector.broadcast %84 : vector<1x1x1xf32> to vector<1x64x8xf32>
    %86 = arith.mulf %81, %85 : vector<1x64x8xf32>
    %87 = vector.shape_cast %66 : vector<1x8xf32> to vector<1x1x8xf32>
    %88 = vector.broadcast %87 : vector<1x1x8xf32> to vector<1x64x8xf32>
    %89 = arith.mulf %86, %88 : vector<1x64x8xf32>
    %90 = vector.shape_cast %67 : vector<1x8xf32> to vector<1x1x8xf32>
    %91 = vector.broadcast %90 : vector<1x1x8xf32> to vector<1x64x8xf32>
    %92 = arith.addf %89, %91 : vector<1x64x8xf32>
    %cst_93 = arith.constant 5.000000e-01 : f32
    %93 = vector.broadcast %cst_93 : f32 to vector<1x64x8xf32>
    %94 = arith.mulf %93, %92 : vector<1x64x8xf32>
    %cst_94 = arith.constant 0.707106769 : f32
    %95 = vector.broadcast %cst_94 : f32 to vector<1x64x8xf32>
    %96 = arith.mulf %92, %95 : vector<1x64x8xf32>
    %97 = math.absf %96 : vector<1x64x8xf32>
    %cst_95 = arith.constant 0.327591091 : f32
    %98 = vector.broadcast %cst_95 : f32 to vector<1x64x8xf32>
    %99 = arith.mulf %98, %97 : vector<1x64x8xf32>
    %cst_96 = arith.constant 1.000000e+00 : f32
    %100 = vector.broadcast %cst_96 : f32 to vector<1x64x8xf32>
    %101 = arith.addf %100, %99 : vector<1x64x8xf32>
    %102 = tpu.reciprocal %101 {approx = true} : vector<1x64x8xf32> -> vector<1x64x8xf32>
    %cst_97 = arith.constant 1.06140542 : f32
    %103 = vector.broadcast %cst_97 : f32 to vector<1x64x8xf32>
    %104 = arith.mulf %103, %102 : vector<1x64x8xf32>
    %cst_98 = arith.constant -1.45315206 : f32
    %105 = vector.broadcast %cst_98 : f32 to vector<1x64x8xf32>
    %106 = arith.addf %104, %105 : vector<1x64x8xf32>
    %107 = arith.mulf %106, %102 : vector<1x64x8xf32>
    %cst_99 = arith.constant 1.42141378 : f32
    %108 = vector.broadcast %cst_99 : f32 to vector<1x64x8xf32>
    %109 = arith.addf %107, %108 : vector<1x64x8xf32>
    %110 = arith.mulf %109, %102 : vector<1x64x8xf32>
    %cst_100 = arith.constant -0.284496725 : f32
    %111 = vector.broadcast %cst_100 : f32 to vector<1x64x8xf32>
    %112 = arith.addf %110, %111 : vector<1x64x8xf32>
    %113 = arith.mulf %112, %102 : vector<1x64x8xf32>
    %cst_101 = arith.constant 0.254829586 : f32
    %114 = vector.broadcast %cst_101 : f32 to vector<1x64x8xf32>
    %115 = arith.addf %113, %114 : vector<1x64x8xf32>
    %116 = arith.mulf %115, %102 : vector<1x64x8xf32>
    %cst_102 = arith.constant 0.000000e+00 : f32
    %117 = vector.broadcast %cst_102 : f32 to vector<1x64x8xf32>
    %118 = arith.subf %117, %97 : vector<1x64x8xf32>
    %119 = arith.mulf %118, %97 : vector<1x64x8xf32>
    %120 = math.exp %119 : vector<1x64x8xf32>
    %121 = arith.mulf %116, %120 : vector<1x64x8xf32>
    %cst_103 = arith.constant 1.000000e+00 : f32
    %122 = vector.broadcast %cst_103 : f32 to vector<1x64x8xf32>
    %123 = arith.subf %122, %121 : vector<1x64x8xf32>
    %cst_104 = arith.constant 0.000000e+00 : f32
    %124 = vector.broadcast %cst_104 : f32 to vector<1x64x8xf32>
    %125 = arith.cmpf oge, %96, %124 : vector<1x64x8xf32>
    %cst_105 = arith.constant 0.000000e+00 : f32
    %126 = vector.broadcast %cst_105 : f32 to vector<1x64x8xf32>
    %127 = arith.subf %126, %123 : vector<1x64x8xf32>
    %128 = arith.select %125, %123, %127 : vector<1x64x8xi1>, vector<1x64x8xf32>
    %cst_106 = arith.constant 1.000000e+00 : f32
    %129 = vector.broadcast %cst_106 : f32 to vector<1x64x8xf32>
    %130 = arith.addf %129, %128 : vector<1x64x8xf32>
    %131 = arith.mulf %94, %130 : vector<1x64x8xf32>
    %132 = vector.shape_cast %131 : vector<1x64x8xf32> to vector<64x8xf32>
    %133 = vector.shape_cast %132 : vector<64x8xf32> to vector<1x8x8x8xf32>
    %c0_107 = arith.constant 0 : index
    %c1_108 = arith.constant 1 : index
    %c1_109 = arith.constant 1 : index
    %c0_110 = arith.constant 0 : index
    %134 = vector.load %arg7[%c0_107, %c1_108, %c1_109, %c0_110] : memref<1x10x10x8xf32, #tpu.memory_space<vmem>>, vector<1x8x8x8xf32>
    tpu.vector_store %arg7[%c0_107, %c1_108, %c1_109, %c0_110], %133 {strides = array<i32>} : memref<1x10x10x8xf32, #tpu.memory_space<vmem>>, vector<1x8x8x8xf32>,
    %c0_111 = arith.constant 0 : index
    %c0_112 = arith.constant 0 : index
    %c0_113 = arith.constant 0 : index
    %c0_114 = arith.constant 0 : index
    %135 = vector.load %arg7[%c0_111, %c0_112, %c0_113, %c0_114] : memref<1x10x10x8xf32, #tpu.memory_space<vmem>>, vector<1x8x8x8xf32>
    %136 = vector.shape_cast %135 : vector<1x8x8x8xf32> to vector<64x8xf32>
    %c1_115 = arith.constant 1 : index
    %c0_116 = arith.constant 0 : index
    %c0_117 = arith.constant 0 : index
    %c0_118 = arith.constant 0 : index
    %137 = vector.load %arg2[%c1_115, %c0_116, %c0_117, %c0_118] : memref<4x9x8x8xf32, #tpu.memory_space<vmem>>, vector<1x1x8x4xf32>
    %138 = vector.shape_cast %137 : vector<1x1x8x4xf32> to vector<8x4xf32>
    %cst_119 = arith.constant dense<0.000000e+00> : vector<64x4xf32>
    %139 = tpu.matmul %136, %138, %cst_119 {dimension_numbers = #tpu.dot_dimension_numbers<[1], [0], [0], [1], [0, 0, 1, 1], [], []>} : vector<64x8xf32>, vector<8x4xf32>, vector<64x4xf32> -> vector<64x4xf32>
    %c0_120 = arith.constant 0 : index
    %c0_121 = arith.constant 0 : index
    %c1_122 = arith.constant 1 : index
    %c0_123 = arith.constant 0 : index
    %140 = vector.load %arg7[%c0_120, %c0_121, %c1_122, %c0_123] : memref<1x10x10x8xf32, #tpu.memory_space<vmem>>, vector<1x8x8x8xf32>
    %141 = vector.shape_cast %140 : vector<1x8x8x8xf32> to vector<64x8xf32>
    %c1_124 = arith.constant 1 : index
    %c1_125 = arith.constant 1 : index
    %c0_126 = arith.constant 0 : index
    %c0_127 = arith.constant 0 : index
    %142 = vector.load %arg2[%c1_124, %c1_125, %c0_126, %c0_127] : memref<4x9x8x8xf32, #tpu.memory_space<vmem>>, vector<1x1x8x4xf32>
    %143 = vector.shape_cast %142 : vector<1x1x8x4xf32> to vector<8x4xf32>
    %cst_128 = arith.constant dense<0.000000e+00> : vector<64x4xf32>
    %144 = tpu.matmul %141, %143, %cst_128 {dimension_numbers = #tpu.dot_dimension_numbers<[1], [0], [0], [1], [0, 0, 1, 1], [], []>} : vector<64x8xf32>, vector<8x4xf32>, vector<64x4xf32> -> vector<64x4xf32>
    %145 = arith.addf %139, %144 : vector<64x4xf32>
    %c0_129 = arith.constant 0 : index
    %c0_130 = arith.constant 0 : index
    %c2_131 = arith.constant 2 : index
    %c0_132 = arith.constant 0 : index
    %146 = vector.load %arg7[%c0_129, %c0_130, %c2_131, %c0_132] : memref<1x10x10x8xf32, #tpu.memory_space<vmem>>, vector<1x8x8x8xf32>
    %147 = vector.shape_cast %146 : vector<1x8x8x8xf32> to vector<64x8xf32>
    %c1_133 = arith.constant 1 : index
    %c2_134 = arith.constant 2 : index
    %c0_135 = arith.constant 0 : index
    %c0_136 = arith.constant 0 : index
    %148 = vector.load %arg2[%c1_133, %c2_134, %c0_135, %c0_136] : memref<4x9x8x8xf32, #tpu.memory_space<vmem>>, vector<1x1x8x4xf32>
    %149 = vector.shape_cast %148 : vector<1x1x8x4xf32> to vector<8x4xf32>
    %cst_137 = arith.constant dense<0.000000e+00> : vector<64x4xf32>
    %150 = tpu.matmul %147, %149, %cst_137 {dimension_numbers = #tpu.dot_dimension_numbers<[1], [0], [0], [1], [0, 0, 1, 1], [], []>} : vector<64x8xf32>, vector<8x4xf32>, vector<64x4xf32> -> vector<64x4xf32>
    %151 = arith.addf %145, %150 : vector<64x4xf32>
    %c0_138 = arith.constant 0 : index
    %c1_139 = arith.constant 1 : index
    %c0_140 = arith.constant 0 : index
    %c0_141 = arith.constant 0 : index
    %152 = vector.load %arg7[%c0_138, %c1_139, %c0_140, %c0_141] : memref<1x10x10x8xf32, #tpu.memory_space<vmem>>, vector<1x8x8x8xf32>
    %153 = vector.shape_cast %152 : vector<1x8x8x8xf32> to vector<64x8xf32>
    %c1_142 = arith.constant 1 : index
    %c3_143 = arith.constant 3 : index
    %c0_144 = arith.constant 0 : index
    %c0_145 = arith.constant 0 : index
    %154 = vector.load %arg2[%c1_142, %c3_143, %c0_144, %c0_145] : memref<4x9x8x8xf32, #tpu.memory_space<vmem>>, vector<1x1x8x4xf32>
    %155 = vector.shape_cast %154 : vector<1x1x8x4xf32> to vector<8x4xf32>
    %cst_146 = arith.constant dense<0.000000e+00> : vector<64x4xf32>
    %156 = tpu.matmul %153, %155, %cst_146 {dimension_numbers = #tpu.dot_dimension_numbers<[1], [0], [0], [1], [0, 0, 1, 1], [], []>} : vector<64x8xf32>, vector<8x4xf32>, vector<64x4xf32> -> vector<64x4xf32>
    %157 = arith.addf %151, %156 : vector<64x4xf32>
    %c0_147 = arith.constant 0 : index
    %c1_148 = arith.constant 1 : index
    %c1_149 = arith.constant 1 : index
    %c0_150 = arith.constant 0 : index
    %158 = vector.load %arg7[%c0_147, %c1_148, %c1_149, %c0_150] : memref<1x10x10x8xf32, #tpu.memory_space<vmem>>, vector<1x8x8x8xf32>
    %159 = vector.shape_cast %158 : vector<1x8x8x8xf32> to vector<64x8xf32>
    %c1_151 = arith.constant 1 : index
    %c4_152 = arith.constant 4 : index
    %c0_153 = arith.constant 0 : index
    %c0_154 = arith.constant 0 : index
    %160 = vector.load %arg2[%c1_151, %c4_152, %c0_153, %c0_154] : memref<4x9x8x8xf32, #tpu.memory_space<vmem>>, vector<1x1x8x4xf32>
    %161 = vector.shape_cast %160 : vector<1x1x8x4xf32> to vector<8x4xf32>
    %cst_155 = arith.constant dense<0.000000e+00> : vector<64x4xf32>
    %162 = tpu.matmul %159, %161, %cst_155 {dimension_numbers = #tpu.dot_dimension_numbers<[1], [0], [0], [1], [0, 0, 1, 1], [], []>} : vector<64x8xf32>, vector<8x4xf32>, vector<64x4xf32> -> vector<64x4xf32>
    %163 = arith.addf %157, %162 : vector<64x4xf32>
    %c0_156 = arith.constant 0 : index
    %c1_157 = arith.constant 1 : index
    %c2_158 = arith.constant 2 : index
    %c0_159 = arith.constant 0 : index
    %164 = vector.load %arg7[%c0_156, %c1_157, %c2_158, %c0_159] : memref<1x10x10x8xf32, #tpu.memory_space<vmem>>, vector<1x8x8x8xf32>
    %165 = vector.shape_cast %164 : vector<1x8x8x8xf32> to vector<64x8xf32>
    %c1_160 = arith.constant 1 : index
    %c5_161 = arith.constant 5 : index
    %c0_162 = arith.constant 0 : index
    %c0_163 = arith.constant 0 : index
    %166 = vector.load %arg2[%c1_160, %c5_161, %c0_162, %c0_163] : memref<4x9x8x8xf32, #tpu.memory_space<vmem>>, vector<1x1x8x4xf32>
    %167 = vector.shape_cast %166 : vector<1x1x8x4xf32> to vector<8x4xf32>
    %cst_164 = arith.constant dense<0.000000e+00> : vector<64x4xf32>
    %168 = tpu.matmul %165, %167, %cst_164 {dimension_numbers = #tpu.dot_dimension_numbers<[1], [0], [0], [1], [0, 0, 1, 1], [], []>} : vector<64x8xf32>, vector<8x4xf32>, vector<64x4xf32> -> vector<64x4xf32>
    %169 = arith.addf %163, %168 : vector<64x4xf32>
    %c0_165 = arith.constant 0 : index
    %c2_166 = arith.constant 2 : index
    %c0_167 = arith.constant 0 : index
    %c0_168 = arith.constant 0 : index
    %170 = vector.load %arg7[%c0_165, %c2_166, %c0_167, %c0_168] : memref<1x10x10x8xf32, #tpu.memory_space<vmem>>, vector<1x8x8x8xf32>
    %171 = vector.shape_cast %170 : vector<1x8x8x8xf32> to vector<64x8xf32>
    %c1_169 = arith.constant 1 : index
    %c6_170 = arith.constant 6 : index
    %c0_171 = arith.constant 0 : index
    %c0_172 = arith.constant 0 : index
    %172 = vector.load %arg2[%c1_169, %c6_170, %c0_171, %c0_172] : memref<4x9x8x8xf32, #tpu.memory_space<vmem>>, vector<1x1x8x4xf32>
    %173 = vector.shape_cast %172 : vector<1x1x8x4xf32> to vector<8x4xf32>
    %cst_173 = arith.constant dense<0.000000e+00> : vector<64x4xf32>
    %174 = tpu.matmul %171, %173, %cst_173 {dimension_numbers = #tpu.dot_dimension_numbers<[1], [0], [0], [1], [0, 0, 1, 1], [], []>} : vector<64x8xf32>, vector<8x4xf32>, vector<64x4xf32> -> vector<64x4xf32>
    %175 = arith.addf %169, %174 : vector<64x4xf32>
    %c0_174 = arith.constant 0 : index
    %c2_175 = arith.constant 2 : index
    %c1_176 = arith.constant 1 : index
    %c0_177 = arith.constant 0 : index
    %176 = vector.load %arg7[%c0_174, %c2_175, %c1_176, %c0_177] : memref<1x10x10x8xf32, #tpu.memory_space<vmem>>, vector<1x8x8x8xf32>
    %177 = vector.shape_cast %176 : vector<1x8x8x8xf32> to vector<64x8xf32>
    %c1_178 = arith.constant 1 : index
    %c7_179 = arith.constant 7 : index
    %c0_180 = arith.constant 0 : index
    %c0_181 = arith.constant 0 : index
    %178 = vector.load %arg2[%c1_178, %c7_179, %c0_180, %c0_181] : memref<4x9x8x8xf32, #tpu.memory_space<vmem>>, vector<1x1x8x4xf32>
    %179 = vector.shape_cast %178 : vector<1x1x8x4xf32> to vector<8x4xf32>
    %cst_182 = arith.constant dense<0.000000e+00> : vector<64x4xf32>
    %180 = tpu.matmul %177, %179, %cst_182 {dimension_numbers = #tpu.dot_dimension_numbers<[1], [0], [0], [1], [0, 0, 1, 1], [], []>} : vector<64x8xf32>, vector<8x4xf32>, vector<64x4xf32> -> vector<64x4xf32>
    %181 = arith.addf %175, %180 : vector<64x4xf32>
    %c0_183 = arith.constant 0 : index
    %c2_184 = arith.constant 2 : index
    %c2_185 = arith.constant 2 : index
    %c0_186 = arith.constant 0 : index
    %182 = vector.load %arg7[%c0_183, %c2_184, %c2_185, %c0_186] : memref<1x10x10x8xf32, #tpu.memory_space<vmem>>, vector<1x8x8x8xf32>
    %183 = vector.shape_cast %182 : vector<1x8x8x8xf32> to vector<64x8xf32>
    %c1_187 = arith.constant 1 : index
    %c8_188 = arith.constant 8 : index
    %c0_189 = arith.constant 0 : index
    %c0_190 = arith.constant 0 : index
    %184 = vector.load %arg2[%c1_187, %c8_188, %c0_189, %c0_190] : memref<4x9x8x8xf32, #tpu.memory_space<vmem>>, vector<1x1x8x4xf32>
    %185 = vector.shape_cast %184 : vector<1x1x8x4xf32> to vector<8x4xf32>
    %cst_191 = arith.constant dense<0.000000e+00> : vector<64x4xf32>
    %186 = tpu.matmul %183, %185, %cst_191 {dimension_numbers = #tpu.dot_dimension_numbers<[1], [0], [0], [1], [0, 0, 1, 1], [], []>} : vector<64x8xf32>, vector<8x4xf32>, vector<64x4xf32> -> vector<64x4xf32>
    %187 = arith.addf %181, %186 : vector<64x4xf32>
    %c2_192 = arith.constant 2 : index
    %c0_193 = arith.constant 0 : index
    %188 = vector.load %arg3[%c2_192, %c0_193] : memref<8x8xf32, #tpu.memory_space<vmem>>, vector<1x4xf32>
    %c3_194 = arith.constant 3 : index
    %c0_195 = arith.constant 0 : index
    %189 = vector.load %arg3[%c3_194, %c0_195] : memref<8x8xf32, #tpu.memory_space<vmem>>, vector<1x4xf32>
    %190 = vector.shape_cast %187 : vector<64x4xf32> to vector<1x64x4xf32>
    %cst_196 = arith.constant dense<0.000000e+00> : vector<1xf32>
    %191 = vector.multi_reduction <add>, %190, %cst_196 [1, 2] : vector<1x64x4xf32> to vector<1xf32>
    %192 = vector.shape_cast %191 : vector<1xf32> to vector<1x1x1xf32>
    %193 = arith.mulf %190, %190 : vector<1x64x4xf32>
    %cst_197 = arith.constant dense<0.000000e+00> : vector<1xf32>
    %194 = vector.multi_reduction <add>, %193, %cst_197 [1, 2] : vector<1x64x4xf32> to vector<1xf32>
    %195 = vector.shape_cast %194 : vector<1xf32> to vector<1x1x1xf32>
    %cst_198 = arith.constant 3.906250e-03 : f32
    %196 = vector.broadcast %cst_198 : f32 to vector<1x1x1xf32>
    %197 = arith.mulf %192, %196 : vector<1x1x1xf32>
    %cst_199 = arith.constant 3.906250e-03 : f32
    %198 = vector.broadcast %cst_199 : f32 to vector<1x1x1xf32>
    %199 = arith.mulf %195, %198 : vector<1x1x1xf32>
    %200 = arith.mulf %197, %197 : vector<1x1x1xf32>
    %201 = arith.subf %199, %200 : vector<1x1x1xf32>
    %202 = vector.broadcast %197 : vector<1x1x1xf32> to vector<1x64x4xf32>
    %203 = arith.subf %190, %202 : vector<1x64x4xf32>
    %cst_200 = arith.constant 9.99999974E-6 : f32
    %204 = vector.broadcast %cst_200 : f32 to vector<1x1x1xf32>
    %205 = arith.addf %201, %204 : vector<1x1x1xf32>
    %206 = math.rsqrt %205 : vector<1x1x1xf32>
    %207 = vector.broadcast %206 : vector<1x1x1xf32> to vector<1x64x4xf32>
    %208 = arith.mulf %203, %207 : vector<1x64x4xf32>
    %209 = vector.shape_cast %188 : vector<1x4xf32> to vector<1x1x4xf32>
    %210 = vector.broadcast %209 : vector<1x1x4xf32> to vector<1x64x4xf32>
    %211 = arith.mulf %208, %210 : vector<1x64x4xf32>
    %212 = vector.shape_cast %189 : vector<1x4xf32> to vector<1x1x4xf32>
    %213 = vector.broadcast %212 : vector<1x1x4xf32> to vector<1x64x4xf32>
    %214 = arith.addf %211, %213 : vector<1x64x4xf32>
    %215 = vector.shape_cast %214 : vector<1x64x4xf32> to vector<64x4xf32>
    %216 = vector.shape_cast %11 : vector<1x8x8x4xf32> to vector<64x4xf32>
    %217 = arith.addf %216, %215 : vector<64x4xf32>
    %cst_201 = arith.constant 5.000000e-01 : f32
    %218 = vector.broadcast %cst_201 : f32 to vector<64x4xf32>
    %219 = arith.mulf %218, %217 : vector<64x4xf32>
    %cst_202 = arith.constant 0.707106769 : f32
    %220 = vector.broadcast %cst_202 : f32 to vector<64x4xf32>
    %221 = arith.mulf %217, %220 : vector<64x4xf32>
    %222 = math.absf %221 : vector<64x4xf32>
    %cst_203 = arith.constant 0.327591091 : f32
    %223 = vector.broadcast %cst_203 : f32 to vector<64x4xf32>
    %224 = arith.mulf %223, %222 : vector<64x4xf32>
    %cst_204 = arith.constant 1.000000e+00 : f32
    %225 = vector.broadcast %cst_204 : f32 to vector<64x4xf32>
    %226 = arith.addf %225, %224 : vector<64x4xf32>
    %227 = tpu.reciprocal %226 {approx = true} : vector<64x4xf32> -> vector<64x4xf32>
    %cst_205 = arith.constant 1.06140542 : f32
    %228 = vector.broadcast %cst_205 : f32 to vector<64x4xf32>
    %229 = arith.mulf %228, %227 : vector<64x4xf32>
    %cst_206 = arith.constant -1.45315206 : f32
    %230 = vector.broadcast %cst_206 : f32 to vector<64x4xf32>
    %231 = arith.addf %229, %230 : vector<64x4xf32>
    %232 = arith.mulf %231, %227 : vector<64x4xf32>
    %cst_207 = arith.constant 1.42141378 : f32
    %233 = vector.broadcast %cst_207 : f32 to vector<64x4xf32>
    %234 = arith.addf %232, %233 : vector<64x4xf32>
    %235 = arith.mulf %234, %227 : vector<64x4xf32>
    %cst_208 = arith.constant -0.284496725 : f32
    %236 = vector.broadcast %cst_208 : f32 to vector<64x4xf32>
    %237 = arith.addf %235, %236 : vector<64x4xf32>
    %238 = arith.mulf %237, %227 : vector<64x4xf32>
    %cst_209 = arith.constant 0.254829586 : f32
    %239 = vector.broadcast %cst_209 : f32 to vector<64x4xf32>
    %240 = arith.addf %238, %239 : vector<64x4xf32>
    %241 = arith.mulf %240, %227 : vector<64x4xf32>
    %cst_210 = arith.constant 0.000000e+00 : f32
    %242 = vector.broadcast %cst_210 : f32 to vector<64x4xf32>
    %243 = arith.subf %242, %222 : vector<64x4xf32>
    %244 = arith.mulf %243, %222 : vector<64x4xf32>
    %245 = math.exp %244 : vector<64x4xf32>
    %246 = arith.mulf %241, %245 : vector<64x4xf32>
    %cst_211 = arith.constant 1.000000e+00 : f32
    %247 = vector.broadcast %cst_211 : f32 to vector<64x4xf32>
    %248 = arith.subf %247, %246 : vector<64x4xf32>
    %cst_212 = arith.constant 0.000000e+00 : f32
    %249 = vector.broadcast %cst_212 : f32 to vector<64x4xf32>
    %250 = arith.cmpf oge, %221, %249 : vector<64x4xf32>
    %cst_213 = arith.constant 0.000000e+00 : f32
    %251 = vector.broadcast %cst_213 : f32 to vector<64x4xf32>
    %252 = arith.subf %251, %248 : vector<64x4xf32>
    %253 = arith.select %250, %248, %252 : vector<64x4xi1>, vector<64x4xf32>
    %cst_214 = arith.constant 1.000000e+00 : f32
    %254 = vector.broadcast %cst_214 : f32 to vector<64x4xf32>
    %255 = arith.addf %254, %253 : vector<64x4xf32>
    %256 = arith.mulf %219, %255 : vector<64x4xf32>
    %257 = vector.shape_cast %256 : vector<64x4xf32> to vector<1x8x8x4xf32>
    %c0_215 = arith.constant 0 : index
    %c1_216 = arith.constant 1 : index
    %c1_217 = arith.constant 1 : index
    %c0_218 = arith.constant 0 : index
    %258 = vector.load %arg7[%c0_215, %c1_216, %c1_217, %c0_218] : memref<1x10x10x8xf32, #tpu.memory_space<vmem>>, vector<1x8x8x4xf32>
    tpu.vector_store %arg7[%c0_215, %c1_216, %c1_217, %c0_218], %257 {strides = array<i32>} : memref<1x10x10x8xf32, #tpu.memory_space<vmem>>, vector<1x8x8x4xf32>,
    %c0_219 = arith.constant 0 : index
    %c0_220 = arith.constant 0 : index
    %c0_221 = arith.constant 0 : index
    %c0_222 = arith.constant 0 : index
    %259 = vector.load %arg7[%c0_219, %c0_220, %c0_221, %c0_222] : memref<1x10x10x8xf32, #tpu.memory_space<vmem>>, vector<1x8x8x4xf32>
    %260 = vector.shape_cast %259 : vector<1x8x8x4xf32> to vector<64x4xf32>
    %c2_223 = arith.constant 2 : index
    %c0_224 = arith.constant 0 : index
    %c0_225 = arith.constant 0 : index
    %c0_226 = arith.constant 0 : index
    %261 = vector.load %arg2[%c2_223, %c0_224, %c0_225, %c0_226] : memref<4x9x8x8xf32, #tpu.memory_space<vmem>>, vector<1x1x4x8xf32>
    %262 = vector.shape_cast %261 : vector<1x1x4x8xf32> to vector<4x8xf32>
    %cst_227 = arith.constant dense<0.000000e+00> : vector<64x8xf32>
    %263 = tpu.matmul %260, %262, %cst_227 {dimension_numbers = #tpu.dot_dimension_numbers<[1], [0], [0], [1], [0, 0, 1, 1], [], []>} : vector<64x4xf32>, vector<4x8xf32>, vector<64x8xf32> -> vector<64x8xf32>
    %c0_228 = arith.constant 0 : index
    %c0_229 = arith.constant 0 : index
    %c1_230 = arith.constant 1 : index
    %c0_231 = arith.constant 0 : index
    %264 = vector.load %arg7[%c0_228, %c0_229, %c1_230, %c0_231] : memref<1x10x10x8xf32, #tpu.memory_space<vmem>>, vector<1x8x8x4xf32>
    %265 = vector.shape_cast %264 : vector<1x8x8x4xf32> to vector<64x4xf32>
    %c2_232 = arith.constant 2 : index
    %c1_233 = arith.constant 1 : index
    %c0_234 = arith.constant 0 : index
    %c0_235 = arith.constant 0 : index
    %266 = vector.load %arg2[%c2_232, %c1_233, %c0_234, %c0_235] : memref<4x9x8x8xf32, #tpu.memory_space<vmem>>, vector<1x1x4x8xf32>
    %267 = vector.shape_cast %266 : vector<1x1x4x8xf32> to vector<4x8xf32>
    %cst_236 = arith.constant dense<0.000000e+00> : vector<64x8xf32>
    %268 = tpu.matmul %265, %267, %cst_236 {dimension_numbers = #tpu.dot_dimension_numbers<[1], [0], [0], [1], [0, 0, 1, 1], [], []>} : vector<64x4xf32>, vector<4x8xf32>, vector<64x8xf32> -> vector<64x8xf32>
    %269 = arith.addf %263, %268 : vector<64x8xf32>
    %c0_237 = arith.constant 0 : index
    %c0_238 = arith.constant 0 : index
    %c2_239 = arith.constant 2 : index
    %c0_240 = arith.constant 0 : index
    %270 = vector.load %arg7[%c0_237, %c0_238, %c2_239, %c0_240] : memref<1x10x10x8xf32, #tpu.memory_space<vmem>>, vector<1x8x8x4xf32>
    %271 = vector.shape_cast %270 : vector<1x8x8x4xf32> to vector<64x4xf32>
    %c2_241 = arith.constant 2 : index
    %c2_242 = arith.constant 2 : index
    %c0_243 = arith.constant 0 : index
    %c0_244 = arith.constant 0 : index
    %272 = vector.load %arg2[%c2_241, %c2_242, %c0_243, %c0_244] : memref<4x9x8x8xf32, #tpu.memory_space<vmem>>, vector<1x1x4x8xf32>
    %273 = vector.shape_cast %272 : vector<1x1x4x8xf32> to vector<4x8xf32>
    %cst_245 = arith.constant dense<0.000000e+00> : vector<64x8xf32>
    %274 = tpu.matmul %271, %273, %cst_245 {dimension_numbers = #tpu.dot_dimension_numbers<[1], [0], [0], [1], [0, 0, 1, 1], [], []>} : vector<64x4xf32>, vector<4x8xf32>, vector<64x8xf32> -> vector<64x8xf32>
    %275 = arith.addf %269, %274 : vector<64x8xf32>
    %c0_246 = arith.constant 0 : index
    %c1_247 = arith.constant 1 : index
    %c0_248 = arith.constant 0 : index
    %c0_249 = arith.constant 0 : index
    %276 = vector.load %arg7[%c0_246, %c1_247, %c0_248, %c0_249] : memref<1x10x10x8xf32, #tpu.memory_space<vmem>>, vector<1x8x8x4xf32>
    %277 = vector.shape_cast %276 : vector<1x8x8x4xf32> to vector<64x4xf32>
    %c2_250 = arith.constant 2 : index
    %c3_251 = arith.constant 3 : index
    %c0_252 = arith.constant 0 : index
    %c0_253 = arith.constant 0 : index
    %278 = vector.load %arg2[%c2_250, %c3_251, %c0_252, %c0_253] : memref<4x9x8x8xf32, #tpu.memory_space<vmem>>, vector<1x1x4x8xf32>
    %279 = vector.shape_cast %278 : vector<1x1x4x8xf32> to vector<4x8xf32>
    %cst_254 = arith.constant dense<0.000000e+00> : vector<64x8xf32>
    %280 = tpu.matmul %277, %279, %cst_254 {dimension_numbers = #tpu.dot_dimension_numbers<[1], [0], [0], [1], [0, 0, 1, 1], [], []>} : vector<64x4xf32>, vector<4x8xf32>, vector<64x8xf32> -> vector<64x8xf32>
    %281 = arith.addf %275, %280 : vector<64x8xf32>
    %c0_255 = arith.constant 0 : index
    %c1_256 = arith.constant 1 : index
    %c1_257 = arith.constant 1 : index
    %c0_258 = arith.constant 0 : index
    %282 = vector.load %arg7[%c0_255, %c1_256, %c1_257, %c0_258] : memref<1x10x10x8xf32, #tpu.memory_space<vmem>>, vector<1x8x8x4xf32>
    %283 = vector.shape_cast %282 : vector<1x8x8x4xf32> to vector<64x4xf32>
    %c2_259 = arith.constant 2 : index
    %c4_260 = arith.constant 4 : index
    %c0_261 = arith.constant 0 : index
    %c0_262 = arith.constant 0 : index
    %284 = vector.load %arg2[%c2_259, %c4_260, %c0_261, %c0_262] : memref<4x9x8x8xf32, #tpu.memory_space<vmem>>, vector<1x1x4x8xf32>
    %285 = vector.shape_cast %284 : vector<1x1x4x8xf32> to vector<4x8xf32>
    %cst_263 = arith.constant dense<0.000000e+00> : vector<64x8xf32>
    %286 = tpu.matmul %283, %285, %cst_263 {dimension_numbers = #tpu.dot_dimension_numbers<[1], [0], [0], [1], [0, 0, 1, 1], [], []>} : vector<64x4xf32>, vector<4x8xf32>, vector<64x8xf32> -> vector<64x8xf32>
    %287 = arith.addf %281, %286 : vector<64x8xf32>
    %c0_264 = arith.constant 0 : index
    %c1_265 = arith.constant 1 : index
    %c2_266 = arith.constant 2 : index
    %c0_267 = arith.constant 0 : index
    %288 = vector.load %arg7[%c0_264, %c1_265, %c2_266, %c0_267] : memref<1x10x10x8xf32, #tpu.memory_space<vmem>>, vector<1x8x8x4xf32>
    %289 = vector.shape_cast %288 : vector<1x8x8x4xf32> to vector<64x4xf32>
    %c2_268 = arith.constant 2 : index
    %c5_269 = arith.constant 5 : index
    %c0_270 = arith.constant 0 : index
    %c0_271 = arith.constant 0 : index
    %290 = vector.load %arg2[%c2_268, %c5_269, %c0_270, %c0_271] : memref<4x9x8x8xf32, #tpu.memory_space<vmem>>, vector<1x1x4x8xf32>
    %291 = vector.shape_cast %290 : vector<1x1x4x8xf32> to vector<4x8xf32>
    %cst_272 = arith.constant dense<0.000000e+00> : vector<64x8xf32>
    %292 = tpu.matmul %289, %291, %cst_272 {dimension_numbers = #tpu.dot_dimension_numbers<[1], [0], [0], [1], [0, 0, 1, 1], [], []>} : vector<64x4xf32>, vector<4x8xf32>, vector<64x8xf32> -> vector<64x8xf32>
    %293 = arith.addf %287, %292 : vector<64x8xf32>
    %c0_273 = arith.constant 0 : index
    %c2_274 = arith.constant 2 : index
    %c0_275 = arith.constant 0 : index
    %c0_276 = arith.constant 0 : index
    %294 = vector.load %arg7[%c0_273, %c2_274, %c0_275, %c0_276] : memref<1x10x10x8xf32, #tpu.memory_space<vmem>>, vector<1x8x8x4xf32>
    %295 = vector.shape_cast %294 : vector<1x8x8x4xf32> to vector<64x4xf32>
    %c2_277 = arith.constant 2 : index
    %c6_278 = arith.constant 6 : index
    %c0_279 = arith.constant 0 : index
    %c0_280 = arith.constant 0 : index
    %296 = vector.load %arg2[%c2_277, %c6_278, %c0_279, %c0_280] : memref<4x9x8x8xf32, #tpu.memory_space<vmem>>, vector<1x1x4x8xf32>
    %297 = vector.shape_cast %296 : vector<1x1x4x8xf32> to vector<4x8xf32>
    %cst_281 = arith.constant dense<0.000000e+00> : vector<64x8xf32>
    %298 = tpu.matmul %295, %297, %cst_281 {dimension_numbers = #tpu.dot_dimension_numbers<[1], [0], [0], [1], [0, 0, 1, 1], [], []>} : vector<64x4xf32>, vector<4x8xf32>, vector<64x8xf32> -> vector<64x8xf32>
    %299 = arith.addf %293, %298 : vector<64x8xf32>
    %c0_282 = arith.constant 0 : index
    %c2_283 = arith.constant 2 : index
    %c1_284 = arith.constant 1 : index
    %c0_285 = arith.constant 0 : index
    %300 = vector.load %arg7[%c0_282, %c2_283, %c1_284, %c0_285] : memref<1x10x10x8xf32, #tpu.memory_space<vmem>>, vector<1x8x8x4xf32>
    %301 = vector.shape_cast %300 : vector<1x8x8x4xf32> to vector<64x4xf32>
    %c2_286 = arith.constant 2 : index
    %c7_287 = arith.constant 7 : index
    %c0_288 = arith.constant 0 : index
    %c0_289 = arith.constant 0 : index
    %302 = vector.load %arg2[%c2_286, %c7_287, %c0_288, %c0_289] : memref<4x9x8x8xf32, #tpu.memory_space<vmem>>, vector<1x1x4x8xf32>
    %303 = vector.shape_cast %302 : vector<1x1x4x8xf32> to vector<4x8xf32>
    %cst_290 = arith.constant dense<0.000000e+00> : vector<64x8xf32>
    %304 = tpu.matmul %301, %303, %cst_290 {dimension_numbers = #tpu.dot_dimension_numbers<[1], [0], [0], [1], [0, 0, 1, 1], [], []>} : vector<64x4xf32>, vector<4x8xf32>, vector<64x8xf32> -> vector<64x8xf32>
    %305 = arith.addf %299, %304 : vector<64x8xf32>
    %c0_291 = arith.constant 0 : index
    %c2_292 = arith.constant 2 : index
    %c2_293 = arith.constant 2 : index
    %c0_294 = arith.constant 0 : index
    %306 = vector.load %arg7[%c0_291, %c2_292, %c2_293, %c0_294] : memref<1x10x10x8xf32, #tpu.memory_space<vmem>>, vector<1x8x8x4xf32>
    %307 = vector.shape_cast %306 : vector<1x8x8x4xf32> to vector<64x4xf32>
    %c2_295 = arith.constant 2 : index
    %c8_296 = arith.constant 8 : index
    %c0_297 = arith.constant 0 : index
    %c0_298 = arith.constant 0 : index
    %308 = vector.load %arg2[%c2_295, %c8_296, %c0_297, %c0_298] : memref<4x9x8x8xf32, #tpu.memory_space<vmem>>, vector<1x1x4x8xf32>
    %309 = vector.shape_cast %308 : vector<1x1x4x8xf32> to vector<4x8xf32>
    %cst_299 = arith.constant dense<0.000000e+00> : vector<64x8xf32>
    %310 = tpu.matmul %307, %309, %cst_299 {dimension_numbers = #tpu.dot_dimension_numbers<[1], [0], [0], [1], [0, 0, 1, 1], [], []>} : vector<64x4xf32>, vector<4x8xf32>, vector<64x8xf32> -> vector<64x8xf32>
    %311 = arith.addf %305, %310 : vector<64x8xf32>
    %c4_300 = arith.constant 4 : index
    %c0_301 = arith.constant 0 : index
    %312 = vector.load %arg3[%c4_300, %c0_301] : memref<8x8xf32, #tpu.memory_space<vmem>>, vector<1x8xf32>
    %c5_302 = arith.constant 5 : index
    %c0_303 = arith.constant 0 : index
    %313 = vector.load %arg3[%c5_302, %c0_303] : memref<8x8xf32, #tpu.memory_space<vmem>>, vector<1x8xf32>
    %314 = vector.shape_cast %311 : vector<64x8xf32> to vector<1x64x8xf32>
    %cst_304 = arith.constant dense<0.000000e+00> : vector<1xf32>
    %315 = vector.multi_reduction <add>, %314, %cst_304 [1, 2] : vector<1x64x8xf32> to vector<1xf32>
    %316 = vector.shape_cast %315 : vector<1xf32> to vector<1x1x1xf32>
    %317 = arith.mulf %314, %314 : vector<1x64x8xf32>
    %cst_305 = arith.constant dense<0.000000e+00> : vector<1xf32>
    %318 = vector.multi_reduction <add>, %317, %cst_305 [1, 2] : vector<1x64x8xf32> to vector<1xf32>
    %319 = vector.shape_cast %318 : vector<1xf32> to vector<1x1x1xf32>
    %cst_306 = arith.constant 0.001953125 : f32
    %320 = vector.broadcast %cst_306 : f32 to vector<1x1x1xf32>
    %321 = arith.mulf %316, %320 : vector<1x1x1xf32>
    %cst_307 = arith.constant 0.001953125 : f32
    %322 = vector.broadcast %cst_307 : f32 to vector<1x1x1xf32>
    %323 = arith.mulf %319, %322 : vector<1x1x1xf32>
    %324 = arith.mulf %321, %321 : vector<1x1x1xf32>
    %325 = arith.subf %323, %324 : vector<1x1x1xf32>
    %326 = vector.broadcast %321 : vector<1x1x1xf32> to vector<1x64x8xf32>
    %327 = arith.subf %314, %326 : vector<1x64x8xf32>
    %cst_308 = arith.constant 9.99999974E-6 : f32
    %328 = vector.broadcast %cst_308 : f32 to vector<1x1x1xf32>
    %329 = arith.addf %325, %328 : vector<1x1x1xf32>
    %330 = math.rsqrt %329 : vector<1x1x1xf32>
    %331 = vector.broadcast %330 : vector<1x1x1xf32> to vector<1x64x8xf32>
    %332 = arith.mulf %327, %331 : vector<1x64x8xf32>
    %333 = vector.shape_cast %312 : vector<1x8xf32> to vector<1x1x8xf32>
    %334 = vector.broadcast %333 : vector<1x1x8xf32> to vector<1x64x8xf32>
    %335 = arith.mulf %332, %334 : vector<1x64x8xf32>
    %336 = vector.shape_cast %313 : vector<1x8xf32> to vector<1x1x8xf32>
    %337 = vector.broadcast %336 : vector<1x1x8xf32> to vector<1x64x8xf32>
    %338 = arith.addf %335, %337 : vector<1x64x8xf32>
    %cst_309 = arith.constant 5.000000e-01 : f32
    %339 = vector.broadcast %cst_309 : f32 to vector<1x64x8xf32>
    %340 = arith.mulf %339, %338 : vector<1x64x8xf32>
    %cst_310 = arith.constant 0.707106769 : f32
    %341 = vector.broadcast %cst_310 : f32 to vector<1x64x8xf32>
    %342 = arith.mulf %338, %341 : vector<1x64x8xf32>
    %343 = math.absf %342 : vector<1x64x8xf32>
    %cst_311 = arith.constant 0.327591091 : f32
    %344 = vector.broadcast %cst_311 : f32 to vector<1x64x8xf32>
    %345 = arith.mulf %344, %343 : vector<1x64x8xf32>
    %cst_312 = arith.constant 1.000000e+00 : f32
    %346 = vector.broadcast %cst_312 : f32 to vector<1x64x8xf32>
    %347 = arith.addf %346, %345 : vector<1x64x8xf32>
    %348 = tpu.reciprocal %347 {approx = true} : vector<1x64x8xf32> -> vector<1x64x8xf32>
    %cst_313 = arith.constant 1.06140542 : f32
    %349 = vector.broadcast %cst_313 : f32 to vector<1x64x8xf32>
    %350 = arith.mulf %349, %348 : vector<1x64x8xf32>
    %cst_314 = arith.constant -1.45315206 : f32
    %351 = vector.broadcast %cst_314 : f32 to vector<1x64x8xf32>
    %352 = arith.addf %350, %351 : vector<1x64x8xf32>
    %353 = arith.mulf %352, %348 : vector<1x64x8xf32>
    %cst_315 = arith.constant 1.42141378 : f32
    %354 = vector.broadcast %cst_315 : f32 to vector<1x64x8xf32>
    %355 = arith.addf %353, %354 : vector<1x64x8xf32>
    %356 = arith.mulf %355, %348 : vector<1x64x8xf32>
    %cst_316 = arith.constant -0.284496725 : f32
    %357 = vector.broadcast %cst_316 : f32 to vector<1x64x8xf32>
    %358 = arith.addf %356, %357 : vector<1x64x8xf32>
    %359 = arith.mulf %358, %348 : vector<1x64x8xf32>
    %cst_317 = arith.constant 0.254829586 : f32
    %360 = vector.broadcast %cst_317 : f32 to vector<1x64x8xf32>
    %361 = arith.addf %359, %360 : vector<1x64x8xf32>
    %362 = arith.mulf %361, %348 : vector<1x64x8xf32>
    %cst_318 = arith.constant 0.000000e+00 : f32
    %363 = vector.broadcast %cst_318 : f32 to vector<1x64x8xf32>
    %364 = arith.subf %363, %343 : vector<1x64x8xf32>
    %365 = arith.mulf %364, %343 : vector<1x64x8xf32>
    %366 = math.exp %365 : vector<1x64x8xf32>
    %367 = arith.mulf %362, %366 : vector<1x64x8xf32>
    %cst_319 = arith.constant 1.000000e+00 : f32
    %368 = vector.broadcast %cst_319 : f32 to vector<1x64x8xf32>
    %369 = arith.subf %368, %367 : vector<1x64x8xf32>
    %cst_320 = arith.constant 0.000000e+00 : f32
    %370 = vector.broadcast %cst_320 : f32 to vector<1x64x8xf32>
    %371 = arith.cmpf oge, %342, %370 : vector<1x64x8xf32>
    %cst_321 = arith.constant 0.000000e+00 : f32
    %372 = vector.broadcast %cst_321 : f32 to vector<1x64x8xf32>
    %373 = arith.subf %372, %369 : vector<1x64x8xf32>
    %374 = arith.select %371, %369, %373 : vector<1x64x8xi1>, vector<1x64x8xf32>
    %cst_322 = arith.constant 1.000000e+00 : f32
    %375 = vector.broadcast %cst_322 : f32 to vector<1x64x8xf32>
    %376 = arith.addf %375, %374 : vector<1x64x8xf32>
    %377 = arith.mulf %340, %376 : vector<1x64x8xf32>
    %378 = vector.shape_cast %377 : vector<1x64x8xf32> to vector<64x8xf32>
    %379 = vector.shape_cast %378 : vector<64x8xf32> to vector<1x8x8x8xf32>
    %c0_323 = arith.constant 0 : index
    %c1_324 = arith.constant 1 : index
    %c1_325 = arith.constant 1 : index
    %c0_326 = arith.constant 0 : index
    %380 = vector.load %arg7[%c0_323, %c1_324, %c1_325, %c0_326] : memref<1x10x10x8xf32, #tpu.memory_space<vmem>>, vector<1x8x8x8xf32>
    tpu.vector_store %arg7[%c0_323, %c1_324, %c1_325, %c0_326], %379 {strides = array<i32>} : memref<1x10x10x8xf32, #tpu.memory_space<vmem>>, vector<1x8x8x8xf32>,
    %c0_327 = arith.constant 0 : index
    %c0_328 = arith.constant 0 : index
    %c0_329 = arith.constant 0 : index
    %c0_330 = arith.constant 0 : index
    %381 = vector.load %arg7[%c0_327, %c0_328, %c0_329, %c0_330] : memref<1x10x10x8xf32, #tpu.memory_space<vmem>>, vector<1x8x8x8xf32>
    %382 = vector.shape_cast %381 : vector<1x8x8x8xf32> to vector<64x8xf32>
    %c3_331 = arith.constant 3 : index
    %c0_332 = arith.constant 0 : index
    %c0_333 = arith.constant 0 : index
    %c0_334 = arith.constant 0 : index
    %383 = vector.load %arg2[%c3_331, %c0_332, %c0_333, %c0_334] : memref<4x9x8x8xf32, #tpu.memory_space<vmem>>, vector<1x1x8x4xf32>
    %384 = vector.shape_cast %383 : vector<1x1x8x4xf32> to vector<8x4xf32>
    %cst_335 = arith.constant dense<0.000000e+00> : vector<64x4xf32>
    %385 = tpu.matmul %382, %384, %cst_335 {dimension_numbers = #tpu.dot_dimension_numbers<[1], [0], [0], [1], [0, 0, 1, 1], [], []>} : vector<64x8xf32>, vector<8x4xf32>, vector<64x4xf32> -> vector<64x4xf32>
    %c0_336 = arith.constant 0 : index
    %c0_337 = arith.constant 0 : index
    %c1_338 = arith.constant 1 : index
    %c0_339 = arith.constant 0 : index
    %386 = vector.load %arg7[%c0_336, %c0_337, %c1_338, %c0_339] : memref<1x10x10x8xf32, #tpu.memory_space<vmem>>, vector<1x8x8x8xf32>
    %387 = vector.shape_cast %386 : vector<1x8x8x8xf32> to vector<64x8xf32>
    %c3_340 = arith.constant 3 : index
    %c1_341 = arith.constant 1 : index
    %c0_342 = arith.constant 0 : index
    %c0_343 = arith.constant 0 : index
    %388 = vector.load %arg2[%c3_340, %c1_341, %c0_342, %c0_343] : memref<4x9x8x8xf32, #tpu.memory_space<vmem>>, vector<1x1x8x4xf32>
    %389 = vector.shape_cast %388 : vector<1x1x8x4xf32> to vector<8x4xf32>
    %cst_344 = arith.constant dense<0.000000e+00> : vector<64x4xf32>
    %390 = tpu.matmul %387, %389, %cst_344 {dimension_numbers = #tpu.dot_dimension_numbers<[1], [0], [0], [1], [0, 0, 1, 1], [], []>} : vector<64x8xf32>, vector<8x4xf32>, vector<64x4xf32> -> vector<64x4xf32>
    %391 = arith.addf %385, %390 : vector<64x4xf32>
    %c0_345 = arith.constant 0 : index
    %c0_346 = arith.constant 0 : index
    %c2_347 = arith.constant 2 : index
    %c0_348 = arith.constant 0 : index
    %392 = vector.load %arg7[%c0_345, %c0_346, %c2_347, %c0_348] : memref<1x10x10x8xf32, #tpu.memory_space<vmem>>, vector<1x8x8x8xf32>
    %393 = vector.shape_cast %392 : vector<1x8x8x8xf32> to vector<64x8xf32>
    %c3_349 = arith.constant 3 : index
    %c2_350 = arith.constant 2 : index
    %c0_351 = arith.constant 0 : index
    %c0_352 = arith.constant 0 : index
    %394 = vector.load %arg2[%c3_349, %c2_350, %c0_351, %c0_352] : memref<4x9x8x8xf32, #tpu.memory_space<vmem>>, vector<1x1x8x4xf32>
    %395 = vector.shape_cast %394 : vector<1x1x8x4xf32> to vector<8x4xf32>
    %cst_353 = arith.constant dense<0.000000e+00> : vector<64x4xf32>
    %396 = tpu.matmul %393, %395, %cst_353 {dimension_numbers = #tpu.dot_dimension_numbers<[1], [0], [0], [1], [0, 0, 1, 1], [], []>} : vector<64x8xf32>, vector<8x4xf32>, vector<64x4xf32> -> vector<64x4xf32>
    %397 = arith.addf %391, %396 : vector<64x4xf32>
    %c0_354 = arith.constant 0 : index
    %c1_355 = arith.constant 1 : index
    %c0_356 = arith.constant 0 : index
    %c0_357 = arith.constant 0 : index
    %398 = vector.load %arg7[%c0_354, %c1_355, %c0_356, %c0_357] : memref<1x10x10x8xf32, #tpu.memory_space<vmem>>, vector<1x8x8x8xf32>
    %399 = vector.shape_cast %398 : vector<1x8x8x8xf32> to vector<64x8xf32>
    %c3_358 = arith.constant 3 : index
    %c3_359 = arith.constant 3 : index
    %c0_360 = arith.constant 0 : index
    %c0_361 = arith.constant 0 : index
    %400 = vector.load %arg2[%c3_358, %c3_359, %c0_360, %c0_361] : memref<4x9x8x8xf32, #tpu.memory_space<vmem>>, vector<1x1x8x4xf32>
    %401 = vector.shape_cast %400 : vector<1x1x8x4xf32> to vector<8x4xf32>
    %cst_362 = arith.constant dense<0.000000e+00> : vector<64x4xf32>
    %402 = tpu.matmul %399, %401, %cst_362 {dimension_numbers = #tpu.dot_dimension_numbers<[1], [0], [0], [1], [0, 0, 1, 1], [], []>} : vector<64x8xf32>, vector<8x4xf32>, vector<64x4xf32> -> vector<64x4xf32>
    %403 = arith.addf %397, %402 : vector<64x4xf32>
    %c0_363 = arith.constant 0 : index
    %c1_364 = arith.constant 1 : index
    %c1_365 = arith.constant 1 : index
    %c0_366 = arith.constant 0 : index
    %404 = vector.load %arg7[%c0_363, %c1_364, %c1_365, %c0_366] : memref<1x10x10x8xf32, #tpu.memory_space<vmem>>, vector<1x8x8x8xf32>
    %405 = vector.shape_cast %404 : vector<1x8x8x8xf32> to vector<64x8xf32>
    %c3_367 = arith.constant 3 : index
    %c4_368 = arith.constant 4 : index
    %c0_369 = arith.constant 0 : index
    %c0_370 = arith.constant 0 : index
    %406 = vector.load %arg2[%c3_367, %c4_368, %c0_369, %c0_370] : memref<4x9x8x8xf32, #tpu.memory_space<vmem>>, vector<1x1x8x4xf32>
    %407 = vector.shape_cast %406 : vector<1x1x8x4xf32> to vector<8x4xf32>
    %cst_371 = arith.constant dense<0.000000e+00> : vector<64x4xf32>
    %408 = tpu.matmul %405, %407, %cst_371 {dimension_numbers = #tpu.dot_dimension_numbers<[1], [0], [0], [1], [0, 0, 1, 1], [], []>} : vector<64x8xf32>, vector<8x4xf32>, vector<64x4xf32> -> vector<64x4xf32>
    %409 = arith.addf %403, %408 : vector<64x4xf32>
    %c0_372 = arith.constant 0 : index
    %c1_373 = arith.constant 1 : index
    %c2_374 = arith.constant 2 : index
    %c0_375 = arith.constant 0 : index
    %410 = vector.load %arg7[%c0_372, %c1_373, %c2_374, %c0_375] : memref<1x10x10x8xf32, #tpu.memory_space<vmem>>, vector<1x8x8x8xf32>
    %411 = vector.shape_cast %410 : vector<1x8x8x8xf32> to vector<64x8xf32>
    %c3_376 = arith.constant 3 : index
    %c5_377 = arith.constant 5 : index
    %c0_378 = arith.constant 0 : index
    %c0_379 = arith.constant 0 : index
    %412 = vector.load %arg2[%c3_376, %c5_377, %c0_378, %c0_379] : memref<4x9x8x8xf32, #tpu.memory_space<vmem>>, vector<1x1x8x4xf32>
    %413 = vector.shape_cast %412 : vector<1x1x8x4xf32> to vector<8x4xf32>
    %cst_380 = arith.constant dense<0.000000e+00> : vector<64x4xf32>
    %414 = tpu.matmul %411, %413, %cst_380 {dimension_numbers = #tpu.dot_dimension_numbers<[1], [0], [0], [1], [0, 0, 1, 1], [], []>} : vector<64x8xf32>, vector<8x4xf32>, vector<64x4xf32> -> vector<64x4xf32>
    %415 = arith.addf %409, %414 : vector<64x4xf32>
    %c0_381 = arith.constant 0 : index
    %c2_382 = arith.constant 2 : index
    %c0_383 = arith.constant 0 : index
    %c0_384 = arith.constant 0 : index
    %416 = vector.load %arg7[%c0_381, %c2_382, %c0_383, %c0_384] : memref<1x10x10x8xf32, #tpu.memory_space<vmem>>, vector<1x8x8x8xf32>
    %417 = vector.shape_cast %416 : vector<1x8x8x8xf32> to vector<64x8xf32>
    %c3_385 = arith.constant 3 : index
    %c6_386 = arith.constant 6 : index
    %c0_387 = arith.constant 0 : index
    %c0_388 = arith.constant 0 : index
    %418 = vector.load %arg2[%c3_385, %c6_386, %c0_387, %c0_388] : memref<4x9x8x8xf32, #tpu.memory_space<vmem>>, vector<1x1x8x4xf32>
    %419 = vector.shape_cast %418 : vector<1x1x8x4xf32> to vector<8x4xf32>
    %cst_389 = arith.constant dense<0.000000e+00> : vector<64x4xf32>
    %420 = tpu.matmul %417, %419, %cst_389 {dimension_numbers = #tpu.dot_dimension_numbers<[1], [0], [0], [1], [0, 0, 1, 1], [], []>} : vector<64x8xf32>, vector<8x4xf32>, vector<64x4xf32> -> vector<64x4xf32>
    %421 = arith.addf %415, %420 : vector<64x4xf32>
    %c0_390 = arith.constant 0 : index
    %c2_391 = arith.constant 2 : index
    %c1_392 = arith.constant 1 : index
    %c0_393 = arith.constant 0 : index
    %422 = vector.load %arg7[%c0_390, %c2_391, %c1_392, %c0_393] : memref<1x10x10x8xf32, #tpu.memory_space<vmem>>, vector<1x8x8x8xf32>
    %423 = vector.shape_cast %422 : vector<1x8x8x8xf32> to vector<64x8xf32>
    %c3_394 = arith.constant 3 : index
    %c7_395 = arith.constant 7 : index
    %c0_396 = arith.constant 0 : index
    %c0_397 = arith.constant 0 : index
    %424 = vector.load %arg2[%c3_394, %c7_395, %c0_396, %c0_397] : memref<4x9x8x8xf32, #tpu.memory_space<vmem>>, vector<1x1x8x4xf32>
    %425 = vector.shape_cast %424 : vector<1x1x8x4xf32> to vector<8x4xf32>
    %cst_398 = arith.constant dense<0.000000e+00> : vector<64x4xf32>
    %426 = tpu.matmul %423, %425, %cst_398 {dimension_numbers = #tpu.dot_dimension_numbers<[1], [0], [0], [1], [0, 0, 1, 1], [], []>} : vector<64x8xf32>, vector<8x4xf32>, vector<64x4xf32> -> vector<64x4xf32>
    %427 = arith.addf %421, %426 : vector<64x4xf32>
    %c0_399 = arith.constant 0 : index
    %c2_400 = arith.constant 2 : index
    %c2_401 = arith.constant 2 : index
    %c0_402 = arith.constant 0 : index
    %428 = vector.load %arg7[%c0_399, %c2_400, %c2_401, %c0_402] : memref<1x10x10x8xf32, #tpu.memory_space<vmem>>, vector<1x8x8x8xf32>
    %429 = vector.shape_cast %428 : vector<1x8x8x8xf32> to vector<64x8xf32>
    %c3_403 = arith.constant 3 : index
    %c8_404 = arith.constant 8 : index
    %c0_405 = arith.constant 0 : index
    %c0_406 = arith.constant 0 : index
    %430 = vector.load %arg2[%c3_403, %c8_404, %c0_405, %c0_406] : memref<4x9x8x8xf32, #tpu.memory_space<vmem>>, vector<1x1x8x4xf32>
    %431 = vector.shape_cast %430 : vector<1x1x8x4xf32> to vector<8x4xf32>
    %cst_407 = arith.constant dense<0.000000e+00> : vector<64x4xf32>
    %432 = tpu.matmul %429, %431, %cst_407 {dimension_numbers = #tpu.dot_dimension_numbers<[1], [0], [0], [1], [0, 0, 1, 1], [], []>} : vector<64x8xf32>, vector<8x4xf32>, vector<64x4xf32> -> vector<64x4xf32>
    %433 = arith.addf %427, %432 : vector<64x4xf32>
    %c6_408 = arith.constant 6 : index
    %c0_409 = arith.constant 0 : index
    %434 = vector.load %arg3[%c6_408, %c0_409] : memref<8x8xf32, #tpu.memory_space<vmem>>, vector<1x4xf32>
    %c7_410 = arith.constant 7 : index
    %c0_411 = arith.constant 0 : index
    %435 = vector.load %arg3[%c7_410, %c0_411] : memref<8x8xf32, #tpu.memory_space<vmem>>, vector<1x4xf32>
    %436 = vector.shape_cast %433 : vector<64x4xf32> to vector<1x64x4xf32>
    %cst_412 = arith.constant dense<0.000000e+00> : vector<1xf32>
    %437 = vector.multi_reduction <add>, %436, %cst_412 [1, 2] : vector<1x64x4xf32> to vector<1xf32>
    %438 = vector.shape_cast %437 : vector<1xf32> to vector<1x1x1xf32>
    %439 = arith.mulf %436, %436 : vector<1x64x4xf32>
    %cst_413 = arith.constant dense<0.000000e+00> : vector<1xf32>
    %440 = vector.multi_reduction <add>, %439, %cst_413 [1, 2] : vector<1x64x4xf32> to vector<1xf32>
    %441 = vector.shape_cast %440 : vector<1xf32> to vector<1x1x1xf32>
    %cst_414 = arith.constant 3.906250e-03 : f32
    %442 = vector.broadcast %cst_414 : f32 to vector<1x1x1xf32>
    %443 = arith.mulf %438, %442 : vector<1x1x1xf32>
    %cst_415 = arith.constant 3.906250e-03 : f32
    %444 = vector.broadcast %cst_415 : f32 to vector<1x1x1xf32>
    %445 = arith.mulf %441, %444 : vector<1x1x1xf32>
    %446 = arith.mulf %443, %443 : vector<1x1x1xf32>
    %447 = arith.subf %445, %446 : vector<1x1x1xf32>
    %448 = vector.broadcast %443 : vector<1x1x1xf32> to vector<1x64x4xf32>
    %449 = arith.subf %436, %448 : vector<1x64x4xf32>
    %cst_416 = arith.constant 9.99999974E-6 : f32
    %450 = vector.broadcast %cst_416 : f32 to vector<1x1x1xf32>
    %451 = arith.addf %447, %450 : vector<1x1x1xf32>
    %452 = math.rsqrt %451 : vector<1x1x1xf32>
    %453 = vector.broadcast %452 : vector<1x1x1xf32> to vector<1x64x4xf32>
    %454 = arith.mulf %449, %453 : vector<1x64x4xf32>
    %455 = vector.shape_cast %434 : vector<1x4xf32> to vector<1x1x4xf32>
    %456 = vector.broadcast %455 : vector<1x1x4xf32> to vector<1x64x4xf32>
    %457 = arith.mulf %454, %456 : vector<1x64x4xf32>
    %458 = vector.shape_cast %435 : vector<1x4xf32> to vector<1x1x4xf32>
    %459 = vector.broadcast %458 : vector<1x1x4xf32> to vector<1x64x4xf32>
    %460 = arith.addf %457, %459 : vector<1x64x4xf32>
    %461 = vector.shape_cast %460 : vector<1x64x4xf32> to vector<64x4xf32>
    %c0_417 = arith.constant 0 : index
    %c0_418 = arith.constant 0 : index
    %462 = vector.load %arg5[%c0_417, %c0_418] : memref<2x8xf32, #tpu.memory_space<vmem>>, vector<1x8xf32>
    %463 = arith.negf %462 : vector<1x8xf32>
    %464 = math.exp %463 : vector<1x8xf32>
    %cst_419 = arith.constant 1.000000e+00 : f32
    %465 = vector.broadcast %cst_419 : f32 to vector<1x8xf32>
    %466 = arith.addf %465, %464 : vector<1x8xf32>
    %467 = arith.divf %465, %466 : vector<1x8xf32>
    %468 = arith.mulf %462, %467 : vector<1x8xf32>
    %c0_420 = arith.constant 0 : index
    %c0_421 = arith.constant 0 : index
    %469 = vector.load %arg4[%c0_420, %c0_421] : memref<8x8xf32, #tpu.memory_space<vmem>>, vector<8x8xf32>
    %cst_422 = arith.constant dense<0.000000e+00> : vector<1x8xf32>
    %470 = tpu.matmul %468, %469, %cst_422 {dimension_numbers = #tpu.dot_dimension_numbers<[1], [0], [0], [1], [0, 0, 1, 1], [], []>} : vector<1x8xf32>, vector<8x8xf32>, vector<1x8xf32> -> vector<1x8xf32>
    %c1_423 = arith.constant 1 : index
    %c0_424 = arith.constant 0 : index
    %471 = vector.load %arg5[%c1_423, %c0_424] : memref<2x8xf32, #tpu.memory_space<vmem>>, vector<1x8xf32>
    %472 = arith.addf %470, %471 : vector<1x8xf32>
    %473 = vector.shape_cast %461 : vector<64x4xf32> to vector<1x8x8x4xf32>
    %474 = vector.shape_cast %472 : vector<1x8xf32> to vector<1x1x8x1xf32>
    %475 = vector.broadcast %474 : vector<1x1x8x1xf32> to vector<1x8x8x4xf32>
    %476 = arith.addf %473, %475 : vector<1x8x8x4xf32>
    %477 = vector.shape_cast %476 : vector<1x8x8x4xf32> to vector<64x4xf32>
    %cst_425 = arith.constant 0.000000e+00 : f32
    %478 = vector.broadcast %cst_425 : f32 to vector<64x4xf32>
    %479 = tpu.concatenate %477, %478 in 1 : vector<64x4xf32>, vector<64x4xf32> -> vector<64x8xf32>
    %480 = tpu.transpose %479, [1, 0] : vector<64x8xf32> -> vector<8x64xf32>
    %481 = vector.extract_strided_slice %480 {offsets = [0, 0], sizes = [4, 64], strides = [1, 1]} : vector<8x64xf32> to vector<4x64xf32>
    %c0_426 = arith.constant 0 : index
    %c0_427 = arith.constant 0 : index
    %c0_428 = arith.constant 0 : index
    %482 = vector.load %arg6[%c0_426, %c0_427, %c0_428] : memref<1x4x64xf32, #tpu.memory_space<vmem>>, vector<1x4x64xf32>
    %483 = vector.shape_cast %482 : vector<1x4x64xf32> to vector<4x64xf32>
    %484 = vector.shape_cast %481 : vector<4x64xf32> to vector<1x4x64xf32>
    tpu.vector_store %arg6[%c0_426, %c0_427, %c0_428], %484 {strides = array<i32>} : memref<1x4x64xf32, #tpu.memory_space<vmem>>, vector<1x4x64xf32>,
    return
  }
  func.func @transform_0(%arg0: i32) -> (i32, i32, i32, i32) {
    %c0_i32 = arith.constant 0 : i32
    %c0_i32_0 = arith.constant 0 : i32
    %c0_i32_1 = arith.constant 0 : i32
    %c0_i32_2 = arith.constant 0 : i32
    return %arg0, %c0_i32, %c0_i32_0, %c0_i32_1 : i32, i32, i32, i32
  }
  func.func @transform_1(%arg0: i32) -> (i32, i32, i32, i32) {
    %c0_i32 = arith.constant 0 : i32
    %c0_i32_0 = arith.constant 0 : i32
    %c0_i32_1 = arith.constant 0 : i32
    %c0_i32_2 = arith.constant 0 : i32
    %c0_i32_3 = arith.constant 0 : i32
    return %c0_i32, %c0_i32_0, %c0_i32_1, %c0_i32_2 : i32, i32, i32, i32
  }
  func.func @transform_2(%arg0: i32) -> (i32, i32) {
    %c0_i32 = arith.constant 0 : i32
    %c0_i32_0 = arith.constant 0 : i32
    %c0_i32_1 = arith.constant 0 : i32
    return %c0_i32, %c0_i32_0 : i32, i32
  }
  func.func @transform_3(%arg0: i32) -> (i32, i32) {
    %c0_i32 = arith.constant 0 : i32
    %c0_i32_0 = arith.constant 0 : i32
    %c0_i32_1 = arith.constant 0 : i32
    return %c0_i32, %c0_i32_0 : i32, i32
  }
  func.func @transform_4(%arg0: i32) -> (i32, i32) {
    %c0_i32 = arith.constant 0 : i32
    %c0_i32_0 = arith.constant 0 : i32
    %c0_i32_1 = arith.constant 0 : i32
    return %c0_i32, %c0_i32_0 : i32, i32
  }
  func.func @transform_5(%arg0: i32) -> (i32, i32, i32) {
    %c0_i32 = arith.constant 0 : i32
    %c0_i32_0 = arith.constant 0 : i32
    %c0_i32_1 = arith.constant 0 : i32
    return %arg0, %c0_i32, %c0_i32_0 : i32, i32, i32
  }
}

</mosaic_0001>

<llo_original>
// kernel: down_forward.1
$region0: #{down_forward.1}
  #allocation0 [shape = 'u32[]', space=smem, size = 0x4, offset = 0x4, fixed_abs, tag = 'smem constant byte address 0x4 - core index']
  #allocation1 [shape = 'u32[144,128]{1,0:T(1,128)}', space=vmem, size = 0x12000, scoped, tag = 'internal scratch']
  #allocation2 [shape = 'f32[1,10,10,8]{3,2,1,0:T(8,128)}', space=vmem, size = 0x14000, scoped, tag = 'scratch operand']
  %s0 = inlined_call_operand.vmem [shape: f32[2,16,8,8], index: 0, kind: input, shape index: {}]
  %s1 = inlined_call_operand.vmem [shape: f32[4,9,8,8], index: 1, kind: input, shape index: {}]
  %s2 = inlined_call_operand.vmem [shape: f32[8,8], index: 2, kind: input, shape index: {}]
  %s3 = inlined_call_operand.vmem [shape: f32[8,8], index: 3, kind: input, shape index: {}]
  %s4 = inlined_call_operand.vmem [shape: f32[2,8], index: 4, kind: input, shape index: {}]
  %s5 = inlined_call_operand.vmem [shape: f32[2,4,64], index: 5, kind: output, shape index: {}]
  %s6 = sld [smem:[#allocation0]]
  $region53: #{down_forward.1} parent=0
    _
  %s8 = ssub.s32 1, %s6
  %s9 = scalar_select 0, %s8, %s6
  loop: start=0, step=1, limit=4
  $region2: #{down_forward.1} parent=0 // loop_pre_header
    _
  $region3: #{down_forward.1} parent=0 // loop_header
    %s11 = sphi 0, %s15
    %p12 = scmp.ge.s32.totalorder %s11, 4
    %s21 = sphi 0, %s23
    %s24 = sphi 0, %s21
    %s25 = sphi 0, %s24
    %s41 = sphi 0, %s25
    %s45 = sphi 0, %s45
    %s47 = sphi 0, %s45
    %s48 = sphi 0, %s47
    %s62 = sphi 0, %s48
    %s66 = sphi 0, %s66
    %s68 = sphi 0, %s66
    %s69 = sphi 0, %s68
    %s83 = sphi 0, %s69
    %s87 = sphi 0, %s87
    %s89 = sphi 0, %s87
    %s90 = sphi 0, %s89
    %s104 = sphi 0, %s90
    %s108 = sphi 0, %s108
    %s110 = sphi 0, %s108
    %s111 = sphi 0, %s110
    %s125 = sphi 0, %s111
    %s131 = sphi 0, %s133
    %s134 = sphi 0, %s131
    %s135 = sphi 0, %s134
    %s151 = sphi 0, %s135
  $region4: #{down_forward.1} parent=0 // loop_header_branch
    %14 = sbr.rel (%p12) target = $region8
  $region5: #{down_forward.1} parent=0 // loop_body
    %s16 = ssub.s32 %s11, 1
    %s17 = ssub.s32 %s11, 2
    %s18 = sadd.s32 %s11, 1
    %s19 = ssub.s32 %s11, %s18
    %p20 = scmp.eq.s32.totalorder %s19, 0
    %s22 = sadd.s32 %s21, 1
    %s23 = scalar_select %p20, %s21, %s22
    %p26 = pneg %p20
    %p27 = scmp.eq.s32.totalorder %s11, 1
    %p28 = por %p26, %p27
    %p29 = scmp.ne.s32.totalorder %s21, %s24
    %p30 = scmp.eq.s32.totalorder %s11, 0
    %p31 = por %p29, %p30
    %p32 = scmp.ne.s32.totalorder %s21, %s24
    %p33 = scmp.eq.s32.totalorder %s16, 1
    %p34 = por %p32, %p33
    %p35 = scmp.ne.s32.totalorder %s24, %s25
    %p36 = scmp.eq.s32.totalorder %s16, 0
    %p37 = por %p35, %p36
    %p38 = scmp.ne.s32.totalorder %s24, %s25
    %p39 = scmp.eq.s32.totalorder %s17, 1
    %p40 = por %p38, %p39
    %p42 = scmp.ne.s32.totalorder %s25, %s41
    %p43 = scmp.eq.s32.totalorder %s17, 0
    %p44 = por %p42, %p43
    %s46 = sadd.s32 %s45, 1
    %p49 = scmp.eq.s32.totalorder %s11, 1
    %p50 = scmp.ne.s32.totalorder %s45, %s47
    %p51 = scmp.eq.s32.totalorder %s11, 0
    %p52 = por %p50, %p51
    %p53 = scmp.ne.s32.totalorder %s45, %s47
    %p54 = scmp.eq.s32.totalorder %s16, 1
    %p55 = por %p53, %p54
    %p56 = scmp.ne.s32.totalorder %s47, %s48
    %p57 = scmp.eq.s32.totalorder %s16, 0
    %p58 = por %p56, %p57
    %p59 = scmp.ne.s32.totalorder %s47, %s48
    %p60 = scmp.eq.s32.totalorder %s17, 1
    %p61 = por %p59, %p60
    %p63 = scmp.ne.s32.totalorder %s48, %s62
    %p64 = scmp.eq.s32.totalorder %s17, 0
    %p65 = por %p63, %p64
    %s67 = sadd.s32 %s66, 1
    %p70 = scmp.eq.s32.totalorder %s11, 1
    %p71 = scmp.ne.s32.totalorder %s66, %s68
    %p72 = scmp.eq.s32.totalorder %s11, 0
    %p73 = por %p71, %p72
    %p74 = scmp.ne.s32.totalorder %s66, %s68
    %p75 = scmp.eq.s32.totalorder %s16, 1
    %p76 = por %p74, %p75
    %p77 = scmp.ne.s32.totalorder %s68, %s69
    %p78 = scmp.eq.s32.totalorder %s16, 0
    %p79 = por %p77, %p78
    %p80 = scmp.ne.s32.totalorder %s68, %s69
    %p81 = scmp.eq.s32.totalorder %s17, 1
    %p82 = por %p80, %p81
    %p84 = scmp.ne.s32.totalorder %s69, %s83
    %p85 = scmp.eq.s32.totalorder %s17, 0
    %p86 = por %p84, %p85
    %s88 = sadd.s32 %s87, 1
    %p91 = scmp.eq.s32.totalorder %s11, 1
    %p92 = scmp.ne.s32.totalorder %s87, %s89
    %p93 = scmp.eq.s32.totalorder %s11, 0
    %p94 = por %p92, %p93
    %p95 = scmp.ne.s32.totalorder %s87, %s89
    %p96 = scmp.eq.s32.totalorder %s16, 1
    %p97 = por %p95, %p96
    %p98 = scmp.ne.s32.totalorder %s89, %s90
    %p99 = scmp.eq.s32.totalorder %s16, 0
    %p100 = por %p98, %p99
    %p101 = scmp.ne.s32.totalorder %s89, %s90
    %p102 = scmp.eq.s32.totalorder %s17, 1
    %p103 = por %p101, %p102
    %p105 = scmp.ne.s32.totalorder %s90, %s104
    %p106 = scmp.eq.s32.totalorder %s17, 0
    %p107 = por %p105, %p106
    %s109 = sadd.s32 %s108, 1
    %p112 = scmp.eq.s32.totalorder %s11, 1
    %p113 = scmp.ne.s32.totalorder %s108, %s110
    %p114 = scmp.eq.s32.totalorder %s11, 0
    %p115 = por %p113, %p114
    %p116 = scmp.ne.s32.totalorder %s108, %s110
    %p117 = scmp.eq.s32.totalorder %s16, 1
    %p118 = por %p116, %p117
    %p119 = scmp.ne.s32.totalorder %s110, %s111
    %p120 = scmp.eq.s32.totalorder %s16, 0
    %p121 = por %p119, %p120
    %p122 = scmp.ne.s32.totalorder %s110, %s111
    %p123 = scmp.eq.s32.totalorder %s17, 1
    %p124 = por %p122, %p123
    %p126 = scmp.ne.s32.totalorder %s111, %s125
    %p127 = scmp.eq.s32.totalorder %s17, 0
    %p128 = por %p126, %p127
    %s129 = ssub.s32 %s11, %s18
    %p130 = scmp.eq.s32.totalorder %s129, 0
    %s132 = sadd.s32 %s131, 1
    %s133 = scalar_select %p130, %s131, %s132
    %p136 = pneg %p130
    %p137 = scmp.eq.s32.totalorder %s11, 1
    %p138 = por %p136, %p137
    %p139 = scmp.ne.s32.totalorder %s131, %s134
    %p140 = scmp.eq.s32.totalorder %s11, 0
    %p141 = por %p139, %p140
    %p142 = scmp.ne.s32.totalorder %s131, %s134
    %p143 = scmp.eq.s32.totalorder %s16, 1
    %p144 = por %p142, %p143
    %p145 = scmp.ne.s32.totalorder %s134, %s135
    %p146 = scmp.eq.s32.totalorder %s16, 0
    %p147 = por %p145, %p146
    %p148 = scmp.ne.s32.totalorder %s134, %s135
    %p149 = scmp.eq.s32.totalorder %s17, 1
    %p150 = por %p148, %p149
    %p152 = scmp.ne.s32.totalorder %s135, %s151
    %p153 = scmp.eq.s32.totalorder %s17, 0
    %p154 = por %p152, %p153
    %p155 = scmp.le.s32.totalorder 1, %s11
    %p156 = scmp.lt.s32.totalorder %s11, 3
    %p157 = pnand %p155, %p156
    %p158 = pneg %p157
    // Predicated region
    $region9: #{down_forward.1} parent=5 // pred_check
      _
    $region10: #{down_forward.1} parent=5 // pred_check_branch
      %160 = sbr.rel (%p157) target = $region12
    $region11: #{down_forward.1} parent=5 // pred_region
      %s161 = ssub.s32 %s11, 1
      // Predicated region
      $region13: #{down_forward.1} parent=11 // pred_check
        %p162 = pneg %p58
      $region14: #{down_forward.1} parent=11 // pred_check_branch
        %164 = sbr.rel (%p162) target = $region16
      $region15: #{down_forward.1} parent=11 // pred_region
        _
      $region16: #{down_forward.1} parent=11 // pred_fallthru
        _
      // Predicated region
      $region17: #{down_forward.1} parent=11 // pred_check
        %p165 = pneg %p79
      $region18: #{down_forward.1} parent=11 // pred_check_branch
        %167 = sbr.rel (%p165) target = $region20
      $region19: #{down_forward.1} parent=11 // pred_region
        _
      $region20: #{down_forward.1} parent=11 // pred_fallthru
        _
      // Predicated region
      $region21: #{down_forward.1} parent=11 // pred_check
        %p168 = pneg %p100
      $region22: #{down_forward.1} parent=11 // pred_check_branch
        %170 = sbr.rel (%p168) target = $region24
      $region23: #{down_forward.1} parent=11 // pred_region
        _
      $region24: #{down_forward.1} parent=11 // pred_fallthru
        _
      // Predicated region
      $region25: #{down_forward.1} parent=11 // pred_check
        %p171 = pneg %p121
      $region26: #{down_forward.1} parent=11 // pred_check_branch
        %173 = sbr.rel (%p171) target = $region28
      $region27: #{down_forward.1} parent=11 // pred_region
        _
      $region28: #{down_forward.1} parent=11 // pred_fallthru
        _
    $region12: #{down_forward.1} parent=5 // pred_fallthru
      _
    %p174 = scmp.lt.s32.totalorder %s11, 2
    // Predicated region
    $region29: #{down_forward.1} parent=5 // pred_check
      %p175 = pneg %p174
    $region30: #{down_forward.1} parent=5 // pred_check_branch
      %177 = sbr.rel (%p175) target = $region32
    $region31: #{down_forward.1} parent=5 // pred_region
      // Predicated region
      $region33: #{down_forward.1} parent=31 // pred_check
        %p178 = pneg %p31
      $region34: #{down_forward.1} parent=31 // pred_check_branch
        %180 = sbr.rel (%p178) target = $region36
      $region35: #{down_forward.1} parent=31 // pred_region
        %p181 = scmp.lt.s32.totalorder %s11, 1
        %s182 = scalar_select %p181, %s11, 1
        %s183 = smul.addr %s182, 16
        %s184 = smul.addr %s183, 8
        %s185 = scalar_lea.vmem %s0, %s184
      $region36: #{down_forward.1} parent=31 // pred_fallthru
        _
    $region32: #{down_forward.1} parent=5 // pred_fallthru
      _
    %p186 = scmp.le.s32.totalorder 1, %s11
    %p187 = scmp.lt.s32.totalorder %s11, 3
    %p188 = pnand %p186, %p187
    %p189 = pneg %p188
    // Predicated region
    $region37: #{down_forward.1} parent=5 // pred_check
      _
    $region38: #{down_forward.1} parent=5 // pred_check_branch
      %191 = sbr.rel (%p188) target = $region40
    $region39: #{down_forward.1} parent=5 // pred_region
      %s192 = ssub.s32 %s11, 1
      %p193 = scmp.lt.s32.totalorder %s16, 1
      %s194 = scalar_select %p193, %s16, 1
      %s195 = smul.addr %s194, 16
      %s196 = smul.addr %s195, 8
      %s197 = scalar_lea.vmem %s0, %s196
      %p198 = pneg %p37
      %p199 = pneg %p34
      %p200 = pneg %p58
      %p201 = pneg %p55
      %p202 = pneg %p79
      %p203 = pneg %p76
      %p204 = pneg %p100
      %p205 = pneg %p97
      %p206 = pneg %p121
      %p207 = pneg %p118
      %p208 = pneg %p147
      %p209 = pneg %p144
      %p210 = scmp.lt.s32.totalorder %s16, 1
      %s211 = scalar_select %p210, %s16, 1
      %s212 = smul.addr %s211, 4
      %s213 = scalar_lea.vmem %s5, %s212
      %p214 = scmp.lt.s32.totalorder %s16, 1
      %s215 = scalar_select %p214, %s16, 1
      %s216 = smul.addr %s215, 16
      %s217 = smul.addr %s216, 8
      %s218 = scalar_lea.vmem %s0, %s217
      %p219 = scmp.lt.s32.totalorder %s16, 1
      %s220 = scalar_select %p219, %s16, 1
      %s221 = smul.addr %s220, 4
      %s222 = scalar_lea.vmem %s5, %s221
      %vm223 = vcmask 64512
      %224 = vst.msk [vmem:[#allocation2] sm:$0xff] %vm223, 0.0
      %vm225 = vcmask 58368
      %226 = vst.msk [vmem:[#allocation2 + $0x8] sm:$0x3] %vm225, 0.0
      %227 = vst.msk [vmem:[#allocation2 + $0x10] sm:$0xff] %vm223, 0.0
      %228 = vst.msk [vmem:[#allocation2 + $0x18] sm:$0x3] %vm225, 0.0
      %229 = vst.msk [vmem:[#allocation2 + $0x20] sm:$0xff] %vm223, 0.0
      %230 = vst.msk [vmem:[#allocation2 + $0x28] sm:$0x3] %vm225, 0.0
      %231 = vst.msk [vmem:[#allocation2 + $0x30] sm:$0xff] %vm223, 0.0
      %232 = vst.msk [vmem:[#allocation2 + $0x38] sm:$0x3] %vm225, 0.0
      %233 = vst.msk [vmem:[#allocation2 + $0x40] sm:$0xff] %vm223, 0.0
      %234 = vst.msk [vmem:[#allocation2 + $0x48] sm:$0x3] %vm225, 0.0
      %235 = vst.msk [vmem:[#allocation2 + $0x50] sm:$0xff] %vm223, 0.0
      %236 = vst.msk [vmem:[#allocation2 + $0x58] sm:$0x3] %vm225, 0.0
      %237 = vst.msk [vmem:[#allocation2 + $0x60] sm:$0xff] %vm223, 0.0
      %238 = vst.msk [vmem:[#allocation2 + $0x68] sm:$0x3] %vm225, 0.0
      %239 = vst.msk [vmem:[#allocation2 + $0x70] sm:$0xff] %vm223, 0.0
      %240 = vst.msk [vmem:[#allocation2 + $0x78] sm:$0x3] %vm225, 0.0
      %241 = vst.msk [vmem:[#allocation2 + $0x80] sm:$0xff] %vm223, 0.0
      %242 = vst.msk [vmem:[#allocation2 + $0x88] sm:$0x3] %vm225, 0.0
      %243 = vst.msk [vmem:[#allocation2 + $0x90] sm:$0xff] %vm223, 0.0
      %244 = vst.msk [vmem:[#allocation2 + $0x98] sm:$0x3] %vm225, 0.0
      %v245 = vld [vmem:[%s218] sm:$0xff]
      %v246 = vld [vmem:[%s218 + $0x8] sm:$0xff]
      %v247 = vld [vmem:[%s218 + $0x10] sm:$0xff]
      %v248 = vld [vmem:[%s218 + $0x18] sm:$0xff]
      %v249 = vld [vmem:[%s218 + $0x20] sm:$0xff]
      %v250 = vld [vmem:[%s218 + $0x28] sm:$0xff]
      %v251 = vld [vmem:[%s218 + $0x30] sm:$0xff]
      %v252 = vld [vmem:[%s218 + $0x38] sm:$0xff]
      %v253 = vld [vmem:[%s218 + $0x40] sm:$0xff]
      %v254 = vld [vmem:[%s218 + $0x48] sm:$0xff]
      %v255 = vld [vmem:[%s218 + $0x50] sm:$0xff]
      %v256 = vld [vmem:[%s218 + $0x58] sm:$0xff]
      %v257 = vld [vmem:[%s218 + $0x60] sm:$0xff]
      %v258 = vld [vmem:[%s218 + $0x68] sm:$0xff]
      %v259 = vld [vmem:[%s218 + $0x70] sm:$0xff]
      %v260 = vld [vmem:[%s218 + $0x78] sm:$0xff]
      %v261 = vmax.f32 %v245, %v246
      %v262 = vmax.f32 %v247, %v248
      %v263 = vmax.f32 %v249, %v250
      %v264 = vmax.f32 %v251, %v252
      %v265 = vmax.f32 %v253, %v254
      %v266 = vmax.f32 %v255, %v256
      %v267 = vmax.f32 %v257, %v258
      %v268 = vmax.f32 %v259, %v260
      %277 = vrot.lane.b32.xlu0 %v261, 124
      %v278 = vpop.permute.xlu0 %277
      %279 = vrot.lane.b32.xlu0 %v262, 124
      %v280 = vpop.permute.xlu0 %279
      %281 = vrot.lane.b32.xlu0 %v263, 124
      %v282 = vpop.permute.xlu0 %281
      %283 = vrot.lane.b32.xlu0 %v264, 124
      %v284 = vpop.permute.xlu0 %283
      %285 = vrot.lane.b32.xlu0 %v265, 124
      %v286 = vpop.permute.xlu0 %285
      %287 = vrot.lane.b32.xlu0 %v266, 124
      %v288 = vpop.permute.xlu0 %287
      %289 = vrot.lane.b32.xlu0 %v267, 124
      %v290 = vpop.permute.xlu0 %289
      %291 = vrot.lane.b32.xlu0 %v268, 124
      %v292 = vpop.permute.xlu0 %291
      %v301 = vmax.f32 %v261, %v278
      %v302 = vmax.f32 %v262, %v280
      %v303 = vmax.f32 %v263, %v282
      %v304 = vmax.f32 %v264, %v284
      %v305 = vmax.f32 %v265, %v286
      %v306 = vmax.f32 %v266, %v288
      %v307 = vmax.f32 %v267, %v290
      %v308 = vmax.f32 %v268, %v292
      %s309 = scalar_lea.vmem [#allocation2], 16
      %vm310 = vcmask 31744
      %311 = vst.msk [vmem:[%s309 + $0x1] sm:$0xff] %vm310, %v301
      %312 = vst.msk [vmem:[%s309 + $0x11] sm:$0xff] %vm310, %v302
      %313 = vst.msk [vmem:[%s309 + $0x21] sm:$0xff] %vm310, %v303
      %314 = vst.msk [vmem:[%s309 + $0x31] sm:$0xff] %vm310, %v304
      %315 = vst.msk [vmem:[%s309 + $0x41] sm:$0xff] %vm310, %v305
      %316 = vst.msk [vmem:[%s309 + $0x51] sm:$0xff] %vm310, %v306
      %317 = vst.msk [vmem:[%s309 + $0x61] sm:$0xff] %vm310, %v307
      %318 = vst.msk [vmem:[%s309 + $0x71] sm:$0xff] %vm310, %v308
      %v319 = vld [vmem:[#allocation2] sm:$0xff]
      %v320 = vld [vmem:[#allocation2 + $0x10] sm:$0xff]
      %v321 = vld [vmem:[#allocation2 + $0x20] sm:$0xff]
      %v322 = vld [vmem:[#allocation2 + $0x30] sm:$0xff]
      %v323 = vld [vmem:[#allocation2 + $0x40] sm:$0xff]
      %v324 = vld [vmem:[#allocation2 + $0x50] sm:$0xff]
      %v325 = vld [vmem:[#allocation2 + $0x60] sm:$0xff]
      %v326 = vld [vmem:[#allocation2 + $0x70] sm:$0xff]
      %v327 = vld [vmem:[%s1] sm:$0xf]
      %v328 = vld [vmem:[#allocation2 + $0x1] sm:$0xff]
      %v329 = vld [vmem:[#allocation2 + $0x11] sm:$0xff]
      %v330 = vld [vmem:[#allocation2 + $0x21] sm:$0xff]
      %v331 = vld [vmem:[#allocation2 + $0x31] sm:$0xff]
      %v332 = vld [vmem:[#allocation2 + $0x41] sm:$0xff]
      %v333 = vld [vmem:[#allocation2 + $0x51] sm:$0xff]
      %v334 = vld [vmem:[#allocation2 + $0x61] sm:$0xff]
      %v335 = vld [vmem:[#allocation2 + $0x71] sm:$0xff]
      %s336 = scalar_lea.vmem %s1, 8
      %v337 = vld [vmem:[%s336] sm:$0xf]
      %v339 = vsel %vm310, %v328, 0
      %v342 = vsel %vm310, %v329, 0
      %v345 = vsel %vm310, %v330, 0
      %v348 = vsel %vm310, %v331, 0
      %v351 = vsel %vm310, %v332, 0
      %v354 = vsel %vm310, %v333, 0
      %v357 = vsel %vm310, %v334, 0
      %v360 = vsel %vm310, %v335, 0
      %vm362 = vcmask 1043456
      %v364 = vsel %vm362, %v337, 0
      %366 = vmatprep.subr.mxu0 0.0
      %367 = vmatpush1.msra.mxu0 %v364
      %368 = vmatprep.subr.mxu0 0.0
      %369 = vmatpush1.msra.mxu0 0.0
      %370 = vmatprep.subr.mxu0 0.0
      %371 = vmatpush1.msra.mxu0 0.0
      %372 = vmatprep.subr.mxu0 0.0
      %373 = vmatpush1.msra.mxu0 0.0
      %374 = vmatprep.subr.mxu0 0.0
      %375 = vmatpush1.msra.mxu0 0.0
      %376 = vmatprep.subr.mxu0 0.0
      %377 = vmatpush1.msra.mxu0 0.0
      %378 = vmatprep.subr.mxu0 0.0
      %379 = vmatpush1.msra.mxu0 0.0
      %380 = vmatprep.subr.mxu0 0.0
      %381 = vmatpush1.msra.mxu0 0.0
      %382 = vmatprep.subr.mxu0 0.0
      %383 = vmatpush1.msra.mxu0 0.0
      %384 = vmatprep.subr.mxu0 0.0
      %385 = vmatpush1.msra.mxu0 0.0
      %386 = vmatprep.subr.mxu0 0.0
      %387 = vmatpush1.msra.mxu0 0.0
      %388 = vmatprep.subr.mxu0 0.0
      %389 = vmatpush1.msra.mxu0 0.0
      %390 = vmatprep.subr.mxu0 0.0
      %391 = vmatpush1.msra.mxu0 0.0
      %392 = vmatprep.subr.mxu0 0.0
      %393 = vmatpush1.msra.mxu0 0.0
      %394 = vmatprep.subr.mxu0 0.0
      %395 = vmatpush1.msra.mxu0 0.0
      %396 = vmatprep.subr.mxu0 0.0
      %397 = vmatpush1.msra.mxu0 0.0
      %398 = vmatprep.subr.mxu0 0.0
      %399 = vmatpush1.msra.mxu0 0.0
      %400 = vmatprep.subr.mxu0 0.0
      %401 = vmatpush1.msra.mxu0 0.0
      %402 = vmatprep.subr.mxu0 0.0
      %403 = vmatpush1.msra.mxu0 0.0
      %404 = vmatprep.subr.mxu0 0.0
      %405 = vmatpush1.msra.mxu0 0.0
      %406 = vmatprep.subr.mxu0 0.0
      %407 = vmatpush1.msra.mxu0 0.0
      %408 = vmatprep.subr.mxu0 0.0
      %409 = vmatpush1.msra.mxu0 0.0
      %410 = vmatprep.subr.mxu0 0.0
      %411 = vmatpush1.msra.mxu0 0.0
      %412 = vmatprep.subr.mxu0 0.0
      %413 = vmatpush1.msra.mxu0 0.0
      %414 = vmatprep.subr.mxu0 0.0
      %415 = vmatpush1.msra.mxu0 0.0
      %416 = vmatprep.subr.mxu0 0.0
      %417 = vmatpush1.msra.mxu0 0.0
      %418 = vmatprep.subr.mxu0 0.0
      %419 = vmatpush1.msra.mxu0 0.0
      %420 = vmatprep.subr.mxu0 0.0
      %421 = vmatpush1.msra.mxu0 0.0
      %422 = vmatprep.subr.mxu0 0.0
      %423 = vmatpush1.msra.mxu0 0.0
      %424 = vmatprep.subr.mxu0 0.0
      %425 = vmatpush1.msra.mxu0 0.0
      %426 = vmatprep.subr.mxu0 0.0
      %427 = vmatpush1.msra.mxu0 0.0
      %428 = vmatprep.subr.mxu0 0.0
      %429 = vmatpush1.msra.mxu0 0.0
      %430 = vmatprep.mubr.f32.mxu0 0.0
      %431 = vmatmul.mubr.f32.gmra.mrb[0].mxu0 %v339
      %v432 = vpop.f32.mrb[0].mxu0
      %v433 = vadd.f32 0.0, %v432
      %v434 = vpop.f32.mrb[0].mxu0
      %435 = vmatprep.mubr.f32.mxu0 0.0
      %436 = vmatmul.mubr.f32.gmra.mrb[0].mxu0 %v342
      %v437 = vpop.f32.mrb[0].mxu0
      %v438 = vadd.f32 0.0, %v437
      %v439 = vpop.f32.mrb[0].mxu0
      %440 = vmatprep.mubr.f32.mxu0 0.0
      %441 = vmatmul.mubr.f32.gmra.mrb[0].mxu0 %v345
      %v442 = vpop.f32.mrb[0].mxu0
      %v443 = vadd.f32 0.0, %v442
      %v444 = vpop.f32.mrb[0].mxu0
      %445 = vmatprep.mubr.f32.mxu0 0.0
      %446 = vmatmul.mubr.f32.gmra.mrb[0].mxu0 %v348
      %v447 = vpop.f32.mrb[0].mxu0
      %v448 = vadd.f32 0.0, %v447
      %v449 = vpop.f32.mrb[0].mxu0
      %450 = vmatprep.mubr.f32.mxu0 0.0
      %451 = vmatmul.mubr.f32.gmra.mrb[0].mxu0 %v351
      %v452 = vpop.f32.mrb[0].mxu0
      %v453 = vadd.f32 0.0, %v452
      %v454 = vpop.f32.mrb[0].mxu0
      %455 = vmatprep.mubr.f32.mxu0 0.0
      %456 = vmatmul.mubr.f32.gmra.mrb[0].mxu0 %v354
      %v457 = vpop.f32.mrb[0].mxu0
      %v458 = vadd.f32 0.0, %v457
      %v459 = vpop.f32.mrb[0].mxu0
      %460 = vmatprep.mubr.f32.mxu0 0.0
      %461 = vmatmul.mubr.f32.gmra.mrb[0].mxu0 %v357
      %v462 = vpop.f32.mrb[0].mxu0
      %v463 = vadd.f32 0.0, %v462
      %v464 = vpop.f32.mrb[0].mxu0
      %465 = vmatprep.mubr.f32.mxu0 0.0
      %466 = vmatmul.mubr.f32.gmra.mrb[0].mxu0 %v360
      %v467 = vpop.f32.mrb[0].mxu0
      %v468 = vadd.f32 0.0, %v467
      %v469 = vpop.f32.mrb[0].mxu0
      %470 = vdwg.mxu0
      %v472 = vsel %vm310, %v319, 0
      %v475 = vsel %vm310, %v320, 0
      %v478 = vsel %vm310, %v321, 0
      %v481 = vsel %vm310, %v322, 0
      %v484 = vsel %vm310, %v323, 0
      %v487 = vsel %vm310, %v324, 0
      %v490 = vsel %vm310, %v325, 0
      %v493 = vsel %vm310, %v326, 0
      %v496 = vsel %vm362, %v327, 0
      %498 = vmatprep.subr.mxu0 0.0
      %499 = vmatpush1.msra.mxu0 %v496
      %500 = vmatprep.subr.mxu0 0.0
      %501 = vmatpush1.msra.mxu0 0.0
      %502 = vmatprep.subr.mxu0 0.0
      %503 = vmatpush1.msra.mxu0 0.0
      %504 = vmatprep.subr.mxu0 0.0
      %505 = vmatpush1.msra.mxu0 0.0
      %506 = vmatprep.subr.mxu0 0.0
      %507 = vmatpush1.msra.mxu0 0.0
      %508 = vmatprep.subr.mxu0 0.0
      %509 = vmatpush1.msra.mxu0 0.0
      %510 = vmatprep.subr.mxu0 0.0
      %511 = vmatpush1.msra.mxu0 0.0
      %512 = vmatprep.subr.mxu0 0.0
      %513 = vmatpush1.msra.mxu0 0.0
      %514 = vmatprep.subr.mxu0 0.0
      %515 = vmatpush1.msra.mxu0 0.0
      %516 = vmatprep.subr.mxu0 0.0
      %517 = vmatpush1.msra.mxu0 0.0
      %518 = vmatprep.subr.mxu0 0.0
      %519 = vmatpush1.msra.mxu0 0.0
      %520 = vmatprep.subr.mxu0 0.0
      %521 = vmatpush1.msra.mxu0 0.0
      %522 = vmatprep.subr.mxu0 0.0
      %523 = vmatpush1.msra.mxu0 0.0
      %524 = vmatprep.subr.mxu0 0.0
      %525 = vmatpush1.msra.mxu0 0.0
      %526 = vmatprep.subr.mxu0 0.0
      %527 = vmatpush1.msra.mxu0 0.0
      %528 = vmatprep.subr.mxu0 0.0
      %529 = vmatpush1.msra.mxu0 0.0
      %530 = vmatprep.subr.mxu0 0.0
      %531 = vmatpush1.msra.mxu0 0.0
      %532 = vmatprep.subr.mxu0 0.0
      %533 = vmatpush1.msra.mxu0 0.0
      %534 = vmatprep.subr.mxu0 0.0
      %535 = vmatpush1.msra.mxu0 0.0
      %536 = vmatprep.subr.mxu0 0.0
      %537 = vmatpush1.msra.mxu0 0.0
      %538 = vmatprep.subr.mxu0 0.0
      %539 = vmatpush1.msra.mxu0 0.0
      %540 = vmatprep.subr.mxu0 0.0
      %541 = vmatpush1.msra.mxu0 0.0
      %542 = vmatprep.subr.mxu0 0.0
      %543 = vmatpush1.msra.mxu0 0.0
      %544 = vmatprep.subr.mxu0 0.0
      %545 = vmatpush1.msra.mxu0 0.0
      %546 = vmatprep.subr.mxu0 0.0
      %547 = vmatpush1.msra.mxu0 0.0
      %548 = vmatprep.subr.mxu0 0.0
      %549 = vmatpush1.msra.mxu0 0.0
      %550 = vmatprep.subr.mxu0 0.0
      %551 = vmatpush1.msra.mxu0 0.0
      %552 = vmatprep.subr.mxu0 0.0
      %553 = vmatpush1.msra.mxu0 0.0
      %554 = vmatprep.subr.mxu0 0.0
      %555 = vmatpush1.msra.mxu0 0.0
      %556 = vmatprep.subr.mxu0 0.0
      %557 = vmatpush1.msra.mxu0 0.0
      %558 = vmatprep.subr.mxu0 0.0
      %559 = vmatpush1.msra.mxu0 0.0
      %560 = vmatprep.subr.mxu0 0.0
      %561 = vmatpush1.msra.mxu0 0.0
      %562 = vmatprep.mubr.f32.mxu0 0.0
      %563 = vmatmul.mubr.f32.gmra.mrb[0].mxu0 %v472
      %v564 = vpop.f32.mrb[0].mxu0
      %v565 = vadd.f32 %v433, %v564
      %v566 = vpop.f32.mrb[0].mxu0
      %567 = vmatprep.mubr.f32.mxu0 0.0
      %568 = vmatmul.mubr.f32.gmra.mrb[0].mxu0 %v475
      %v569 = vpop.f32.mrb[0].mxu0
      %v570 = vadd.f32 %v438, %v569
      %v571 = vpop.f32.mrb[0].mxu0
      %572 = vmatprep.mubr.f32.mxu0 0.0
      %573 = vmatmul.mubr.f32.gmra.mrb[0].mxu0 %v478
      %v574 = vpop.f32.mrb[0].mxu0
      %v575 = vadd.f32 %v443, %v574
      %v576 = vpop.f32.mrb[0].mxu0
      %577 = vmatprep.mubr.f32.mxu0 0.0
      %578 = vmatmul.mubr.f32.gmra.mrb[0].mxu0 %v481
      %v579 = vpop.f32.mrb[0].mxu0
      %v580 = vadd.f32 %v448, %v579
      %v581 = vpop.f32.mrb[0].mxu0
      %582 = vmatprep.mubr.f32.mxu0 0.0
      %583 = vmatmul.mubr.f32.gmra.mrb[0].mxu0 %v484
      %v584 = vpop.f32.mrb[0].mxu0
      %v585 = vadd.f32 %v453, %v584
      %v586 = vpop.f32.mrb[0].mxu0
      %587 = vmatprep.mubr.f32.mxu0 0.0
      %588 = vmatmul.mubr.f32.gmra.mrb[0].mxu0 %v487
      %v589 = vpop.f32.mrb[0].mxu0
      %v590 = vadd.f32 %v458, %v589
      %v591 = vpop.f32.mrb[0].mxu0
      %592 = vmatprep.mubr.f32.mxu0 0.0
      %593 = vmatmul.mubr.f32.gmra.mrb[0].mxu0 %v490
      %v594 = vpop.f32.mrb[0].mxu0
      %v595 = vadd.f32 %v463, %v594
      %v596 = vpop.f32.mrb[0].mxu0
      %597 = vmatprep.mubr.f32.mxu0 0.0
      %598 = vmatmul.mubr.f32.gmra.mrb[0].mxu0 %v493
      %v599 = vpop.f32.mrb[0].mxu0
      %v600 = vadd.f32 %v468, %v599
      %v601 = vpop.f32.mrb[0].mxu0
      %602 = vdwg.mxu0
      %v603 = vld [vmem:[#allocation2 + $0x2] sm:$0xff]
      %v604 = vld [vmem:[#allocation2 + $0x12] sm:$0xff]
      %v605 = vld [vmem:[#allocation2 + $0x22] sm:$0xff]
      %v606 = vld [vmem:[#allocation2 + $0x32] sm:$0xff]
      %v607 = vld [vmem:[#allocation2 + $0x42] sm:$0xff]
      %v608 = vld [vmem:[#allocation2 + $0x52] sm:$0xff]
      %v609 = vld [vmem:[#allocation2 + $0x62] sm:$0xff]
      %v610 = vld [vmem:[#allocation2 + $0x72] sm:$0xff]
      %s611 = scalar_lea.vmem %s1, 16
      %v612 = vld [vmem:[%s611] sm:$0xf]
      %v614 = vsel %vm310, %v603, 0
      %v617 = vsel %vm310, %v604, 0
      %v620 = vsel %vm310, %v605, 0
      %v623 = vsel %vm310, %v606, 0
      %v626 = vsel %vm310, %v607, 0
      %v629 = vsel %vm310, %v608, 0
      %v632 = vsel %vm310, %v609, 0
      %v635 = vsel %vm310, %v610, 0
      %v638 = vsel %vm362, %v612, 0
      %640 = vmatprep.subr.mxu0 0.0
      %641 = vmatpush1.msra.mxu0 %v638
      %642 = vmatprep.subr.mxu0 0.0
      %643 = vmatpush1.msra.mxu0 0.0
      %644 = vmatprep.subr.mxu0 0.0
      %645 = vmatpush1.msra.mxu0 0.0
      %646 = vmatprep.subr.mxu0 0.0
      %647 = vmatpush1.msra.mxu0 0.0
      %648 = vmatprep.subr.mxu0 0.0
      %649 = vmatpush1.msra.mxu0 0.0
      %650 = vmatprep.subr.mxu0 0.0
      %651 = vmatpush1.msra.mxu0 0.0
      %652 = vmatprep.subr.mxu0 0.0
      %653 = vmatpush1.msra.mxu0 0.0
      %654 = vmatprep.subr.mxu0 0.0
      %655 = vmatpush1.msra.mxu0 0.0
      %656 = vmatprep.subr.mxu0 0.0
      %657 = vmatpush1.msra.mxu0 0.0
      %658 = vmatprep.subr.mxu0 0.0
      %659 = vmatpush1.msra.mxu0 0.0
      %660 = vmatprep.subr.mxu0 0.0
      %661 = vmatpush1.msra.mxu0 0.0
      %662 = vmatprep.subr.mxu0 0.0
      %663 = vmatpush1.msra.mxu0 0.0
      %664 = vmatprep.subr.mxu0 0.0
      %665 = vmatpush1.msra.mxu0 0.0
      %666 = vmatprep.subr.mxu0 0.0
      %667 = vmatpush1.msra.mxu0 0.0
      %668 = vmatprep.subr.mxu0 0.0
      %669 = vmatpush1.msra.mxu0 0.0
      %670 = vmatprep.subr.mxu0 0.0
      %671 = vmatpush1.msra.mxu0 0.0
      %672 = vmatprep.subr.mxu0 0.0
      %673 = vmatpush1.msra.mxu0 0.0
      %674 = vmatprep.subr.mxu0 0.0
      %675 = vmatpush1.msra.mxu0 0.0
      %676 = vmatprep.subr.mxu0 0.0
      %677 = vmatpush1.msra.mxu0 0.0
      %678 = vmatprep.subr.mxu0 0.0
      %679 = vmatpush1.msra.mxu0 0.0
      %680 = vmatprep.subr.mxu0 0.0
      %681 = vmatpush1.msra.mxu0 0.0
      %682 = vmatprep.subr.mxu0 0.0
      %683 = vmatpush1.msra.mxu0 0.0
      %684 = vmatprep.subr.mxu0 0.0
      %685 = vmatpush1.msra.mxu0 0.0
      %686 = vmatprep.subr.mxu0 0.0
      %687 = vmatpush1.msra.mxu0 0.0
      %688 = vmatprep.subr.mxu0 0.0
      %689 = vmatpush1.msra.mxu0 0.0
      %690 = vmatprep.subr.mxu0 0.0
      %691 = vmatpush1.msra.mxu0 0.0
      %692 = vmatprep.subr.mxu0 0.0
      %693 = vmatpush1.msra.mxu0 0.0
      %694 = vmatprep.subr.mxu0 0.0
      %695 = vmatpush1.msra.mxu0 0.0
      %696 = vmatprep.subr.mxu0 0.0
      %697 = vmatpush1.msra.mxu0 0.0
      %698 = vmatprep.subr.mxu0 0.0
      %699 = vmatpush1.msra.mxu0 0.0
      %700 = vmatprep.subr.mxu0 0.0
      %701 = vmatpush1.msra.mxu0 0.0
      %702 = vmatprep.subr.mxu0 0.0
      %703 = vmatpush1.msra.mxu0 0.0
      %704 = vmatprep.mubr.f32.mxu0 0.0
      %705 = vmatmul.mubr.f32.gmra.mrb[0].mxu0 %v614
      %v706 = vpop.f32.mrb[0].mxu0
      %v707 = vadd.f32 0.0, %v706
      %v708 = vpop.f32.mrb[0].mxu0
      %709 = vmatprep.mubr.f32.mxu0 0.0
      %710 = vmatmul.mubr.f32.gmra.mrb[0].mxu0 %v617
      %v711 = vpop.f32.mrb[0].mxu0
      %v712 = vadd.f32 0.0, %v711
      %v713 = vpop.f32.mrb[0].mxu0
      %714 = vmatprep.mubr.f32.mxu0 0.0
      %715 = vmatmul.mubr.f32.gmra.mrb[0].mxu0 %v620
      %v716 = vpop.f32.mrb[0].mxu0
      %v717 = vadd.f32 0.0, %v716
      %v718 = vpop.f32.mrb[0].mxu0
      %719 = vmatprep.mubr.f32.mxu0 0.0
      %720 = vmatmul.mubr.f32.gmra.mrb[0].mxu0 %v623
      %v721 = vpop.f32.mrb[0].mxu0
      %v722 = vadd.f32 0.0, %v721
      %v723 = vpop.f32.mrb[0].mxu0
      %724 = vmatprep.mubr.f32.mxu0 0.0
      %725 = vmatmul.mubr.f32.gmra.mrb[0].mxu0 %v626
      %v726 = vpop.f32.mrb[0].mxu0
      %v727 = vadd.f32 0.0, %v726
      %v728 = vpop.f32.mrb[0].mxu0
      %729 = vmatprep.mubr.f32.mxu0 0.0
      %730 = vmatmul.mubr.f32.gmra.mrb[0].mxu0 %v629
      %v731 = vpop.f32.mrb[0].mxu0
      %v732 = vadd.f32 0.0, %v731
      %v733 = vpop.f32.mrb[0].mxu0
      %734 = vmatprep.mubr.f32.mxu0 0.0
      %735 = vmatmul.mubr.f32.gmra.mrb[0].mxu0 %v632
      %v736 = vpop.f32.mrb[0].mxu0
      %v737 = vadd.f32 0.0, %v736
      %v738 = vpop.f32.mrb[0].mxu0
      %739 = vmatprep.mubr.f32.mxu0 0.0
      %740 = vmatmul.mubr.f32.gmra.mrb[0].mxu0 %v635
      %v741 = vpop.f32.mrb[0].mxu0
      %v742 = vadd.f32 0.0, %v741
      %v743 = vpop.f32.mrb[0].mxu0
      %744 = vdwg.mxu0
      %v745 = vadd.f32 %v565, %v707
      %v746 = vadd.f32 %v570, %v712
      %v747 = vadd.f32 %v575, %v717
      %v748 = vadd.f32 %v580, %v722
      %v749 = vadd.f32 %v585, %v727
      %v750 = vadd.f32 %v590, %v732
      %v751 = vadd.f32 %v595, %v737
      %v752 = vadd.f32 %v600, %v742
      %v753 = vld [vmem:[%s309] sm:$0xff]
      %v754 = vld [vmem:[%s309 + $0x10] sm:$0xff]
      %v755 = vld [vmem:[%s309 + $0x20] sm:$0xff]
      %v756 = vld [vmem:[%s309 + $0x30] sm:$0xff]
      %v757 = vld [vmem:[%s309 + $0x40] sm:$0xff]
      %v758 = vld [vmem:[%s309 + $0x50] sm:$0xff]
      %v759 = vld [vmem:[%s309 + $0x60] sm:$0xff]
      %v760 = vld [vmem:[%s309 + $0x70] sm:$0xff]
      %s761 = scalar_lea.vmem %s1, 24
      %v762 = vld [vmem:[%s761] sm:$0xf]
      %v764 = vsel %vm310, %v753, 0
      %v767 = vsel %vm310, %v754, 0
      %v770 = vsel %vm310, %v755, 0
      %v773 = vsel %vm310, %v756, 0
      %v776 = vsel %vm310, %v757, 0
      %v779 = vsel %vm310, %v758, 0
      %v782 = vsel %vm310, %v759, 0
      %v785 = vsel %vm310, %v760, 0
      %v788 = vsel %vm362, %v762, 0
      %790 = vmatprep.subr.mxu0 0.0
      %791 = vmatpush1.msra.mxu0 %v788
      %792 = vmatprep.subr.mxu0 0.0
      %793 = vmatpush1.msra.mxu0 0.0
      %794 = vmatprep.subr.mxu0 0.0
      %795 = vmatpush1.msra.mxu0 0.0
      %796 = vmatprep.subr.mxu0 0.0
      %797 = vmatpush1.msra.mxu0 0.0
      %798 = vmatprep.subr.mxu0 0.0
      %799 = vmatpush1.msra.mxu0 0.0
      %800 = vmatprep.subr.mxu0 0.0
      %801 = vmatpush1.msra.mxu0 0.0
      %802 = vmatprep.subr.mxu0 0.0
      %803 = vmatpush1.msra.mxu0 0.0
      %804 = vmatprep.subr.mxu0 0.0
      %805 = vmatpush1.msra.mxu0 0.0
      %806 = vmatprep.subr.mxu0 0.0
      %807 = vmatpush1.msra.mxu0 0.0
      %808 = vmatprep.subr.mxu0 0.0
      %809 = vmatpush1.msra.mxu0 0.0
      %810 = vmatprep.subr.mxu0 0.0
      %811 = vmatpush1.msra.mxu0 0.0
      %812 = vmatprep.subr.mxu0 0.0
      %813 = vmatpush1.msra.mxu0 0.0
      %814 = vmatprep.subr.mxu0 0.0
      %815 = vmatpush1.msra.mxu0 0.0
      %816 = vmatprep.subr.mxu0 0.0
      %817 = vmatpush1.msra.mxu0 0.0
      %818 = vmatprep.subr.mxu0 0.0
      %819 = vmatpush1.msra.mxu0 0.0
      %820 = vmatprep.subr.mxu0 0.0
      %821 = vmatpush1.msra.mxu0 0.0
      %822 = vmatprep.subr.mxu0 0.0
      %823 = vmatpush1.msra.mxu0 0.0
      %824 = vmatprep.subr.mxu0 0.0
      %825 = vmatpush1.msra.mxu0 0.0
      %826 = vmatprep.subr.mxu0 0.0
      %827 = vmatpush1.msra.mxu0 0.0
      %828 = vmatprep.subr.mxu0 0.0
      %829 = vmatpush1.msra.mxu0 0.0
      %830 = vmatprep.subr.mxu0 0.0
      %831 = vmatpush1.msra.mxu0 0.0
      %832 = vmatprep.subr.mxu0 0.0
      %833 = vmatpush1.msra.mxu0 0.0
      %834 = vmatprep.subr.mxu0 0.0
      %835 = vmatpush1.msra.mxu0 0.0
      %836 = vmatprep.subr.mxu0 0.0
      %837 = vmatpush1.msra.mxu0 0.0
      %838 = vmatprep.subr.mxu0 0.0
      %839 = vmatpush1.msra.mxu0 0.0
      %840 = vmatprep.subr.mxu0 0.0
      %841 = vmatpush1.msra.mxu0 0.0
      %842 = vmatprep.subr.mxu0 0.0
      %843 = vmatpush1.msra.mxu0 0.0
      %844 = vmatprep.subr.mxu0 0.0
      %845 = vmatpush1.msra.mxu0 0.0
      %846 = vmatprep.subr.mxu0 0.0
      %847 = vmatpush1.msra.mxu0 0.0
      %848 = vmatprep.subr.mxu0 0.0
      %849 = vmatpush1.msra.mxu0 0.0
      %850 = vmatprep.subr.mxu0 0.0
      %851 = vmatpush1.msra.mxu0 0.0
      %852 = vmatprep.subr.mxu0 0.0
      %853 = vmatpush1.msra.mxu0 0.0
      %854 = vmatprep.mubr.f32.mxu0 0.0
      %855 = vmatmul.mubr.f32.gmra.mrb[0].mxu0 %v764
      %v856 = vpop.f32.mrb[0].mxu0
      %v857 = vadd.f32 0.0, %v856
      %v858 = vpop.f32.mrb[0].mxu0
      %859 = vmatprep.mubr.f32.mxu0 0.0
      %860 = vmatmul.mubr.f32.gmra.mrb[0].mxu0 %v767
      %v861 = vpop.f32.mrb[0].mxu0
      %v862 = vadd.f32 0.0, %v861
      %v863 = vpop.f32.mrb[0].mxu0
      %864 = vmatprep.mubr.f32.mxu0 0.0
      %865 = vmatmul.mubr.f32.gmra.mrb[0].mxu0 %v770
      %v866 = vpop.f32.mrb[0].mxu0
      %v867 = vadd.f32 0.0, %v866
      %v868 = vpop.f32.mrb[0].mxu0
      %869 = vmatprep.mubr.f32.mxu0 0.0
      %870 = vmatmul.mubr.f32.gmra.mrb[0].mxu0 %v773
      %v871 = vpop.f32.mrb[0].mxu0
      %v872 = vadd.f32 0.0, %v871
      %v873 = vpop.f32.mrb[0].mxu0
      %874 = vmatprep.mubr.f32.mxu0 0.0
      %875 = vmatmul.mubr.f32.gmra.mrb[0].mxu0 %v776
      %v876 = vpop.f32.mrb[0].mxu0
      %v877 = vadd.f32 0.0, %v876
      %v878 = vpop.f32.mrb[0].mxu0
      %879 = vmatprep.mubr.f32.mxu0 0.0
      %880 = vmatmul.mubr.f32.gmra.mrb[0].mxu0 %v779
      %v881 = vpop.f32.mrb[0].mxu0
      %v882 = vadd.f32 0.0, %v881
      %v883 = vpop.f32.mrb[0].mxu0
      %884 = vmatprep.mubr.f32.mxu0 0.0
      %885 = vmatmul.mubr.f32.gmra.mrb[0].mxu0 %v782
      %v886 = vpop.f32.mrb[0].mxu0
      %v887 = vadd.f32 0.0, %v886
      %v888 = vpop.f32.mrb[0].mxu0
      %889 = vmatprep.mubr.f32.mxu0 0.0
      %890 = vmatmul.mubr.f32.gmra.mrb[0].mxu0 %v785
      %v891 = vpop.f32.mrb[0].mxu0
      %v892 = vadd.f32 0.0, %v891
      %v893 = vpop.f32.mrb[0].mxu0
      %894 = vdwg.mxu0
      %v895 = vadd.f32 %v745, %v857
      %v896 = vadd.f32 %v746, %v862
      %v897 = vadd.f32 %v747, %v867
      %v898 = vadd.f32 %v748, %v872
      %v899 = vadd.f32 %v749, %v877
      %v900 = vadd.f32 %v750, %v882
      %v901 = vadd.f32 %v751, %v887
      %v902 = vadd.f32 %v752, %v892
      %v903 = vld [vmem:[%s309 + $0x1] sm:$0xff]
      %v904 = vld [vmem:[%s309 + $0x11] sm:$0xff]
      %v905 = vld [vmem:[%s309 + $0x21] sm:$0xff]
      %v906 = vld [vmem:[%s309 + $0x31] sm:$0xff]
      %v907 = vld [vmem:[%s309 + $0x41] sm:$0xff]
      %v908 = vld [vmem:[%s309 + $0x51] sm:$0xff]
      %v909 = vld [vmem:[%s309 + $0x61] sm:$0xff]
      %v910 = vld [vmem:[%s309 + $0x71] sm:$0xff]
      %s911 = scalar_lea.vmem %s1, 32
      %v912 = vld [vmem:[%s911] sm:$0xf]
      %v914 = vsel %vm310, %v903, 0
      %v917 = vsel %vm310, %v904, 0
      %v920 = vsel %vm310, %v905, 0
      %v923 = vsel %vm310, %v906, 0
      %v926 = vsel %vm310, %v907, 0
      %v929 = vsel %vm310, %v908, 0
      %v932 = vsel %vm310, %v909, 0
      %v935 = vsel %vm310, %v910, 0
      %v938 = vsel %vm362, %v912, 0
      %940 = vmatprep.subr.mxu0 0.0
      %941 = vmatpush1.msra.mxu0 %v938
      %942 = vmatprep.subr.mxu0 0.0
      %943 = vmatpush1.msra.mxu0 0.0
      %944 = vmatprep.subr.mxu0 0.0
      %945 = vmatpush1.msra.mxu0 0.0
      %946 = vmatprep.subr.mxu0 0.0
      %947 = vmatpush1.msra.mxu0 0.0
      %948 = vmatprep.subr.mxu0 0.0
      %949 = vmatpush1.msra.mxu0 0.0
      %950 = vmatprep.subr.mxu0 0.0
      %951 = vmatpush1.msra.mxu0 0.0
      %952 = vmatprep.subr.mxu0 0.0
      %953 = vmatpush1.msra.mxu0 0.0
      %954 = vmatprep.subr.mxu0 0.0
      %955 = vmatpush1.msra.mxu0 0.0
      %956 = vmatprep.subr.mxu0 0.0
      %957 = vmatpush1.msra.mxu0 0.0
      %958 = vmatprep.subr.mxu0 0.0
      %959 = vmatpush1.msra.mxu0 0.0
      %960 = vmatprep.subr.mxu0 0.0
      %961 = vmatpush1.msra.mxu0 0.0
      %962 = vmatprep.subr.mxu0 0.0
      %963 = vmatpush1.msra.mxu0 0.0
      %964 = vmatprep.subr.mxu0 0.0
      %965 = vmatpush1.msra.mxu0 0.0
      %966 = vmatprep.subr.mxu0 0.0
      %967 = vmatpush1.msra.mxu0 0.0
      %968 = vmatprep.subr.mxu0 0.0
      %969 = vmatpush1.msra.mxu0 0.0
      %970 = vmatprep.subr.mxu0 0.0
      %971 = vmatpush1.msra.mxu0 0.0
      %972 = vmatprep.subr.mxu0 0.0
      %973 = vmatpush1.msra.mxu0 0.0
      %974 = vmatprep.subr.mxu0 0.0
      %975 = vmatpush1.msra.mxu0 0.0
      %976 = vmatprep.subr.mxu0 0.0
      %977 = vmatpush1.msra.mxu0 0.0
      %978 = vmatprep.subr.mxu0 0.0
      %979 = vmatpush1.msra.mxu0 0.0
      %980 = vmatprep.subr.mxu0 0.0
      %981 = vmatpush1.msra.mxu0 0.0
      %982 = vmatprep.subr.mxu0 0.0
      %983 = vmatpush1.msra.mxu0 0.0
      %984 = vmatprep.subr.mxu0 0.0
      %985 = vmatpush1.msra.mxu0 0.0
      %986 = vmatprep.subr.mxu0 0.0
      %987 = vmatpush1.msra.mxu0 0.0
      %988 = vmatprep.subr.mxu0 0.0
      %989 = vmatpush1.msra.mxu0 0.0
      %990 = vmatprep.subr.mxu0 0.0
      %991 = vmatpush1.msra.mxu0 0.0
      %992 = vmatprep.subr.mxu0 0.0
      %993 = vmatpush1.msra.mxu0 0.0
      %994 = vmatprep.subr.mxu0 0.0
      %995 = vmatpush1.msra.mxu0 0.0
      %996 = vmatprep.subr.mxu0 0.0
      %997 = vmatpush1.msra.mxu0 0.0
      %998 = vmatprep.subr.mxu0 0.0
      %999 = vmatpush1.msra.mxu0 0.0
      %1000 = vmatprep.subr.mxu0 0.0
      %1001 = vmatpush1.msra.mxu0 0.0
      %1002 = vmatprep.subr.mxu0 0.0
      %1003 = vmatpush1.msra.mxu0 0.0
      %1004 = vmatprep.mubr.f32.mxu0 0.0
      %1005 = vmatmul.mubr.f32.gmra.mrb[0].mxu0 %v914
      %v1006 = vpop.f32.mrb[0].mxu0
      %v1007 = vadd.f32 0.0, %v1006
      %v1008 = vpop.f32.mrb[0].mxu0
      %1009 = vmatprep.mubr.f32.mxu0 0.0
      %1010 = vmatmul.mubr.f32.gmra.mrb[0].mxu0 %v917
      %v1011 = vpop.f32.mrb[0].mxu0
      %v1012 = vadd.f32 0.0, %v1011
      %v1013 = vpop.f32.mrb[0].mxu0
      %1014 = vmatprep.mubr.f32.mxu0 0.0
      %1015 = vmatmul.mubr.f32.gmra.mrb[0].mxu0 %v920
      %v1016 = vpop.f32.mrb[0].mxu0
      %v1017 = vadd.f32 0.0, %v1016
      %v1018 = vpop.f32.mrb[0].mxu0
      %1019 = vmatprep.mubr.f32.mxu0 0.0
      %1020 = vmatmul.mubr.f32.gmra.mrb[0].mxu0 %v923
      %v1021 = vpop.f32.mrb[0].mxu0
      %v1022 = vadd.f32 0.0, %v1021
      %v1023 = vpop.f32.mrb[0].mxu0
      %1024 = vmatprep.mubr.f32.mxu0 0.0
      %1025 = vmatmul.mubr.f32.gmra.mrb[0].mxu0 %v926
      %v1026 = vpop.f32.mrb[0].mxu0
      %v1027 = vadd.f32 0.0, %v1026
      %v1028 = vpop.f32.mrb[0].mxu0
      %1029 = vmatprep.mubr.f32.mxu0 0.0
      %1030 = vmatmul.mubr.f32.gmra.mrb[0].mxu0 %v929
      %v1031 = vpop.f32.mrb[0].mxu0
      %v1032 = vadd.f32 0.0, %v1031
      %v1033 = vpop.f32.mrb[0].mxu0
      %1034 = vmatprep.mubr.f32.mxu0 0.0
      %1035 = vmatmul.mubr.f32.gmra.mrb[0].mxu0 %v932
      %v1036 = vpop.f32.mrb[0].mxu0
      %v1037 = vadd.f32 0.0, %v1036
      %v1038 = vpop.f32.mrb[0].mxu0
      %1039 = vmatprep.mubr.f32.mxu0 0.0
      %1040 = vmatmul.mubr.f32.gmra.mrb[0].mxu0 %v935
      %v1041 = vpop.f32.mrb[0].mxu0
      %v1042 = vadd.f32 0.0, %v1041
      %v1043 = vpop.f32.mrb[0].mxu0
      %1044 = vdwg.mxu0
      %v1045 = vadd.f32 %v895, %v1007
      %v1046 = vadd.f32 %v896, %v1012
      %v1047 = vadd.f32 %v897, %v1017
      %v1048 = vadd.f32 %v898, %v1022
      %v1049 = vadd.f32 %v899, %v1027
      %v1050 = vadd.f32 %v900, %v1032
      %v1051 = vadd.f32 %v901, %v1037
      %v1052 = vadd.f32 %v902, %v1042
      %v1053 = vld [vmem:[%s309 + $0x2] sm:$0xff]
      %v1054 = vld [vmem:[%s309 + $0x12] sm:$0xff]
      %v1055 = vld [vmem:[%s309 + $0x22] sm:$0xff]
      %v1056 = vld [vmem:[%s309 + $0x32] sm:$0xff]
      %v1057 = vld [vmem:[%s309 + $0x42] sm:$0xff]
      %v1058 = vld [vmem:[%s309 + $0x52] sm:$0xff]
      %v1059 = vld [vmem:[%s309 + $0x62] sm:$0xff]
      %v1060 = vld [vmem:[%s309 + $0x72] sm:$0xff]
      %s1061 = scalar_lea.vmem %s1, 40
      %v1062 = vld [vmem:[%s1061] sm:$0xf]
      %v1064 = vsel %vm310, %v1053, 0
      %v1067 = vsel %vm310, %v1054, 0
      %v1070 = vsel %vm310, %v1055, 0
      %v1073 = vsel %vm310, %v1056, 0
      %v1076 = vsel %vm310, %v1057, 0
      %v1079 = vsel %vm310, %v1058, 0
      %v1082 = vsel %vm310, %v1059, 0
      %v1085 = vsel %vm310, %v1060, 0
      %v1088 = vsel %vm362, %v1062, 0
      %1090 = vmatprep.subr.mxu0 0.0
      %1091 = vmatpush1.msra.mxu0 %v1088
      %1092 = vmatprep.subr.mxu0 0.0
      %1093 = vmatpush1.msra.mxu0 0.0
      %1094 = vmatprep.subr.mxu0 0.0
      %1095 = vmatpush1.msra.mxu0 0.0
      %1096 = vmatprep.subr.mxu0 0.0
      %1097 = vmatpush1.msra.mxu0 0.0
      %1098 = vmatprep.subr.mxu0 0.0
      %1099 = vmatpush1.msra.mxu0 0.0
      %1100 = vmatprep.subr.mxu0 0.0
      %1101 = vmatpush1.msra.mxu0 0.0
      %1102 = vmatprep.subr.mxu0 0.0
      %1103 = vmatpush1.msra.mxu0 0.0
      %1104 = vmatprep.subr.mxu0 0.0
      %1105 = vmatpush1.msra.mxu0 0.0
      %1106 = vmatprep.subr.mxu0 0.0
      %1107 = vmatpush1.msra.mxu0 0.0
      %1108 = vmatprep.subr.mxu0 0.0
      %1109 = vmatpush1.msra.mxu0 0.0
      %1110 = vmatprep.subr.mxu0 0.0
      %1111 = vmatpush1.msra.mxu0 0.0
      %1112 = vmatprep.subr.mxu0 0.0
      %1113 = vmatpush1.msra.mxu0 0.0
      %1114 = vmatprep.subr.mxu0 0.0
      %1115 = vmatpush1.msra.mxu0 0.0
      %1116 = vmatprep.subr.mxu0 0.0
      %1117 = vmatpush1.msra.mxu0 0.0
      %1118 = vmatprep.subr.mxu0 0.0
      %1119 = vmatpush1.msra.mxu0 0.0
      %1120 = vmatprep.subr.mxu0 0.0
      %1121 = vmatpush1.msra.mxu0 0.0
      %1122 = vmatprep.subr.mxu0 0.0
      %1123 = vmatpush1.msra.mxu0 0.0
      %1124 = vmatprep.subr.mxu0 0.0
      %1125 = vmatpush1.msra.mxu0 0.0
      %1126 = vmatprep.subr.mxu0 0.0
      %1127 = vmatpush1.msra.mxu0 0.0
      %1128 = vmatprep.subr.mxu0 0.0
      %1129 = vmatpush1.msra.mxu0 0.0
      %1130 = vmatprep.subr.mxu0 0.0
      %1131 = vmatpush1.msra.mxu0 0.0
      %1132 = vmatprep.subr.mxu0 0.0
      %1133 = vmatpush1.msra.mxu0 0.0
      %1134 = vmatprep.subr.mxu0 0.0
      %1135 = vmatpush1.msra.mxu0 0.0
      %1136 = vmatprep.subr.mxu0 0.0
      %1137 = vmatpush1.msra.mxu0 0.0
      %1138 = vmatprep.subr.mxu0 0.0
      %1139 = vmatpush1.msra.mxu0 0.0
      %1140 = vmatprep.subr.mxu0 0.0
      %1141 = vmatpush1.msra.mxu0 0.0
      %1142 = vmatprep.subr.mxu0 0.0
      %1143 = vmatpush1.msra.mxu0 0.0
      %1144 = vmatprep.subr.mxu0 0.0
      %1145 = vmatpush1.msra.mxu0 0.0
      %1146 = vmatprep.subr.mxu0 0.0
      %1147 = vmatpush1.msra.mxu0 0.0
      %1148 = vmatprep.subr.mxu0 0.0
      %1149 = vmatpush1.msra.mxu0 0.0
      %1150 = vmatprep.subr.mxu0 0.0
      %1151 = vmatpush1.msra.mxu0 0.0
      %1152 = vmatprep.subr.mxu0 0.0
      %1153 = vmatpush1.msra.mxu0 0.0
      %1154 = vmatprep.mubr.f32.mxu0 0.0
      %1155 = vmatmul.mubr.f32.gmra.mrb[0].mxu0 %v1064
      %v1156 = vpop.f32.mrb[0].mxu0
      %v1157 = vadd.f32 0.0, %v1156
      %v1158 = vpop.f32.mrb[0].mxu0
      %1159 = vmatprep.mubr.f32.mxu0 0.0
      %1160 = vmatmul.mubr.f32.gmra.mrb[0].mxu0 %v1067
      %v1161 = vpop.f32.mrb[0].mxu0
      %v1162 = vadd.f32 0.0, %v1161
      %v1163 = vpop.f32.mrb[0].mxu0
      %1164 = vmatprep.mubr.f32.mxu0 0.0
      %1165 = vmatmul.mubr.f32.gmra.mrb[0].mxu0 %v1070
      %v1166 = vpop.f32.mrb[0].mxu0
      %v1167 = vadd.f32 0.0, %v1166
      %v1168 = vpop.f32.mrb[0].mxu0
      %1169 = vmatprep.mubr.f32.mxu0 0.0
      %1170 = vmatmul.mubr.f32.gmra.mrb[0].mxu0 %v1073
      %v1171 = vpop.f32.mrb[0].mxu0
      %v1172 = vadd.f32 0.0, %v1171
      %v1173 = vpop.f32.mrb[0].mxu0
      %1174 = vmatprep.mubr.f32.mxu0 0.0
      %1175 = vmatmul.mubr.f32.gmra.mrb[0].mxu0 %v1076
      %v1176 = vpop.f32.mrb[0].mxu0
      %v1177 = vadd.f32 0.0, %v1176
      %v1178 = vpop.f32.mrb[0].mxu0
      %1179 = vmatprep.mubr.f32.mxu0 0.0
      %1180 = vmatmul.mubr.f32.gmra.mrb[0].mxu0 %v1079
      %v1181 = vpop.f32.mrb[0].mxu0
      %v1182 = vadd.f32 0.0, %v1181
      %v1183 = vpop.f32.mrb[0].mxu0
      %1184 = vmatprep.mubr.f32.mxu0 0.0
      %1185 = vmatmul.mubr.f32.gmra.mrb[0].mxu0 %v1082
      %v1186 = vpop.f32.mrb[0].mxu0
      %v1187 = vadd.f32 0.0, %v1186
      %v1188 = vpop.f32.mrb[0].mxu0
      %1189 = vmatprep.mubr.f32.mxu0 0.0
      %1190 = vmatmul.mubr.f32.gmra.mrb[0].mxu0 %v1085
      %v1191 = vpop.f32.mrb[0].mxu0
      %v1192 = vadd.f32 0.0, %v1191
      %v1193 = vpop.f32.mrb[0].mxu0
      %1194 = vdwg.mxu0
      %v1195 = vadd.f32 %v1045, %v1157
      %v1196 = vadd.f32 %v1046, %v1162
      %v1197 = vadd.f32 %v1047, %v1167
      %v1198 = vadd.f32 %v1048, %v1172
      %v1199 = vadd.f32 %v1049, %v1177
      %v1200 = vadd.f32 %v1050, %v1182
      %v1201 = vadd.f32 %v1051, %v1187
      %v1202 = vadd.f32 %v1052, %v1192
      %s1203 = scalar_lea.vmem [#allocation2], 32
      %v1204 = vld [vmem:[%s1203] sm:$0xff]
      %v1205 = vld [vmem:[%s1203 + $0x10] sm:$0xff]
      %v1206 = vld [vmem:[%s1203 + $0x20] sm:$0xff]
      %v1207 = vld [vmem:[%s1203 + $0x30] sm:$0xff]
      %v1208 = vld [vmem:[%s1203 + $0x40] sm:$0xff]
      %v1209 = vld [vmem:[%s1203 + $0x50] sm:$0xff]
      %v1210 = vld [vmem:[%s1203 + $0x60] sm:$0xff]
      %v1211 = vld [vmem:[%s1203 + $0x70] sm:$0xff]
      %s1212 = scalar_lea.vmem %s1, 48
      %v1213 = vld [vmem:[%s1212] sm:$0xf]
      %v1215 = vsel %vm310, %v1204, 0
      %v1218 = vsel %vm310, %v1205, 0
      %v1221 = vsel %vm310, %v1206, 0
      %v1224 = vsel %vm310, %v1207, 0
      %v1227 = vsel %vm310, %v1208, 0
      %v1230 = vsel %vm310, %v1209, 0
      %v1233 = vsel %vm310, %v1210, 0
      %v1236 = vsel %vm310, %v1211, 0
      %v1239 = vsel %vm362, %v1213, 0
      %1241 = vmatprep.subr.mxu0 0.0
      %1242 = vmatpush1.msra.mxu0 %v1239
      %1243 = vmatprep.subr.mxu0 0.0
      %1244 = vmatpush1.msra.mxu0 0.0
      %1245 = vmatprep.subr.mxu0 0.0
      %1246 = vmatpush1.msra.mxu0 0.0
      %1247 = vmatprep.subr.mxu0 0.0
      %1248 = vmatpush1.msra.mxu0 0.0
      %1249 = vmatprep.subr.mxu0 0.0
      %1250 = vmatpush1.msra.mxu0 0.0
      %1251 = vmatprep.subr.mxu0 0.0
      %1252 = vmatpush1.msra.mxu0 0.0
      %1253 = vmatprep.subr.mxu0 0.0
      %1254 = vmatpush1.msra.mxu0 0.0
      %1255 = vmatprep.subr.mxu0 0.0
      %1256 = vmatpush1.msra.mxu0 0.0
      %1257 = vmatprep.subr.mxu0 0.0
      %1258 = vmatpush1.msra.mxu0 0.0
      %1259 = vmatprep.subr.mxu0 0.0
      %1260 = vmatpush1.msra.mxu0 0.0
      %1261 = vmatprep.subr.mxu0 0.0
      %1262 = vmatpush1.msra.mxu0 0.0
      %1263 = vmatprep.subr.mxu0 0.0
      %1264 = vmatpush1.msra.mxu0 0.0
      %1265 = vmatprep.subr.mxu0 0.0
      %1266 = vmatpush1.msra.mxu0 0.0
      %1267 = vmatprep.subr.mxu0 0.0
      %1268 = vmatpush1.msra.mxu0 0.0
      %1269 = vmatprep.subr.mxu0 0.0
      %1270 = vmatpush1.msra.mxu0 0.0
      %1271 = vmatprep.subr.mxu0 0.0
      %1272 = vmatpush1.msra.mxu0 0.0
      %1273 = vmatprep.subr.mxu0 0.0
      %1274 = vmatpush1.msra.mxu0 0.0
      %1275 = vmatprep.subr.mxu0 0.0
      %1276 = vmatpush1.msra.mxu0 0.0
      %1277 = vmatprep.subr.mxu0 0.0
      %1278 = vmatpush1.msra.mxu0 0.0
      %1279 = vmatprep.subr.mxu0 0.0
      %1280 = vmatpush1.msra.mxu0 0.0
      %1281 = vmatprep.subr.mxu0 0.0
      %1282 = vmatpush1.msra.mxu0 0.0
      %1283 = vmatprep.subr.mxu0 0.0
      %1284 = vmatpush1.msra.mxu0 0.0
      %1285 = vmatprep.subr.mxu0 0.0
      %1286 = vmatpush1.msra.mxu0 0.0
      %1287 = vmatprep.subr.mxu0 0.0
      %1288 = vmatpush1.msra.mxu0 0.0
      %1289 = vmatprep.subr.mxu0 0.0
      %1290 = vmatpush1.msra.mxu0 0.0
      %1291 = vmatprep.subr.mxu0 0.0
      %1292 = vmatpush1.msra.mxu0 0.0
      %1293 = vmatprep.subr.mxu0 0.0
      %1294 = vmatpush1.msra.mxu0 0.0
      %1295 = vmatprep.subr.mxu0 0.0
      %1296 = vmatpush1.msra.mxu0 0.0
      %1297 = vmatprep.subr.mxu0 0.0
      %1298 = vmatpush1.msra.mxu0 0.0
      %1299 = vmatprep.subr.mxu0 0.0
      %1300 = vmatpush1.msra.mxu0 0.0
      %1301 = vmatprep.subr.mxu0 0.0
      %1302 = vmatpush1.msra.mxu0 0.0
      %1303 = vmatprep.subr.mxu0 0.0
      %1304 = vmatpush1.msra.mxu0 0.0
      %1305 = vmatprep.mubr.f32.mxu0 0.0
      %1306 = vmatmul.mubr.f32.gmra.mrb[0].mxu0 %v1215
      %v1307 = vpop.f32.mrb[0].mxu0
      %v1308 = vadd.f32 0.0, %v1307
      %v1309 = vpop.f32.mrb[0].mxu0
      %1310 = vmatprep.mubr.f32.mxu0 0.0
      %1311 = vmatmul.mubr.f32.gmra.mrb[0].mxu0 %v1218
      %v1312 = vpop.f32.mrb[0].mxu0
      %v1313 = vadd.f32 0.0, %v1312
      %v1314 = vpop.f32.mrb[0].mxu0
      %1315 = vmatprep.mubr.f32.mxu0 0.0
      %1316 = vmatmul.mubr.f32.gmra.mrb[0].mxu0 %v1221
      %v1317 = vpop.f32.mrb[0].mxu0
      %v1318 = vadd.f32 0.0, %v1317
      %v1319 = vpop.f32.mrb[0].mxu0
      %1320 = vmatprep.mubr.f32.mxu0 0.0
      %1321 = vmatmul.mubr.f32.gmra.mrb[0].mxu0 %v1224
      %v1322 = vpop.f32.mrb[0].mxu0
      %v1323 = vadd.f32 0.0, %v1322
      %v1324 = vpop.f32.mrb[0].mxu0
      %1325 = vmatprep.mubr.f32.mxu0 0.0
      %1326 = vmatmul.mubr.f32.gmra.mrb[0].mxu0 %v1227
      %v1327 = vpop.f32.mrb[0].mxu0
      %v1328 = vadd.f32 0.0, %v1327
      %v1329 = vpop.f32.mrb[0].mxu0
      %1330 = vmatprep.mubr.f32.mxu0 0.0
      %1331 = vmatmul.mubr.f32.gmra.mrb[0].mxu0 %v1230
      %v1332 = vpop.f32.mrb[0].mxu0
      %v1333 = vadd.f32 0.0, %v1332
      %v1334 = vpop.f32.mrb[0].mxu0
      %1335 = vmatprep.mubr.f32.mxu0 0.0
      %1336 = vmatmul.mubr.f32.gmra.mrb[0].mxu0 %v1233
      %v1337 = vpop.f32.mrb[0].mxu0
      %v1338 = vadd.f32 0.0, %v1337
      %v1339 = vpop.f32.mrb[0].mxu0
      %1340 = vmatprep.mubr.f32.mxu0 0.0
      %1341 = vmatmul.mubr.f32.gmra.mrb[0].mxu0 %v1236
      %v1342 = vpop.f32.mrb[0].mxu0
      %v1343 = vadd.f32 0.0, %v1342
      %v1344 = vpop.f32.mrb[0].mxu0
      %1345 = vdwg.mxu0
      %v1346 = vadd.f32 %v1195, %v1308
      %v1347 = vadd.f32 %v1196, %v1313
      %v1348 = vadd.f32 %v1197, %v1318
      %v1349 = vadd.f32 %v1198, %v1323
      %v1350 = vadd.f32 %v1199, %v1328
      %v1351 = vadd.f32 %v1200, %v1333
      %v1352 = vadd.f32 %v1201, %v1338
      %v1353 = vadd.f32 %v1202, %v1343
      %v1354 = vld [vmem:[%s1203 + $0x1] sm:$0xff]
      %v1355 = vld [vmem:[%s1203 + $0x11] sm:$0xff]
      %v1356 = vld [vmem:[%s1203 + $0x21] sm:$0xff]
      %v1357 = vld [vmem:[%s1203 + $0x31] sm:$0xff]
      %v1358 = vld [vmem:[%s1203 + $0x41] sm:$0xff]
      %v1359 = vld [vmem:[%s1203 + $0x51] sm:$0xff]
      %v1360 = vld [vmem:[%s1203 + $0x61] sm:$0xff]
      %v1361 = vld [vmem:[%s1203 + $0x71] sm:$0xff]
      %s1362 = scalar_lea.vmem %s1, 56
      %v1363 = vld [vmem:[%s1362] sm:$0xf]
      %v1365 = vsel %vm310, %v1354, 0
      %v1368 = vsel %vm310, %v1355, 0
      %v1371 = vsel %vm310, %v1356, 0
      %v1374 = vsel %vm310, %v1357, 0
      %v1377 = vsel %vm310, %v1358, 0
      %v1380 = vsel %vm310, %v1359, 0
      %v1383 = vsel %vm310, %v1360, 0
      %v1386 = vsel %vm310, %v1361, 0
      %v1389 = vsel %vm362, %v1363, 0
      %1391 = vmatprep.subr.mxu0 0.0
      %1392 = vmatpush1.msra.mxu0 %v1389
      %1393 = vmatprep.subr.mxu0 0.0
      %1394 = vmatpush1.msra.mxu0 0.0
      %1395 = vmatprep.subr.mxu0 0.0
      %1396 = vmatpush1.msra.mxu0 0.0
      %1397 = vmatprep.subr.mxu0 0.0
      %1398 = vmatpush1.msra.mxu0 0.0
      %1399 = vmatprep.subr.mxu0 0.0
      %1400 = vmatpush1.msra.mxu0 0.0
      %1401 = vmatprep.subr.mxu0 0.0
      %1402 = vmatpush1.msra.mxu0 0.0
      %1403 = vmatprep.subr.mxu0 0.0
      %1404 = vmatpush1.msra.mxu0 0.0
      %1405 = vmatprep.subr.mxu0 0.0
      %1406 = vmatpush1.msra.mxu0 0.0
      %1407 = vmatprep.subr.mxu0 0.0
      %1408 = vmatpush1.msra.mxu0 0.0
      %1409 = vmatprep.subr.mxu0 0.0
      %1410 = vmatpush1.msra.mxu0 0.0
      %1411 = vmatprep.subr.mxu0 0.0
      %1412 = vmatpush1.msra.mxu0 0.0
      %1413 = vmatprep.subr.mxu0 0.0
      %1414 = vmatpush1.msra.mxu0 0.0
      %1415 = vmatprep.subr.mxu0 0.0
      %1416 = vmatpush1.msra.mxu0 0.0
      %1417 = vmatprep.subr.mxu0 0.0
      %1418 = vmatpush1.msra.mxu0 0.0
      %1419 = vmatprep.subr.mxu0 0.0
      %1420 = vmatpush1.msra.mxu0 0.0
      %1421 = vmatprep.subr.mxu0 0.0
      %1422 = vmatpush1.msra.mxu0 0.0
      %1423 = vmatprep.subr.mxu0 0.0
      %1424 = vmatpush1.msra.mxu0 0.0
      %1425 = vmatprep.subr.mxu0 0.0
      %1426 = vmatpush1.msra.mxu0 0.0
      %1427 = vmatprep.subr.mxu0 0.0
      %1428 = vmatpush1.msra.mxu0 0.0
      %1429 = vmatprep.subr.mxu0 0.0
      %1430 = vmatpush1.msra.mxu0 0.0
      %1431 = vmatprep.subr.mxu0 0.0
      %1432 = vmatpush1.msra.mxu0 0.0
      %1433 = vmatprep.subr.mxu0 0.0
      %1434 = vmatpush1.msra.mxu0 0.0
      %1435 = vmatprep.subr.mxu0 0.0
      %1436 = vmatpush1.msra.mxu0 0.0
      %1437 = vmatprep.subr.mxu0 0.0
      %1438 = vmatpush1.msra.mxu0 0.0
      %1439 = vmatprep.subr.mxu0 0.0
      %1440 = vmatpush1.msra.mxu0 0.0
      %1441 = vmatprep.subr.mxu0 0.0
      %1442 = vmatpush1.msra.mxu0 0.0
      %1443 = vmatprep.subr.mxu0 0.0
      %1444 = vmatpush1.msra.mxu0 0.0
      %1445 = vmatprep.subr.mxu0 0.0
      %1446 = vmatpush1.msra.mxu0 0.0
      %1447 = vmatprep.subr.mxu0 0.0
      %1448 = vmatpush1.msra.mxu0 0.0
      %1449 = vmatprep.subr.mxu0 0.0
      %1450 = vmatpush1.msra.mxu0 0.0
      %1451 = vmatprep.subr.mxu0 0.0
      %1452 = vmatpush1.msra.mxu0 0.0
      %1453 = vmatprep.subr.mxu0 0.0
      %1454 = vmatpush1.msra.mxu0 0.0
      %1455 = vmatprep.mubr.f32.mxu0 0.0
      %1456 = vmatmul.mubr.f32.gmra.mrb[0].mxu0 %v1365
      %v1457 = vpop.f32.mrb[0].mxu0
      %v1458 = vadd.f32 0.0, %v1457
      %v1459 = vpop.f32.mrb[0].mxu0
      %1460 = vmatprep.mubr.f32.mxu0 0.0
      %1461 = vmatmul.mubr.f32.gmra.mrb[0].mxu0 %v1368
      %v1462 = vpop.f32.mrb[0].mxu0
      %v1463 = vadd.f32 0.0, %v1462
      %v1464 = vpop.f32.mrb[0].mxu0
      %1465 = vmatprep.mubr.f32.mxu0 0.0
      %1466 = vmatmul.mubr.f32.gmra.mrb[0].mxu0 %v1371
      %v1467 = vpop.f32.mrb[0].mxu0
      %v1468 = vadd.f32 0.0, %v1467
      %v1469 = vpop.f32.mrb[0].mxu0
      %1470 = vmatprep.mubr.f32.mxu0 0.0
      %1471 = vmatmul.mubr.f32.gmra.mrb[0].mxu0 %v1374
      %v1472 = vpop.f32.mrb[0].mxu0
      %v1473 = vadd.f32 0.0, %v1472
      %v1474 = vpop.f32.mrb[0].mxu0
      %1475 = vmatprep.mubr.f32.mxu0 0.0
      %1476 = vmatmul.mubr.f32.gmra.mrb[0].mxu0 %v1377
      %v1477 = vpop.f32.mrb[0].mxu0
      %v1478 = vadd.f32 0.0, %v1477
      %v1479 = vpop.f32.mrb[0].mxu0
      %1480 = vmatprep.mubr.f32.mxu0 0.0
      %1481 = vmatmul.mubr.f32.gmra.mrb[0].mxu0 %v1380
      %v1482 = vpop.f32.mrb[0].mxu0
      %v1483 = vadd.f32 0.0, %v1482
      %v1484 = vpop.f32.mrb[0].mxu0
      %1485 = vmatprep.mubr.f32.mxu0 0.0
      %1486 = vmatmul.mubr.f32.gmra.mrb[0].mxu0 %v1383
      %v1487 = vpop.f32.mrb[0].mxu0
      %v1488 = vadd.f32 0.0, %v1487
      %v1489 = vpop.f32.mrb[0].mxu0
      %1490 = vmatprep.mubr.f32.mxu0 0.0
      %1491 = vmatmul.mubr.f32.gmra.mrb[0].mxu0 %v1386
      %v1492 = vpop.f32.mrb[0].mxu0
      %v1493 = vadd.f32 0.0, %v1492
      %v1494 = vpop.f32.mrb[0].mxu0
      %1495 = vdwg.mxu0
      %v1496 = vadd.f32 %v1346, %v1458
      %v1497 = vadd.f32 %v1347, %v1463
      %v1498 = vadd.f32 %v1348, %v1468
      %v1499 = vadd.f32 %v1349, %v1473
      %v1500 = vadd.f32 %v1350, %v1478
      %v1501 = vadd.f32 %v1351, %v1483
      %v1502 = vadd.f32 %v1352, %v1488
      %v1503 = vadd.f32 %v1353, %v1493
      %v1504 = vld [vmem:[%s1203 + $0x2] sm:$0xff]
      %v1505 = vld [vmem:[%s1203 + $0x12] sm:$0xff]
      %v1506 = vld [vmem:[%s1203 + $0x22] sm:$0xff]
      %v1507 = vld [vmem:[%s1203 + $0x32] sm:$0xff]
      %v1508 = vld [vmem:[%s1203 + $0x42] sm:$0xff]
      %v1509 = vld [vmem:[%s1203 + $0x52] sm:$0xff]
      %v1510 = vld [vmem:[%s1203 + $0x62] sm:$0xff]
      %v1511 = vld [vmem:[%s1203 + $0x72] sm:$0xff]
      %s1512 = scalar_lea.vmem %s1, 64
      %v1513 = vld [vmem:[%s1512] sm:$0xf]
      %v1515 = vsel %vm310, %v1504, 0
      %v1518 = vsel %vm310, %v1505, 0
      %v1521 = vsel %vm310, %v1506, 0
      %v1524 = vsel %vm310, %v1507, 0
      %v1527 = vsel %vm310, %v1508, 0
      %v1530 = vsel %vm310, %v1509, 0
      %v1533 = vsel %vm310, %v1510, 0
      %v1536 = vsel %vm310, %v1511, 0
      %v1539 = vsel %vm362, %v1513, 0
      %1541 = vmatprep.subr.mxu0 0.0
      %1542 = vmatpush1.msra.mxu0 %v1539
      %1543 = vmatprep.subr.mxu0 0.0
      %1544 = vmatpush1.msra.mxu0 0.0
      %1545 = vmatprep.subr.mxu0 0.0
      %1546 = vmatpush1.msra.mxu0 0.0
      %1547 = vmatprep.subr.mxu0 0.0
      %1548 = vmatpush1.msra.mxu0 0.0
      %1549 = vmatprep.subr.mxu0 0.0
      %1550 = vmatpush1.msra.mxu0 0.0
      %1551 = vmatprep.subr.mxu0 0.0
      %1552 = vmatpush1.msra.mxu0 0.0
      %1553 = vmatprep.subr.mxu0 0.0
      %1554 = vmatpush1.msra.mxu0 0.0
      %1555 = vmatprep.subr.mxu0 0.0
      %1556 = vmatpush1.msra.mxu0 0.0
      %1557 = vmatprep.subr.mxu0 0.0
      %1558 = vmatpush1.msra.mxu0 0.0
      %1559 = vmatprep.subr.mxu0 0.0
      %1560 = vmatpush1.msra.mxu0 0.0
      %1561 = vmatprep.subr.mxu0 0.0
      %1562 = vmatpush1.msra.mxu0 0.0
      %1563 = vmatprep.subr.mxu0 0.0
      %1564 = vmatpush1.msra.mxu0 0.0
      %1565 = vmatprep.subr.mxu0 0.0
      %1566 = vmatpush1.msra.mxu0 0.0
      %1567 = vmatprep.subr.mxu0 0.0
      %1568 = vmatpush1.msra.mxu0 0.0
      %1569 = vmatprep.subr.mxu0 0.0
      %1570 = vmatpush1.msra.mxu0 0.0
      %1571 = vmatprep.subr.mxu0 0.0
      %1572 = vmatpush1.msra.mxu0 0.0
      %1573 = vmatprep.subr.mxu0 0.0
      %1574 = vmatpush1.msra.mxu0 0.0
      %1575 = vmatprep.subr.mxu0 0.0
      %1576 = vmatpush1.msra.mxu0 0.0
      %1577 = vmatprep.subr.mxu0 0.0
      %1578 = vmatpush1.msra.mxu0 0.0
      %1579 = vmatprep.subr.mxu0 0.0
      %1580 = vmatpush1.msra.mxu0 0.0
      %1581 = vmatprep.subr.mxu0 0.0
      %1582 = vmatpush1.msra.mxu0 0.0
      %1583 = vmatprep.subr.mxu0 0.0
      %1584 = vmatpush1.msra.mxu0 0.0
      %1585 = vmatprep.subr.mxu0 0.0
      %1586 = vmatpush1.msra.mxu0 0.0
      %1587 = vmatprep.subr.mxu0 0.0
      %1588 = vmatpush1.msra.mxu0 0.0
      %1589 = vmatprep.subr.mxu0 0.0
      %1590 = vmatpush1.msra.mxu0 0.0
      %1591 = vmatprep.subr.mxu0 0.0
      %1592 = vmatpush1.msra.mxu0 0.0
      %1593 = vmatprep.subr.mxu0 0.0
      %1594 = vmatpush1.msra.mxu0 0.0
      %1595 = vmatprep.subr.mxu0 0.0
      %1596 = vmatpush1.msra.mxu0 0.0
      %1597 = vmatprep.subr.mxu0 0.0
      %1598 = vmatpush1.msra.mxu0 0.0
      %1599 = vmatprep.subr.mxu0 0.0
      %1600 = vmatpush1.msra.mxu0 0.0
      %1601 = vmatprep.subr.mxu0 0.0
      %1602 = vmatpush1.msra.mxu0 0.0
      %1603 = vmatprep.subr.mxu0 0.0
      %1604 = vmatpush1.msra.mxu0 0.0
      %1605 = vmatprep.mubr.f32.mxu0 0.0
      %1606 = vmatmul.mubr.f32.gmra.mrb[0].mxu0 %v1515
      %v1607 = vpop.f32.mrb[0].mxu0
      %v1608 = vadd.f32 0.0, %v1607
      %v1609 = vpop.f32.mrb[0].mxu0
      %1610 = vmatprep.mubr.f32.mxu0 0.0
      %1611 = vmatmul.mubr.f32.gmra.mrb[0].mxu0 %v1518
      %v1612 = vpop.f32.mrb[0].mxu0
      %v1613 = vadd.f32 0.0, %v1612
      %v1614 = vpop.f32.mrb[0].mxu0
      %1615 = vmatprep.mubr.f32.mxu0 0.0
      %1616 = vmatmul.mubr.f32.gmra.mrb[0].mxu0 %v1521
      %v1617 = vpop.f32.mrb[0].mxu0
      %v1618 = vadd.f32 0.0, %v1617
      %v1619 = vpop.f32.mrb[0].mxu0
      %1620 = vmatprep.mubr.f32.mxu0 0.0
      %1621 = vmatmul.mubr.f32.gmra.mrb[0].mxu0 %v1524
      %v1622 = vpop.f32.mrb[0].mxu0
      %v1623 = vadd.f32 0.0, %v1622
      %v1624 = vpop.f32.mrb[0].mxu0
      %1625 = vmatprep.mubr.f32.mxu0 0.0
      %1626 = vmatmul.mubr.f32.gmra.mrb[0].mxu0 %v1527
      %v1627 = vpop.f32.mrb[0].mxu0
      %v1628 = vadd.f32 0.0, %v1627
      %v1629 = vpop.f32.mrb[0].mxu0
      %1630 = vmatprep.mubr.f32.mxu0 0.0
      %1631 = vmatmul.mubr.f32.gmra.mrb[0].mxu0 %v1530
      %v1632 = vpop.f32.mrb[0].mxu0
      %v1633 = vadd.f32 0.0, %v1632
      %v1634 = vpop.f32.mrb[0].mxu0
      %1635 = vmatprep.mubr.f32.mxu0 0.0
      %1636 = vmatmul.mubr.f32.gmra.mrb[0].mxu0 %v1533
      %v1637 = vpop.f32.mrb[0].mxu0
      %v1638 = vadd.f32 0.0, %v1637
      %v1639 = vpop.f32.mrb[0].mxu0
      %1640 = vmatprep.mubr.f32.mxu0 0.0
      %1641 = vmatmul.mubr.f32.gmra.mrb[0].mxu0 %v1536
      %v1642 = vpop.f32.mrb[0].mxu0
      %v1643 = vadd.f32 0.0, %v1642
      %v1644 = vpop.f32.mrb[0].mxu0
      %1645 = vdwg.mxu0
      %v1646 = vadd.f32 %v1496, %v1608
      %v1647 = vadd.f32 %v1497, %v1613
      %v1648 = vadd.f32 %v1498, %v1618
      %v1649 = vadd.f32 %v1499, %v1623
      %v1650 = vadd.f32 %v1500, %v1628
      %v1651 = vadd.f32 %v1501, %v1633
      %v1652 = vadd.f32 %v1502, %v1638
      %v1653 = vadd.f32 %v1503, %v1643
      %v1654 = vld [vmem:[%s2] sm:$0x1]
      %v1655 = vld [vmem:[%s2 + $0x1] sm:$0x1]
      %v1656 = vsel %vm223, %v1646, 0.0
      %v1657 = vsel %vm223, %v1647, 0.0
      %v1658 = vadd.f32 %v1656, %v1657
      %v1659 = vsel %vm223, %v1648, 0.0
      %v1660 = vadd.f32 %v1658, %v1659
      %v1661 = vsel %vm223, %v1649, 0.0
      %v1662 = vadd.f32 %v1660, %v1661
      %v1663 = vsel %vm223, %v1650, 0.0
      %v1664 = vadd.f32 %v1662, %v1663
      %v1665 = vsel %vm223, %v1651, 0.0
      %v1666 = vadd.f32 %v1664, %v1665
      %v1667 = vsel %vm223, %v1652, 0.0
      %v1668 = vadd.f32 %v1666, %v1667
      %v1669 = vsel %vm223, %v1653, 0.0
      %v1670 = vadd.f32 %v1668, %v1669
      %1671 = vadd.xlane.f32.xlu0 %v1670
      %v1672 = vpop.xlane.xlu0 %1671
      %v1673 = vrot.slane %v1672, 4
      %v1674 = vadd.f32 %v1672, %v1673
      %v1675 = vrot.slane %v1674, 2
      %v1676 = vadd.f32 %v1674, %v1675
      %v1677 = vrot.slane %v1676, 1
      %v1678 = vadd.f32 %v1676, %v1677
      %v1679 = vmul.f32 %v1646, %v1646
      %v1680 = vmul.f32 %v1647, %v1647
      %v1681 = vmul.f32 %v1648, %v1648
      %v1682 = vmul.f32 %v1649, %v1649
      %v1683 = vmul.f32 %v1650, %v1650
      %v1684 = vmul.f32 %v1651, %v1651
      %v1685 = vmul.f32 %v1652, %v1652
      %v1686 = vmul.f32 %v1653, %v1653
      %v1687 = vsel %vm223, %v1679, 0.0
      %v1688 = vsel %vm223, %v1680, 0.0
      %v1689 = vadd.f32 %v1687, %v1688
      %v1690 = vsel %vm223, %v1681, 0.0
      %v1691 = vadd.f32 %v1689, %v1690
      %v1692 = vsel %vm223, %v1682, 0.0
      %v1693 = vadd.f32 %v1691, %v1692
      %v1694 = vsel %vm223, %v1683, 0.0
      %v1695 = vadd.f32 %v1693, %v1694
      %v1696 = vsel %vm223, %v1684, 0.0
      %v1697 = vadd.f32 %v1695, %v1696
      %v1698 = vsel %vm223, %v1685, 0.0
      %v1699 = vadd.f32 %v1697, %v1698
      %v1700 = vsel %vm223, %v1686, 0.0
      %v1701 = vadd.f32 %v1699, %v1700
      %1702 = vadd.xlane.f32.xlu0 %v1701
      %v1703 = vpop.xlane.xlu0 %1702
      %v1704 = vrot.slane %v1703, 4
      %v1705 = vadd.f32 %v1703, %v1704
      %v1706 = vrot.slane %v1705, 2
      %v1707 = vadd.f32 %v1705, %v1706
      %v1708 = vrot.slane %v1707, 1
      %v1709 = vadd.f32 %v1707, %v1708
      %v1710 = vmul.f32 %v1678, 0.001953125
      %v1711 = vmul.f32 %v1709, 0.001953125
      %v1712 = vmul.f32 %v1710, %v1710
      %v1713 = vsub.f32 %v1711, %v1712
      %v1714 = vsub.f32 %v1646, %v1710
      %v1715 = vsub.f32 %v1647, %v1710
      %v1716 = vsub.f32 %v1648, %v1710
      %v1717 = vsub.f32 %v1649, %v1710
      %v1718 = vsub.f32 %v1650, %v1710
      %v1719 = vsub.f32 %v1651, %v1710
      %v1720 = vsub.f32 %v1652, %v1710
      %v1721 = vsub.f32 %v1653, %v1710
      %v1722 = vadd.f32 %v1713, 1e-05
      %v1723 = vrsqrt.pop %v1722
      %v1724 = vmul.f32 %v1714, %v1723
      %v1725 = vmul.f32 %v1715, %v1723
      %v1726 = vmul.f32 %v1716, %v1723
      %v1727 = vmul.f32 %v1717, %v1723
      %v1728 = vmul.f32 %v1718, %v1723
      %v1729 = vmul.f32 %v1719, %v1723
      %v1730 = vmul.f32 %v1720, %v1723
      %v1731 = vmul.f32 %v1721, %v1723
      %v1732 = vlaneseq
      %v1733 = vshrl.u32 %v1732, 7
      %v1734 = vsub.s32 0, %v1733
      %v1735 = vrot.slane %v1654, %v1734
      %v1736 = vmul.f32 %v1724, %v1735
      %v1737 = vmul.f32 %v1725, %v1735
      %v1738 = vmul.f32 %v1726, %v1735
      %v1739 = vmul.f32 %v1727, %v1735
      %v1740 = vmul.f32 %v1728, %v1735
      %v1741 = vmul.f32 %v1729, %v1735
      %v1742 = vmul.f32 %v1730, %v1735
      %v1743 = vmul.f32 %v1731, %v1735
      %v1744 = vlaneseq
      %v1745 = vshrl.u32 %v1744, 7
      %v1746 = vsub.s32 0, %v1745
      %v1747 = vrot.slane %v1655, %v1746
      %v1748 = vadd.f32 %v1736, %v1747
      %v1749 = vadd.f32 %v1737, %v1747
      %v1750 = vadd.f32 %v1738, %v1747
      %v1751 = vadd.f32 %v1739, %v1747
      %v1752 = vadd.f32 %v1740, %v1747
      %v1753 = vadd.f32 %v1741, %v1747
      %v1754 = vadd.f32 %v1742, %v1747
      %v1755 = vadd.f32 %v1743, %v1747
      %v1756 = vmul.f32 %v1748, 0.5
      %v1757 = vmul.f32 %v1749, 0.5
      %v1758 = vmul.f32 %v1750, 0.5
      %v1759 = vmul.f32 %v1751, 0.5
      %v1760 = vmul.f32 %v1752, 0.5
      %v1761 = vmul.f32 %v1753, 0.5
      %v1762 = vmul.f32 %v1754, 0.5
      %v1763 = vmul.f32 %v1755, 0.5
      %v1764 = vmul.f32 %v1748, 0.70710677
      %v1765 = vmul.f32 %v1749, 0.70710677
      %v1766 = vmul.f32 %v1750, 0.70710677
      %v1767 = vmul.f32 %v1751, 0.70710677
      %v1768 = vmul.f32 %v1752, 0.70710677
      %v1769 = vmul.f32 %v1753, 0.70710677
      %v1770 = vmul.f32 %v1754, 0.70710677
      %v1771 = vmul.f32 %v1755, 0.70710677
      %v1772 = vand.u32 2147483647, %v1764
      %v1773 = vand.u32 2147483647, %v1765
      %v1774 = vand.u32 2147483647, %v1766
      %v1775 = vand.u32 2147483647, %v1767
      %v1776 = vand.u32 2147483647, %v1768
      %v1777 = vand.u32 2147483647, %v1769
      %v1778 = vand.u32 2147483647, %v1770
      %v1779 = vand.u32 2147483647, %v1771
      %v1780 = vmul.f32 %v1772, 0.3275911
      %v1781 = vmul.f32 %v1773, 0.3275911
      %v1782 = vmul.f32 %v1774, 0.3275911
      %v1783 = vmul.f32 %v1775, 0.3275911
      %v1784 = vmul.f32 %v1776, 0.3275911
      %v1785 = vmul.f32 %v1777, 0.3275911
      %v1786 = vmul.f32 %v1778, 0.3275911
      %v1787 = vmul.f32 %v1779, 0.3275911
      %v1788 = vadd.f32 %v1780, 1.0
      %v1789 = vadd.f32 %v1781, 1.0
      %v1790 = vadd.f32 %v1782, 1.0
      %v1791 = vadd.f32 %v1783, 1.0
      %v1792 = vadd.f32 %v1784, 1.0
      %v1793 = vadd.f32 %v1785, 1.0
      %v1794 = vadd.f32 %v1786, 1.0
      %v1795 = vadd.f32 %v1787, 1.0
      %v1796 = vrcp.pop %v1788
      %v1797 = vrcp.pop %v1789
      %v1798 = vrcp.pop %v1790
      %v1799 = vrcp.pop %v1791
      %v1800 = vrcp.pop %v1792
      %v1801 = vrcp.pop %v1793
      %v1802 = vrcp.pop %v1794
      %v1803 = vrcp.pop %v1795
      %v1804 = vmul.f32 %v1796, 1.0614054
      %v1805 = vmul.f32 %v1797, 1.0614054
      %v1806 = vmul.f32 %v1798, 1.0614054
      %v1807 = vmul.f32 %v1799, 1.0614054
      %v1808 = vmul.f32 %v1800, 1.0614054
      %v1809 = vmul.f32 %v1801, 1.0614054
      %v1810 = vmul.f32 %v1802, 1.0614054
      %v1811 = vmul.f32 %v1803, 1.0614054
      %v1812 = vadd.f32 %v1804, -1.4531521
      %v1813 = vadd.f32 %v1805, -1.4531521
      %v1814 = vadd.f32 %v1806, -1.4531521
      %v1815 = vadd.f32 %v1807, -1.4531521
      %v1816 = vadd.f32 %v1808, -1.4531521
      %v1817 = vadd.f32 %v1809, -1.4531521
      %v1818 = vadd.f32 %v1810, -1.4531521
      %v1819 = vadd.f32 %v1811, -1.4531521
      %v1820 = vmul.f32 %v1812, %v1796
      %v1821 = vmul.f32 %v1813, %v1797
      %v1822 = vmul.f32 %v1814, %v1798
      %v1823 = vmul.f32 %v1815, %v1799
      %v1824 = vmul.f32 %v1816, %v1800
      %v1825 = vmul.f32 %v1817, %v1801
      %v1826 = vmul.f32 %v1818, %v1802
      %v1827 = vmul.f32 %v1819, %v1803
      %v1828 = vadd.f32 %v1820, 1.4214138
      %v1829 = vadd.f32 %v1821, 1.4214138
      %v1830 = vadd.f32 %v1822, 1.4214138
      %v1831 = vadd.f32 %v1823, 1.4214138
      %v1832 = vadd.f32 %v1824, 1.4214138
      %v1833 = vadd.f32 %v1825, 1.4214138
      %v1834 = vadd.f32 %v1826, 1.4214138
      %v1835 = vadd.f32 %v1827, 1.4214138
      %v1836 = vmul.f32 %v1828, %v1796
      %v1837 = vmul.f32 %v1829, %v1797
      %v1838 = vmul.f32 %v1830, %v1798
      %v1839 = vmul.f32 %v1831, %v1799
      %v1840 = vmul.f32 %v1832, %v1800
      %v1841 = vmul.f32 %v1833, %v1801
      %v1842 = vmul.f32 %v1834, %v1802
      %v1843 = vmul.f32 %v1835, %v1803
      %v1844 = vadd.f32 %v1836, -0.28449672
      %v1845 = vadd.f32 %v1837, -0.28449672
      %v1846 = vadd.f32 %v1838, -0.28449672
      %v1847 = vadd.f32 %v1839, -0.28449672
      %v1848 = vadd.f32 %v1840, -0.28449672
      %v1849 = vadd.f32 %v1841, -0.28449672
      %v1850 = vadd.f32 %v1842, -0.28449672
      %v1851 = vadd.f32 %v1843, -0.28449672
      %v1852 = vmul.f32 %v1844, %v1796
      %v1853 = vmul.f32 %v1845, %v1797
      %v1854 = vmul.f32 %v1846, %v1798
      %v1855 = vmul.f32 %v1847, %v1799
      %v1856 = vmul.f32 %v1848, %v1800
      %v1857 = vmul.f32 %v1849, %v1801
      %v1858 = vmul.f32 %v1850, %v1802
      %v1859 = vmul.f32 %v1851, %v1803
      %v1860 = vadd.f32 %v1852, 0.2548296
      %v1861 = vadd.f32 %v1853, 0.2548296
      %v1862 = vadd.f32 %v1854, 0.2548296
      %v1863 = vadd.f32 %v1855, 0.2548296
      %v1864 = vadd.f32 %v1856, 0.2548296
      %v1865 = vadd.f32 %v1857, 0.2548296
      %v1866 = vadd.f32 %v1858, 0.2548296
      %v1867 = vadd.f32 %v1859, 0.2548296
      %v1868 = vmul.f32 %v1860, %v1796
      %v1869 = vmul.f32 %v1861, %v1797
      %v1870 = vmul.f32 %v1862, %v1798
      %v1871 = vmul.f32 %v1863, %v1799
      %v1872 = vmul.f32 %v1864, %v1800
      %v1873 = vmul.f32 %v1865, %v1801
      %v1874 = vmul.f32 %v1866, %v1802
      %v1875 = vmul.f32 %v1867, %v1803
      %v1876 = vsub.f32 0.0, %v1772
      %v1877 = vsub.f32 0.0, %v1773
      %v1878 = vsub.f32 0.0, %v1774
      %v1879 = vsub.f32 0.0, %v1775
      %v1880 = vsub.f32 0.0, %v1776
      %v1881 = vsub.f32 0.0, %v1777
      %v1882 = vsub.f32 0.0, %v1778
      %v1883 = vsub.f32 0.0, %v1779
      %v1884 = vmul.f32 %v1876, %v1772
      %v1885 = vmul.f32 %v1877, %v1773
      %v1886 = vmul.f32 %v1878, %v1774
      %v1887 = vmul.f32 %v1879, %v1775
      %v1888 = vmul.f32 %v1880, %v1776
      %v1889 = vmul.f32 %v1881, %v1777
      %v1890 = vmul.f32 %v1882, %v1778
      %v1891 = vmul.f32 %v1883, %v1779
      %v1892 = vmul.f32 %v1884, 1.442695
      %v1893 = vpow.pop %v1892
      %v1894 = vmul.f32 %v1885, 1.442695
      %v1895 = vpow.pop %v1894
      %v1896 = vmul.f32 %v1886, 1.442695
      %v1897 = vpow.pop %v1896
      %v1898 = vmul.f32 %v1887, 1.442695
      %v1899 = vpow.pop %v1898
      %v1900 = vmul.f32 %v1888, 1.442695
      %v1901 = vpow.pop %v1900
      %v1902 = vmul.f32 %v1889, 1.442695
      %v1903 = vpow.pop %v1902
      %v1904 = vmul.f32 %v1890, 1.442695
      %v1905 = vpow.pop %v1904
      %v1906 = vmul.f32 %v1891, 1.442695
      %v1907 = vpow.pop %v1906
      %v1908 = vmul.f32 %v1868, %v1893
      %v1909 = vmul.f32 %v1869, %v1895
      %v1910 = vmul.f32 %v1870, %v1897
      %v1911 = vmul.f32 %v1871, %v1899
      %v1912 = vmul.f32 %v1872, %v1901
      %v1913 = vmul.f32 %v1873, %v1903
      %v1914 = vmul.f32 %v1874, %v1905
      %v1915 = vmul.f32 %v1875, %v1907
      %v1916 = vsub.f32 1.0, %v1908
      %v1917 = vsub.f32 1.0, %v1909
      %v1918 = vsub.f32 1.0, %v1910
      %v1919 = vsub.f32 1.0, %v1911
      %v1920 = vsub.f32 1.0, %v1912
      %v1921 = vsub.f32 1.0, %v1913
      %v1922 = vsub.f32 1.0, %v1914
      %v1923 = vsub.f32 1.0, %v1915
      %vm1924 = vcmp.ge.f32.partialorder %v1764, 0.0
      %vm1925 = vcmp.ge.f32.partialorder %v1765, 0.0
      %vm1926 = vcmp.ge.f32.partialorder %v1766, 0.0
      %vm1927 = vcmp.ge.f32.partialorder %v1767, 0.0
      %vm1928 = vcmp.ge.f32.partialorder %v1768, 0.0
      %vm1929 = vcmp.ge.f32.partialorder %v1769, 0.0
      %vm1930 = vcmp.ge.f32.partialorder %v1770, 0.0
      %vm1931 = vcmp.ge.f32.partialorder %v1771, 0.0
      %v1932 = vsub.f32 0.0, %v1916
      %v1933 = vsub.f32 0.0, %v1917
      %v1934 = vsub.f32 0.0, %v1918
      %v1935 = vsub.f32 0.0, %v1919
      %v1936 = vsub.f32 0.0, %v1920
      %v1937 = vsub.f32 0.0, %v1921
      %v1938 = vsub.f32 0.0, %v1922
      %v1939 = vsub.f32 0.0, %v1923
      %v1940 = vsel %vm1924, %v1916, %v1932
      %v1941 = vsel %vm1925, %v1917, %v1933
      %v1942 = vsel %vm1926, %v1918, %v1934
      %v1943 = vsel %vm1927, %v1919, %v1935
      %v1944 = vsel %vm1928, %v1920, %v1936
      %v1945 = vsel %vm1929, %v1921, %v1937
      %v1946 = vsel %vm1930, %v1922, %v1938
      %v1947 = vsel %vm1931, %v1923, %v1939
      %v1948 = vadd.f32 %v1940, 1.0
      %v1949 = vadd.f32 %v1941, 1.0
      %v1950 = vadd.f32 %v1942, 1.0
      %v1951 = vadd.f32 %v1943, 1.0
      %v1952 = vadd.f32 %v1944, 1.0
      %v1953 = vadd.f32 %v1945, 1.0
      %v1954 = vadd.f32 %v1946, 1.0
      %v1955 = vadd.f32 %v1947, 1.0
      %v1956 = vmul.f32 %v1756, %v1948
      %v1957 = vmul.f32 %v1757, %v1949
      %v1958 = vmul.f32 %v1758, %v1950
      %v1959 = vmul.f32 %v1759, %v1951
      %v1960 = vmul.f32 %v1760, %v1952
      %v1961 = vmul.f32 %v1761, %v1953
      %v1962 = vmul.f32 %v1762, %v1954
      %v1963 = vmul.f32 %v1763, %v1955
      %1964 = vst.msk [vmem:[%s309 + $0x1] sm:$0xff] %vm223, %v1956
      %1965 = vst.msk [vmem:[%s309 + $0x11] sm:$0xff] %vm223, %v1957
      %1966 = vst.msk [vmem:[%s309 + $0x21] sm:$0xff] %vm223, %v1958
      %1967 = vst.msk [vmem:[%s309 + $0x31] sm:$0xff] %vm223, %v1959
      %1968 = vst.msk [vmem:[%s309 + $0x41] sm:$0xff] %vm223, %v1960
      %1969 = vst.msk [vmem:[%s309 + $0x51] sm:$0xff] %vm223, %v1961
      %1970 = vst.msk [vmem:[%s309 + $0x61] sm:$0xff] %vm223, %v1962
      %1971 = vst.msk [vmem:[%s309 + $0x71] sm:$0xff] %vm223, %v1963
      %v1972 = vld [vmem:[#allocation2] sm:$0xff]
      %v1973 = vld [vmem:[#allocation2 + $0x10] sm:$0xff]
      %v1974 = vld [vmem:[#allocation2 + $0x20] sm:$0xff]
      %v1975 = vld [vmem:[#allocation2 + $0x30] sm:$0xff]
      %v1976 = vld [vmem:[#allocation2 + $0x40] sm:$0xff]
      %v1977 = vld [vmem:[#allocation2 + $0x50] sm:$0xff]
      %v1978 = vld [vmem:[#allocation2 + $0x60] sm:$0xff]
      %v1979 = vld [vmem:[#allocation2 + $0x70] sm:$0xff]
      %s1980 = scalar_lea.vmem %s1, 72
      %v1981 = vld [vmem:[%s1980] sm:$0xff]
      %v1982 = vld [vmem:[#allocation2 + $0x1] sm:$0xff]
      %v1983 = vld [vmem:[#allocation2 + $0x11] sm:$0xff]
      %v1984 = vld [vmem:[#allocation2 + $0x21] sm:$0xff]
      %v1985 = vld [vmem:[#allocation2 + $0x31] sm:$0xff]
      %v1986 = vld [vmem:[#allocation2 + $0x41] sm:$0xff]
      %v1987 = vld [vmem:[#allocation2 + $0x51] sm:$0xff]
      %v1988 = vld [vmem:[#allocation2 + $0x61] sm:$0xff]
      %v1989 = vld [vmem:[#allocation2 + $0x71] sm:$0xff]
      %s1990 = scalar_lea.vmem %s1, 80
      %v1991 = vld [vmem:[%s1990] sm:$0xff]
      %v1993 = vsel %vm223, %v1982, 0
      %v1996 = vsel %vm223, %v1983, 0
      %v1999 = vsel %vm223, %v1984, 0
      %v2002 = vsel %vm223, %v1985, 0
      %v2005 = vsel %vm223, %v1986, 0
      %v2008 = vsel %vm223, %v1987, 0
      %v2011 = vsel %vm223, %v1988, 0
      %v2014 = vsel %vm223, %v1989, 0
      %2016 = vmatprep.subr.mxu0 0.0
      %2017 = vmatpush1.msra.mxu0 %v1991
      %2018 = vmatprep.subr.mxu0 0.0
      %2019 = vmatpush1.msra.mxu0 0.0
      %2020 = vmatprep.subr.mxu0 0.0
      %2021 = vmatpush1.msra.mxu0 0.0
      %2022 = vmatprep.subr.mxu0 0.0
      %2023 = vmatpush1.msra.mxu0 0.0
      %2024 = vmatprep.subr.mxu0 0.0
      %2025 = vmatpush1.msra.mxu0 0.0
      %2026 = vmatprep.subr.mxu0 0.0
      %2027 = vmatpush1.msra.mxu0 0.0
      %2028 = vmatprep.subr.mxu0 0.0
      %2029 = vmatpush1.msra.mxu0 0.0
      %2030 = vmatprep.subr.mxu0 0.0
      %2031 = vmatpush1.msra.mxu0 0.0
      %2032 = vmatprep.subr.mxu0 0.0
      %2033 = vmatpush1.msra.mxu0 0.0
      %2034 = vmatprep.subr.mxu0 0.0
      %2035 = vmatpush1.msra.mxu0 0.0
      %2036 = vmatprep.subr.mxu0 0.0
      %2037 = vmatpush1.msra.mxu0 0.0
      %2038 = vmatprep.subr.mxu0 0.0
      %2039 = vmatpush1.msra.mxu0 0.0
      %2040 = vmatprep.subr.mxu0 0.0
      %2041 = vmatpush1.msra.mxu0 0.0
      %2042 = vmatprep.subr.mxu0 0.0
      %2043 = vmatpush1.msra.mxu0 0.0
      %2044 = vmatprep.subr.mxu0 0.0
      %2045 = vmatpush1.msra.mxu0 0.0
      %2046 = vmatprep.subr.mxu0 0.0
      %2047 = vmatpush1.msra.mxu0 0.0
      %2048 = vmatprep.subr.mxu0 0.0
      %2049 = vmatpush1.msra.mxu0 0.0
      %2050 = vmatprep.subr.mxu0 0.0
      %2051 = vmatpush1.msra.mxu0 0.0
      %2052 = vmatprep.subr.mxu0 0.0
      %2053 = vmatpush1.msra.mxu0 0.0
      %2054 = vmatprep.subr.mxu0 0.0
      %2055 = vmatpush1.msra.mxu0 0.0
      %2056 = vmatprep.subr.mxu0 0.0
      %2057 = vmatpush1.msra.mxu0 0.0
      %2058 = vmatprep.subr.mxu0 0.0
      %2059 = vmatpush1.msra.mxu0 0.0
      %2060 = vmatprep.subr.mxu0 0.0
      %2061 = vmatpush1.msra.mxu0 0.0
      %2062 = vmatprep.subr.mxu0 0.0
      %2063 = vmatpush1.msra.mxu0 0.0
      %2064 = vmatprep.subr.mxu0 0.0
      %2065 = vmatpush1.msra.mxu0 0.0
      %2066 = vmatprep.subr.mxu0 0.0
      %2067 = vmatpush1.msra.mxu0 0.0
      %2068 = vmatprep.subr.mxu0 0.0
      %2069 = vmatpush1.msra.mxu0 0.0
      %2070 = vmatprep.subr.mxu0 0.0
      %2071 = vmatpush1.msra.mxu0 0.0
      %2072 = vmatprep.subr.mxu0 0.0
      %2073 = vmatpush1.msra.mxu0 0.0
      %2074 = vmatprep.subr.mxu0 0.0
      %2075 = vmatpush1.msra.mxu0 0.0
      %2076 = vmatprep.subr.mxu0 0.0
      %2077 = vmatpush1.msra.mxu0 0.0
      %2078 = vmatprep.subr.mxu0 0.0
      %2079 = vmatpush1.msra.mxu0 0.0
      %2080 = vmatprep.mubr.f32.mxu0 0.0
      %2081 = vmatmul.mubr.f32.gmra.mrb[0].mxu0 %v1993
      %v2082 = vpop.f32.mrb[0].mxu0
      %v2083 = vadd.f32 0.0, %v2082
      %v2084 = vpop.f32.mrb[0].mxu0
      %2085 = vmatprep.mubr.f32.mxu0 0.0
      %2086 = vmatmul.mubr.f32.gmra.mrb[0].mxu0 %v1996
      %v2087 = vpop.f32.mrb[0].mxu0
      %v2088 = vadd.f32 0.0, %v2087
      %v2089 = vpop.f32.mrb[0].mxu0
      %2090 = vmatprep.mubr.f32.mxu0 0.0
      %2091 = vmatmul.mubr.f32.gmra.mrb[0].mxu0 %v1999
      %v2092 = vpop.f32.mrb[0].mxu0
      %v2093 = vadd.f32 0.0, %v2092
      %v2094 = vpop.f32.mrb[0].mxu0
      %2095 = vmatprep.mubr.f32.mxu0 0.0
      %2096 = vmatmul.mubr.f32.gmra.mrb[0].mxu0 %v2002
      %v2097 = vpop.f32.mrb[0].mxu0
      %v2098 = vadd.f32 0.0, %v2097
      %v2099 = vpop.f32.mrb[0].mxu0
      %2100 = vmatprep.mubr.f32.mxu0 0.0
      %2101 = vmatmul.mubr.f32.gmra.mrb[0].mxu0 %v2005
      %v2102 = vpop.f32.mrb[0].mxu0
      %v2103 = vadd.f32 0.0, %v2102
      %v2104 = vpop.f32.mrb[0].mxu0
      %2105 = vmatprep.mubr.f32.mxu0 0.0
      %2106 = vmatmul.mubr.f32.gmra.mrb[0].mxu0 %v2008
      %v2107 = vpop.f32.mrb[0].mxu0
      %v2108 = vadd.f32 0.0, %v2107
      %v2109 = vpop.f32.mrb[0].mxu0
      %2110 = vmatprep.mubr.f32.mxu0 0.0
      %2111 = vmatmul.mubr.f32.gmra.mrb[0].mxu0 %v2011
      %v2112 = vpop.f32.mrb[0].mxu0
      %v2113 = vadd.f32 0.0, %v2112
      %v2114 = vpop.f32.mrb[0].mxu0
      %2115 = vmatprep.mubr.f32.mxu0 0.0
      %2116 = vmatmul.mubr.f32.gmra.mrb[0].mxu0 %v2014
      %v2117 = vpop.f32.mrb[0].mxu0
      %v2118 = vadd.f32 0.0, %v2117
      %v2119 = vpop.f32.mrb[0].mxu0
      %2120 = vdwg.mxu0
      %v2122 = vsel %vm223, %v1972, 0
      %v2125 = vsel %vm223, %v1973, 0
      %v2128 = vsel %vm223, %v1974, 0
      %v2131 = vsel %vm223, %v1975, 0
      %v2134 = vsel %vm223, %v1976, 0
      %v2137 = vsel %vm223, %v1977, 0
      %v2140 = vsel %vm223, %v1978, 0
      %v2143 = vsel %vm223, %v1979, 0
      %2145 = vmatprep.subr.mxu0 0.0
      %2146 = vmatpush1.msra.mxu0 %v1981
      %2147 = vmatprep.subr.mxu0 0.0
      %2148 = vmatpush1.msra.mxu0 0.0
      %2149 = vmatprep.subr.mxu0 0.0
      %2150 = vmatpush1.msra.mxu0 0.0
      %2151 = vmatprep.subr.mxu0 0.0
      %2152 = vmatpush1.msra.mxu0 0.0
      %2153 = vmatprep.subr.mxu0 0.0
      %2154 = vmatpush1.msra.mxu0 0.0
      %2155 = vmatprep.subr.mxu0 0.0
      %2156 = vmatpush1.msra.mxu0 0.0
      %2157 = vmatprep.subr.mxu0 0.0
      %2158 = vmatpush1.msra.mxu0 0.0
      %2159 = vmatprep.subr.mxu0 0.0
      %2160 = vmatpush1.msra.mxu0 0.0
      %2161 = vmatprep.subr.mxu0 0.0
      %2162 = vmatpush1.msra.mxu0 0.0
      %2163 = vmatprep.subr.mxu0 0.0
      %2164 = vmatpush1.msra.mxu0 0.0
      %2165 = vmatprep.subr.mxu0 0.0
      %2166 = vmatpush1.msra.mxu0 0.0
      %2167 = vmatprep.subr.mxu0 0.0
      %2168 = vmatpush1.msra.mxu0 0.0
      %2169 = vmatprep.subr.mxu0 0.0
      %2170 = vmatpush1.msra.mxu0 0.0
      %2171 = vmatprep.subr.mxu0 0.0
      %2172 = vmatpush1.msra.mxu0 0.0
      %2173 = vmatprep.subr.mxu0 0.0
      %2174 = vmatpush1.msra.mxu0 0.0
      %2175 = vmatprep.subr.mxu0 0.0
      %2176 = vmatpush1.msra.mxu0 0.0
      %2177 = vmatprep.subr.mxu0 0.0
      %2178 = vmatpush1.msra.mxu0 0.0
      %2179 = vmatprep.subr.mxu0 0.0
      %2180 = vmatpush1.msra.mxu0 0.0
      %2181 = vmatprep.subr.mxu0 0.0
      %2182 = vmatpush1.msra.mxu0 0.0
      %2183 = vmatprep.subr.mxu0 0.0
      %2184 = vmatpush1.msra.mxu0 0.0
      %2185 = vmatprep.subr.mxu0 0.0
      %2186 = vmatpush1.msra.mxu0 0.0
      %2187 = vmatprep.subr.mxu0 0.0
      %2188 = vmatpush1.msra.mxu0 0.0
      %2189 = vmatprep.subr.mxu0 0.0
      %2190 = vmatpush1.msra.mxu0 0.0
      %2191 = vmatprep.subr.mxu0 0.0
      %2192 = vmatpush1.msra.mxu0 0.0
      %2193 = vmatprep.subr.mxu0 0.0
      %2194 = vmatpush1.msra.mxu0 0.0
      %2195 = vmatprep.subr.mxu0 0.0
      %2196 = vmatpush1.msra.mxu0 0.0
      %2197 = vmatprep.subr.mxu0 0.0
      %2198 = vmatpush1.msra.mxu0 0.0
      %2199 = vmatprep.subr.mxu0 0.0
      %2200 = vmatpush1.msra.mxu0 0.0
      %2201 = vmatprep.subr.mxu0 0.0
      %2202 = vmatpush1.msra.mxu0 0.0
      %2203 = vmatprep.subr.mxu0 0.0
      %2204 = vmatpush1.msra.mxu0 0.0
      %2205 = vmatprep.subr.mxu0 0.0
      %2206 = vmatpush1.msra.mxu0 0.0
      %2207 = vmatprep.subr.mxu0 0.0
      %2208 = vmatpush1.msra.mxu0 0.0
      %2209 = vmatprep.mubr.f32.mxu0 0.0
      %2210 = vmatmul.mubr.f32.gmra.mrb[0].mxu0 %v2122
      %v2211 = vpop.f32.mrb[0].mxu0
      %v2212 = vadd.f32 %v2083, %v2211
      %v2213 = vpop.f32.mrb[0].mxu0
      %2214 = vmatprep.mubr.f32.mxu0 0.0
      %2215 = vmatmul.mubr.f32.gmra.mrb[0].mxu0 %v2125
      %v2216 = vpop.f32.mrb[0].mxu0
      %v2217 = vadd.f32 %v2088, %v2216
      %v2218 = vpop.f32.mrb[0].mxu0
      %2219 = vmatprep.mubr.f32.mxu0 0.0
      %2220 = vmatmul.mubr.f32.gmra.mrb[0].mxu0 %v2128
      %v2221 = vpop.f32.mrb[0].mxu0
      %v2222 = vadd.f32 %v2093, %v2221
      %v2223 = vpop.f32.mrb[0].mxu0
      %2224 = vmatprep.mubr.f32.mxu0 0.0
      %2225 = vmatmul.mubr.f32.gmra.mrb[0].mxu0 %v2131
      %v2226 = vpop.f32.mrb[0].mxu0
      %v2227 = vadd.f32 %v2098, %v2226
      %v2228 = vpop.f32.mrb[0].mxu0
      %2229 = vmatprep.mubr.f32.mxu0 0.0
      %2230 = vmatmul.mubr.f32.gmra.mrb[0].mxu0 %v2134
      %v2231 = vpop.f32.mrb[0].mxu0
      %v2232 = vadd.f32 %v2103, %v2231
      %v2233 = vpop.f32.mrb[0].mxu0
      %2234 = vmatprep.mubr.f32.mxu0 0.0
      %2235 = vmatmul.mubr.f32.gmra.mrb[0].mxu0 %v2137
      %v2236 = vpop.f32.mrb[0].mxu0
      %v2237 = vadd.f32 %v2108, %v2236
      %v2238 = vpop.f32.mrb[0].mxu0
      %2239 = vmatprep.mubr.f32.mxu0 0.0
      %2240 = vmatmul.mubr.f32.gmra.mrb[0].mxu0 %v2140
      %v2241 = vpop.f32.mrb[0].mxu0
      %v2242 = vadd.f32 %v2113, %v2241
      %v2243 = vpop.f32.mrb[0].mxu0
      %2244 = vmatprep.mubr.f32.mxu0 0.0
      %2245 = vmatmul.mubr.f32.gmra.mrb[0].mxu0 %v2143
      %v2246 = vpop.f32.mrb[0].mxu0
      %v2247 = vadd.f32 %v2118, %v2246
      %v2248 = vpop.f32.mrb[0].mxu0
      %2249 = vdwg.mxu0
      %v2250 = vld [vmem:[#allocation2 + $0x2] sm:$0xff]
      %v2251 = vld [vmem:[#allocation2 + $0x12] sm:$0xff]
      %v2252 = vld [vmem:[#allocation2 + $0x22] sm:$0xff]
      %v2253 = vld [vmem:[#allocation2 + $0x32] sm:$0xff]
      %v2254 = vld [vmem:[#allocation2 + $0x42] sm:$0xff]
      %v2255 = vld [vmem:[#allocation2 + $0x52] sm:$0xff]
      %v2256 = vld [vmem:[#allocation2 + $0x62] sm:$0xff]
      %v2257 = vld [vmem:[#allocation2 + $0x72] sm:$0xff]
      %s2258 = scalar_lea.vmem %s1, 88
      %v2259 = vld [vmem:[%s2258] sm:$0xff]
      %v2261 = vsel %vm223, %v2250, 0
      %v2264 = vsel %vm223, %v2251, 0
      %v2267 = vsel %vm223, %v2252, 0
      %v2270 = vsel %vm223, %v2253, 0
      %v2273 = vsel %vm223, %v2254, 0
      %v2276 = vsel %vm223, %v2255, 0
      %v2279 = vsel %vm223, %v2256, 0
      %v2282 = vsel %vm223, %v2257, 0
      %2284 = vmatprep.subr.mxu0 0.0
      %2285 = vmatpush1.msra.mxu0 %v2259
      %2286 = vmatprep.subr.mxu0 0.0
      %2287 = vmatpush1.msra.mxu0 0.0
      %2288 = vmatprep.subr.mxu0 0.0
      %2289 = vmatpush1.msra.mxu0 0.0
      %2290 = vmatprep.subr.mxu0 0.0
      %2291 = vmatpush1.msra.mxu0 0.0
      %2292 = vmatprep.subr.mxu0 0.0
      %2293 = vmatpush1.msra.mxu0 0.0
      %2294 = vmatprep.subr.mxu0 0.0
      %2295 = vmatpush1.msra.mxu0 0.0
      %2296 = vmatprep.subr.mxu0 0.0
      %2297 = vmatpush1.msra.mxu0 0.0
      %2298 = vmatprep.subr.mxu0 0.0
      %2299 = vmatpush1.msra.mxu0 0.0
      %2300 = vmatprep.subr.mxu0 0.0
      %2301 = vmatpush1.msra.mxu0 0.0
      %2302 = vmatprep.subr.mxu0 0.0
      %2303 = vmatpush1.msra.mxu0 0.0
      %2304 = vmatprep.subr.mxu0 0.0
      %2305 = vmatpush1.msra.mxu0 0.0
      %2306 = vmatprep.subr.mxu0 0.0
      %2307 = vmatpush1.msra.mxu0 0.0
      %2308 = vmatprep.subr.mxu0 0.0
      %2309 = vmatpush1.msra.mxu0 0.0
      %2310 = vmatprep.subr.mxu0 0.0
      %2311 = vmatpush1.msra.mxu0 0.0
      %2312 = vmatprep.subr.mxu0 0.0
      %2313 = vmatpush1.msra.mxu0 0.0
      %2314 = vmatprep.subr.mxu0 0.0
      %2315 = vmatpush1.msra.mxu0 0.0
      %2316 = vmatprep.subr.mxu0 0.0
      %2317 = vmatpush1.msra.mxu0 0.0
      %2318 = vmatprep.subr.mxu0 0.0
      %2319 = vmatpush1.msra.mxu0 0.0
      %2320 = vmatprep.subr.mxu0 0.0
      %2321 = vmatpush1.msra.mxu0 0.0
      %2322 = vmatprep.subr.mxu0 0.0
      %2323 = vmatpush1.msra.mxu0 0.0
      %2324 = vmatprep.subr.mxu0 0.0
      %2325 = vmatpush1.msra.mxu0 0.0
      %2326 = vmatprep.subr.mxu0 0.0
      %2327 = vmatpush1.msra.mxu0 0.0
      %2328 = vmatprep.subr.mxu0 0.0
      %2329 = vmatpush1.msra.mxu0 0.0
      %2330 = vmatprep.subr.mxu0 0.0
      %2331 = vmatpush1.msra.mxu0 0.0
      %2332 = vmatprep.subr.mxu0 0.0
      %2333 = vmatpush1.msra.mxu0 0.0
      %2334 = vmatprep.subr.mxu0 0.0
      %2335 = vmatpush1.msra.mxu0 0.0
      %2336 = vmatprep.subr.mxu0 0.0
      %2337 = vmatpush1.msra.mxu0 0.0
      %2338 = vmatprep.subr.mxu0 0.0
      %2339 = vmatpush1.msra.mxu0 0.0
      %2340 = vmatprep.subr.mxu0 0.0
      %2341 = vmatpush1.msra.mxu0 0.0
      %2342 = vmatprep.subr.mxu0 0.0
      %2343 = vmatpush1.msra.mxu0 0.0
      %2344 = vmatprep.subr.mxu0 0.0
      %2345 = vmatpush1.msra.mxu0 0.0
      %2346 = vmatprep.subr.mxu0 0.0
      %2347 = vmatpush1.msra.mxu0 0.0
      %2348 = vmatprep.mubr.f32.mxu0 0.0
      %2349 = vmatmul.mubr.f32.gmra.mrb[0].mxu0 %v2261
      %v2350 = vpop.f32.mrb[0].mxu0
      %v2351 = vadd.f32 0.0, %v2350
      %v2352 = vpop.f32.mrb[0].mxu0
      %2353 = vmatprep.mubr.f32.mxu0 0.0
      %2354 = vmatmul.mubr.f32.gmra.mrb[0].mxu0 %v2264
      %v2355 = vpop.f32.mrb[0].mxu0
      %v2356 = vadd.f32 0.0, %v2355
      %v2357 = vpop.f32.mrb[0].mxu0
      %2358 = vmatprep.mubr.f32.mxu0 0.0
      %2359 = vmatmul.mubr.f32.gmra.mrb[0].mxu0 %v2267
      %v2360 = vpop.f32.mrb[0].mxu0
      %v2361 = vadd.f32 0.0, %v2360
      %v2362 = vpop.f32.mrb[0].mxu0
      %2363 = vmatprep.mubr.f32.mxu0 0.0
      %2364 = vmatmul.mubr.f32.gmra.mrb[0].mxu0 %v2270
      %v2365 = vpop.f32.mrb[0].mxu0
      %v2366 = vadd.f32 0.0, %v2365
      %v2367 = vpop.f32.mrb[0].mxu0
      %2368 = vmatprep.mubr.f32.mxu0 0.0
      %2369 = vmatmul.mubr.f32.gmra.mrb[0].mxu0 %v2273
      %v2370 = vpop.f32.mrb[0].mxu0
      %v2371 = vadd.f32 0.0, %v2370
      %v2372 = vpop.f32.mrb[0].mxu0
      %2373 = vmatprep.mubr.f32.mxu0 0.0
      %2374 = vmatmul.mubr.f32.gmra.mrb[0].mxu0 %v2276
      %v2375 = vpop.f32.mrb[0].mxu0
      %v2376 = vadd.f32 0.0, %v2375
      %v2377 = vpop.f32.mrb[0].mxu0
      %2378 = vmatprep.mubr.f32.mxu0 0.0
      %2379 = vmatmul.mubr.f32.gmra.mrb[0].mxu0 %v2279
      %v2380 = vpop.f32.mrb[0].mxu0
      %v2381 = vadd.f32 0.0, %v2380
      %v2382 = vpop.f32.mrb[0].mxu0
      %2383 = vmatprep.mubr.f32.mxu0 0.0
      %2384 = vmatmul.mubr.f32.gmra.mrb[0].mxu0 %v2282
      %v2385 = vpop.f32.mrb[0].mxu0
      %v2386 = vadd.f32 0.0, %v2385
      %v2387 = vpop.f32.mrb[0].mxu0
      %2388 = vdwg.mxu0
      %v2389 = vadd.f32 %v2212, %v2351
      %v2390 = vadd.f32 %v2217, %v2356
      %v2391 = vadd.f32 %v2222, %v2361
      %v2392 = vadd.f32 %v2227, %v2366
      %v2393 = vadd.f32 %v2232, %v2371
      %v2394 = vadd.f32 %v2237, %v2376
      %v2395 = vadd.f32 %v2242, %v2381
      %v2396 = vadd.f32 %v2247, %v2386
      %v2397 = vld [vmem:[%s309] sm:$0xff]
      %v2398 = vld [vmem:[%s309 + $0x10] sm:$0xff]
      %v2399 = vld [vmem:[%s309 + $0x20] sm:$0xff]
      %v2400 = vld [vmem:[%s309 + $0x30] sm:$0xff]
      %v2401 = vld [vmem:[%s309 + $0x40] sm:$0xff]
      %v2402 = vld [vmem:[%s309 + $0x50] sm:$0xff]
      %v2403 = vld [vmem:[%s309 + $0x60] sm:$0xff]
      %v2404 = vld [vmem:[%s309 + $0x70] sm:$0xff]
      %s2405 = scalar_lea.vmem %s1, 96
      %v2406 = vld [vmem:[%s2405] sm:$0xff]
      %v2408 = vsel %vm223, %v2397, 0
      %v2411 = vsel %vm223, %v2398, 0
      %v2414 = vsel %vm223, %v2399, 0
      %v2417 = vsel %vm223, %v2400, 0
      %v2420 = vsel %vm223, %v2401, 0
      %v2423 = vsel %vm223, %v2402, 0
      %v2426 = vsel %vm223, %v2403, 0
      %v2429 = vsel %vm223, %v2404, 0
      %2431 = vmatprep.subr.mxu0 0.0
      %2432 = vmatpush1.msra.mxu0 %v2406
      %2433 = vmatprep.subr.mxu0 0.0
      %2434 = vmatpush1.msra.mxu0 0.0
      %2435 = vmatprep.subr.mxu0 0.0
      %2436 = vmatpush1.msra.mxu0 0.0
      %2437 = vmatprep.subr.mxu0 0.0
      %2438 = vmatpush1.msra.mxu0 0.0
      %2439 = vmatprep.subr.mxu0 0.0
      %2440 = vmatpush1.msra.mxu0 0.0
      %2441 = vmatprep.subr.mxu0 0.0
      %2442 = vmatpush1.msra.mxu0 0.0
      %2443 = vmatprep.subr.mxu0 0.0
      %2444 = vmatpush1.msra.mxu0 0.0
      %2445 = vmatprep.subr.mxu0 0.0
      %2446 = vmatpush1.msra.mxu0 0.0
      %2447 = vmatprep.subr.mxu0 0.0
      %2448 = vmatpush1.msra.mxu0 0.0
      %2449 = vmatprep.subr.mxu0 0.0
      %2450 = vmatpush1.msra.mxu0 0.0
      %2451 = vmatprep.subr.mxu0 0.0
      %2452 = vmatpush1.msra.mxu0 0.0
      %2453 = vmatprep.subr.mxu0 0.0
      %2454 = vmatpush1.msra.mxu0 0.0
      %2455 = vmatprep.subr.mxu0 0.0
      %2456 = vmatpush1.msra.mxu0 0.0
      %2457 = vmatprep.subr.mxu0 0.0
      %2458 = vmatpush1.msra.mxu0 0.0
      %2459 = vmatprep.subr.mxu0 0.0
      %2460 = vmatpush1.msra.mxu0 0.0
      %2461 = vmatprep.subr.mxu0 0.0
      %2462 = vmatpush1.msra.mxu0 0.0
      %2463 = vmatprep.subr.mxu0 0.0
      %2464 = vmatpush1.msra.mxu0 0.0
      %2465 = vmatprep.subr.mxu0 0.0
      %2466 = vmatpush1.msra.mxu0 0.0
      %2467 = vmatprep.subr.mxu0 0.0
      %2468 = vmatpush1.msra.mxu0 0.0
      %2469 = vmatprep.subr.mxu0 0.0
      %2470 = vmatpush1.msra.mxu0 0.0
      %2471 = vmatprep.subr.mxu0 0.0
      %2472 = vmatpush1.msra.mxu0 0.0
      %2473 = vmatprep.subr.mxu0 0.0
      %2474 = vmatpush1.msra.mxu0 0.0
      %2475 = vmatprep.subr.mxu0 0.0
      %2476 = vmatpush1.msra.mxu0 0.0
      %2477 = vmatprep.subr.mxu0 0.0
      %2478 = vmatpush1.msra.mxu0 0.0
      %2479 = vmatprep.subr.mxu0 0.0
      %2480 = vmatpush1.msra.mxu0 0.0
      %2481 = vmatprep.subr.mxu0 0.0
      %2482 = vmatpush1.msra.mxu0 0.0
      %2483 = vmatprep.subr.mxu0 0.0
      %2484 = vmatpush1.msra.mxu0 0.0
      %2485 = vmatprep.subr.mxu0 0.0
      %2486 = vmatpush1.msra.mxu0 0.0
      %2487 = vmatprep.subr.mxu0 0.0
      %2488 = vmatpush1.msra.mxu0 0.0
      %2489 = vmatprep.subr.mxu0 0.0
      %2490 = vmatpush1.msra.mxu0 0.0
      %2491 = vmatprep.subr.mxu0 0.0
      %2492 = vmatpush1.msra.mxu0 0.0
      %2493 = vmatprep.subr.mxu0 0.0
      %2494 = vmatpush1.msra.mxu0 0.0
      %2495 = vmatprep.mubr.f32.mxu0 0.0
      %2496 = vmatmul.mubr.f32.gmra.mrb[0].mxu0 %v2408
      %v2497 = vpop.f32.mrb[0].mxu0
      %v2498 = vadd.f32 0.0, %v2497
      %v2499 = vpop.f32.mrb[0].mxu0
      %2500 = vmatprep.mubr.f32.mxu0 0.0
      %2501 = vmatmul.mubr.f32.gmra.mrb[0].mxu0 %v2411
      %v2502 = vpop.f32.mrb[0].mxu0
      %v2503 = vadd.f32 0.0, %v2502
      %v2504 = vpop.f32.mrb[0].mxu0
      %2505 = vmatprep.mubr.f32.mxu0 0.0
      %2506 = vmatmul.mubr.f32.gmra.mrb[0].mxu0 %v2414
      %v2507 = vpop.f32.mrb[0].mxu0
      %v2508 = vadd.f32 0.0, %v2507
      %v2509 = vpop.f32.mrb[0].mxu0
      %2510 = vmatprep.mubr.f32.mxu0 0.0
      %2511 = vmatmul.mubr.f32.gmra.mrb[0].mxu0 %v2417
      %v2512 = vpop.f32.mrb[0].mxu0
      %v2513 = vadd.f32 0.0, %v2512
      %v2514 = vpop.f32.mrb[0].mxu0
      %2515 = vmatprep.mubr.f32.mxu0 0.0
      %2516 = vmatmul.mubr.f32.gmra.mrb[0].mxu0 %v2420
      %v2517 = vpop.f32.mrb[0].mxu0
      %v2518 = vadd.f32 0.0, %v2517
      %v2519 = vpop.f32.mrb[0].mxu0
      %2520 = vmatprep.mubr.f32.mxu0 0.0
      %2521 = vmatmul.mubr.f32.gmra.mrb[0].mxu0 %v2423
      %v2522 = vpop.f32.mrb[0].mxu0
      %v2523 = vadd.f32 0.0, %v2522
      %v2524 = vpop.f32.mrb[0].mxu0
      %2525 = vmatprep.mubr.f32.mxu0 0.0
      %2526 = vmatmul.mubr.f32.gmra.mrb[0].mxu0 %v2426
      %v2527 = vpop.f32.mrb[0].mxu0
      %v2528 = vadd.f32 0.0, %v2527
      %v2529 = vpop.f32.mrb[0].mxu0
      %2530 = vmatprep.mubr.f32.mxu0 0.0
      %2531 = vmatmul.mubr.f32.gmra.mrb[0].mxu0 %v2429
      %v2532 = vpop.f32.mrb[0].mxu0
      %v2533 = vadd.f32 0.0, %v2532
      %v2534 = vpop.f32.mrb[0].mxu0
      %2535 = vdwg.mxu0
      %v2536 = vadd.f32 %v2389, %v2498
      %v2537 = vadd.f32 %v2390, %v2503
      %v2538 = vadd.f32 %v2391, %v2508
      %v2539 = vadd.f32 %v2392, %v2513
      %v2540 = vadd.f32 %v2393, %v2518
      %v2541 = vadd.f32 %v2394, %v2523
      %v2542 = vadd.f32 %v2395, %v2528
      %v2543 = vadd.f32 %v2396, %v2533
      %v2544 = vld [vmem:[%s309 + $0x1] sm:$0xff]
      %v2545 = vld [vmem:[%s309 + $0x11] sm:$0xff]
      %v2546 = vld [vmem:[%s309 + $0x21] sm:$0xff]
      %v2547 = vld [vmem:[%s309 + $0x31] sm:$0xff]
      %v2548 = vld [vmem:[%s309 + $0x41] sm:$0xff]
      %v2549 = vld [vmem:[%s309 + $0x51] sm:$0xff]
      %v2550 = vld [vmem:[%s309 + $0x61] sm:$0xff]
      %v2551 = vld [vmem:[%s309 + $0x71] sm:$0xff]
      %s2552 = scalar_lea.vmem %s1, 104
      %v2553 = vld [vmem:[%s2552] sm:$0xff]
      %v2555 = vsel %vm223, %v2544, 0
      %v2558 = vsel %vm223, %v2545, 0
      %v2561 = vsel %vm223, %v2546, 0
      %v2564 = vsel %vm223, %v2547, 0
      %v2567 = vsel %vm223, %v2548, 0
      %v2570 = vsel %vm223, %v2549, 0
      %v2573 = vsel %vm223, %v2550, 0
      %v2576 = vsel %vm223, %v2551, 0
      %2578 = vmatprep.subr.mxu0 0.0
      %2579 = vmatpush1.msra.mxu0 %v2553
      %2580 = vmatprep.subr.mxu0 0.0
      %2581 = vmatpush1.msra.mxu0 0.0
      %2582 = vmatprep.subr.mxu0 0.0
      %2583 = vmatpush1.msra.mxu0 0.0
      %2584 = vmatprep.subr.mxu0 0.0
      %2585 = vmatpush1.msra.mxu0 0.0
      %2586 = vmatprep.subr.mxu0 0.0
      %2587 = vmatpush1.msra.mxu0 0.0
      %2588 = vmatprep.subr.mxu0 0.0
      %2589 = vmatpush1.msra.mxu0 0.0
      %2590 = vmatprep.subr.mxu0 0.0
      %2591 = vmatpush1.msra.mxu0 0.0
      %2592 = vmatprep.subr.mxu0 0.0
      %2593 = vmatpush1.msra.mxu0 0.0
      %2594 = vmatprep.subr.mxu0 0.0
      %2595 = vmatpush1.msra.mxu0 0.0
      %2596 = vmatprep.subr.mxu0 0.0
      %2597 = vmatpush1.msra.mxu0 0.0
      %2598 = vmatprep.subr.mxu0 0.0
      %2599 = vmatpush1.msra.mxu0 0.0
      %2600 = vmatprep.subr.mxu0 0.0
      %2601 = vmatpush1.msra.mxu0 0.0
      %2602 = vmatprep.subr.mxu0 0.0
      %2603 = vmatpush1.msra.mxu0 0.0
      %2604 = vmatprep.subr.mxu0 0.0
      %2605 = vmatpush1.msra.mxu0 0.0
      %2606 = vmatprep.subr.mxu0 0.0
      %2607 = vmatpush1.msra.mxu0 0.0
      %2608 = vmatprep.subr.mxu0 0.0
      %2609 = vmatpush1.msra.mxu0 0.0
      %2610 = vmatprep.subr.mxu0 0.0
      %2611 = vmatpush1.msra.mxu0 0.0
      %2612 = vmatprep.subr.mxu0 0.0
      %2613 = vmatpush1.msra.mxu0 0.0
      %2614 = vmatprep.subr.mxu0 0.0
      %2615 = vmatpush1.msra.mxu0 0.0
      %2616 = vmatprep.subr.mxu0 0.0
      %2617 = vmatpush1.msra.mxu0 0.0
      %2618 = vmatprep.subr.mxu0 0.0
      %2619 = vmatpush1.msra.mxu0 0.0
      %2620 = vmatprep.subr.mxu0 0.0
      %2621 = vmatpush1.msra.mxu0 0.0
      %2622 = vmatprep.subr.mxu0 0.0
      %2623 = vmatpush1.msra.mxu0 0.0
      %2624 = vmatprep.subr.mxu0 0.0
      %2625 = vmatpush1.msra.mxu0 0.0
      %2626 = vmatprep.subr.mxu0 0.0
      %2627 = vmatpush1.msra.mxu0 0.0
      %2628 = vmatprep.subr.mxu0 0.0
      %2629 = vmatpush1.msra.mxu0 0.0
      %2630 = vmatprep.subr.mxu0 0.0
      %2631 = vmatpush1.msra.mxu0 0.0
      %2632 = vmatprep.subr.mxu0 0.0
      %2633 = vmatpush1.msra.mxu0 0.0
      %2634 = vmatprep.subr.mxu0 0.0
      %2635 = vmatpush1.msra.mxu0 0.0
      %2636 = vmatprep.subr.mxu0 0.0
      %2637 = vmatpush1.msra.mxu0 0.0
      %2638 = vmatprep.subr.mxu0 0.0
      %2639 = vmatpush1.msra.mxu0 0.0
      %2640 = vmatprep.subr.mxu0 0.0
      %2641 = vmatpush1.msra.mxu0 0.0
      %2642 = vmatprep.mubr.f32.mxu0 0.0
      %2643 = vmatmul.mubr.f32.gmra.mrb[0].mxu0 %v2555
      %v2644 = vpop.f32.mrb[0].mxu0
      %v2645 = vadd.f32 0.0, %v2644
      %v2646 = vpop.f32.mrb[0].mxu0
      %2647 = vmatprep.mubr.f32.mxu0 0.0
      %2648 = vmatmul.mubr.f32.gmra.mrb[0].mxu0 %v2558
      %v2649 = vpop.f32.mrb[0].mxu0
      %v2650 = vadd.f32 0.0, %v2649
      %v2651 = vpop.f32.mrb[0].mxu0
      %2652 = vmatprep.mubr.f32.mxu0 0.0
      %2653 = vmatmul.mubr.f32.gmra.mrb[0].mxu0 %v2561
      %v2654 = vpop.f32.mrb[0].mxu0
      %v2655 = vadd.f32 0.0, %v2654
      %v2656 = vpop.f32.mrb[0].mxu0
      %2657 = vmatprep.mubr.f32.mxu0 0.0
      %2658 = vmatmul.mubr.f32.gmra.mrb[0].mxu0 %v2564
      %v2659 = vpop.f32.mrb[0].mxu0
      %v2660 = vadd.f32 0.0, %v2659
      %v2661 = vpop.f32.mrb[0].mxu0
      %2662 = vmatprep.mubr.f32.mxu0 0.0
      %2663 = vmatmul.mubr.f32.gmra.mrb[0].mxu0 %v2567
      %v2664 = vpop.f32.mrb[0].mxu0
      %v2665 = vadd.f32 0.0, %v2664
      %v2666 = vpop.f32.mrb[0].mxu0
      %2667 = vmatprep.mubr.f32.mxu0 0.0
      %2668 = vmatmul.mubr.f32.gmra.mrb[0].mxu0 %v2570
      %v2669 = vpop.f32.mrb[0].mxu0
      %v2670 = vadd.f32 0.0, %v2669
      %v2671 = vpop.f32.mrb[0].mxu0
      %2672 = vmatprep.mubr.f32.mxu0 0.0
      %2673 = vmatmul.mubr.f32.gmra.mrb[0].mxu0 %v2573
      %v2674 = vpop.f32.mrb[0].mxu0
      %v2675 = vadd.f32 0.0, %v2674
      %v2676 = vpop.f32.mrb[0].mxu0
      %2677 = vmatprep.mubr.f32.mxu0 0.0
      %2678 = vmatmul.mubr.f32.gmra.mrb[0].mxu0 %v2576
      %v2679 = vpop.f32.mrb[0].mxu0
      %v2680 = vadd.f32 0.0, %v2679
      %v2681 = vpop.f32.mrb[0].mxu0
      %2682 = vdwg.mxu0
      %v2683 = vadd.f32 %v2536, %v2645
      %v2684 = vadd.f32 %v2537, %v2650
      %v2685 = vadd.f32 %v2538, %v2655
      %v2686 = vadd.f32 %v2539, %v2660
      %v2687 = vadd.f32 %v2540, %v2665
      %v2688 = vadd.f32 %v2541, %v2670
      %v2689 = vadd.f32 %v2542, %v2675
      %v2690 = vadd.f32 %v2543, %v2680
      %v2691 = vld [vmem:[%s309 + $0x2] sm:$0xff]
      %v2692 = vld [vmem:[%s309 + $0x12] sm:$0xff]
      %v2693 = vld [vmem:[%s309 + $0x22] sm:$0xff]
      %v2694 = vld [vmem:[%s309 + $0x32] sm:$0xff]
      %v2695 = vld [vmem:[%s309 + $0x42] sm:$0xff]
      %v2696 = vld [vmem:[%s309 + $0x52] sm:$0xff]
      %v2697 = vld [vmem:[%s309 + $0x62] sm:$0xff]
      %v2698 = vld [vmem:[%s309 + $0x72] sm:$0xff]
      %s2699 = scalar_lea.vmem %s1, 112
      %v2700 = vld [vmem:[%s2699] sm:$0xff]
      %v2702 = vsel %vm223, %v2691, 0
      %v2705 = vsel %vm223, %v2692, 0
      %v2708 = vsel %vm223, %v2693, 0
      %v2711 = vsel %vm223, %v2694, 0
      %v2714 = vsel %vm223, %v2695, 0
      %v2717 = vsel %vm223, %v2696, 0
      %v2720 = vsel %vm223, %v2697, 0
      %v2723 = vsel %vm223, %v2698, 0
      %2725 = vmatprep.subr.mxu0 0.0
      %2726 = vmatpush1.msra.mxu0 %v2700
      %2727 = vmatprep.subr.mxu0 0.0
      %2728 = vmatpush1.msra.mxu0 0.0
      %2729 = vmatprep.subr.mxu0 0.0
      %2730 = vmatpush1.msra.mxu0 0.0
      %2731 = vmatprep.subr.mxu0 0.0
      %2732 = vmatpush1.msra.mxu0 0.0
      %2733 = vmatprep.subr.mxu0 0.0
      %2734 = vmatpush1.msra.mxu0 0.0
      %2735 = vmatprep.subr.mxu0 0.0
      %2736 = vmatpush1.msra.mxu0 0.0
      %2737 = vmatprep.subr.mxu0 0.0
      %2738 = vmatpush1.msra.mxu0 0.0
      %2739 = vmatprep.subr.mxu0 0.0
      %2740 = vmatpush1.msra.mxu0 0.0
      %2741 = vmatprep.subr.mxu0 0.0
      %2742 = vmatpush1.msra.mxu0 0.0
      %2743 = vmatprep.subr.mxu0 0.0
      %2744 = vmatpush1.msra.mxu0 0.0
      %2745 = vmatprep.subr.mxu0 0.0
      %2746 = vmatpush1.msra.mxu0 0.0
      %2747 = vmatprep.subr.mxu0 0.0
      %2748 = vmatpush1.msra.mxu0 0.0
      %2749 = vmatprep.subr.mxu0 0.0
      %2750 = vmatpush1.msra.mxu0 0.0
      %2751 = vmatprep.subr.mxu0 0.0
      %2752 = vmatpush1.msra.mxu0 0.0
      %2753 = vmatprep.subr.mxu0 0.0
      %2754 = vmatpush1.msra.mxu0 0.0
      %2755 = vmatprep.subr.mxu0 0.0
      %2756 = vmatpush1.msra.mxu0 0.0
      %2757 = vmatprep.subr.mxu0 0.0
      %2758 = vmatpush1.msra.mxu0 0.0
      %2759 = vmatprep.subr.mxu0 0.0
      %2760 = vmatpush1.msra.mxu0 0.0
      %2761 = vmatprep.subr.mxu0 0.0
      %2762 = vmatpush1.msra.mxu0 0.0
      %2763 = vmatprep.subr.mxu0 0.0
      %2764 = vmatpush1.msra.mxu0 0.0
      %2765 = vmatprep.subr.mxu0 0.0
      %2766 = vmatpush1.msra.mxu0 0.0
      %2767 = vmatprep.subr.mxu0 0.0
      %2768 = vmatpush1.msra.mxu0 0.0
      %2769 = vmatprep.subr.mxu0 0.0
      %2770 = vmatpush1.msra.mxu0 0.0
      %2771 = vmatprep.subr.mxu0 0.0
      %2772 = vmatpush1.msra.mxu0 0.0
      %2773 = vmatprep.subr.mxu0 0.0
      %2774 = vmatpush1.msra.mxu0 0.0
      %2775 = vmatprep.subr.mxu0 0.0
      %2776 = vmatpush1.msra.mxu0 0.0
      %2777 = vmatprep.subr.mxu0 0.0
      %2778 = vmatpush1.msra.mxu0 0.0
      %2779 = vmatprep.subr.mxu0 0.0
      %2780 = vmatpush1.msra.mxu0 0.0
      %2781 = vmatprep.subr.mxu0 0.0
      %2782 = vmatpush1.msra.mxu0 0.0
      %2783 = vmatprep.subr.mxu0 0.0
      %2784 = vmatpush1.msra.mxu0 0.0
      %2785 = vmatprep.subr.mxu0 0.0
      %2786 = vmatpush1.msra.mxu0 0.0
      %2787 = vmatprep.subr.mxu0 0.0
      %2788 = vmatpush1.msra.mxu0 0.0
      %2789 = vmatprep.mubr.f32.mxu0 0.0
      %2790 = vmatmul.mubr.f32.gmra.mrb[0].mxu0 %v2702
      %v2791 = vpop.f32.mrb[0].mxu0
      %v2792 = vadd.f32 0.0, %v2791
      %v2793 = vpop.f32.mrb[0].mxu0
      %2794 = vmatprep.mubr.f32.mxu0 0.0
      %2795 = vmatmul.mubr.f32.gmra.mrb[0].mxu0 %v2705
      %v2796 = vpop.f32.mrb[0].mxu0
      %v2797 = vadd.f32 0.0, %v2796
      %v2798 = vpop.f32.mrb[0].mxu0
      %2799 = vmatprep.mubr.f32.mxu0 0.0
      %2800 = vmatmul.mubr.f32.gmra.mrb[0].mxu0 %v2708
      %v2801 = vpop.f32.mrb[0].mxu0
      %v2802 = vadd.f32 0.0, %v2801
      %v2803 = vpop.f32.mrb[0].mxu0
      %2804 = vmatprep.mubr.f32.mxu0 0.0
      %2805 = vmatmul.mubr.f32.gmra.mrb[0].mxu0 %v2711
      %v2806 = vpop.f32.mrb[0].mxu0
      %v2807 = vadd.f32 0.0, %v2806
      %v2808 = vpop.f32.mrb[0].mxu0
      %2809 = vmatprep.mubr.f32.mxu0 0.0
      %2810 = vmatmul.mubr.f32.gmra.mrb[0].mxu0 %v2714
      %v2811 = vpop.f32.mrb[0].mxu0
      %v2812 = vadd.f32 0.0, %v2811
      %v2813 = vpop.f32.mrb[0].mxu0
      %2814 = vmatprep.mubr.f32.mxu0 0.0
      %2815 = vmatmul.mubr.f32.gmra.mrb[0].mxu0 %v2717
      %v2816 = vpop.f32.mrb[0].mxu0
      %v2817 = vadd.f32 0.0, %v2816
      %v2818 = vpop.f32.mrb[0].mxu0
      %2819 = vmatprep.mubr.f32.mxu0 0.0
      %2820 = vmatmul.mubr.f32.gmra.mrb[0].mxu0 %v2720
      %v2821 = vpop.f32.mrb[0].mxu0
      %v2822 = vadd.f32 0.0, %v2821
      %v2823 = vpop.f32.mrb[0].mxu0
      %2824 = vmatprep.mubr.f32.mxu0 0.0
      %2825 = vmatmul.mubr.f32.gmra.mrb[0].mxu0 %v2723
      %v2826 = vpop.f32.mrb[0].mxu0
      %v2827 = vadd.f32 0.0, %v2826
      %v2828 = vpop.f32.mrb[0].mxu0
      %2829 = vdwg.mxu0
      %v2830 = vadd.f32 %v2683, %v2792
      %v2831 = vadd.f32 %v2684, %v2797
      %v2832 = vadd.f32 %v2685, %v2802
      %v2833 = vadd.f32 %v2686, %v2807
      %v2834 = vadd.f32 %v2687, %v2812
      %v2835 = vadd.f32 %v2688, %v2817
      %v2836 = vadd.f32 %v2689, %v2822
      %v2837 = vadd.f32 %v2690, %v2827
      %v2838 = vld [vmem:[%s1203] sm:$0xff]
      %v2839 = vld [vmem:[%s1203 + $0x10] sm:$0xff]
      %v2840 = vld [vmem:[%s1203 + $0x20] sm:$0xff]
      %v2841 = vld [vmem:[%s1203 + $0x30] sm:$0xff]
      %v2842 = vld [vmem:[%s1203 + $0x40] sm:$0xff]
      %v2843 = vld [vmem:[%s1203 + $0x50] sm:$0xff]
      %v2844 = vld [vmem:[%s1203 + $0x60] sm:$0xff]
      %v2845 = vld [vmem:[%s1203 + $0x70] sm:$0xff]
      %s2846 = scalar_lea.vmem %s1, 120
      %v2847 = vld [vmem:[%s2846] sm:$0xff]
      %v2849 = vsel %vm223, %v2838, 0
      %v2852 = vsel %vm223, %v2839, 0
      %v2855 = vsel %vm223, %v2840, 0
      %v2858 = vsel %vm223, %v2841, 0
      %v2861 = vsel %vm223, %v2842, 0
      %v2864 = vsel %vm223, %v2843, 0
      %v2867 = vsel %vm223, %v2844, 0
      %v2870 = vsel %vm223, %v2845, 0
      %2872 = vmatprep.subr.mxu0 0.0
      %2873 = vmatpush1.msra.mxu0 %v2847
      %2874 = vmatprep.subr.mxu0 0.0
      %2875 = vmatpush1.msra.mxu0 0.0
      %2876 = vmatprep.subr.mxu0 0.0
      %2877 = vmatpush1.msra.mxu0 0.0
      %2878 = vmatprep.subr.mxu0 0.0
      %2879 = vmatpush1.msra.mxu0 0.0
      %2880 = vmatprep.subr.mxu0 0.0
      %2881 = vmatpush1.msra.mxu0 0.0
      %2882 = vmatprep.subr.mxu0 0.0
      %2883 = vmatpush1.msra.mxu0 0.0
      %2884 = vmatprep.subr.mxu0 0.0
      %2885 = vmatpush1.msra.mxu0 0.0
      %2886 = vmatprep.subr.mxu0 0.0
      %2887 = vmatpush1.msra.mxu0 0.0
      %2888 = vmatprep.subr.mxu0 0.0
      %2889 = vmatpush1.msra.mxu0 0.0
      %2890 = vmatprep.subr.mxu0 0.0
      %2891 = vmatpush1.msra.mxu0 0.0
      %2892 = vmatprep.subr.mxu0 0.0
      %2893 = vmatpush1.msra.mxu0 0.0
      %2894 = vmatprep.subr.mxu0 0.0
      %2895 = vmatpush1.msra.mxu0 0.0
      %2896 = vmatprep.subr.mxu0 0.0
      %2897 = vmatpush1.msra.mxu0 0.0
      %2898 = vmatprep.subr.mxu0 0.0
      %2899 = vmatpush1.msra.mxu0 0.0
      %2900 = vmatprep.subr.mxu0 0.0
      %2901 = vmatpush1.msra.mxu0 0.0
      %2902 = vmatprep.subr.mxu0 0.0
      %2903 = vmatpush1.msra.mxu0 0.0
      %2904 = vmatprep.subr.mxu0 0.0
      %2905 = vmatpush1.msra.mxu0 0.0
      %2906 = vmatprep.subr.mxu0 0.0
      %2907 = vmatpush1.msra.mxu0 0.0
      %2908 = vmatprep.subr.mxu0 0.0
      %2909 = vmatpush1.msra.mxu0 0.0
      %2910 = vmatprep.subr.mxu0 0.0
      %2911 = vmatpush1.msra.mxu0 0.0
      %2912 = vmatprep.subr.mxu0 0.0
      %2913 = vmatpush1.msra.mxu0 0.0
      %2914 = vmatprep.subr.mxu0 0.0
      %2915 = vmatpush1.msra.mxu0 0.0
      %2916 = vmatprep.subr.mxu0 0.0
      %2917 = vmatpush1.msra.mxu0 0.0
      %2918 = vmatprep.subr.mxu0 0.0
      %2919 = vmatpush1.msra.mxu0 0.0
      %2920 = vmatprep.subr.mxu0 0.0
      %2921 = vmatpush1.msra.mxu0 0.0
      %2922 = vmatprep.subr.mxu0 0.0
      %2923 = vmatpush1.msra.mxu0 0.0
      %2924 = vmatprep.subr.mxu0 0.0
      %2925 = vmatpush1.msra.mxu0 0.0
      %2926 = vmatprep.subr.mxu0 0.0
      %2927 = vmatpush1.msra.mxu0 0.0
      %2928 = vmatprep.subr.mxu0 0.0
      %2929 = vmatpush1.msra.mxu0 0.0
      %2930 = vmatprep.subr.mxu0 0.0
      %2931 = vmatpush1.msra.mxu0 0.0
      %2932 = vmatprep.subr.mxu0 0.0
      %2933 = vmatpush1.msra.mxu0 0.0
      %2934 = vmatprep.subr.mxu0 0.0
      %2935 = vmatpush1.msra.mxu0 0.0
      %2936 = vmatprep.mubr.f32.mxu0 0.0
      %2937 = vmatmul.mubr.f32.gmra.mrb[0].mxu0 %v2849
      %v2938 = vpop.f32.mrb[0].mxu0
      %v2939 = vadd.f32 0.0, %v2938
      %v2940 = vpop.f32.mrb[0].mxu0
      %2941 = vmatprep.mubr.f32.mxu0 0.0
      %2942 = vmatmul.mubr.f32.gmra.mrb[0].mxu0 %v2852
      %v2943 = vpop.f32.mrb[0].mxu0
      %v2944 = vadd.f32 0.0, %v2943
      %v2945 = vpop.f32.mrb[0].mxu0
      %2946 = vmatprep.mubr.f32.mxu0 0.0
      %2947 = vmatmul.mubr.f32.gmra.mrb[0].mxu0 %v2855
      %v2948 = vpop.f32.mrb[0].mxu0
      %v2949 = vadd.f32 0.0, %v2948
      %v2950 = vpop.f32.mrb[0].mxu0
      %2951 = vmatprep.mubr.f32.mxu0 0.0
      %2952 = vmatmul.mubr.f32.gmra.mrb[0].mxu0 %v2858
      %v2953 = vpop.f32.mrb[0].mxu0
      %v2954 = vadd.f32 0.0, %v2953
      %v2955 = vpop.f32.mrb[0].mxu0
      %2956 = vmatprep.mubr.f32.mxu0 0.0
      %2957 = vmatmul.mubr.f32.gmra.mrb[0].mxu0 %v2861
      %v2958 = vpop.f32.mrb[0].mxu0
      %v2959 = vadd.f32 0.0, %v2958
      %v2960 = vpop.f32.mrb[0].mxu0
      %2961 = vmatprep.mubr.f32.mxu0 0.0
      %2962 = vmatmul.mubr.f32.gmra.mrb[0].mxu0 %v2864
      %v2963 = vpop.f32.mrb[0].mxu0
      %v2964 = vadd.f32 0.0, %v2963
      %v2965 = vpop.f32.mrb[0].mxu0
      %2966 = vmatprep.mubr.f32.mxu0 0.0
      %2967 = vmatmul.mubr.f32.gmra.mrb[0].mxu0 %v2867
      %v2968 = vpop.f32.mrb[0].mxu0
      %v2969 = vadd.f32 0.0, %v2968
      %v2970 = vpop.f32.mrb[0].mxu0
      %2971 = vmatprep.mubr.f32.mxu0 0.0
      %2972 = vmatmul.mubr.f32.gmra.mrb[0].mxu0 %v2870
      %v2973 = vpop.f32.mrb[0].mxu0
      %v2974 = vadd.f32 0.0, %v2973
      %v2975 = vpop.f32.mrb[0].mxu0
      %2976 = vdwg.mxu0
      %v2977 = vadd.f32 %v2830, %v2939
      %v2978 = vadd.f32 %v2831, %v2944
      %v2979 = vadd.f32 %v2832, %v2949
      %v2980 = vadd.f32 %v2833, %v2954
      %v2981 = vadd.f32 %v2834, %v2959
      %v2982 = vadd.f32 %v2835, %v2964
      %v2983 = vadd.f32 %v2836, %v2969
      %v2984 = vadd.f32 %v2837, %v2974
      %v2985 = vld [vmem:[%s1203 + $0x1] sm:$0xff]
      %v2986 = vld [vmem:[%s1203 + $0x11] sm:$0xff]
      %v2987 = vld [vmem:[%s1203 + $0x21] sm:$0xff]
      %v2988 = vld [vmem:[%s1203 + $0x31] sm:$0xff]
      %v2989 = vld [vmem:[%s1203 + $0x41] sm:$0xff]
      %v2990 = vld [vmem:[%s1203 + $0x51] sm:$0xff]
      %v2991 = vld [vmem:[%s1203 + $0x61] sm:$0xff]
      %v2992 = vld [vmem:[%s1203 + $0x71] sm:$0xff]
      %s2993 = scalar_lea.vmem %s1, 128
      %v2994 = vld [vmem:[%s2993] sm:$0xff]
      %v2996 = vsel %vm223, %v2985, 0
      %v2999 = vsel %vm223, %v2986, 0
      %v3002 = vsel %vm223, %v2987, 0
      %v3005 = vsel %vm223, %v2988, 0
      %v3008 = vsel %vm223, %v2989, 0
      %v3011 = vsel %vm223, %v2990, 0
      %v3014 = vsel %vm223, %v2991, 0
      %v3017 = vsel %vm223, %v2992, 0
      %3019 = vmatprep.subr.mxu0 0.0
      %3020 = vmatpush1.msra.mxu0 %v2994
      %3021 = vmatprep.subr.mxu0 0.0
      %3022 = vmatpush1.msra.mxu0 0.0
      %3023 = vmatprep.subr.mxu0 0.0
      %3024 = vmatpush1.msra.mxu0 0.0
      %3025 = vmatprep.subr.mxu0 0.0
      %3026 = vmatpush1.msra.mxu0 0.0
      %3027 = vmatprep.subr.mxu0 0.0
      %3028 = vmatpush1.msra.mxu0 0.0
      %3029 = vmatprep.subr.mxu0 0.0
      %3030 = vmatpush1.msra.mxu0 0.0
      %3031 = vmatprep.subr.mxu0 0.0
      %3032 = vmatpush1.msra.mxu0 0.0
      %3033 = vmatprep.subr.mxu0 0.0
      %3034 = vmatpush1.msra.mxu0 0.0
      %3035 = vmatprep.subr.mxu0 0.0
      %3036 = vmatpush1.msra.mxu0 0.0
      %3037 = vmatprep.subr.mxu0 0.0
      %3038 = vmatpush1.msra.mxu0 0.0
      %3039 = vmatprep.subr.mxu0 0.0
      %3040 = vmatpush1.msra.mxu0 0.0
      %3041 = vmatprep.subr.mxu0 0.0
      %3042 = vmatpush1.msra.mxu0 0.0
      %3043 = vmatprep.subr.mxu0 0.0
      %3044 = vmatpush1.msra.mxu0 0.0
      %3045 = vmatprep.subr.mxu0 0.0
      %3046 = vmatpush1.msra.mxu0 0.0
      %3047 = vmatprep.subr.mxu0 0.0
      %3048 = vmatpush1.msra.mxu0 0.0
      %3049 = vmatprep.subr.mxu0 0.0
      %3050 = vmatpush1.msra.mxu0 0.0
      %3051 = vmatprep.subr.mxu0 0.0
      %3052 = vmatpush1.msra.mxu0 0.0
      %3053 = vmatprep.subr.mxu0 0.0
      %3054 = vmatpush1.msra.mxu0 0.0
      %3055 = vmatprep.subr.mxu0 0.0
      %3056 = vmatpush1.msra.mxu0 0.0
      %3057 = vmatprep.subr.mxu0 0.0
      %3058 = vmatpush1.msra.mxu0 0.0
      %3059 = vmatprep.subr.mxu0 0.0
      %3060 = vmatpush1.msra.mxu0 0.0
      %3061 = vmatprep.subr.mxu0 0.0
      %3062 = vmatpush1.msra.mxu0 0.0
      %3063 = vmatprep.subr.mxu0 0.0
      %3064 = vmatpush1.msra.mxu0 0.0
      %3065 = vmatprep.subr.mxu0 0.0
      %3066 = vmatpush1.msra.mxu0 0.0
      %3067 = vmatprep.subr.mxu0 0.0
      %3068 = vmatpush1.msra.mxu0 0.0
      %3069 = vmatprep.subr.mxu0 0.0
      %3070 = vmatpush1.msra.mxu0 0.0
      %3071 = vmatprep.subr.mxu0 0.0
      %3072 = vmatpush1.msra.mxu0 0.0
      %3073 = vmatprep.subr.mxu0 0.0
      %3074 = vmatpush1.msra.mxu0 0.0
      %3075 = vmatprep.subr.mxu0 0.0
      %3076 = vmatpush1.msra.mxu0 0.0
      %3077 = vmatprep.subr.mxu0 0.0
      %3078 = vmatpush1.msra.mxu0 0.0
      %3079 = vmatprep.subr.mxu0 0.0
      %3080 = vmatpush1.msra.mxu0 0.0
      %3081 = vmatprep.subr.mxu0 0.0
      %3082 = vmatpush1.msra.mxu0 0.0
      %3083 = vmatprep.mubr.f32.mxu0 0.0
      %3084 = vmatmul.mubr.f32.gmra.mrb[0].mxu0 %v2996
      %v3085 = vpop.f32.mrb[0].mxu0
      %v3086 = vadd.f32 0.0, %v3085
      %v3087 = vpop.f32.mrb[0].mxu0
      %3088 = vmatprep.mubr.f32.mxu0 0.0
      %3089 = vmatmul.mubr.f32.gmra.mrb[0].mxu0 %v2999
      %v3090 = vpop.f32.mrb[0].mxu0
      %v3091 = vadd.f32 0.0, %v3090
      %v3092 = vpop.f32.mrb[0].mxu0
      %3093 = vmatprep.mubr.f32.mxu0 0.0
      %3094 = vmatmul.mubr.f32.gmra.mrb[0].mxu0 %v3002
      %v3095 = vpop.f32.mrb[0].mxu0
      %v3096 = vadd.f32 0.0, %v3095
      %v3097 = vpop.f32.mrb[0].mxu0
      %3098 = vmatprep.mubr.f32.mxu0 0.0
      %3099 = vmatmul.mubr.f32.gmra.mrb[0].mxu0 %v3005
      %v3100 = vpop.f32.mrb[0].mxu0
      %v3101 = vadd.f32 0.0, %v3100
      %v3102 = vpop.f32.mrb[0].mxu0
      %3103 = vmatprep.mubr.f32.mxu0 0.0
      %3104 = vmatmul.mubr.f32.gmra.mrb[0].mxu0 %v3008
      %v3105 = vpop.f32.mrb[0].mxu0
      %v3106 = vadd.f32 0.0, %v3105
      %v3107 = vpop.f32.mrb[0].mxu0
      %3108 = vmatprep.mubr.f32.mxu0 0.0
      %3109 = vmatmul.mubr.f32.gmra.mrb[0].mxu0 %v3011
      %v3110 = vpop.f32.mrb[0].mxu0
      %v3111 = vadd.f32 0.0, %v3110
      %v3112 = vpop.f32.mrb[0].mxu0
      %3113 = vmatprep.mubr.f32.mxu0 0.0
      %3114 = vmatmul.mubr.f32.gmra.mrb[0].mxu0 %v3014
      %v3115 = vpop.f32.mrb[0].mxu0
      %v3116 = vadd.f32 0.0, %v3115
      %v3117 = vpop.f32.mrb[0].mxu0
      %3118 = vmatprep.mubr.f32.mxu0 0.0
      %3119 = vmatmul.mubr.f32.gmra.mrb[0].mxu0 %v3017
      %v3120 = vpop.f32.mrb[0].mxu0
      %v3121 = vadd.f32 0.0, %v3120
      %v3122 = vpop.f32.mrb[0].mxu0
      %3123 = vdwg.mxu0
      %v3124 = vadd.f32 %v2977, %v3086
      %v3125 = vadd.f32 %v2978, %v3091
      %v3126 = vadd.f32 %v2979, %v3096
      %v3127 = vadd.f32 %v2980, %v3101
      %v3128 = vadd.f32 %v2981, %v3106
      %v3129 = vadd.f32 %v2982, %v3111
      %v3130 = vadd.f32 %v2983, %v3116
      %v3131 = vadd.f32 %v2984, %v3121
      %v3132 = vld [vmem:[%s1203 + $0x2] sm:$0xff]
      %v3133 = vld [vmem:[%s1203 + $0x12] sm:$0xff]
      %v3134 = vld [vmem:[%s1203 + $0x22] sm:$0xff]
      %v3135 = vld [vmem:[%s1203 + $0x32] sm:$0xff]
      %v3136 = vld [vmem:[%s1203 + $0x42] sm:$0xff]
      %v3137 = vld [vmem:[%s1203 + $0x52] sm:$0xff]
      %v3138 = vld [vmem:[%s1203 + $0x62] sm:$0xff]
      %v3139 = vld [vmem:[%s1203 + $0x72] sm:$0xff]
      %s3140 = scalar_lea.vmem %s1, 136
      %v3141 = vld [vmem:[%s3140] sm:$0xff]
      %v3143 = vsel %vm223, %v3132, 0
      %v3146 = vsel %vm223, %v3133, 0
      %v3149 = vsel %vm223, %v3134, 0
      %v3152 = vsel %vm223, %v3135, 0
      %v3155 = vsel %vm223, %v3136, 0
      %v3158 = vsel %vm223, %v3137, 0
      %v3161 = vsel %vm223, %v3138, 0
      %v3164 = vsel %vm223, %v3139, 0
      %3166 = vmatprep.subr.mxu0 0.0
      %3167 = vmatpush1.msra.mxu0 %v3141
      %3168 = vmatprep.subr.mxu0 0.0
      %3169 = vmatpush1.msra.mxu0 0.0
      %3170 = vmatprep.subr.mxu0 0.0
      %3171 = vmatpush1.msra.mxu0 0.0
      %3172 = vmatprep.subr.mxu0 0.0
      %3173 = vmatpush1.msra.mxu0 0.0
      %3174 = vmatprep.subr.mxu0 0.0
      %3175 = vmatpush1.msra.mxu0 0.0
      %3176 = vmatprep.subr.mxu0 0.0
      %3177 = vmatpush1.msra.mxu0 0.0
      %3178 = vmatprep.subr.mxu0 0.0
      %3179 = vmatpush1.msra.mxu0 0.0
      %3180 = vmatprep.subr.mxu0 0.0
      %3181 = vmatpush1.msra.mxu0 0.0
      %3182 = vmatprep.subr.mxu0 0.0
      %3183 = vmatpush1.msra.mxu0 0.0
      %3184 = vmatprep.subr.mxu0 0.0
      %3185 = vmatpush1.msra.mxu0 0.0
      %3186 = vmatprep.subr.mxu0 0.0
      %3187 = vmatpush1.msra.mxu0 0.0
      %3188 = vmatprep.subr.mxu0 0.0
      %3189 = vmatpush1.msra.mxu0 0.0
      %3190 = vmatprep.subr.mxu0 0.0
      %3191 = vmatpush1.msra.mxu0 0.0
      %3192 = vmatprep.subr.mxu0 0.0
      %3193 = vmatpush1.msra.mxu0 0.0
      %3194 = vmatprep.subr.mxu0 0.0
      %3195 = vmatpush1.msra.mxu0 0.0
      %3196 = vmatprep.subr.mxu0 0.0
      %3197 = vmatpush1.msra.mxu0 0.0
      %3198 = vmatprep.subr.mxu0 0.0
      %3199 = vmatpush1.msra.mxu0 0.0
      %3200 = vmatprep.subr.mxu0 0.0
      %3201 = vmatpush1.msra.mxu0 0.0
      %3202 = vmatprep.subr.mxu0 0.0
      %3203 = vmatpush1.msra.mxu0 0.0
      %3204 = vmatprep.subr.mxu0 0.0
      %3205 = vmatpush1.msra.mxu0 0.0
      %3206 = vmatprep.subr.mxu0 0.0
      %3207 = vmatpush1.msra.mxu0 0.0
      %3208 = vmatprep.subr.mxu0 0.0
      %3209 = vmatpush1.msra.mxu0 0.0
      %3210 = vmatprep.subr.mxu0 0.0
      %3211 = vmatpush1.msra.mxu0 0.0
      %3212 = vmatprep.subr.mxu0 0.0
      %3213 = vmatpush1.msra.mxu0 0.0
      %3214 = vmatprep.subr.mxu0 0.0
      %3215 = vmatpush1.msra.mxu0 0.0
      %3216 = vmatprep.subr.mxu0 0.0
      %3217 = vmatpush1.msra.mxu0 0.0
      %3218 = vmatprep.subr.mxu0 0.0
      %3219 = vmatpush1.msra.mxu0 0.0
      %3220 = vmatprep.subr.mxu0 0.0
      %3221 = vmatpush1.msra.mxu0 0.0
      %3222 = vmatprep.subr.mxu0 0.0
      %3223 = vmatpush1.msra.mxu0 0.0
      %3224 = vmatprep.subr.mxu0 0.0
      %3225 = vmatpush1.msra.mxu0 0.0
      %3226 = vmatprep.subr.mxu0 0.0
      %3227 = vmatpush1.msra.mxu0 0.0
      %3228 = vmatprep.subr.mxu0 0.0
      %3229 = vmatpush1.msra.mxu0 0.0
      %3230 = vmatprep.mubr.f32.mxu0 0.0
      %3231 = vmatmul.mubr.f32.gmra.mrb[0].mxu0 %v3143
      %v3232 = vpop.f32.mrb[0].mxu0
      %v3233 = vadd.f32 0.0, %v3232
      %v3234 = vpop.f32.mrb[0].mxu0
      %3235 = vmatprep.mubr.f32.mxu0 0.0
      %3236 = vmatmul.mubr.f32.gmra.mrb[0].mxu0 %v3146
      %v3237 = vpop.f32.mrb[0].mxu0
      %v3238 = vadd.f32 0.0, %v3237
      %v3239 = vpop.f32.mrb[0].mxu0
      %3240 = vmatprep.mubr.f32.mxu0 0.0
      %3241 = vmatmul.mubr.f32.gmra.mrb[0].mxu0 %v3149
      %v3242 = vpop.f32.mrb[0].mxu0
      %v3243 = vadd.f32 0.0, %v3242
      %v3244 = vpop.f32.mrb[0].mxu0
      %3245 = vmatprep.mubr.f32.mxu0 0.0
      %3246 = vmatmul.mubr.f32.gmra.mrb[0].mxu0 %v3152
      %v3247 = vpop.f32.mrb[0].mxu0
      %v3248 = vadd.f32 0.0, %v3247
      %v3249 = vpop.f32.mrb[0].mxu0
      %3250 = vmatprep.mubr.f32.mxu0 0.0
      %3251 = vmatmul.mubr.f32.gmra.mrb[0].mxu0 %v3155
      %v3252 = vpop.f32.mrb[0].mxu0
      %v3253 = vadd.f32 0.0, %v3252
      %v3254 = vpop.f32.mrb[0].mxu0
      %3255 = vmatprep.mubr.f32.mxu0 0.0
      %3256 = vmatmul.mubr.f32.gmra.mrb[0].mxu0 %v3158
      %v3257 = vpop.f32.mrb[0].mxu0
      %v3258 = vadd.f32 0.0, %v3257
      %v3259 = vpop.f32.mrb[0].mxu0
      %3260 = vmatprep.mubr.f32.mxu0 0.0
      %3261 = vmatmul.mubr.f32.gmra.mrb[0].mxu0 %v3161
      %v3262 = vpop.f32.mrb[0].mxu0
      %v3263 = vadd.f32 0.0, %v3262
      %v3264 = vpop.f32.mrb[0].mxu0
      %3265 = vmatprep.mubr.f32.mxu0 0.0
      %3266 = vmatmul.mubr.f32.gmra.mrb[0].mxu0 %v3164
      %v3267 = vpop.f32.mrb[0].mxu0
      %v3268 = vadd.f32 0.0, %v3267
      %v3269 = vpop.f32.mrb[0].mxu0
      %3270 = vdwg.mxu0
      %v3271 = vadd.f32 %v3124, %v3233
      %v3272 = vadd.f32 %v3125, %v3238
      %v3273 = vadd.f32 %v3126, %v3243
      %v3274 = vadd.f32 %v3127, %v3248
      %v3275 = vadd.f32 %v3128, %v3253
      %v3276 = vadd.f32 %v3129, %v3258
      %v3277 = vadd.f32 %v3130, %v3263
      %v3278 = vadd.f32 %v3131, %v3268
      %v3279 = vld [vmem:[%s2 + $0x2] sm:$0x1]
      %v3280 = vld [vmem:[%s2 + $0x3] sm:$0x1]
      %v3281 = vsel %vm310, %v3271, 0.0
      %v3282 = vsel %vm310, %v3272, 0.0
      %v3283 = vadd.f32 %v3281, %v3282
      %v3284 = vsel %vm310, %v3273, 0.0
      %v3285 = vadd.f32 %v3283, %v3284
      %v3286 = vsel %vm310, %v3274, 0.0
      %v3287 = vadd.f32 %v3285, %v3286
      %v3288 = vsel %vm310, %v3275, 0.0
      %v3289 = vadd.f32 %v3287, %v3288
      %v3290 = vsel %vm310, %v3276, 0.0
      %v3291 = vadd.f32 %v3289, %v3290
      %v3292 = vsel %vm310, %v3277, 0.0
      %v3293 = vadd.f32 %v3291, %v3292
      %v3294 = vsel %vm310, %v3278, 0.0
      %v3295 = vadd.f32 %v3293, %v3294
      %3296 = vadd.xlane.f32.xlu0 %v3295
      %v3297 = vpop.xlane.xlu0 %3296
      %v3298 = vrot.slane %v3297, 4
      %v3299 = vadd.f32 %v3297, %v3298
      %v3300 = vrot.slane %v3299, 2
      %v3301 = vadd.f32 %v3299, %v3300
      %v3302 = vrot.slane %v3301, 1
      %v3303 = vadd.f32 %v3301, %v3302
      %v3304 = vmul.f32 %v3271, %v3271
      %v3305 = vmul.f32 %v3272, %v3272
      %v3306 = vmul.f32 %v3273, %v3273
      %v3307 = vmul.f32 %v3274, %v3274
      %v3308 = vmul.f32 %v3275, %v3275
      %v3309 = vmul.f32 %v3276, %v3276
      %v3310 = vmul.f32 %v3277, %v3277
      %v3311 = vmul.f32 %v3278, %v3278
      %v3312 = vsel %vm310, %v3304, 0.0
      %v3313 = vsel %vm310, %v3305, 0.0
      %v3314 = vadd.f32 %v3312, %v3313
      %v3315 = vsel %vm310, %v3306, 0.0
      %v3316 = vadd.f32 %v3314, %v3315
      %v3317 = vsel %vm310, %v3307, 0.0
      %v3318 = vadd.f32 %v3316, %v3317
      %v3319 = vsel %vm310, %v3308, 0.0
      %v3320 = vadd.f32 %v3318, %v3319
      %v3321 = vsel %vm310, %v3309, 0.0
      %v3322 = vadd.f32 %v3320, %v3321
      %v3323 = vsel %vm310, %v3310, 0.0
      %v3324 = vadd.f32 %v3322, %v3323
      %v3325 = vsel %vm310, %v3311, 0.0
      %v3326 = vadd.f32 %v3324, %v3325
      %3327 = vadd.xlane.f32.xlu0 %v3326
      %v3328 = vpop.xlane.xlu0 %3327
      %v3329 = vrot.slane %v3328, 4
      %v3330 = vadd.f32 %v3328, %v3329
      %v3331 = vrot.slane %v3330, 2
      %v3332 = vadd.f32 %v3330, %v3331
      %v3333 = vrot.slane %v3332, 1
      %v3334 = vadd.f32 %v3332, %v3333
      %v3335 = vmul.f32 %v3303, 0.00390625
      %v3336 = vmul.f32 %v3334, 0.00390625
      %v3337 = vmul.f32 %v3335, %v3335
      %v3338 = vsub.f32 %v3336, %v3337
      %v3339 = vsub.f32 %v3271, %v3335
      %v3340 = vsub.f32 %v3272, %v3335
      %v3341 = vsub.f32 %v3273, %v3335
      %v3342 = vsub.f32 %v3274, %v3335
      %v3343 = vsub.f32 %v3275, %v3335
      %v3344 = vsub.f32 %v3276, %v3335
      %v3345 = vsub.f32 %v3277, %v3335
      %v3346 = vsub.f32 %v3278, %v3335
      %v3347 = vadd.f32 %v3338, 1e-05
      %v3348 = vrsqrt.pop %v3347
      %v3349 = vmul.f32 %v3339, %v3348
      %v3350 = vmul.f32 %v3340, %v3348
      %v3351 = vmul.f32 %v3341, %v3348
      %v3352 = vmul.f32 %v3342, %v3348
      %v3353 = vmul.f32 %v3343, %v3348
      %v3354 = vmul.f32 %v3344, %v3348
      %v3355 = vmul.f32 %v3345, %v3348
      %v3356 = vmul.f32 %v3346, %v3348
      %v3357 = vlaneseq
      %v3358 = vshrl.u32 %v3357, 7
      %v3359 = vsub.s32 0, %v3358
      %v3360 = vrot.slane %v3279, %v3359
      %v3361 = vmul.f32 %v3349, %v3360
      %v3362 = vmul.f32 %v3350, %v3360
      %v3363 = vmul.f32 %v3351, %v3360
      %v3364 = vmul.f32 %v3352, %v3360
      %v3365 = vmul.f32 %v3353, %v3360
      %v3366 = vmul.f32 %v3354, %v3360
      %v3367 = vmul.f32 %v3355, %v3360
      %v3368 = vmul.f32 %v3356, %v3360
      %v3369 = vlaneseq
      %v3370 = vshrl.u32 %v3369, 7
      %v3371 = vsub.s32 0, %v3370
      %v3372 = vrot.slane %v3280, %v3371
      %v3373 = vadd.f32 %v3361, %v3372
      %v3374 = vadd.f32 %v3362, %v3372
      %v3375 = vadd.f32 %v3363, %v3372
      %v3376 = vadd.f32 %v3364, %v3372
      %v3377 = vadd.f32 %v3365, %v3372
      %v3378 = vadd.f32 %v3366, %v3372
      %v3379 = vadd.f32 %v3367, %v3372
      %v3380 = vadd.f32 %v3368, %v3372
      %v3381 = vadd.f32 %v301, %v3373
      %v3382 = vadd.f32 %v302, %v3374
      %v3383 = vadd.f32 %v303, %v3375
      %v3384 = vadd.f32 %v304, %v3376
      %v3385 = vadd.f32 %v305, %v3377
      %v3386 = vadd.f32 %v306, %v3378
      %v3387 = vadd.f32 %v307, %v3379
      %v3388 = vadd.f32 %v308, %v3380
      %v3389 = vmul.f32 %v3381, 0.5
      %v3390 = vmul.f32 %v3382, 0.5
      %v3391 = vmul.f32 %v3383, 0.5
      %v3392 = vmul.f32 %v3384, 0.5
      %v3393 = vmul.f32 %v3385, 0.5
      %v3394 = vmul.f32 %v3386, 0.5
      %v3395 = vmul.f32 %v3387, 0.5
      %v3396 = vmul.f32 %v3388, 0.5
      %v3397 = vmul.f32 %v3381, 0.70710677
      %v3398 = vmul.f32 %v3382, 0.70710677
      %v3399 = vmul.f32 %v3383, 0.70710677
      %v3400 = vmul.f32 %v3384, 0.70710677
      %v3401 = vmul.f32 %v3385, 0.70710677
      %v3402 = vmul.f32 %v3386, 0.70710677
      %v3403 = vmul.f32 %v3387, 0.70710677
      %v3404 = vmul.f32 %v3388, 0.70710677
      %v3405 = vand.u32 2147483647, %v3397
      %v3406 = vand.u32 2147483647, %v3398
      %v3407 = vand.u32 2147483647, %v3399
      %v3408 = vand.u32 2147483647, %v3400
      %v3409 = vand.u32 2147483647, %v3401
      %v3410 = vand.u32 2147483647, %v3402
      %v3411 = vand.u32 2147483647, %v3403
      %v3412 = vand.u32 2147483647, %v3404
      %v3413 = vmul.f32 %v3405, 0.3275911
      %v3414 = vmul.f32 %v3406, 0.3275911
      %v3415 = vmul.f32 %v3407, 0.3275911
      %v3416 = vmul.f32 %v3408, 0.3275911
      %v3417 = vmul.f32 %v3409, 0.3275911
      %v3418 = vmul.f32 %v3410, 0.3275911
      %v3419 = vmul.f32 %v3411, 0.3275911
      %v3420 = vmul.f32 %v3412, 0.3275911
      %v3421 = vadd.f32 %v3413, 1.0
      %v3422 = vadd.f32 %v3414, 1.0
      %v3423 = vadd.f32 %v3415, 1.0
      %v3424 = vadd.f32 %v3416, 1.0
      %v3425 = vadd.f32 %v3417, 1.0
      %v3426 = vadd.f32 %v3418, 1.0
      %v3427 = vadd.f32 %v3419, 1.0
      %v3428 = vadd.f32 %v3420, 1.0
      %v3429 = vrcp.pop %v3421
      %v3430 = vrcp.pop %v3422
      %v3431 = vrcp.pop %v3423
      %v3432 = vrcp.pop %v3424
      %v3433 = vrcp.pop %v3425
      %v3434 = vrcp.pop %v3426
      %v3435 = vrcp.pop %v3427
      %v3436 = vrcp.pop %v3428
      %v3437 = vmul.f32 %v3429, 1.0614054
      %v3438 = vmul.f32 %v3430, 1.0614054
      %v3439 = vmul.f32 %v3431, 1.0614054
      %v3440 = vmul.f32 %v3432, 1.0614054
      %v3441 = vmul.f32 %v3433, 1.0614054
      %v3442 = vmul.f32 %v3434, 1.0614054
      %v3443 = vmul.f32 %v3435, 1.0614054
      %v3444 = vmul.f32 %v3436, 1.0614054
      %v3445 = vadd.f32 %v3437, -1.4531521
      %v3446 = vadd.f32 %v3438, -1.4531521
      %v3447 = vadd.f32 %v3439, -1.4531521
      %v3448 = vadd.f32 %v3440, -1.4531521
      %v3449 = vadd.f32 %v3441, -1.4531521
      %v3450 = vadd.f32 %v3442, -1.4531521
      %v3451 = vadd.f32 %v3443, -1.4531521
      %v3452 = vadd.f32 %v3444, -1.4531521
      %v3453 = vmul.f32 %v3445, %v3429
      %v3454 = vmul.f32 %v3446, %v3430
      %v3455 = vmul.f32 %v3447, %v3431
      %v3456 = vmul.f32 %v3448, %v3432
      %v3457 = vmul.f32 %v3449, %v3433
      %v3458 = vmul.f32 %v3450, %v3434
      %v3459 = vmul.f32 %v3451, %v3435
      %v3460 = vmul.f32 %v3452, %v3436
      %v3461 = vadd.f32 %v3453, 1.4214138
      %v3462 = vadd.f32 %v3454, 1.4214138
      %v3463 = vadd.f32 %v3455, 1.4214138
      %v3464 = vadd.f32 %v3456, 1.4214138
      %v3465 = vadd.f32 %v3457, 1.4214138
      %v3466 = vadd.f32 %v3458, 1.4214138
      %v3467 = vadd.f32 %v3459, 1.4214138
      %v3468 = vadd.f32 %v3460, 1.4214138
      %v3469 = vmul.f32 %v3461, %v3429
      %v3470 = vmul.f32 %v3462, %v3430
      %v3471 = vmul.f32 %v3463, %v3431
      %v3472 = vmul.f32 %v3464, %v3432
      %v3473 = vmul.f32 %v3465, %v3433
      %v3474 = vmul.f32 %v3466, %v3434
      %v3475 = vmul.f32 %v3467, %v3435
      %v3476 = vmul.f32 %v3468, %v3436
      %v3477 = vadd.f32 %v3469, -0.28449672
      %v3478 = vadd.f32 %v3470, -0.28449672
      %v3479 = vadd.f32 %v3471, -0.28449672
      %v3480 = vadd.f32 %v3472, -0.28449672
      %v3481 = vadd.f32 %v3473, -0.28449672
      %v3482 = vadd.f32 %v3474, -0.28449672
      %v3483 = vadd.f32 %v3475, -0.28449672
      %v3484 = vadd.f32 %v3476, -0.28449672
      %v3485 = vmul.f32 %v3477, %v3429
      %v3486 = vmul.f32 %v3478, %v3430
      %v3487 = vmul.f32 %v3479, %v3431
      %v3488 = vmul.f32 %v3480, %v3432
      %v3489 = vmul.f32 %v3481, %v3433
      %v3490 = vmul.f32 %v3482, %v3434
      %v3491 = vmul.f32 %v3483, %v3435
      %v3492 = vmul.f32 %v3484, %v3436
      %v3493 = vadd.f32 %v3485, 0.2548296
      %v3494 = vadd.f32 %v3486, 0.2548296
      %v3495 = vadd.f32 %v3487, 0.2548296
      %v3496 = vadd.f32 %v3488, 0.2548296
      %v3497 = vadd.f32 %v3489, 0.2548296
      %v3498 = vadd.f32 %v3490, 0.2548296
      %v3499 = vadd.f32 %v3491, 0.2548296
      %v3500 = vadd.f32 %v3492, 0.2548296
      %v3501 = vmul.f32 %v3493, %v3429
      %v3502 = vmul.f32 %v3494, %v3430
      %v3503 = vmul.f32 %v3495, %v3431
      %v3504 = vmul.f32 %v3496, %v3432
      %v3505 = vmul.f32 %v3497, %v3433
      %v3506 = vmul.f32 %v3498, %v3434
      %v3507 = vmul.f32 %v3499, %v3435
      %v3508 = vmul.f32 %v3500, %v3436
      %v3509 = vsub.f32 0.0, %v3405
      %v3510 = vsub.f32 0.0, %v3406
      %v3511 = vsub.f32 0.0, %v3407
      %v3512 = vsub.f32 0.0, %v3408
      %v3513 = vsub.f32 0.0, %v3409
      %v3514 = vsub.f32 0.0, %v3410
      %v3515 = vsub.f32 0.0, %v3411
      %v3516 = vsub.f32 0.0, %v3412
      %v3517 = vmul.f32 %v3509, %v3405
      %v3518 = vmul.f32 %v3510, %v3406
      %v3519 = vmul.f32 %v3511, %v3407
      %v3520 = vmul.f32 %v3512, %v3408
      %v3521 = vmul.f32 %v3513, %v3409
      %v3522 = vmul.f32 %v3514, %v3410
      %v3523 = vmul.f32 %v3515, %v3411
      %v3524 = vmul.f32 %v3516, %v3412
      %v3525 = vmul.f32 %v3517, 1.442695
      %v3526 = vpow.pop %v3525
      %v3527 = vmul.f32 %v3518, 1.442695
      %v3528 = vpow.pop %v3527
      %v3529 = vmul.f32 %v3519, 1.442695
      %v3530 = vpow.pop %v3529
      %v3531 = vmul.f32 %v3520, 1.442695
      %v3532 = vpow.pop %v3531
      %v3533 = vmul.f32 %v3521, 1.442695
      %v3534 = vpow.pop %v3533
      %v3535 = vmul.f32 %v3522, 1.442695
      %v3536 = vpow.pop %v3535
      %v3537 = vmul.f32 %v3523, 1.442695
      %v3538 = vpow.pop %v3537
      %v3539 = vmul.f32 %v3524, 1.442695
      %v3540 = vpow.pop %v3539
      %v3541 = vmul.f32 %v3501, %v3526
      %v3542 = vmul.f32 %v3502, %v3528
      %v3543 = vmul.f32 %v3503, %v3530
      %v3544 = vmul.f32 %v3504, %v3532
      %v3545 = vmul.f32 %v3505, %v3534
      %v3546 = vmul.f32 %v3506, %v3536
      %v3547 = vmul.f32 %v3507, %v3538
      %v3548 = vmul.f32 %v3508, %v3540
      %v3549 = vsub.f32 1.0, %v3541
      %v3550 = vsub.f32 1.0, %v3542
      %v3551 = vsub.f32 1.0, %v3543
      %v3552 = vsub.f32 1.0, %v3544
      %v3553 = vsub.f32 1.0, %v3545
      %v3554 = vsub.f32 1.0, %v3546
      %v3555 = vsub.f32 1.0, %v3547
      %v3556 = vsub.f32 1.0, %v3548
      %vm3557 = vcmp.ge.f32.partialorder %v3397, 0.0
      %vm3558 = vcmp.ge.f32.partialorder %v3398, 0.0
      %vm3559 = vcmp.ge.f32.partialorder %v3399, 0.0
      %vm3560 = vcmp.ge.f32.partialorder %v3400, 0.0
      %vm3561 = vcmp.ge.f32.partialorder %v3401, 0.0
      %vm3562 = vcmp.ge.f32.partialorder %v3402, 0.0
      %vm3563 = vcmp.ge.f32.partialorder %v3403, 0.0
      %vm3564 = vcmp.ge.f32.partialorder %v3404, 0.0
      %v3565 = vsub.f32 0.0, %v3549
      %v3566 = vsub.f32 0.0, %v3550
      %v3567 = vsub.f32 0.0, %v3551
      %v3568 = vsub.f32 0.0, %v3552
      %v3569 = vsub.f32 0.0, %v3553
      %v3570 = vsub.f32 0.0, %v3554
      %v3571 = vsub.f32 0.0, %v3555
      %v3572 = vsub.f32 0.0, %v3556
      %v3573 = vsel %vm3557, %v3549, %v3565
      %v3574 = vsel %vm3558, %v3550, %v3566
      %v3575 = vsel %vm3559, %v3551, %v3567
      %v3576 = vsel %vm3560, %v3552, %v3568
      %v3577 = vsel %vm3561, %v3553, %v3569
      %v3578 = vsel %vm3562, %v3554, %v3570
      %v3579 = vsel %vm3563, %v3555, %v3571
      %v3580 = vsel %vm3564, %v3556, %v3572
      %v3581 = vadd.f32 %v3573, 1.0
      %v3582 = vadd.f32 %v3574, 1.0
      %v3583 = vadd.f32 %v3575, 1.0
      %v3584 = vadd.f32 %v3576, 1.0
      %v3585 = vadd.f32 %v3577, 1.0
      %v3586 = vadd.f32 %v3578, 1.0
      %v3587 = vadd.f32 %v3579, 1.0
      %v3588 = vadd.f32 %v3580, 1.0
      %v3589 = vmul.f32 %v3389, %v3581
      %v3590 = vmul.f32 %v3390, %v3582
      %v3591 = vmul.f32 %v3391, %v3583
      %v3592 = vmul.f32 %v3392, %v3584
      %v3593 = vmul.f32 %v3393, %v3585
      %v3594 = vmul.f32 %v3394, %v3586
      %v3595 = vmul.f32 %v3395, %v3587
      %v3596 = vmul.f32 %v3396, %v3588
      %3597 = vst.msk [vmem:[%s309 + $0x1] sm:$0xff] %vm310, %v3589
      %3598 = vst.msk [vmem:[%s309 + $0x11] sm:$0xff] %vm310, %v3590
      %3599 = vst.msk [vmem:[%s309 + $0x21] sm:$0xff] %vm310, %v3591
      %3600 = vst.msk [vmem:[%s309 + $0x31] sm:$0xff] %vm310, %v3592
      %3601 = vst.msk [vmem:[%s309 + $0x41] sm:$0xff] %vm310, %v3593
      %3602 = vst.msk [vmem:[%s309 + $0x51] sm:$0xff] %vm310, %v3594
      %3603 = vst.msk [vmem:[%s309 + $0x61] sm:$0xff] %vm310, %v3595
      %3604 = vst.msk [vmem:[%s309 + $0x71] sm:$0xff] %vm310, %v3596
      %v3605 = vld [vmem:[#allocation2] sm:$0xff]
      %v3606 = vld [vmem:[#allocation2 + $0x10] sm:$0xff]
      %v3607 = vld [vmem:[#allocation2 + $0x20] sm:$0xff]
      %v3608 = vld [vmem:[#allocation2 + $0x30] sm:$0xff]
      %v3609 = vld [vmem:[#allocation2 + $0x40] sm:$0xff]
      %v3610 = vld [vmem:[#allocation2 + $0x50] sm:$0xff]
      %v3611 = vld [vmem:[#allocation2 + $0x60] sm:$0xff]
      %v3612 = vld [vmem:[#allocation2 + $0x70] sm:$0xff]
      %s3613 = scalar_lea.vmem %s1, 144
      %v3614 = vld [vmem:[%s3613] sm:$0xf]
      %v3615 = vld [vmem:[#allocation2 + $0x1] sm:$0xff]
      %v3616 = vld [vmem:[#allocation2 + $0x11] sm:$0xff]
      %v3617 = vld [vmem:[#allocation2 + $0x21] sm:$0xff]
      %v3618 = vld [vmem:[#allocation2 + $0x31] sm:$0xff]
      %v3619 = vld [vmem:[#allocation2 + $0x41] sm:$0xff]
      %v3620 = vld [vmem:[#allocation2 + $0x51] sm:$0xff]
      %v3621 = vld [vmem:[#allocation2 + $0x61] sm:$0xff]
      %v3622 = vld [vmem:[#allocation2 + $0x71] sm:$0xff]
      %s3623 = scalar_lea.vmem %s1, 152
      %v3624 = vld [vmem:[%s3623] sm:$0xf]
      %v3626 = vsel %vm310, %v3615, 0
      %v3629 = vsel %vm310, %v3616, 0
      %v3632 = vsel %vm310, %v3617, 0
      %v3635 = vsel %vm310, %v3618, 0
      %v3638 = vsel %vm310, %v3619, 0
      %v3641 = vsel %vm310, %v3620, 0
      %v3644 = vsel %vm310, %v3621, 0
      %v3647 = vsel %vm310, %v3622, 0
      %v3650 = vsel %vm362, %v3624, 0
      %3652 = vmatprep.subr.mxu0 0.0
      %3653 = vmatpush1.msra.mxu0 %v3650
      %3654 = vmatprep.subr.mxu0 0.0
      %3655 = vmatpush1.msra.mxu0 0.0
      %3656 = vmatprep.subr.mxu0 0.0
      %3657 = vmatpush1.msra.mxu0 0.0
      %3658 = vmatprep.subr.mxu0 0.0
      %3659 = vmatpush1.msra.mxu0 0.0
      %3660 = vmatprep.subr.mxu0 0.0
      %3661 = vmatpush1.msra.mxu0 0.0
      %3662 = vmatprep.subr.mxu0 0.0
      %3663 = vmatpush1.msra.mxu0 0.0
      %3664 = vmatprep.subr.mxu0 0.0
      %3665 = vmatpush1.msra.mxu0 0.0
      %3666 = vmatprep.subr.mxu0 0.0
      %3667 = vmatpush1.msra.mxu0 0.0
      %3668 = vmatprep.subr.mxu0 0.0
      %3669 = vmatpush1.msra.mxu0 0.0
      %3670 = vmatprep.subr.mxu0 0.0
      %3671 = vmatpush1.msra.mxu0 0.0
      %3672 = vmatprep.subr.mxu0 0.0
      %3673 = vmatpush1.msra.mxu0 0.0
      %3674 = vmatprep.subr.mxu0 0.0
      %3675 = vmatpush1.msra.mxu0 0.0
      %3676 = vmatprep.subr.mxu0 0.0
      %3677 = vmatpush1.msra.mxu0 0.0
      %3678 = vmatprep.subr.mxu0 0.0
      %3679 = vmatpush1.msra.mxu0 0.0
      %3680 = vmatprep.subr.mxu0 0.0
      %3681 = vmatpush1.msra.mxu0 0.0
      %3682 = vmatprep.subr.mxu0 0.0
      %3683 = vmatpush1.msra.mxu0 0.0
      %3684 = vmatprep.subr.mxu0 0.0
      %3685 = vmatpush1.msra.mxu0 0.0
      %3686 = vmatprep.subr.mxu0 0.0
      %3687 = vmatpush1.msra.mxu0 0.0
      %3688 = vmatprep.subr.mxu0 0.0
      %3689 = vmatpush1.msra.mxu0 0.0
      %3690 = vmatprep.subr.mxu0 0.0
      %3691 = vmatpush1.msra.mxu0 0.0
      %3692 = vmatprep.subr.mxu0 0.0
      %3693 = vmatpush1.msra.mxu0 0.0
      %3694 = vmatprep.subr.mxu0 0.0
      %3695 = vmatpush1.msra.mxu0 0.0
      %3696 = vmatprep.subr.mxu0 0.0
      %3697 = vmatpush1.msra.mxu0 0.0
      %3698 = vmatprep.subr.mxu0 0.0
      %3699 = vmatpush1.msra.mxu0 0.0
      %3700 = vmatprep.subr.mxu0 0.0
      %3701 = vmatpush1.msra.mxu0 0.0
      %3702 = vmatprep.subr.mxu0 0.0
      %3703 = vmatpush1.msra.mxu0 0.0
      %3704 = vmatprep.subr.mxu0 0.0
      %3705 = vmatpush1.msra.mxu0 0.0
      %3706 = vmatprep.subr.mxu0 0.0
      %3707 = vmatpush1.msra.mxu0 0.0
      %3708 = vmatprep.subr.mxu0 0.0
      %3709 = vmatpush1.msra.mxu0 0.0
      %3710 = vmatprep.subr.mxu0 0.0
      %3711 = vmatpush1.msra.mxu0 0.0
      %3712 = vmatprep.subr.mxu0 0.0
      %3713 = vmatpush1.msra.mxu0 0.0
      %3714 = vmatprep.subr.mxu0 0.0
      %3715 = vmatpush1.msra.mxu0 0.0
      %3716 = vmatprep.mubr.f32.mxu0 0.0
      %3717 = vmatmul.mubr.f32.gmra.mrb[0].mxu0 %v3626
      %v3718 = vpop.f32.mrb[0].mxu0
      %v3719 = vadd.f32 0.0, %v3718
      %v3720 = vpop.f32.mrb[0].mxu0
      %3721 = vmatprep.mubr.f32.mxu0 0.0
      %3722 = vmatmul.mubr.f32.gmra.mrb[0].mxu0 %v3629
      %v3723 = vpop.f32.mrb[0].mxu0
      %v3724 = vadd.f32 0.0, %v3723
      %v3725 = vpop.f32.mrb[0].mxu0
      %3726 = vmatprep.mubr.f32.mxu0 0.0
      %3727 = vmatmul.mubr.f32.gmra.mrb[0].mxu0 %v3632
      %v3728 = vpop.f32.mrb[0].mxu0
      %v3729 = vadd.f32 0.0, %v3728
      %v3730 = vpop.f32.mrb[0].mxu0
      %3731 = vmatprep.mubr.f32.mxu0 0.0
      %3732 = vmatmul.mubr.f32.gmra.mrb[0].mxu0 %v3635
      %v3733 = vpop.f32.mrb[0].mxu0
      %v3734 = vadd.f32 0.0, %v3733
      %v3735 = vpop.f32.mrb[0].mxu0
      %3736 = vmatprep.mubr.f32.mxu0 0.0
      %3737 = vmatmul.mubr.f32.gmra.mrb[0].mxu0 %v3638
      %v3738 = vpop.f32.mrb[0].mxu0
      %v3739 = vadd.f32 0.0, %v3738
      %v3740 = vpop.f32.mrb[0].mxu0
      %3741 = vmatprep.mubr.f32.mxu0 0.0
      %3742 = vmatmul.mubr.f32.gmra.mrb[0].mxu0 %v3641
      %v3743 = vpop.f32.mrb[0].mxu0
      %v3744 = vadd.f32 0.0, %v3743
      %v3745 = vpop.f32.mrb[0].mxu0
      %3746 = vmatprep.mubr.f32.mxu0 0.0
      %3747 = vmatmul.mubr.f32.gmra.mrb[0].mxu0 %v3644
      %v3748 = vpop.f32.mrb[0].mxu0
      %v3749 = vadd.f32 0.0, %v3748
      %v3750 = vpop.f32.mrb[0].mxu0
      %3751 = vmatprep.mubr.f32.mxu0 0.0
      %3752 = vmatmul.mubr.f32.gmra.mrb[0].mxu0 %v3647
      %v3753 = vpop.f32.mrb[0].mxu0
      %v3754 = vadd.f32 0.0, %v3753
      %v3755 = vpop.f32.mrb[0].mxu0
      %3756 = vdwg.mxu0
      %v3758 = vsel %vm310, %v3605, 0
      %v3761 = vsel %vm310, %v3606, 0
      %v3764 = vsel %vm310, %v3607, 0
      %v3767 = vsel %vm310, %v3608, 0
      %v3770 = vsel %vm310, %v3609, 0
      %v3773 = vsel %vm310, %v3610, 0
      %v3776 = vsel %vm310, %v3611, 0
      %v3779 = vsel %vm310, %v3612, 0
      %v3782 = vsel %vm362, %v3614, 0
      %3784 = vmatprep.subr.mxu0 0.0
      %3785 = vmatpush1.msra.mxu0 %v3782
      %3786 = vmatprep.subr.mxu0 0.0
      %3787 = vmatpush1.msra.mxu0 0.0
      %3788 = vmatprep.subr.mxu0 0.0
      %3789 = vmatpush1.msra.mxu0 0.0
      %3790 = vmatprep.subr.mxu0 0.0
      %3791 = vmatpush1.msra.mxu0 0.0
      %3792 = vmatprep.subr.mxu0 0.0
      %3793 = vmatpush1.msra.mxu0 0.0
      %3794 = vmatprep.subr.mxu0 0.0
      %3795 = vmatpush1.msra.mxu0 0.0
      %3796 = vmatprep.subr.mxu0 0.0
      %3797 = vmatpush1.msra.mxu0 0.0
      %3798 = vmatprep.subr.mxu0 0.0
      %3799 = vmatpush1.msra.mxu0 0.0
      %3800 = vmatprep.subr.mxu0 0.0
      %3801 = vmatpush1.msra.mxu0 0.0
      %3802 = vmatprep.subr.mxu0 0.0
      %3803 = vmatpush1.msra.mxu0 0.0
      %3804 = vmatprep.subr.mxu0 0.0
      %3805 = vmatpush1.msra.mxu0 0.0
      %3806 = vmatprep.subr.mxu0 0.0
      %3807 = vmatpush1.msra.mxu0 0.0
      %3808 = vmatprep.subr.mxu0 0.0
      %3809 = vmatpush1.msra.mxu0 0.0
      %3810 = vmatprep.subr.mxu0 0.0
      %3811 = vmatpush1.msra.mxu0 0.0
      %3812 = vmatprep.subr.mxu0 0.0
      %3813 = vmatpush1.msra.mxu0 0.0
      %3814 = vmatprep.subr.mxu0 0.0
      %3815 = vmatpush1.msra.mxu0 0.0
      %3816 = vmatprep.subr.mxu0 0.0
      %3817 = vmatpush1.msra.mxu0 0.0
      %3818 = vmatprep.subr.mxu0 0.0
      %3819 = vmatpush1.msra.mxu0 0.0
      %3820 = vmatprep.subr.mxu0 0.0
      %3821 = vmatpush1.msra.mxu0 0.0
      %3822 = vmatprep.subr.mxu0 0.0
      %3823 = vmatpush1.msra.mxu0 0.0
      %3824 = vmatprep.subr.mxu0 0.0
      %3825 = vmatpush1.msra.mxu0 0.0
      %3826 = vmatprep.subr.mxu0 0.0
      %3827 = vmatpush1.msra.mxu0 0.0
      %3828 = vmatprep.subr.mxu0 0.0
      %3829 = vmatpush1.msra.mxu0 0.0
      %3830 = vmatprep.subr.mxu0 0.0
      %3831 = vmatpush1.msra.mxu0 0.0
      %3832 = vmatprep.subr.mxu0 0.0
      %3833 = vmatpush1.msra.mxu0 0.0
      %3834 = vmatprep.subr.mxu0 0.0
      %3835 = vmatpush1.msra.mxu0 0.0
      %3836 = vmatprep.subr.mxu0 0.0
      %3837 = vmatpush1.msra.mxu0 0.0
      %3838 = vmatprep.subr.mxu0 0.0
      %3839 = vmatpush1.msra.mxu0 0.0
      %3840 = vmatprep.subr.mxu0 0.0
      %3841 = vmatpush1.msra.mxu0 0.0
      %3842 = vmatprep.subr.mxu0 0.0
      %3843 = vmatpush1.msra.mxu0 0.0
      %3844 = vmatprep.subr.mxu0 0.0
      %3845 = vmatpush1.msra.mxu0 0.0
      %3846 = vmatprep.subr.mxu0 0.0
      %3847 = vmatpush1.msra.mxu0 0.0
      %3848 = vmatprep.mubr.f32.mxu0 0.0
      %3849 = vmatmul.mubr.f32.gmra.mrb[0].mxu0 %v3758
      %v3850 = vpop.f32.mrb[0].mxu0
      %v3851 = vadd.f32 %v3719, %v3850
      %v3852 = vpop.f32.mrb[0].mxu0
      %3853 = vmatprep.mubr.f32.mxu0 0.0
      %3854 = vmatmul.mubr.f32.gmra.mrb[0].mxu0 %v3761
      %v3855 = vpop.f32.mrb[0].mxu0
      %v3856 = vadd.f32 %v3724, %v3855
      %v3857 = vpop.f32.mrb[0].mxu0
      %3858 = vmatprep.mubr.f32.mxu0 0.0
      %3859 = vmatmul.mubr.f32.gmra.mrb[0].mxu0 %v3764
      %v3860 = vpop.f32.mrb[0].mxu0
      %v3861 = vadd.f32 %v3729, %v3860
      %v3862 = vpop.f32.mrb[0].mxu0
      %3863 = vmatprep.mubr.f32.mxu0 0.0
      %3864 = vmatmul.mubr.f32.gmra.mrb[0].mxu0 %v3767
      %v3865 = vpop.f32.mrb[0].mxu0
      %v3866 = vadd.f32 %v3734, %v3865
      %v3867 = vpop.f32.mrb[0].mxu0
      %3868 = vmatprep.mubr.f32.mxu0 0.0
      %3869 = vmatmul.mubr.f32.gmra.mrb[0].mxu0 %v3770
      %v3870 = vpop.f32.mrb[0].mxu0
      %v3871 = vadd.f32 %v3739, %v3870
      %v3872 = vpop.f32.mrb[0].mxu0
      %3873 = vmatprep.mubr.f32.mxu0 0.0
      %3874 = vmatmul.mubr.f32.gmra.mrb[0].mxu0 %v3773
      %v3875 = vpop.f32.mrb[0].mxu0
      %v3876 = vadd.f32 %v3744, %v3875
      %v3877 = vpop.f32.mrb[0].mxu0
      %3878 = vmatprep.mubr.f32.mxu0 0.0
      %3879 = vmatmul.mubr.f32.gmra.mrb[0].mxu0 %v3776
      %v3880 = vpop.f32.mrb[0].mxu0
      %v3881 = vadd.f32 %v3749, %v3880
      %v3882 = vpop.f32.mrb[0].mxu0
      %3883 = vmatprep.mubr.f32.mxu0 0.0
      %3884 = vmatmul.mubr.f32.gmra.mrb[0].mxu0 %v3779
      %v3885 = vpop.f32.mrb[0].mxu0
      %v3886 = vadd.f32 %v3754, %v3885
      %v3887 = vpop.f32.mrb[0].mxu0
      %3888 = vdwg.mxu0
      %v3889 = vld [vmem:[#allocation2 + $0x2] sm:$0xff]
      %v3890 = vld [vmem:[#allocation2 + $0x12] sm:$0xff]
      %v3891 = vld [vmem:[#allocation2 + $0x22] sm:$0xff]
      %v3892 = vld [vmem:[#allocation2 + $0x32] sm:$0xff]
      %v3893 = vld [vmem:[#allocation2 + $0x42] sm:$0xff]
      %v3894 = vld [vmem:[#allocation2 + $0x52] sm:$0xff]
      %v3895 = vld [vmem:[#allocation2 + $0x62] sm:$0xff]
      %v3896 = vld [vmem:[#allocation2 + $0x72] sm:$0xff]
      %s3897 = scalar_lea.vmem %s1, 160
      %v3898 = vld [vmem:[%s3897] sm:$0xf]
      %v3900 = vsel %vm310, %v3889, 0
      %v3903 = vsel %vm310, %v3890, 0
      %v3906 = vsel %vm310, %v3891, 0
      %v3909 = vsel %vm310, %v3892, 0
      %v3912 = vsel %vm310, %v3893, 0
      %v3915 = vsel %vm310, %v3894, 0
      %v3918 = vsel %vm310, %v3895, 0
      %v3921 = vsel %vm310, %v3896, 0
      %v3924 = vsel %vm362, %v3898, 0
      %3926 = vmatprep.subr.mxu0 0.0
      %3927 = vmatpush1.msra.mxu0 %v3924
      %3928 = vmatprep.subr.mxu0 0.0
      %3929 = vmatpush1.msra.mxu0 0.0
      %3930 = vmatprep.subr.mxu0 0.0
      %3931 = vmatpush1.msra.mxu0 0.0
      %3932 = vmatprep.subr.mxu0 0.0
      %3933 = vmatpush1.msra.mxu0 0.0
      %3934 = vmatprep.subr.mxu0 0.0
      %3935 = vmatpush1.msra.mxu0 0.0
      %3936 = vmatprep.subr.mxu0 0.0
      %3937 = vmatpush1.msra.mxu0 0.0
      %3938 = vmatprep.subr.mxu0 0.0
      %3939 = vmatpush1.msra.mxu0 0.0
      %3940 = vmatprep.subr.mxu0 0.0
      %3941 = vmatpush1.msra.mxu0 0.0
      %3942 = vmatprep.subr.mxu0 0.0
      %3943 = vmatpush1.msra.mxu0 0.0
      %3944 = vmatprep.subr.mxu0 0.0
      %3945 = vmatpush1.msra.mxu0 0.0
      %3946 = vmatprep.subr.mxu0 0.0
      %3947 = vmatpush1.msra.mxu0 0.0
      %3948 = vmatprep.subr.mxu0 0.0
      %3949 = vmatpush1.msra.mxu0 0.0
      %3950 = vmatprep.subr.mxu0 0.0
      %3951 = vmatpush1.msra.mxu0 0.0
      %3952 = vmatprep.subr.mxu0 0.0
      %3953 = vmatpush1.msra.mxu0 0.0
      %3954 = vmatprep.subr.mxu0 0.0
      %3955 = vmatpush1.msra.mxu0 0.0
      %3956 = vmatprep.subr.mxu0 0.0
      %3957 = vmatpush1.msra.mxu0 0.0
      %3958 = vmatprep.subr.mxu0 0.0
      %3959 = vmatpush1.msra.mxu0 0.0
      %3960 = vmatprep.subr.mxu0 0.0
      %3961 = vmatpush1.msra.mxu0 0.0
      %3962 = vmatprep.subr.mxu0 0.0
      %3963 = vmatpush1.msra.mxu0 0.0
      %3964 = vmatprep.subr.mxu0 0.0
      %3965 = vmatpush1.msra.mxu0 0.0
      %3966 = vmatprep.subr.mxu0 0.0
      %3967 = vmatpush1.msra.mxu0 0.0
      %3968 = vmatprep.subr.mxu0 0.0
      %3969 = vmatpush1.msra.mxu0 0.0
      %3970 = vmatprep.subr.mxu0 0.0
      %3971 = vmatpush1.msra.mxu0 0.0
      %3972 = vmatprep.subr.mxu0 0.0
      %3973 = vmatpush1.msra.mxu0 0.0
      %3974 = vmatprep.subr.mxu0 0.0
      %3975 = vmatpush1.msra.mxu0 0.0
      %3976 = vmatprep.subr.mxu0 0.0
      %3977 = vmatpush1.msra.mxu0 0.0
      %3978 = vmatprep.subr.mxu0 0.0
      %3979 = vmatpush1.msra.mxu0 0.0
      %3980 = vmatprep.subr.mxu0 0.0
      %3981 = vmatpush1.msra.mxu0 0.0
      %3982 = vmatprep.subr.mxu0 0.0
      %3983 = vmatpush1.msra.mxu0 0.0
      %3984 = vmatprep.subr.mxu0 0.0
      %3985 = vmatpush1.msra.mxu0 0.0
      %3986 = vmatprep.subr.mxu0 0.0
      %3987 = vmatpush1.msra.mxu0 0.0
      %3988 = vmatprep.subr.mxu0 0.0
      %3989 = vmatpush1.msra.mxu0 0.0
      %3990 = vmatprep.mubr.f32.mxu0 0.0
      %3991 = vmatmul.mubr.f32.gmra.mrb[0].mxu0 %v3900
      %v3992 = vpop.f32.mrb[0].mxu0
      %v3993 = vadd.f32 0.0, %v3992
      %v3994 = vpop.f32.mrb[0].mxu0
      %3995 = vmatprep.mubr.f32.mxu0 0.0
      %3996 = vmatmul.mubr.f32.gmra.mrb[0].mxu0 %v3903
      %v3997 = vpop.f32.mrb[0].mxu0
      %v3998 = vadd.f32 0.0, %v3997
      %v3999 = vpop.f32.mrb[0].mxu0
      %4000 = vmatprep.mubr.f32.mxu0 0.0
      %4001 = vmatmul.mubr.f32.gmra.mrb[0].mxu0 %v3906
      %v4002 = vpop.f32.mrb[0].mxu0
      %v4003 = vadd.f32 0.0, %v4002
      %v4004 = vpop.f32.mrb[0].mxu0
      %4005 = vmatprep.mubr.f32.mxu0 0.0
      %4006 = vmatmul.mubr.f32.gmra.mrb[0].mxu0 %v3909
      %v4007 = vpop.f32.mrb[0].mxu0
      %v4008 = vadd.f32 0.0, %v4007
      %v4009 = vpop.f32.mrb[0].mxu0
      %4010 = vmatprep.mubr.f32.mxu0 0.0
      %4011 = vmatmul.mubr.f32.gmra.mrb[0].mxu0 %v3912
      %v4012 = vpop.f32.mrb[0].mxu0
      %v4013 = vadd.f32 0.0, %v4012
      %v4014 = vpop.f32.mrb[0].mxu0
      %4015 = vmatprep.mubr.f32.mxu0 0.0
      %4016 = vmatmul.mubr.f32.gmra.mrb[0].mxu0 %v3915
      %v4017 = vpop.f32.mrb[0].mxu0
      %v4018 = vadd.f32 0.0, %v4017
      %v4019 = vpop.f32.mrb[0].mxu0
      %4020 = vmatprep.mubr.f32.mxu0 0.0
      %4021 = vmatmul.mubr.f32.gmra.mrb[0].mxu0 %v3918
      %v4022 = vpop.f32.mrb[0].mxu0
      %v4023 = vadd.f32 0.0, %v4022
      %v4024 = vpop.f32.mrb[0].mxu0
      %4025 = vmatprep.mubr.f32.mxu0 0.0
      %4026 = vmatmul.mubr.f32.gmra.mrb[0].mxu0 %v3921
      %v4027 = vpop.f32.mrb[0].mxu0
      %v4028 = vadd.f32 0.0, %v4027
      %v4029 = vpop.f32.mrb[0].mxu0
      %4030 = vdwg.mxu0
      %v4031 = vadd.f32 %v3851, %v3993
      %v4032 = vadd.f32 %v3856, %v3998
      %v4033 = vadd.f32 %v3861, %v4003
      %v4034 = vadd.f32 %v3866, %v4008
      %v4035 = vadd.f32 %v3871, %v4013
      %v4036 = vadd.f32 %v3876, %v4018
      %v4037 = vadd.f32 %v3881, %v4023
      %v4038 = vadd.f32 %v3886, %v4028
      %v4039 = vld [vmem:[%s309] sm:$0xff]
      %v4040 = vld [vmem:[%s309 + $0x10] sm:$0xff]
      %v4041 = vld [vmem:[%s309 + $0x20] sm:$0xff]
      %v4042 = vld [vmem:[%s309 + $0x30] sm:$0xff]
      %v4043 = vld [vmem:[%s309 + $0x40] sm:$0xff]
      %v4044 = vld [vmem:[%s309 + $0x50] sm:$0xff]
      %v4045 = vld [vmem:[%s309 + $0x60] sm:$0xff]
      %v4046 = vld [vmem:[%s309 + $0x70] sm:$0xff]
      %s4047 = scalar_lea.vmem %s1, 168
      %v4048 = vld [vmem:[%s4047] sm:$0xf]
      %v4050 = vsel %vm310, %v4039, 0
      %v4053 = vsel %vm310, %v4040, 0
      %v4056 = vsel %vm310, %v4041, 0
      %v4059 = vsel %vm310, %v4042, 0
      %v4062 = vsel %vm310, %v4043, 0
      %v4065 = vsel %vm310, %v4044, 0
      %v4068 = vsel %vm310, %v4045, 0
      %v4071 = vsel %vm310, %v4046, 0
      %v4074 = vsel %vm362, %v4048, 0
      %4076 = vmatprep.subr.mxu0 0.0
      %4077 = vmatpush1.msra.mxu0 %v4074
      %4078 = vmatprep.subr.mxu0 0.0
      %4079 = vmatpush1.msra.mxu0 0.0
      %4080 = vmatprep.subr.mxu0 0.0
      %4081 = vmatpush1.msra.mxu0 0.0
      %4082 = vmatprep.subr.mxu0 0.0
      %4083 = vmatpush1.msra.mxu0 0.0
      %4084 = vmatprep.subr.mxu0 0.0
      %4085 = vmatpush1.msra.mxu0 0.0
      %4086 = vmatprep.subr.mxu0 0.0
      %4087 = vmatpush1.msra.mxu0 0.0
      %4088 = vmatprep.subr.mxu0 0.0
      %4089 = vmatpush1.msra.mxu0 0.0
      %4090 = vmatprep.subr.mxu0 0.0
      %4091 = vmatpush1.msra.mxu0 0.0
      %4092 = vmatprep.subr.mxu0 0.0
      %4093 = vmatpush1.msra.mxu0 0.0
      %4094 = vmatprep.subr.mxu0 0.0
      %4095 = vmatpush1.msra.mxu0 0.0
      %4096 = vmatprep.subr.mxu0 0.0
      %4097 = vmatpush1.msra.mxu0 0.0
      %4098 = vmatprep.subr.mxu0 0.0
      %4099 = vmatpush1.msra.mxu0 0.0
      %4100 = vmatprep.subr.mxu0 0.0
      %4101 = vmatpush1.msra.mxu0 0.0
      %4102 = vmatprep.subr.mxu0 0.0
      %4103 = vmatpush1.msra.mxu0 0.0
      %4104 = vmatprep.subr.mxu0 0.0
      %4105 = vmatpush1.msra.mxu0 0.0
      %4106 = vmatprep.subr.mxu0 0.0
      %4107 = vmatpush1.msra.mxu0 0.0
      %4108 = vmatprep.subr.mxu0 0.0
      %4109 = vmatpush1.msra.mxu0 0.0
      %4110 = vmatprep.subr.mxu0 0.0
      %4111 = vmatpush1.msra.mxu0 0.0
      %4112 = vmatprep.subr.mxu0 0.0
      %4113 = vmatpush1.msra.mxu0 0.0
      %4114 = vmatprep.subr.mxu0 0.0
      %4115 = vmatpush1.msra.mxu0 0.0
      %4116 = vmatprep.subr.mxu0 0.0
      %4117 = vmatpush1.msra.mxu0 0.0
      %4118 = vmatprep.subr.mxu0 0.0
      %4119 = vmatpush1.msra.mxu0 0.0
      %4120 = vmatprep.subr.mxu0 0.0
      %4121 = vmatpush1.msra.mxu0 0.0
      %4122 = vmatprep.subr.mxu0 0.0
      %4123 = vmatpush1.msra.mxu0 0.0
      %4124 = vmatprep.subr.mxu0 0.0
      %4125 = vmatpush1.msra.mxu0 0.0
      %4126 = vmatprep.subr.mxu0 0.0
      %4127 = vmatpush1.msra.mxu0 0.0
      %4128 = vmatprep.subr.mxu0 0.0
      %4129 = vmatpush1.msra.mxu0 0.0
      %4130 = vmatprep.subr.mxu0 0.0
      %4131 = vmatpush1.msra.mxu0 0.0
      %4132 = vmatprep.subr.mxu0 0.0
      %4133 = vmatpush1.msra.mxu0 0.0
      %4134 = vmatprep.subr.mxu0 0.0
      %4135 = vmatpush1.msra.mxu0 0.0
      %4136 = vmatprep.subr.mxu0 0.0
      %4137 = vmatpush1.msra.mxu0 0.0
      %4138 = vmatprep.subr.mxu0 0.0
      %4139 = vmatpush1.msra.mxu0 0.0
      %4140 = vmatprep.mubr.f32.mxu0 0.0
      %4141 = vmatmul.mubr.f32.gmra.mrb[0].mxu0 %v4050
      %v4142 = vpop.f32.mrb[0].mxu0
      %v4143 = vadd.f32 0.0, %v4142
      %v4144 = vpop.f32.mrb[0].mxu0
      %4145 = vmatprep.mubr.f32.mxu0 0.0
      %4146 = vmatmul.mubr.f32.gmra.mrb[0].mxu0 %v4053
      %v4147 = vpop.f32.mrb[0].mxu0
      %v4148 = vadd.f32 0.0, %v4147
      %v4149 = vpop.f32.mrb[0].mxu0
      %4150 = vmatprep.mubr.f32.mxu0 0.0
      %4151 = vmatmul.mubr.f32.gmra.mrb[0].mxu0 %v4056
      %v4152 = vpop.f32.mrb[0].mxu0
      %v4153 = vadd.f32 0.0, %v4152
      %v4154 = vpop.f32.mrb[0].mxu0
      %4155 = vmatprep.mubr.f32.mxu0 0.0
      %4156 = vmatmul.mubr.f32.gmra.mrb[0].mxu0 %v4059
      %v4157 = vpop.f32.mrb[0].mxu0
      %v4158 = vadd.f32 0.0, %v4157
      %v4159 = vpop.f32.mrb[0].mxu0
      %4160 = vmatprep.mubr.f32.mxu0 0.0
      %4161 = vmatmul.mubr.f32.gmra.mrb[0].mxu0 %v4062
      %v4162 = vpop.f32.mrb[0].mxu0
      %v4163 = vadd.f32 0.0, %v4162
      %v4164 = vpop.f32.mrb[0].mxu0
      %4165 = vmatprep.mubr.f32.mxu0 0.0
      %4166 = vmatmul.mubr.f32.gmra.mrb[0].mxu0 %v4065
      %v4167 = vpop.f32.mrb[0].mxu0
      %v4168 = vadd.f32 0.0, %v4167
      %v4169 = vpop.f32.mrb[0].mxu0
      %4170 = vmatprep.mubr.f32.mxu0 0.0
      %4171 = vmatmul.mubr.f32.gmra.mrb[0].mxu0 %v4068
      %v4172 = vpop.f32.mrb[0].mxu0
      %v4173 = vadd.f32 0.0, %v4172
      %v4174 = vpop.f32.mrb[0].mxu0
      %4175 = vmatprep.mubr.f32.mxu0 0.0
      %4176 = vmatmul.mubr.f32.gmra.mrb[0].mxu0 %v4071
      %v4177 = vpop.f32.mrb[0].mxu0
      %v4178 = vadd.f32 0.0, %v4177
      %v4179 = vpop.f32.mrb[0].mxu0
      %4180 = vdwg.mxu0
      %v4181 = vadd.f32 %v4031, %v4143
      %v4182 = vadd.f32 %v4032, %v4148
      %v4183 = vadd.f32 %v4033, %v4153
      %v4184 = vadd.f32 %v4034, %v4158
      %v4185 = vadd.f32 %v4035, %v4163
      %v4186 = vadd.f32 %v4036, %v4168
      %v4187 = vadd.f32 %v4037, %v4173
      %v4188 = vadd.f32 %v4038, %v4178
      %v4189 = vld [vmem:[%s309 + $0x1] sm:$0xff]
      %v4190 = vld [vmem:[%s309 + $0x11] sm:$0xff]
      %v4191 = vld [vmem:[%s309 + $0x21] sm:$0xff]
      %v4192 = vld [vmem:[%s309 + $0x31] sm:$0xff]
      %v4193 = vld [vmem:[%s309 + $0x41] sm:$0xff]
      %v4194 = vld [vmem:[%s309 + $0x51] sm:$0xff]
      %v4195 = vld [vmem:[%s309 + $0x61] sm:$0xff]
      %v4196 = vld [vmem:[%s309 + $0x71] sm:$0xff]
      %s4197 = scalar_lea.vmem %s1, 176
      %v4198 = vld [vmem:[%s4197] sm:$0xf]
      %v4200 = vsel %vm310, %v4189, 0
      %v4203 = vsel %vm310, %v4190, 0
      %v4206 = vsel %vm310, %v4191, 0
      %v4209 = vsel %vm310, %v4192, 0
      %v4212 = vsel %vm310, %v4193, 0
      %v4215 = vsel %vm310, %v4194, 0
      %v4218 = vsel %vm310, %v4195, 0
      %v4221 = vsel %vm310, %v4196, 0
      %v4224 = vsel %vm362, %v4198, 0
      %4226 = vmatprep.subr.mxu0 0.0
      %4227 = vmatpush1.msra.mxu0 %v4224
      %4228 = vmatprep.subr.mxu0 0.0
      %4229 = vmatpush1.msra.mxu0 0.0
      %4230 = vmatprep.subr.mxu0 0.0
      %4231 = vmatpush1.msra.mxu0 0.0
      %4232 = vmatprep.subr.mxu0 0.0
      %4233 = vmatpush1.msra.mxu0 0.0
      %4234 = vmatprep.subr.mxu0 0.0
      %4235 = vmatpush1.msra.mxu0 0.0
      %4236 = vmatprep.subr.mxu0 0.0
      %4237 = vmatpush1.msra.mxu0 0.0
      %4238 = vmatprep.subr.mxu0 0.0
      %4239 = vmatpush1.msra.mxu0 0.0
      %4240 = vmatprep.subr.mxu0 0.0
      %4241 = vmatpush1.msra.mxu0 0.0
      %4242 = vmatprep.subr.mxu0 0.0
      %4243 = vmatpush1.msra.mxu0 0.0
      %4244 = vmatprep.subr.mxu0 0.0
      %4245 = vmatpush1.msra.mxu0 0.0
      %4246 = vmatprep.subr.mxu0 0.0
      %4247 = vmatpush1.msra.mxu0 0.0
      %4248 = vmatprep.subr.mxu0 0.0
      %4249 = vmatpush1.msra.mxu0 0.0
      %4250 = vmatprep.subr.mxu0 0.0
      %4251 = vmatpush1.msra.mxu0 0.0
      %4252 = vmatprep.subr.mxu0 0.0
      %4253 = vmatpush1.msra.mxu0 0.0
      %4254 = vmatprep.subr.mxu0 0.0
      %4255 = vmatpush1.msra.mxu0 0.0
      %4256 = vmatprep.subr.mxu0 0.0
      %4257 = vmatpush1.msra.mxu0 0.0
      %4258 = vmatprep.subr.mxu0 0.0
      %4259 = vmatpush1.msra.mxu0 0.0
      %4260 = vmatprep.subr.mxu0 0.0
      %4261 = vmatpush1.msra.mxu0 0.0
      %4262 = vmatprep.subr.mxu0 0.0
      %4263 = vmatpush1.msra.mxu0 0.0
      %4264 = vmatprep.subr.mxu0 0.0
      %4265 = vmatpush1.msra.mxu0 0.0
      %4266 = vmatprep.subr.mxu0 0.0
      %4267 = vmatpush1.msra.mxu0 0.0
      %4268 = vmatprep.subr.mxu0 0.0
      %4269 = vmatpush1.msra.mxu0 0.0
      %4270 = vmatprep.subr.mxu0 0.0
      %4271 = vmatpush1.msra.mxu0 0.0
      %4272 = vmatprep.subr.mxu0 0.0
      %4273 = vmatpush1.msra.mxu0 0.0
      %4274 = vmatprep.subr.mxu0 0.0
      %4275 = vmatpush1.msra.mxu0 0.0
      %4276 = vmatprep.subr.mxu0 0.0
      %4277 = vmatpush1.msra.mxu0 0.0
      %4278 = vmatprep.subr.mxu0 0.0
      %4279 = vmatpush1.msra.mxu0 0.0
      %4280 = vmatprep.subr.mxu0 0.0
      %4281 = vmatpush1.msra.mxu0 0.0
      %4282 = vmatprep.subr.mxu0 0.0
      %4283 = vmatpush1.msra.mxu0 0.0
      %4284 = vmatprep.subr.mxu0 0.0
      %4285 = vmatpush1.msra.mxu0 0.0
      %4286 = vmatprep.subr.mxu0 0.0
      %4287 = vmatpush1.msra.mxu0 0.0
      %4288 = vmatprep.subr.mxu0 0.0
      %4289 = vmatpush1.msra.mxu0 0.0
      %4290 = vmatprep.mubr.f32.mxu0 0.0
      %4291 = vmatmul.mubr.f32.gmra.mrb[0].mxu0 %v4200
      %v4292 = vpop.f32.mrb[0].mxu0
      %v4293 = vadd.f32 0.0, %v4292
      %v4294 = vpop.f32.mrb[0].mxu0
      %4295 = vmatprep.mubr.f32.mxu0 0.0
      %4296 = vmatmul.mubr.f32.gmra.mrb[0].mxu0 %v4203
      %v4297 = vpop.f32.mrb[0].mxu0
      %v4298 = vadd.f32 0.0, %v4297
      %v4299 = vpop.f32.mrb[0].mxu0
      %4300 = vmatprep.mubr.f32.mxu0 0.0
      %4301 = vmatmul.mubr.f32.gmra.mrb[0].mxu0 %v4206
      %v4302 = vpop.f32.mrb[0].mxu0
      %v4303 = vadd.f32 0.0, %v4302
      %v4304 = vpop.f32.mrb[0].mxu0
      %4305 = vmatprep.mubr.f32.mxu0 0.0
      %4306 = vmatmul.mubr.f32.gmra.mrb[0].mxu0 %v4209
      %v4307 = vpop.f32.mrb[0].mxu0
      %v4308 = vadd.f32 0.0, %v4307
      %v4309 = vpop.f32.mrb[0].mxu0
      %4310 = vmatprep.mubr.f32.mxu0 0.0
      %4311 = vmatmul.mubr.f32.gmra.mrb[0].mxu0 %v4212
      %v4312 = vpop.f32.mrb[0].mxu0
      %v4313 = vadd.f32 0.0, %v4312
      %v4314 = vpop.f32.mrb[0].mxu0
      %4315 = vmatprep.mubr.f32.mxu0 0.0
      %4316 = vmatmul.mubr.f32.gmra.mrb[0].mxu0 %v4215
      %v4317 = vpop.f32.mrb[0].mxu0
      %v4318 = vadd.f32 0.0, %v4317
      %v4319 = vpop.f32.mrb[0].mxu0
      %4320 = vmatprep.mubr.f32.mxu0 0.0
      %4321 = vmatmul.mubr.f32.gmra.mrb[0].mxu0 %v4218
      %v4322 = vpop.f32.mrb[0].mxu0
      %v4323 = vadd.f32 0.0, %v4322
      %v4324 = vpop.f32.mrb[0].mxu0
      %4325 = vmatprep.mubr.f32.mxu0 0.0
      %4326 = vmatmul.mubr.f32.gmra.mrb[0].mxu0 %v4221
      %v4327 = vpop.f32.mrb[0].mxu0
      %v4328 = vadd.f32 0.0, %v4327
      %v4329 = vpop.f32.mrb[0].mxu0
      %4330 = vdwg.mxu0
      %v4331 = vadd.f32 %v4181, %v4293
      %v4332 = vadd.f32 %v4182, %v4298
      %v4333 = vadd.f32 %v4183, %v4303
      %v4334 = vadd.f32 %v4184, %v4308
      %v4335 = vadd.f32 %v4185, %v4313
      %v4336 = vadd.f32 %v4186, %v4318
      %v4337 = vadd.f32 %v4187, %v4323
      %v4338 = vadd.f32 %v4188, %v4328
      %v4339 = vld [vmem:[%s309 + $0x2] sm:$0xff]
      %v4340 = vld [vmem:[%s309 + $0x12] sm:$0xff]
      %v4341 = vld [vmem:[%s309 + $0x22] sm:$0xff]
      %v4342 = vld [vmem:[%s309 + $0x32] sm:$0xff]
      %v4343 = vld [vmem:[%s309 + $0x42] sm:$0xff]
      %v4344 = vld [vmem:[%s309 + $0x52] sm:$0xff]
      %v4345 = vld [vmem:[%s309 + $0x62] sm:$0xff]
      %v4346 = vld [vmem:[%s309 + $0x72] sm:$0xff]
      %s4347 = scalar_lea.vmem %s1, 184
      %v4348 = vld [vmem:[%s4347] sm:$0xf]
      %v4350 = vsel %vm310, %v4339, 0
      %v4353 = vsel %vm310, %v4340, 0
      %v4356 = vsel %vm310, %v4341, 0
      %v4359 = vsel %vm310, %v4342, 0
      %v4362 = vsel %vm310, %v4343, 0
      %v4365 = vsel %vm310, %v4344, 0
      %v4368 = vsel %vm310, %v4345, 0
      %v4371 = vsel %vm310, %v4346, 0
      %v4374 = vsel %vm362, %v4348, 0
      %4376 = vmatprep.subr.mxu0 0.0
      %4377 = vmatpush1.msra.mxu0 %v4374
      %4378 = vmatprep.subr.mxu0 0.0
      %4379 = vmatpush1.msra.mxu0 0.0
      %4380 = vmatprep.subr.mxu0 0.0
      %4381 = vmatpush1.msra.mxu0 0.0
      %4382 = vmatprep.subr.mxu0 0.0
      %4383 = vmatpush1.msra.mxu0 0.0
      %4384 = vmatprep.subr.mxu0 0.0
      %4385 = vmatpush1.msra.mxu0 0.0
      %4386 = vmatprep.subr.mxu0 0.0
      %4387 = vmatpush1.msra.mxu0 0.0
      %4388 = vmatprep.subr.mxu0 0.0
      %4389 = vmatpush1.msra.mxu0 0.0
      %4390 = vmatprep.subr.mxu0 0.0
      %4391 = vmatpush1.msra.mxu0 0.0
      %4392 = vmatprep.subr.mxu0 0.0
      %4393 = vmatpush1.msra.mxu0 0.0
      %4394 = vmatprep.subr.mxu0 0.0
      %4395 = vmatpush1.msra.mxu0 0.0
      %4396 = vmatprep.subr.mxu0 0.0
      %4397 = vmatpush1.msra.mxu0 0.0
      %4398 = vmatprep.subr.mxu0 0.0
      %4399 = vmatpush1.msra.mxu0 0.0
      %4400 = vmatprep.subr.mxu0 0.0
      %4401 = vmatpush1.msra.mxu0 0.0
      %4402 = vmatprep.subr.mxu0 0.0
      %4403 = vmatpush1.msra.mxu0 0.0
      %4404 = vmatprep.subr.mxu0 0.0
      %4405 = vmatpush1.msra.mxu0 0.0
      %4406 = vmatprep.subr.mxu0 0.0
      %4407 = vmatpush1.msra.mxu0 0.0
      %4408 = vmatprep.subr.mxu0 0.0
      %4409 = vmatpush1.msra.mxu0 0.0
      %4410 = vmatprep.subr.mxu0 0.0
      %4411 = vmatpush1.msra.mxu0 0.0
      %4412 = vmatprep.subr.mxu0 0.0
      %4413 = vmatpush1.msra.mxu0 0.0
      %4414 = vmatprep.subr.mxu0 0.0
      %4415 = vmatpush1.msra.mxu0 0.0
      %4416 = vmatprep.subr.mxu0 0.0
      %4417 = vmatpush1.msra.mxu0 0.0
      %4418 = vmatprep.subr.mxu0 0.0
      %4419 = vmatpush1.msra.mxu0 0.0
      %4420 = vmatprep.subr.mxu0 0.0
      %4421 = vmatpush1.msra.mxu0 0.0
      %4422 = vmatprep.subr.mxu0 0.0
      %4423 = vmatpush1.msra.mxu0 0.0
      %4424 = vmatprep.subr.mxu0 0.0
      %4425 = vmatpush1.msra.mxu0 0.0
      %4426 = vmatprep.subr.mxu0 0.0
      %4427 = vmatpush1.msra.mxu0 0.0
      %4428 = vmatprep.subr.mxu0 0.0
      %4429 = vmatpush1.msra.mxu0 0.0
      %4430 = vmatprep.subr.mxu0 0.0
      %4431 = vmatpush1.msra.mxu0 0.0
      %4432 = vmatprep.subr.mxu0 0.0
      %4433 = vmatpush1.msra.mxu0 0.0
      %4434 = vmatprep.subr.mxu0 0.0
      %4435 = vmatpush1.msra.mxu0 0.0
      %4436 = vmatprep.subr.mxu0 0.0
      %4437 = vmatpush1.msra.mxu0 0.0
      %4438 = vmatprep.subr.mxu0 0.0
      %4439 = vmatpush1.msra.mxu0 0.0
      %4440 = vmatprep.mubr.f32.mxu0 0.0
      %4441 = vmatmul.mubr.f32.gmra.mrb[0].mxu0 %v4350
      %v4442 = vpop.f32.mrb[0].mxu0
      %v4443 = vadd.f32 0.0, %v4442
      %v4444 = vpop.f32.mrb[0].mxu0
      %4445 = vmatprep.mubr.f32.mxu0 0.0
      %4446 = vmatmul.mubr.f32.gmra.mrb[0].mxu0 %v4353
      %v4447 = vpop.f32.mrb[0].mxu0
      %v4448 = vadd.f32 0.0, %v4447
      %v4449 = vpop.f32.mrb[0].mxu0
      %4450 = vmatprep.mubr.f32.mxu0 0.0
      %4451 = vmatmul.mubr.f32.gmra.mrb[0].mxu0 %v4356
      %v4452 = vpop.f32.mrb[0].mxu0
      %v4453 = vadd.f32 0.0, %v4452
      %v4454 = vpop.f32.mrb[0].mxu0
      %4455 = vmatprep.mubr.f32.mxu0 0.0
      %4456 = vmatmul.mubr.f32.gmra.mrb[0].mxu0 %v4359
      %v4457 = vpop.f32.mrb[0].mxu0
      %v4458 = vadd.f32 0.0, %v4457
      %v4459 = vpop.f32.mrb[0].mxu0
      %4460 = vmatprep.mubr.f32.mxu0 0.0
      %4461 = vmatmul.mubr.f32.gmra.mrb[0].mxu0 %v4362
      %v4462 = vpop.f32.mrb[0].mxu0
      %v4463 = vadd.f32 0.0, %v4462
      %v4464 = vpop.f32.mrb[0].mxu0
      %4465 = vmatprep.mubr.f32.mxu0 0.0
      %4466 = vmatmul.mubr.f32.gmra.mrb[0].mxu0 %v4365
      %v4467 = vpop.f32.mrb[0].mxu0
      %v4468 = vadd.f32 0.0, %v4467
      %v4469 = vpop.f32.mrb[0].mxu0
      %4470 = vmatprep.mubr.f32.mxu0 0.0
      %4471 = vmatmul.mubr.f32.gmra.mrb[0].mxu0 %v4368
      %v4472 = vpop.f32.mrb[0].mxu0
      %v4473 = vadd.f32 0.0, %v4472
      %v4474 = vpop.f32.mrb[0].mxu0
      %4475 = vmatprep.mubr.f32.mxu0 0.0
      %4476 = vmatmul.mubr.f32.gmra.mrb[0].mxu0 %v4371
      %v4477 = vpop.f32.mrb[0].mxu0
      %v4478 = vadd.f32 0.0, %v4477
      %v4479 = vpop.f32.mrb[0].mxu0
      %4480 = vdwg.mxu0
      %v4481 = vadd.f32 %v4331, %v4443
      %v4482 = vadd.f32 %v4332, %v4448
      %v4483 = vadd.f32 %v4333, %v4453
      %v4484 = vadd.f32 %v4334, %v4458
      %v4485 = vadd.f32 %v4335, %v4463
      %v4486 = vadd.f32 %v4336, %v4468
      %v4487 = vadd.f32 %v4337, %v4473
      %v4488 = vadd.f32 %v4338, %v4478
      %v4489 = vld [vmem:[%s1203] sm:$0xff]
      %v4490 = vld [vmem:[%s1203 + $0x10] sm:$0xff]
      %v4491 = vld [vmem:[%s1203 + $0x20] sm:$0xff]
      %v4492 = vld [vmem:[%s1203 + $0x30] sm:$0xff]
      %v4493 = vld [vmem:[%s1203 + $0x40] sm:$0xff]
      %v4494 = vld [vmem:[%s1203 + $0x50] sm:$0xff]
      %v4495 = vld [vmem:[%s1203 + $0x60] sm:$0xff]
      %v4496 = vld [vmem:[%s1203 + $0x70] sm:$0xff]
      %s4497 = scalar_lea.vmem %s1, 192
      %v4498 = vld [vmem:[%s4497] sm:$0xf]
      %v4500 = vsel %vm310, %v4489, 0
      %v4503 = vsel %vm310, %v4490, 0
      %v4506 = vsel %vm310, %v4491, 0
      %v4509 = vsel %vm310, %v4492, 0
      %v4512 = vsel %vm310, %v4493, 0
      %v4515 = vsel %vm310, %v4494, 0
      %v4518 = vsel %vm310, %v4495, 0
      %v4521 = vsel %vm310, %v4496, 0
      %v4524 = vsel %vm362, %v4498, 0
      %4526 = vmatprep.subr.mxu0 0.0
      %4527 = vmatpush1.msra.mxu0 %v4524
      %4528 = vmatprep.subr.mxu0 0.0
      %4529 = vmatpush1.msra.mxu0 0.0
      %4530 = vmatprep.subr.mxu0 0.0
      %4531 = vmatpush1.msra.mxu0 0.0
      %4532 = vmatprep.subr.mxu0 0.0
      %4533 = vmatpush1.msra.mxu0 0.0
      %4534 = vmatprep.subr.mxu0 0.0
      %4535 = vmatpush1.msra.mxu0 0.0
      %4536 = vmatprep.subr.mxu0 0.0
      %4537 = vmatpush1.msra.mxu0 0.0
      %4538 = vmatprep.subr.mxu0 0.0
      %4539 = vmatpush1.msra.mxu0 0.0
      %4540 = vmatprep.subr.mxu0 0.0
      %4541 = vmatpush1.msra.mxu0 0.0
      %4542 = vmatprep.subr.mxu0 0.0
      %4543 = vmatpush1.msra.mxu0 0.0
      %4544 = vmatprep.subr.mxu0 0.0
      %4545 = vmatpush1.msra.mxu0 0.0
      %4546 = vmatprep.subr.mxu0 0.0
      %4547 = vmatpush1.msra.mxu0 0.0
      %4548 = vmatprep.subr.mxu0 0.0
      %4549 = vmatpush1.msra.mxu0 0.0
      %4550 = vmatprep.subr.mxu0 0.0
      %4551 = vmatpush1.msra.mxu0 0.0
      %4552 = vmatprep.subr.mxu0 0.0
      %4553 = vmatpush1.msra.mxu0 0.0
      %4554 = vmatprep.subr.mxu0 0.0
      %4555 = vmatpush1.msra.mxu0 0.0
      %4556 = vmatprep.subr.mxu0 0.0
      %4557 = vmatpush1.msra.mxu0 0.0
      %4558 = vmatprep.subr.mxu0 0.0
      %4559 = vmatpush1.msra.mxu0 0.0
      %4560 = vmatprep.subr.mxu0 0.0
      %4561 = vmatpush1.msra.mxu0 0.0
      %4562 = vmatprep.subr.mxu0 0.0
      %4563 = vmatpush1.msra.mxu0 0.0
      %4564 = vmatprep.subr.mxu0 0.0
      %4565 = vmatpush1.msra.mxu0 0.0
      %4566 = vmatprep.subr.mxu0 0.0
      %4567 = vmatpush1.msra.mxu0 0.0
      %4568 = vmatprep.subr.mxu0 0.0
      %4569 = vmatpush1.msra.mxu0 0.0
      %4570 = vmatprep.subr.mxu0 0.0
      %4571 = vmatpush1.msra.mxu0 0.0
      %4572 = vmatprep.subr.mxu0 0.0
      %4573 = vmatpush1.msra.mxu0 0.0
      %4574 = vmatprep.subr.mxu0 0.0
      %4575 = vmatpush1.msra.mxu0 0.0
      %4576 = vmatprep.subr.mxu0 0.0
      %4577 = vmatpush1.msra.mxu0 0.0
      %4578 = vmatprep.subr.mxu0 0.0
      %4579 = vmatpush1.msra.mxu0 0.0
      %4580 = vmatprep.subr.mxu0 0.0
      %4581 = vmatpush1.msra.mxu0 0.0
      %4582 = vmatprep.subr.mxu0 0.0
      %4583 = vmatpush1.msra.mxu0 0.0
      %4584 = vmatprep.subr.mxu0 0.0
      %4585 = vmatpush1.msra.mxu0 0.0
      %4586 = vmatprep.subr.mxu0 0.0
      %4587 = vmatpush1.msra.mxu0 0.0
      %4588 = vmatprep.subr.mxu0 0.0
      %4589 = vmatpush1.msra.mxu0 0.0
      %4590 = vmatprep.mubr.f32.mxu0 0.0
      %4591 = vmatmul.mubr.f32.gmra.mrb[0].mxu0 %v4500
      %v4592 = vpop.f32.mrb[0].mxu0
      %v4593 = vadd.f32 0.0, %v4592
      %v4594 = vpop.f32.mrb[0].mxu0
      %4595 = vmatprep.mubr.f32.mxu0 0.0
      %4596 = vmatmul.mubr.f32.gmra.mrb[0].mxu0 %v4503
      %v4597 = vpop.f32.mrb[0].mxu0
      %v4598 = vadd.f32 0.0, %v4597
      %v4599 = vpop.f32.mrb[0].mxu0
      %4600 = vmatprep.mubr.f32.mxu0 0.0
      %4601 = vmatmul.mubr.f32.gmra.mrb[0].mxu0 %v4506
      %v4602 = vpop.f32.mrb[0].mxu0
      %v4603 = vadd.f32 0.0, %v4602
      %v4604 = vpop.f32.mrb[0].mxu0
      %4605 = vmatprep.mubr.f32.mxu0 0.0
      %4606 = vmatmul.mubr.f32.gmra.mrb[0].mxu0 %v4509
      %v4607 = vpop.f32.mrb[0].mxu0
      %v4608 = vadd.f32 0.0, %v4607
      %v4609 = vpop.f32.mrb[0].mxu0
      %4610 = vmatprep.mubr.f32.mxu0 0.0
      %4611 = vmatmul.mubr.f32.gmra.mrb[0].mxu0 %v4512
      %v4612 = vpop.f32.mrb[0].mxu0
      %v4613 = vadd.f32 0.0, %v4612
      %v4614 = vpop.f32.mrb[0].mxu0
      %4615 = vmatprep.mubr.f32.mxu0 0.0
      %4616 = vmatmul.mubr.f32.gmra.mrb[0].mxu0 %v4515
      %v4617 = vpop.f32.mrb[0].mxu0
      %v4618 = vadd.f32 0.0, %v4617
      %v4619 = vpop.f32.mrb[0].mxu0
      %4620 = vmatprep.mubr.f32.mxu0 0.0
      %4621 = vmatmul.mubr.f32.gmra.mrb[0].mxu0 %v4518
      %v4622 = vpop.f32.mrb[0].mxu0
      %v4623 = vadd.f32 0.0, %v4622
      %v4624 = vpop.f32.mrb[0].mxu0
      %4625 = vmatprep.mubr.f32.mxu0 0.0
      %4626 = vmatmul.mubr.f32.gmra.mrb[0].mxu0 %v4521
      %v4627 = vpop.f32.mrb[0].mxu0
      %v4628 = vadd.f32 0.0, %v4627
      %v4629 = vpop.f32.mrb[0].mxu0
      %4630 = vdwg.mxu0
      %v4631 = vadd.f32 %v4481, %v4593
      %v4632 = vadd.f32 %v4482, %v4598
      %v4633 = vadd.f32 %v4483, %v4603
      %v4634 = vadd.f32 %v4484, %v4608
      %v4635 = vadd.f32 %v4485, %v4613
      %v4636 = vadd.f32 %v4486, %v4618
      %v4637 = vadd.f32 %v4487, %v4623
      %v4638 = vadd.f32 %v4488, %v4628
      %v4639 = vld [vmem:[%s1203 + $0x1] sm:$0xff]
      %v4640 = vld [vmem:[%s1203 + $0x11] sm:$0xff]
      %v4641 = vld [vmem:[%s1203 + $0x21] sm:$0xff]
      %v4642 = vld [vmem:[%s1203 + $0x31] sm:$0xff]
      %v4643 = vld [vmem:[%s1203 + $0x41] sm:$0xff]
      %v4644 = vld [vmem:[%s1203 + $0x51] sm:$0xff]
      %v4645 = vld [vmem:[%s1203 + $0x61] sm:$0xff]
      %v4646 = vld [vmem:[%s1203 + $0x71] sm:$0xff]
      %s4647 = scalar_lea.vmem %s1, 200
      %v4648 = vld [vmem:[%s4647] sm:$0xf]
      %v4650 = vsel %vm310, %v4639, 0
      %v4653 = vsel %vm310, %v4640, 0
      %v4656 = vsel %vm310, %v4641, 0
      %v4659 = vsel %vm310, %v4642, 0
      %v4662 = vsel %vm310, %v4643, 0
      %v4665 = vsel %vm310, %v4644, 0
      %v4668 = vsel %vm310, %v4645, 0
      %v4671 = vsel %vm310, %v4646, 0
      %v4674 = vsel %vm362, %v4648, 0
      %4676 = vmatprep.subr.mxu0 0.0
      %4677 = vmatpush1.msra.mxu0 %v4674
      %4678 = vmatprep.subr.mxu0 0.0
      %4679 = vmatpush1.msra.mxu0 0.0
      %4680 = vmatprep.subr.mxu0 0.0
      %4681 = vmatpush1.msra.mxu0 0.0
      %4682 = vmatprep.subr.mxu0 0.0
      %4683 = vmatpush1.msra.mxu0 0.0
      %4684 = vmatprep.subr.mxu0 0.0
      %4685 = vmatpush1.msra.mxu0 0.0
      %4686 = vmatprep.subr.mxu0 0.0
      %4687 = vmatpush1.msra.mxu0 0.0
      %4688 = vmatprep.subr.mxu0 0.0
      %4689 = vmatpush1.msra.mxu0 0.0
      %4690 = vmatprep.subr.mxu0 0.0
      %4691 = vmatpush1.msra.mxu0 0.0
      %4692 = vmatprep.subr.mxu0 0.0
      %4693 = vmatpush1.msra.mxu0 0.0
      %4694 = vmatprep.subr.mxu0 0.0
      %4695 = vmatpush1.msra.mxu0 0.0
      %4696 = vmatprep.subr.mxu0 0.0
      %4697 = vmatpush1.msra.mxu0 0.0
      %4698 = vmatprep.subr.mxu0 0.0
      %4699 = vmatpush1.msra.mxu0 0.0
      %4700 = vmatprep.subr.mxu0 0.0
      %4701 = vmatpush1.msra.mxu0 0.0
      %4702 = vmatprep.subr.mxu0 0.0
      %4703 = vmatpush1.msra.mxu0 0.0
      %4704 = vmatprep.subr.mxu0 0.0
      %4705 = vmatpush1.msra.mxu0 0.0
      %4706 = vmatprep.subr.mxu0 0.0
      %4707 = vmatpush1.msra.mxu0 0.0
      %4708 = vmatprep.subr.mxu0 0.0
      %4709 = vmatpush1.msra.mxu0 0.0
      %4710 = vmatprep.subr.mxu0 0.0
      %4711 = vmatpush1.msra.mxu0 0.0
      %4712 = vmatprep.subr.mxu0 0.0
      %4713 = vmatpush1.msra.mxu0 0.0
      %4714 = vmatprep.subr.mxu0 0.0
      %4715 = vmatpush1.msra.mxu0 0.0
      %4716 = vmatprep.subr.mxu0 0.0
      %4717 = vmatpush1.msra.mxu0 0.0
      %4718 = vmatprep.subr.mxu0 0.0
      %4719 = vmatpush1.msra.mxu0 0.0
      %4720 = vmatprep.subr.mxu0 0.0
      %4721 = vmatpush1.msra.mxu0 0.0
      %4722 = vmatprep.subr.mxu0 0.0
      %4723 = vmatpush1.msra.mxu0 0.0
      %4724 = vmatprep.subr.mxu0 0.0
      %4725 = vmatpush1.msra.mxu0 0.0
      %4726 = vmatprep.subr.mxu0 0.0
      %4727 = vmatpush1.msra.mxu0 0.0
      %4728 = vmatprep.subr.mxu0 0.0
      %4729 = vmatpush1.msra.mxu0 0.0
      %4730 = vmatprep.subr.mxu0 0.0
      %4731 = vmatpush1.msra.mxu0 0.0
      %4732 = vmatprep.subr.mxu0 0.0
      %4733 = vmatpush1.msra.mxu0 0.0
      %4734 = vmatprep.subr.mxu0 0.0
      %4735 = vmatpush1.msra.mxu0 0.0
      %4736 = vmatprep.subr.mxu0 0.0
      %4737 = vmatpush1.msra.mxu0 0.0
      %4738 = vmatprep.subr.mxu0 0.0
      %4739 = vmatpush1.msra.mxu0 0.0
      %4740 = vmatprep.mubr.f32.mxu0 0.0
      %4741 = vmatmul.mubr.f32.gmra.mrb[0].mxu0 %v4650
      %v4742 = vpop.f32.mrb[0].mxu0
      %v4743 = vadd.f32 0.0, %v4742
      %v4744 = vpop.f32.mrb[0].mxu0
      %4745 = vmatprep.mubr.f32.mxu0 0.0
      %4746 = vmatmul.mubr.f32.gmra.mrb[0].mxu0 %v4653
      %v4747 = vpop.f32.mrb[0].mxu0
      %v4748 = vadd.f32 0.0, %v4747
      %v4749 = vpop.f32.mrb[0].mxu0
      %4750 = vmatprep.mubr.f32.mxu0 0.0
      %4751 = vmatmul.mubr.f32.gmra.mrb[0].mxu0 %v4656
      %v4752 = vpop.f32.mrb[0].mxu0
      %v4753 = vadd.f32 0.0, %v4752
      %v4754 = vpop.f32.mrb[0].mxu0
      %4755 = vmatprep.mubr.f32.mxu0 0.0
      %4756 = vmatmul.mubr.f32.gmra.mrb[0].mxu0 %v4659
      %v4757 = vpop.f32.mrb[0].mxu0
      %v4758 = vadd.f32 0.0, %v4757
      %v4759 = vpop.f32.mrb[0].mxu0
      %4760 = vmatprep.mubr.f32.mxu0 0.0
      %4761 = vmatmul.mubr.f32.gmra.mrb[0].mxu0 %v4662
      %v4762 = vpop.f32.mrb[0].mxu0
      %v4763 = vadd.f32 0.0, %v4762
      %v4764 = vpop.f32.mrb[0].mxu0
      %4765 = vmatprep.mubr.f32.mxu0 0.0
      %4766 = vmatmul.mubr.f32.gmra.mrb[0].mxu0 %v4665
      %v4767 = vpop.f32.mrb[0].mxu0
      %v4768 = vadd.f32 0.0, %v4767
      %v4769 = vpop.f32.mrb[0].mxu0
      %4770 = vmatprep.mubr.f32.mxu0 0.0
      %4771 = vmatmul.mubr.f32.gmra.mrb[0].mxu0 %v4668
      %v4772 = vpop.f32.mrb[0].mxu0
      %v4773 = vadd.f32 0.0, %v4772
      %v4774 = vpop.f32.mrb[0].mxu0
      %4775 = vmatprep.mubr.f32.mxu0 0.0
      %4776 = vmatmul.mubr.f32.gmra.mrb[0].mxu0 %v4671
      %v4777 = vpop.f32.mrb[0].mxu0
      %v4778 = vadd.f32 0.0, %v4777
      %v4779 = vpop.f32.mrb[0].mxu0
      %4780 = vdwg.mxu0
      %v4781 = vadd.f32 %v4631, %v4743
      %v4782 = vadd.f32 %v4632, %v4748
      %v4783 = vadd.f32 %v4633, %v4753
      %v4784 = vadd.f32 %v4634, %v4758
      %v4785 = vadd.f32 %v4635, %v4763
      %v4786 = vadd.f32 %v4636, %v4768
      %v4787 = vadd.f32 %v4637, %v4773
      %v4788 = vadd.f32 %v4638, %v4778
      %v4789 = vld [vmem:[%s1203 + $0x2] sm:$0xff]
      %v4790 = vld [vmem:[%s1203 + $0x12] sm:$0xff]
      %v4791 = vld [vmem:[%s1203 + $0x22] sm:$0xff]
      %v4792 = vld [vmem:[%s1203 + $0x32] sm:$0xff]
      %v4793 = vld [vmem:[%s1203 + $0x42] sm:$0xff]
      %v4794 = vld [vmem:[%s1203 + $0x52] sm:$0xff]
      %v4795 = vld [vmem:[%s1203 + $0x62] sm:$0xff]
      %v4796 = vld [vmem:[%s1203 + $0x72] sm:$0xff]
      %s4797 = scalar_lea.vmem %s1, 208
      %v4798 = vld [vmem:[%s4797] sm:$0xf]
      %v4800 = vsel %vm310, %v4789, 0
      %v4803 = vsel %vm310, %v4790, 0
      %v4806 = vsel %vm310, %v4791, 0
      %v4809 = vsel %vm310, %v4792, 0
      %v4812 = vsel %vm310, %v4793, 0
      %v4815 = vsel %vm310, %v4794, 0
      %v4818 = vsel %vm310, %v4795, 0
      %v4821 = vsel %vm310, %v4796, 0
      %v4824 = vsel %vm362, %v4798, 0
      %4826 = vmatprep.subr.mxu0 0.0
      %4827 = vmatpush1.msra.mxu0 %v4824
      %4828 = vmatprep.subr.mxu0 0.0
      %4829 = vmatpush1.msra.mxu0 0.0
      %4830 = vmatprep.subr.mxu0 0.0
      %4831 = vmatpush1.msra.mxu0 0.0
      %4832 = vmatprep.subr.mxu0 0.0
      %4833 = vmatpush1.msra.mxu0 0.0
      %4834 = vmatprep.subr.mxu0 0.0
      %4835 = vmatpush1.msra.mxu0 0.0
      %4836 = vmatprep.subr.mxu0 0.0
      %4837 = vmatpush1.msra.mxu0 0.0
      %4838 = vmatprep.subr.mxu0 0.0
      %4839 = vmatpush1.msra.mxu0 0.0
      %4840 = vmatprep.subr.mxu0 0.0
      %4841 = vmatpush1.msra.mxu0 0.0
      %4842 = vmatprep.subr.mxu0 0.0
      %4843 = vmatpush1.msra.mxu0 0.0
      %4844 = vmatprep.subr.mxu0 0.0
      %4845 = vmatpush1.msra.mxu0 0.0
      %4846 = vmatprep.subr.mxu0 0.0
      %4847 = vmatpush1.msra.mxu0 0.0
      %4848 = vmatprep.subr.mxu0 0.0
      %4849 = vmatpush1.msra.mxu0 0.0
      %4850 = vmatprep.subr.mxu0 0.0
      %4851 = vmatpush1.msra.mxu0 0.0
      %4852 = vmatprep.subr.mxu0 0.0
      %4853 = vmatpush1.msra.mxu0 0.0
      %4854 = vmatprep.subr.mxu0 0.0
      %4855 = vmatpush1.msra.mxu0 0.0
      %4856 = vmatprep.subr.mxu0 0.0
      %4857 = vmatpush1.msra.mxu0 0.0
      %4858 = vmatprep.subr.mxu0 0.0
      %4859 = vmatpush1.msra.mxu0 0.0
      %4860 = vmatprep.subr.mxu0 0.0
      %4861 = vmatpush1.msra.mxu0 0.0
      %4862 = vmatprep.subr.mxu0 0.0
      %4863 = vmatpush1.msra.mxu0 0.0
      %4864 = vmatprep.subr.mxu0 0.0
      %4865 = vmatpush1.msra.mxu0 0.0
      %4866 = vmatprep.subr.mxu0 0.0
      %4867 = vmatpush1.msra.mxu0 0.0
      %4868 = vmatprep.subr.mxu0 0.0
      %4869 = vmatpush1.msra.mxu0 0.0
      %4870 = vmatprep.subr.mxu0 0.0
      %4871 = vmatpush1.msra.mxu0 0.0
      %4872 = vmatprep.subr.mxu0 0.0
      %4873 = vmatpush1.msra.mxu0 0.0
      %4874 = vmatprep.subr.mxu0 0.0
      %4875 = vmatpush1.msra.mxu0 0.0
      %4876 = vmatprep.subr.mxu0 0.0
      %4877 = vmatpush1.msra.mxu0 0.0
      %4878 = vmatprep.subr.mxu0 0.0
      %4879 = vmatpush1.msra.mxu0 0.0
      %4880 = vmatprep.subr.mxu0 0.0
      %4881 = vmatpush1.msra.mxu0 0.0
      %4882 = vmatprep.subr.mxu0 0.0
      %4883 = vmatpush1.msra.mxu0 0.0
      %4884 = vmatprep.subr.mxu0 0.0
      %4885 = vmatpush1.msra.mxu0 0.0
      %4886 = vmatprep.subr.mxu0 0.0
      %4887 = vmatpush1.msra.mxu0 0.0
      %4888 = vmatprep.subr.mxu0 0.0
      %4889 = vmatpush1.msra.mxu0 0.0
      %4890 = vmatprep.mubr.f32.mxu0 0.0
      %4891 = vmatmul.mubr.f32.gmra.mrb[0].mxu0 %v4800
      %v4892 = vpop.f32.mrb[0].mxu0
      %v4893 = vadd.f32 0.0, %v4892
      %v4894 = vpop.f32.mrb[0].mxu0
      %4895 = vmatprep.mubr.f32.mxu0 0.0
      %4896 = vmatmul.mubr.f32.gmra.mrb[0].mxu0 %v4803
      %v4897 = vpop.f32.mrb[0].mxu0
      %v4898 = vadd.f32 0.0, %v4897
      %v4899 = vpop.f32.mrb[0].mxu0
      %4900 = vmatprep.mubr.f32.mxu0 0.0
      %4901 = vmatmul.mubr.f32.gmra.mrb[0].mxu0 %v4806
      %v4902 = vpop.f32.mrb[0].mxu0
      %v4903 = vadd.f32 0.0, %v4902
      %v4904 = vpop.f32.mrb[0].mxu0
      %4905 = vmatprep.mubr.f32.mxu0 0.0
      %4906 = vmatmul.mubr.f32.gmra.mrb[0].mxu0 %v4809
      %v4907 = vpop.f32.mrb[0].mxu0
      %v4908 = vadd.f32 0.0, %v4907
      %v4909 = vpop.f32.mrb[0].mxu0
      %4910 = vmatprep.mubr.f32.mxu0 0.0
      %4911 = vmatmul.mubr.f32.gmra.mrb[0].mxu0 %v4812
      %v4912 = vpop.f32.mrb[0].mxu0
      %v4913 = vadd.f32 0.0, %v4912
      %v4914 = vpop.f32.mrb[0].mxu0
      %4915 = vmatprep.mubr.f32.mxu0 0.0
      %4916 = vmatmul.mubr.f32.gmra.mrb[0].mxu0 %v4815
      %v4917 = vpop.f32.mrb[0].mxu0
      %v4918 = vadd.f32 0.0, %v4917
      %v4919 = vpop.f32.mrb[0].mxu0
      %4920 = vmatprep.mubr.f32.mxu0 0.0
      %4921 = vmatmul.mubr.f32.gmra.mrb[0].mxu0 %v4818
      %v4922 = vpop.f32.mrb[0].mxu0
      %v4923 = vadd.f32 0.0, %v4922
      %v4924 = vpop.f32.mrb[0].mxu0
      %4925 = vmatprep.mubr.f32.mxu0 0.0
      %4926 = vmatmul.mubr.f32.gmra.mrb[0].mxu0 %v4821
      %v4927 = vpop.f32.mrb[0].mxu0
      %v4928 = vadd.f32 0.0, %v4927
      %v4929 = vpop.f32.mrb[0].mxu0
      %4930 = vdwg.mxu0
      %v4931 = vadd.f32 %v4781, %v4893
      %v4932 = vadd.f32 %v4782, %v4898
      %v4933 = vadd.f32 %v4783, %v4903
      %v4934 = vadd.f32 %v4784, %v4908
      %v4935 = vadd.f32 %v4785, %v4913
      %v4936 = vadd.f32 %v4786, %v4918
      %v4937 = vadd.f32 %v4787, %v4923
      %v4938 = vadd.f32 %v4788, %v4928
      %v4939 = vld [vmem:[%s2 + $0x4] sm:$0x1]
      %v4940 = vld [vmem:[%s2 + $0x5] sm:$0x1]
      %v4941 = vsel %vm223, %v4931, 0.0
      %v4942 = vsel %vm223, %v4932, 0.0
      %v4943 = vadd.f32 %v4941, %v4942
      %v4944 = vsel %vm223, %v4933, 0.0
      %v4945 = vadd.f32 %v4943, %v4944
      %v4946 = vsel %vm223, %v4934, 0.0
      %v4947 = vadd.f32 %v4945, %v4946
      %v4948 = vsel %vm223, %v4935, 0.0
      %v4949 = vadd.f32 %v4947, %v4948
      %v4950 = vsel %vm223, %v4936, 0.0
      %v4951 = vadd.f32 %v4949, %v4950
      %v4952 = vsel %vm223, %v4937, 0.0
      %v4953 = vadd.f32 %v4951, %v4952
      %v4954 = vsel %vm223, %v4938, 0.0
      %v4955 = vadd.f32 %v4953, %v4954
      %4956 = vadd.xlane.f32.xlu0 %v4955
      %v4957 = vpop.xlane.xlu0 %4956
      %v4958 = vrot.slane %v4957, 4
      %v4959 = vadd.f32 %v4957, %v4958
      %v4960 = vrot.slane %v4959, 2
      %v4961 = vadd.f32 %v4959, %v4960
      %v4962 = vrot.slane %v4961, 1
      %v4963 = vadd.f32 %v4961, %v4962
      %v4964 = vmul.f32 %v4931, %v4931
      %v4965 = vmul.f32 %v4932, %v4932
      %v4966 = vmul.f32 %v4933, %v4933
      %v4967 = vmul.f32 %v4934, %v4934
      %v4968 = vmul.f32 %v4935, %v4935
      %v4969 = vmul.f32 %v4936, %v4936
      %v4970 = vmul.f32 %v4937, %v4937
      %v4971 = vmul.f32 %v4938, %v4938
      %v4972 = vsel %vm223, %v4964, 0.0
      %v4973 = vsel %vm223, %v4965, 0.0
      %v4974 = vadd.f32 %v4972, %v4973
      %v4975 = vsel %vm223, %v4966, 0.0
      %v4976 = vadd.f32 %v4974, %v4975
      %v4977 = vsel %vm223, %v4967, 0.0
      %v4978 = vadd.f32 %v4976, %v4977
      %v4979 = vsel %vm223, %v4968, 0.0
      %v4980 = vadd.f32 %v4978, %v4979
      %v4981 = vsel %vm223, %v4969, 0.0
      %v4982 = vadd.f32 %v4980, %v4981
      %v4983 = vsel %vm223, %v4970, 0.0
      %v4984 = vadd.f32 %v4982, %v4983
      %v4985 = vsel %vm223, %v4971, 0.0
      %v4986 = vadd.f32 %v4984, %v4985
      %4987 = vadd.xlane.f32.xlu0 %v4986
      %v4988 = vpop.xlane.xlu0 %4987
      %v4989 = vrot.slane %v4988, 4
      %v4990 = vadd.f32 %v4988, %v4989
      %v4991 = vrot.slane %v4990, 2
      %v4992 = vadd.f32 %v4990, %v4991
      %v4993 = vrot.slane %v4992, 1
      %v4994 = vadd.f32 %v4992, %v4993
      %v4995 = vmul.f32 %v4963, 0.001953125
      %v4996 = vmul.f32 %v4994, 0.001953125
      %v4997 = vmul.f32 %v4995, %v4995
      %v4998 = vsub.f32 %v4996, %v4997
      %v4999 = vsub.f32 %v4931, %v4995
      %v5000 = vsub.f32 %v4932, %v4995
      %v5001 = vsub.f32 %v4933, %v4995
      %v5002 = vsub.f32 %v4934, %v4995
      %v5003 = vsub.f32 %v4935, %v4995
      %v5004 = vsub.f32 %v4936, %v4995
      %v5005 = vsub.f32 %v4937, %v4995
      %v5006 = vsub.f32 %v4938, %v4995
      %v5007 = vadd.f32 %v4998, 1e-05
      %v5008 = vrsqrt.pop %v5007
      %v5009 = vmul.f32 %v4999, %v5008
      %v5010 = vmul.f32 %v5000, %v5008
      %v5011 = vmul.f32 %v5001, %v5008
      %v5012 = vmul.f32 %v5002, %v5008
      %v5013 = vmul.f32 %v5003, %v5008
      %v5014 = vmul.f32 %v5004, %v5008
      %v5015 = vmul.f32 %v5005, %v5008
      %v5016 = vmul.f32 %v5006, %v5008
      %v5017 = vlaneseq
      %v5018 = vshrl.u32 %v5017, 7
      %v5019 = vsub.s32 0, %v5018
      %v5020 = vrot.slane %v4939, %v5019
      %v5021 = vmul.f32 %v5009, %v5020
      %v5022 = vmul.f32 %v5010, %v5020
      %v5023 = vmul.f32 %v5011, %v5020
      %v5024 = vmul.f32 %v5012, %v5020
      %v5025 = vmul.f32 %v5013, %v5020
      %v5026 = vmul.f32 %v5014, %v5020
      %v5027 = vmul.f32 %v5015, %v5020
      %v5028 = vmul.f32 %v5016, %v5020
      %v5029 = vlaneseq
      %v5030 = vshrl.u32 %v5029, 7
      %v5031 = vsub.s32 0, %v5030
      %v5032 = vrot.slane %v4940, %v5031
      %v5033 = vadd.f32 %v5021, %v5032
      %v5034 = vadd.f32 %v5022, %v5032
      %v5035 = vadd.f32 %v5023, %v5032
      %v5036 = vadd.f32 %v5024, %v5032
      %v5037 = vadd.f32 %v5025, %v5032
      %v5038 = vadd.f32 %v5026, %v5032
      %v5039 = vadd.f32 %v5027, %v5032
      %v5040 = vadd.f32 %v5028, %v5032
      %v5041 = vmul.f32 %v5033, 0.5
      %v5042 = vmul.f32 %v5034, 0.5
      %v5043 = vmul.f32 %v5035, 0.5
      %v5044 = vmul.f32 %v5036, 0.5
      %v5045 = vmul.f32 %v5037, 0.5
      %v5046 = vmul.f32 %v5038, 0.5
      %v5047 = vmul.f32 %v5039, 0.5
      %v5048 = vmul.f32 %v5040, 0.5
      %v5049 = vmul.f32 %v5033, 0.70710677
      %v5050 = vmul.f32 %v5034, 0.70710677
      %v5051 = vmul.f32 %v5035, 0.70710677
      %v5052 = vmul.f32 %v5036, 0.70710677
      %v5053 = vmul.f32 %v5037, 0.70710677
      %v5054 = vmul.f32 %v5038, 0.70710677
      %v5055 = vmul.f32 %v5039, 0.70710677
      %v5056 = vmul.f32 %v5040, 0.70710677
      %v5057 = vand.u32 2147483647, %v5049
      %v5058 = vand.u32 2147483647, %v5050
      %v5059 = vand.u32 2147483647, %v5051
      %v5060 = vand.u32 2147483647, %v5052
      %v5061 = vand.u32 2147483647, %v5053
      %v5062 = vand.u32 2147483647, %v5054
      %v5063 = vand.u32 2147483647, %v5055
      %v5064 = vand.u32 2147483647, %v5056
      %v5065 = vmul.f32 %v5057, 0.3275911
      %v5066 = vmul.f32 %v5058, 0.3275911
      %v5067 = vmul.f32 %v5059, 0.3275911
      %v5068 = vmul.f32 %v5060, 0.3275911
      %v5069 = vmul.f32 %v5061, 0.3275911
      %v5070 = vmul.f32 %v5062, 0.3275911
      %v5071 = vmul.f32 %v5063, 0.3275911
      %v5072 = vmul.f32 %v5064, 0.3275911
      %v5073 = vadd.f32 %v5065, 1.0
      %v5074 = vadd.f32 %v5066, 1.0
      %v5075 = vadd.f32 %v5067, 1.0
      %v5076 = vadd.f32 %v5068, 1.0
      %v5077 = vadd.f32 %v5069, 1.0
      %v5078 = vadd.f32 %v5070, 1.0
      %v5079 = vadd.f32 %v5071, 1.0
      %v5080 = vadd.f32 %v5072, 1.0
      %v5081 = vrcp.pop %v5073
      %v5082 = vrcp.pop %v5074
      %v5083 = vrcp.pop %v5075
      %v5084 = vrcp.pop %v5076
      %v5085 = vrcp.pop %v5077
      %v5086 = vrcp.pop %v5078
      %v5087 = vrcp.pop %v5079
      %v5088 = vrcp.pop %v5080
      %v5089 = vmul.f32 %v5081, 1.0614054
      %v5090 = vmul.f32 %v5082, 1.0614054
      %v5091 = vmul.f32 %v5083, 1.0614054
      %v5092 = vmul.f32 %v5084, 1.0614054
      %v5093 = vmul.f32 %v5085, 1.0614054
      %v5094 = vmul.f32 %v5086, 1.0614054
      %v5095 = vmul.f32 %v5087, 1.0614054
      %v5096 = vmul.f32 %v5088, 1.0614054
      %v5097 = vadd.f32 %v5089, -1.4531521
      %v5098 = vadd.f32 %v5090, -1.4531521
      %v5099 = vadd.f32 %v5091, -1.4531521
      %v5100 = vadd.f32 %v5092, -1.4531521
      %v5101 = vadd.f32 %v5093, -1.4531521
      %v5102 = vadd.f32 %v5094, -1.4531521
      %v5103 = vadd.f32 %v5095, -1.4531521
      %v5104 = vadd.f32 %v5096, -1.4531521
      %v5105 = vmul.f32 %v5097, %v5081
      %v5106 = vmul.f32 %v5098, %v5082
      %v5107 = vmul.f32 %v5099, %v5083
      %v5108 = vmul.f32 %v5100, %v5084
      %v5109 = vmul.f32 %v5101, %v5085
      %v5110 = vmul.f32 %v5102, %v5086
      %v5111 = vmul.f32 %v5103, %v5087
      %v5112 = vmul.f32 %v5104, %v5088
      %v5113 = vadd.f32 %v5105, 1.4214138
      %v5114 = vadd.f32 %v5106, 1.4214138
      %v5115 = vadd.f32 %v5107, 1.4214138
      %v5116 = vadd.f32 %v5108, 1.4214138
      %v5117 = vadd.f32 %v5109, 1.4214138
      %v5118 = vadd.f32 %v5110, 1.4214138
      %v5119 = vadd.f32 %v5111, 1.4214138
      %v5120 = vadd.f32 %v5112, 1.4214138
      %v5121 = vmul.f32 %v5113, %v5081
      %v5122 = vmul.f32 %v5114, %v5082
      %v5123 = vmul.f32 %v5115, %v5083
      %v5124 = vmul.f32 %v5116, %v5084
      %v5125 = vmul.f32 %v5117, %v5085
      %v5126 = vmul.f32 %v5118, %v5086
      %v5127 = vmul.f32 %v5119, %v5087
      %v5128 = vmul.f32 %v5120, %v5088
      %v5129 = vadd.f32 %v5121, -0.28449672
      %v5130 = vadd.f32 %v5122, -0.28449672
      %v5131 = vadd.f32 %v5123, -0.28449672
      %v5132 = vadd.f32 %v5124, -0.28449672
      %v5133 = vadd.f32 %v5125, -0.28449672
      %v5134 = vadd.f32 %v5126, -0.28449672
      %v5135 = vadd.f32 %v5127, -0.28449672
      %v5136 = vadd.f32 %v5128, -0.28449672
      %v5137 = vmul.f32 %v5129, %v5081
      %v5138 = vmul.f32 %v5130, %v5082
      %v5139 = vmul.f32 %v5131, %v5083
      %v5140 = vmul.f32 %v5132, %v5084
      %v5141 = vmul.f32 %v5133, %v5085
      %v5142 = vmul.f32 %v5134, %v5086
      %v5143 = vmul.f32 %v5135, %v5087
      %v5144 = vmul.f32 %v5136, %v5088
      %v5145 = vadd.f32 %v5137, 0.2548296
      %v5146 = vadd.f32 %v5138, 0.2548296
      %v5147 = vadd.f32 %v5139, 0.2548296
      %v5148 = vadd.f32 %v5140, 0.2548296
      %v5149 = vadd.f32 %v5141, 0.2548296
      %v5150 = vadd.f32 %v5142, 0.2548296
      %v5151 = vadd.f32 %v5143, 0.2548296
      %v5152 = vadd.f32 %v5144, 0.2548296
      %v5153 = vmul.f32 %v5145, %v5081
      %v5154 = vmul.f32 %v5146, %v5082
      %v5155 = vmul.f32 %v5147, %v5083
      %v5156 = vmul.f32 %v5148, %v5084
      %v5157 = vmul.f32 %v5149, %v5085
      %v5158 = vmul.f32 %v5150, %v5086
      %v5159 = vmul.f32 %v5151, %v5087
      %v5160 = vmul.f32 %v5152, %v5088
      %v5161 = vsub.f32 0.0, %v5057
      %v5162 = vsub.f32 0.0, %v5058
      %v5163 = vsub.f32 0.0, %v5059
      %v5164 = vsub.f32 0.0, %v5060
      %v5165 = vsub.f32 0.0, %v5061
      %v5166 = vsub.f32 0.0, %v5062
      %v5167 = vsub.f32 0.0, %v5063
      %v5168 = vsub.f32 0.0, %v5064
      %v5169 = vmul.f32 %v5161, %v5057
      %v5170 = vmul.f32 %v5162, %v5058
      %v5171 = vmul.f32 %v5163, %v5059
      %v5172 = vmul.f32 %v5164, %v5060
      %v5173 = vmul.f32 %v5165, %v5061
      %v5174 = vmul.f32 %v5166, %v5062
      %v5175 = vmul.f32 %v5167, %v5063
      %v5176 = vmul.f32 %v5168, %v5064
      %v5177 = vmul.f32 %v5169, 1.442695
      %v5178 = vpow.pop %v5177
      %v5179 = vmul.f32 %v5170, 1.442695
      %v5180 = vpow.pop %v5179
      %v5181 = vmul.f32 %v5171, 1.442695
      %v5182 = vpow.pop %v5181
      %v5183 = vmul.f32 %v5172, 1.442695
      %v5184 = vpow.pop %v5183
      %v5185 = vmul.f32 %v5173, 1.442695
      %v5186 = vpow.pop %v5185
      %v5187 = vmul.f32 %v5174, 1.442695
      %v5188 = vpow.pop %v5187
      %v5189 = vmul.f32 %v5175, 1.442695
      %v5190 = vpow.pop %v5189
      %v5191 = vmul.f32 %v5176, 1.442695
      %v5192 = vpow.pop %v5191
      %v5193 = vmul.f32 %v5153, %v5178
      %v5194 = vmul.f32 %v5154, %v5180
      %v5195 = vmul.f32 %v5155, %v5182
      %v5196 = vmul.f32 %v5156, %v5184
      %v5197 = vmul.f32 %v5157, %v5186
      %v5198 = vmul.f32 %v5158, %v5188
      %v5199 = vmul.f32 %v5159, %v5190
      %v5200 = vmul.f32 %v5160, %v5192
      %v5201 = vsub.f32 1.0, %v5193
      %v5202 = vsub.f32 1.0, %v5194
      %v5203 = vsub.f32 1.0, %v5195
      %v5204 = vsub.f32 1.0, %v5196
      %v5205 = vsub.f32 1.0, %v5197
      %v5206 = vsub.f32 1.0, %v5198
      %v5207 = vsub.f32 1.0, %v5199
      %v5208 = vsub.f32 1.0, %v5200
      %vm5209 = vcmp.ge.f32.partialorder %v5049, 0.0
      %vm5210 = vcmp.ge.f32.partialorder %v5050, 0.0
      %vm5211 = vcmp.ge.f32.partialorder %v5051, 0.0
      %vm5212 = vcmp.ge.f32.partialorder %v5052, 0.0
      %vm5213 = vcmp.ge.f32.partialorder %v5053, 0.0
      %vm5214 = vcmp.ge.f32.partialorder %v5054, 0.0
      %vm5215 = vcmp.ge.f32.partialorder %v5055, 0.0
      %vm5216 = vcmp.ge.f32.partialorder %v5056, 0.0
      %v5217 = vsub.f32 0.0, %v5201
      %v5218 = vsub.f32 0.0, %v5202
      %v5219 = vsub.f32 0.0, %v5203
      %v5220 = vsub.f32 0.0, %v5204
      %v5221 = vsub.f32 0.0, %v5205
      %v5222 = vsub.f32 0.0, %v5206
      %v5223 = vsub.f32 0.0, %v5207
      %v5224 = vsub.f32 0.0, %v5208
      %v5225 = vsel %vm5209, %v5201, %v5217
      %v5226 = vsel %vm5210, %v5202, %v5218
      %v5227 = vsel %vm5211, %v5203, %v5219
      %v5228 = vsel %vm5212, %v5204, %v5220
      %v5229 = vsel %vm5213, %v5205, %v5221
      %v5230 = vsel %vm5214, %v5206, %v5222
      %v5231 = vsel %vm5215, %v5207, %v5223
      %v5232 = vsel %vm5216, %v5208, %v5224
      %v5233 = vadd.f32 %v5225, 1.0
      %v5234 = vadd.f32 %v5226, 1.0
      %v5235 = vadd.f32 %v5227, 1.0
      %v5236 = vadd.f32 %v5228, 1.0
      %v5237 = vadd.f32 %v5229, 1.0
      %v5238 = vadd.f32 %v5230, 1.0
      %v5239 = vadd.f32 %v5231, 1.0
      %v5240 = vadd.f32 %v5232, 1.0
      %v5241 = vmul.f32 %v5041, %v5233
      %v5242 = vmul.f32 %v5042, %v5234
      %v5243 = vmul.f32 %v5043, %v5235
      %v5244 = vmul.f32 %v5044, %v5236
      %v5245 = vmul.f32 %v5045, %v5237
      %v5246 = vmul.f32 %v5046, %v5238
      %v5247 = vmul.f32 %v5047, %v5239
      %v5248 = vmul.f32 %v5048, %v5240
      %5249 = vst.msk [vmem:[%s309 + $0x1] sm:$0xff] %vm223, %v5241
      %5250 = vst.msk [vmem:[%s309 + $0x11] sm:$0xff] %vm223, %v5242
      %5251 = vst.msk [vmem:[%s309 + $0x21] sm:$0xff] %vm223, %v5243
      %5252 = vst.msk [vmem:[%s309 + $0x31] sm:$0xff] %vm223, %v5244
      %5253 = vst.msk [vmem:[%s309 + $0x41] sm:$0xff] %vm223, %v5245
      %5254 = vst.msk [vmem:[%s309 + $0x51] sm:$0xff] %vm223, %v5246
      %5255 = vst.msk [vmem:[%s309 + $0x61] sm:$0xff] %vm223, %v5247
      %5256 = vst.msk [vmem:[%s309 + $0x71] sm:$0xff] %vm223, %v5248
      %v5257 = vld [vmem:[#allocation2] sm:$0xff]
      %v5258 = vld [vmem:[#allocation2 + $0x10] sm:$0xff]
      %v5259 = vld [vmem:[#allocation2 + $0x20] sm:$0xff]
      %v5260 = vld [vmem:[#allocation2 + $0x30] sm:$0xff]
      %v5261 = vld [vmem:[#allocation2 + $0x40] sm:$0xff]
      %v5262 = vld [vmem:[#allocation2 + $0x50] sm:$0xff]
      %v5263 = vld [vmem:[#allocation2 + $0x60] sm:$0xff]
      %v5264 = vld [vmem:[#allocation2 + $0x70] sm:$0xff]
      %s5265 = scalar_lea.vmem %s1, 216
      %v5266 = vld [vmem:[%s5265] sm:$0xff]
      %v5267 = vld [vmem:[#allocation2 + $0x1] sm:$0xff]
      %v5268 = vld [vmem:[#allocation2 + $0x11] sm:$0xff]
      %v5269 = vld [vmem:[#allocation2 + $0x21] sm:$0xff]
      %v5270 = vld [vmem:[#allocation2 + $0x31] sm:$0xff]
      %v5271 = vld [vmem:[#allocation2 + $0x41] sm:$0xff]
      %v5272 = vld [vmem:[#allocation2 + $0x51] sm:$0xff]
      %v5273 = vld [vmem:[#allocation2 + $0x61] sm:$0xff]
      %v5274 = vld [vmem:[#allocation2 + $0x71] sm:$0xff]
      %s5275 = scalar_lea.vmem %s1, 224
      %v5276 = vld [vmem:[%s5275] sm:$0xff]
      %v5278 = vsel %vm223, %v5267, 0
      %v5281 = vsel %vm223, %v5268, 0
      %v5284 = vsel %vm223, %v5269, 0
      %v5287 = vsel %vm223, %v5270, 0
      %v5290 = vsel %vm223, %v5271, 0
      %v5293 = vsel %vm223, %v5272, 0
      %v5296 = vsel %vm223, %v5273, 0
      %v5299 = vsel %vm223, %v5274, 0
      %5301 = vmatprep.subr.mxu0 0.0
      %5302 = vmatpush1.msra.mxu0 %v5276
      %5303 = vmatprep.subr.mxu0 0.0
      %5304 = vmatpush1.msra.mxu0 0.0
      %5305 = vmatprep.subr.mxu0 0.0
      %5306 = vmatpush1.msra.mxu0 0.0
      %5307 = vmatprep.subr.mxu0 0.0
      %5308 = vmatpush1.msra.mxu0 0.0
      %5309 = vmatprep.subr.mxu0 0.0
      %5310 = vmatpush1.msra.mxu0 0.0
      %5311 = vmatprep.subr.mxu0 0.0
      %5312 = vmatpush1.msra.mxu0 0.0
      %5313 = vmatprep.subr.mxu0 0.0
      %5314 = vmatpush1.msra.mxu0 0.0
      %5315 = vmatprep.subr.mxu0 0.0
      %5316 = vmatpush1.msra.mxu0 0.0
      %5317 = vmatprep.subr.mxu0 0.0
      %5318 = vmatpush1.msra.mxu0 0.0
      %5319 = vmatprep.subr.mxu0 0.0
      %5320 = vmatpush1.msra.mxu0 0.0
      %5321 = vmatprep.subr.mxu0 0.0
      %5322 = vmatpush1.msra.mxu0 0.0
      %5323 = vmatprep.subr.mxu0 0.0
      %5324 = vmatpush1.msra.mxu0 0.0
      %5325 = vmatprep.subr.mxu0 0.0
      %5326 = vmatpush1.msra.mxu0 0.0
      %5327 = vmatprep.subr.mxu0 0.0
      %5328 = vmatpush1.msra.mxu0 0.0
      %5329 = vmatprep.subr.mxu0 0.0
      %5330 = vmatpush1.msra.mxu0 0.0
      %5331 = vmatprep.subr.mxu0 0.0
      %5332 = vmatpush1.msra.mxu0 0.0
      %5333 = vmatprep.subr.mxu0 0.0
      %5334 = vmatpush1.msra.mxu0 0.0
      %5335 = vmatprep.subr.mxu0 0.0
      %5336 = vmatpush1.msra.mxu0 0.0
      %5337 = vmatprep.subr.mxu0 0.0
      %5338 = vmatpush1.msra.mxu0 0.0
      %5339 = vmatprep.subr.mxu0 0.0
      %5340 = vmatpush1.msra.mxu0 0.0
      %5341 = vmatprep.subr.mxu0 0.0
      %5342 = vmatpush1.msra.mxu0 0.0
      %5343 = vmatprep.subr.mxu0 0.0
      %5344 = vmatpush1.msra.mxu0 0.0
      %5345 = vmatprep.subr.mxu0 0.0
      %5346 = vmatpush1.msra.mxu0 0.0
      %5347 = vmatprep.subr.mxu0 0.0
      %5348 = vmatpush1.msra.mxu0 0.0
      %5349 = vmatprep.subr.mxu0 0.0
      %5350 = vmatpush1.msra.mxu0 0.0
      %5351 = vmatprep.subr.mxu0 0.0
      %5352 = vmatpush1.msra.mxu0 0.0
      %5353 = vmatprep.subr.mxu0 0.0
      %5354 = vmatpush1.msra.mxu0 0.0
      %5355 = vmatprep.subr.mxu0 0.0
      %5356 = vmatpush1.msra.mxu0 0.0
      %5357 = vmatprep.subr.mxu0 0.0
      %5358 = vmatpush1.msra.mxu0 0.0
      %5359 = vmatprep.subr.mxu0 0.0
      %5360 = vmatpush1.msra.mxu0 0.0
      %5361 = vmatprep.subr.mxu0 0.0
      %5362 = vmatpush1.msra.mxu0 0.0
      %5363 = vmatprep.subr.mxu0 0.0
      %5364 = vmatpush1.msra.mxu0 0.0
      %5365 = vmatprep.mubr.f32.mxu0 0.0
      %5366 = vmatmul.mubr.f32.gmra.mrb[0].mxu0 %v5278
      %v5367 = vpop.f32.mrb[0].mxu0
      %v5368 = vadd.f32 0.0, %v5367
      %v5369 = vpop.f32.mrb[0].mxu0
      %5370 = vmatprep.mubr.f32.mxu0 0.0
      %5371 = vmatmul.mubr.f32.gmra.mrb[0].mxu0 %v5281
      %v5372 = vpop.f32.mrb[0].mxu0
      %v5373 = vadd.f32 0.0, %v5372
      %v5374 = vpop.f32.mrb[0].mxu0
      %5375 = vmatprep.mubr.f32.mxu0 0.0
      %5376 = vmatmul.mubr.f32.gmra.mrb[0].mxu0 %v5284
      %v5377 = vpop.f32.mrb[0].mxu0
      %v5378 = vadd.f32 0.0, %v5377
      %v5379 = vpop.f32.mrb[0].mxu0
      %5380 = vmatprep.mubr.f32.mxu0 0.0
      %5381 = vmatmul.mubr.f32.gmra.mrb[0].mxu0 %v5287
      %v5382 = vpop.f32.mrb[0].mxu0
      %v5383 = vadd.f32 0.0, %v5382
      %v5384 = vpop.f32.mrb[0].mxu0
      %5385 = vmatprep.mubr.f32.mxu0 0.0
      %5386 = vmatmul.mubr.f32.gmra.mrb[0].mxu0 %v5290
      %v5387 = vpop.f32.mrb[0].mxu0
      %v5388 = vadd.f32 0.0, %v5387
      %v5389 = vpop.f32.mrb[0].mxu0
      %5390 = vmatprep.mubr.f32.mxu0 0.0
      %5391 = vmatmul.mubr.f32.gmra.mrb[0].mxu0 %v5293
      %v5392 = vpop.f32.mrb[0].mxu0
      %v5393 = vadd.f32 0.0, %v5392
      %v5394 = vpop.f32.mrb[0].mxu0
      %5395 = vmatprep.mubr.f32.mxu0 0.0
      %5396 = vmatmul.mubr.f32.gmra.mrb[0].mxu0 %v5296
      %v5397 = vpop.f32.mrb[0].mxu0
      %v5398 = vadd.f32 0.0, %v5397
      %v5399 = vpop.f32.mrb[0].mxu0
      %5400 = vmatprep.mubr.f32.mxu0 0.0
      %5401 = vmatmul.mubr.f32.gmra.mrb[0].mxu0 %v5299
      %v5402 = vpop.f32.mrb[0].mxu0
      %v5403 = vadd.f32 0.0, %v5402
      %v5404 = vpop.f32.mrb[0].mxu0
      %5405 = vdwg.mxu0
      %v5407 = vsel %vm223, %v5257, 0
      %v5410 = vsel %vm223, %v5258, 0
      %v5413 = vsel %vm223, %v5259, 0
      %v5416 = vsel %vm223, %v5260, 0
      %v5419 = vsel %vm223, %v5261, 0
      %v5422 = vsel %vm223, %v5262, 0
      %v5425 = vsel %vm223, %v5263, 0
      %v5428 = vsel %vm223, %v5264, 0
      %5430 = vmatprep.subr.mxu0 0.0
      %5431 = vmatpush1.msra.mxu0 %v5266
      %5432 = vmatprep.subr.mxu0 0.0
      %5433 = vmatpush1.msra.mxu0 0.0
      %5434 = vmatprep.subr.mxu0 0.0
      %5435 = vmatpush1.msra.mxu0 0.0
      %5436 = vmatprep.subr.mxu0 0.0
      %5437 = vmatpush1.msra.mxu0 0.0
      %5438 = vmatprep.subr.mxu0 0.0
      %5439 = vmatpush1.msra.mxu0 0.0
      %5440 = vmatprep.subr.mxu0 0.0
      %5441 = vmatpush1.msra.mxu0 0.0
      %5442 = vmatprep.subr.mxu0 0.0
      %5443 = vmatpush1.msra.mxu0 0.0
      %5444 = vmatprep.subr.mxu0 0.0
      %5445 = vmatpush1.msra.mxu0 0.0
      %5446 = vmatprep.subr.mxu0 0.0
      %5447 = vmatpush1.msra.mxu0 0.0
      %5448 = vmatprep.subr.mxu0 0.0
      %5449 = vmatpush1.msra.mxu0 0.0
      %5450 = vmatprep.subr.mxu0 0.0
      %5451 = vmatpush1.msra.mxu0 0.0
      %5452 = vmatprep.subr.mxu0 0.0
      %5453 = vmatpush1.msra.mxu0 0.0
      %5454 = vmatprep.subr.mxu0 0.0
      %5455 = vmatpush1.msra.mxu0 0.0
      %5456 = vmatprep.subr.mxu0 0.0
      %5457 = vmatpush1.msra.mxu0 0.0
      %5458 = vmatprep.subr.mxu0 0.0
      %5459 = vmatpush1.msra.mxu0 0.0
      %5460 = vmatprep.subr.mxu0 0.0
      %5461 = vmatpush1.msra.mxu0 0.0
      %5462 = vmatprep.subr.mxu0 0.0
      %5463 = vmatpush1.msra.mxu0 0.0
      %5464 = vmatprep.subr.mxu0 0.0
      %5465 = vmatpush1.msra.mxu0 0.0
      %5466 = vmatprep.subr.mxu0 0.0
      %5467 = vmatpush1.msra.mxu0 0.0
      %5468 = vmatprep.subr.mxu0 0.0
      %5469 = vmatpush1.msra.mxu0 0.0
      %5470 = vmatprep.subr.mxu0 0.0
      %5471 = vmatpush1.msra.mxu0 0.0
      %5472 = vmatprep.subr.mxu0 0.0
      %5473 = vmatpush1.msra.mxu0 0.0
      %5474 = vmatprep.subr.mxu0 0.0
      %5475 = vmatpush1.msra.mxu0 0.0
      %5476 = vmatprep.subr.mxu0 0.0
      %5477 = vmatpush1.msra.mxu0 0.0
      %5478 = vmatprep.subr.mxu0 0.0
      %5479 = vmatpush1.msra.mxu0 0.0
      %5480 = vmatprep.subr.mxu0 0.0
      %5481 = vmatpush1.msra.mxu0 0.0
      %5482 = vmatprep.subr.mxu0 0.0
      %5483 = vmatpush1.msra.mxu0 0.0
      %5484 = vmatprep.subr.mxu0 0.0
      %5485 = vmatpush1.msra.mxu0 0.0
      %5486 = vmatprep.subr.mxu0 0.0
      %5487 = vmatpush1.msra.mxu0 0.0
      %5488 = vmatprep.subr.mxu0 0.0
      %5489 = vmatpush1.msra.mxu0 0.0
      %5490 = vmatprep.subr.mxu0 0.0
      %5491 = vmatpush1.msra.mxu0 0.0
      %5492 = vmatprep.subr.mxu0 0.0
      %5493 = vmatpush1.msra.mxu0 0.0
      %5494 = vmatprep.mubr.f32.mxu0 0.0
      %5495 = vmatmul.mubr.f32.gmra.mrb[0].mxu0 %v5407
      %v5496 = vpop.f32.mrb[0].mxu0
      %v5497 = vadd.f32 %v5368, %v5496
      %v5498 = vpop.f32.mrb[0].mxu0
      %5499 = vmatprep.mubr.f32.mxu0 0.0
      %5500 = vmatmul.mubr.f32.gmra.mrb[0].mxu0 %v5410
      %v5501 = vpop.f32.mrb[0].mxu0
      %v5502 = vadd.f32 %v5373, %v5501
      %v5503 = vpop.f32.mrb[0].mxu0
      %5504 = vmatprep.mubr.f32.mxu0 0.0
      %5505 = vmatmul.mubr.f32.gmra.mrb[0].mxu0 %v5413
      %v5506 = vpop.f32.mrb[0].mxu0
      %v5507 = vadd.f32 %v5378, %v5506
      %v5508 = vpop.f32.mrb[0].mxu0
      %5509 = vmatprep.mubr.f32.mxu0 0.0
      %5510 = vmatmul.mubr.f32.gmra.mrb[0].mxu0 %v5416
      %v5511 = vpop.f32.mrb[0].mxu0
      %v5512 = vadd.f32 %v5383, %v5511
      %v5513 = vpop.f32.mrb[0].mxu0
      %5514 = vmatprep.mubr.f32.mxu0 0.0
      %5515 = vmatmul.mubr.f32.gmra.mrb[0].mxu0 %v5419
      %v5516 = vpop.f32.mrb[0].mxu0
      %v5517 = vadd.f32 %v5388, %v5516
      %v5518 = vpop.f32.mrb[0].mxu0
      %5519 = vmatprep.mubr.f32.mxu0 0.0
      %5520 = vmatmul.mubr.f32.gmra.mrb[0].mxu0 %v5422
      %v5521 = vpop.f32.mrb[0].mxu0
      %v5522 = vadd.f32 %v5393, %v5521
      %v5523 = vpop.f32.mrb[0].mxu0
      %5524 = vmatprep.mubr.f32.mxu0 0.0
      %5525 = vmatmul.mubr.f32.gmra.mrb[0].mxu0 %v5425
      %v5526 = vpop.f32.mrb[0].mxu0
      %v5527 = vadd.f32 %v5398, %v5526
      %v5528 = vpop.f32.mrb[0].mxu0
      %5529 = vmatprep.mubr.f32.mxu0 0.0
      %5530 = vmatmul.mubr.f32.gmra.mrb[0].mxu0 %v5428
      %v5531 = vpop.f32.mrb[0].mxu0
      %v5532 = vadd.f32 %v5403, %v5531
      %v5533 = vpop.f32.mrb[0].mxu0
      %5534 = vdwg.mxu0
      %v5535 = vld [vmem:[#allocation2 + $0x2] sm:$0xff]
      %v5536 = vld [vmem:[#allocation2 + $0x12] sm:$0xff]
      %v5537 = vld [vmem:[#allocation2 + $0x22] sm:$0xff]
      %v5538 = vld [vmem:[#allocation2 + $0x32] sm:$0xff]
      %v5539 = vld [vmem:[#allocation2 + $0x42] sm:$0xff]
      %v5540 = vld [vmem:[#allocation2 + $0x52] sm:$0xff]
      %v5541 = vld [vmem:[#allocation2 + $0x62] sm:$0xff]
      %v5542 = vld [vmem:[#allocation2 + $0x72] sm:$0xff]
      %s5543 = scalar_lea.vmem %s1, 232
      %v5544 = vld [vmem:[%s5543] sm:$0xff]
      %v5546 = vsel %vm223, %v5535, 0
      %v5549 = vsel %vm223, %v5536, 0
      %v5552 = vsel %vm223, %v5537, 0
      %v5555 = vsel %vm223, %v5538, 0
      %v5558 = vsel %vm223, %v5539, 0
      %v5561 = vsel %vm223, %v5540, 0
      %v5564 = vsel %vm223, %v5541, 0
      %v5567 = vsel %vm223, %v5542, 0
      %5569 = vmatprep.subr.mxu0 0.0
      %5570 = vmatpush1.msra.mxu0 %v5544
      %5571 = vmatprep.subr.mxu0 0.0
      %5572 = vmatpush1.msra.mxu0 0.0
      %5573 = vmatprep.subr.mxu0 0.0
      %5574 = vmatpush1.msra.mxu0 0.0
      %5575 = vmatprep.subr.mxu0 0.0
      %5576 = vmatpush1.msra.mxu0 0.0
      %5577 = vmatprep.subr.mxu0 0.0
      %5578 = vmatpush1.msra.mxu0 0.0
      %5579 = vmatprep.subr.mxu0 0.0
      %5580 = vmatpush1.msra.mxu0 0.0
      %5581 = vmatprep.subr.mxu0 0.0
      %5582 = vmatpush1.msra.mxu0 0.0
      %5583 = vmatprep.subr.mxu0 0.0
      %5584 = vmatpush1.msra.mxu0 0.0
      %5585 = vmatprep.subr.mxu0 0.0
      %5586 = vmatpush1.msra.mxu0 0.0
      %5587 = vmatprep.subr.mxu0 0.0
      %5588 = vmatpush1.msra.mxu0 0.0
      %5589 = vmatprep.subr.mxu0 0.0
      %5590 = vmatpush1.msra.mxu0 0.0
      %5591 = vmatprep.subr.mxu0 0.0
      %5592 = vmatpush1.msra.mxu0 0.0
      %5593 = vmatprep.subr.mxu0 0.0
      %5594 = vmatpush1.msra.mxu0 0.0
      %5595 = vmatprep.subr.mxu0 0.0
      %5596 = vmatpush1.msra.mxu0 0.0
      %5597 = vmatprep.subr.mxu0 0.0
      %5598 = vmatpush1.msra.mxu0 0.0
      %5599 = vmatprep.subr.mxu0 0.0
      %5600 = vmatpush1.msra.mxu0 0.0
      %5601 = vmatprep.subr.mxu0 0.0
      %5602 = vmatpush1.msra.mxu0 0.0
      %5603 = vmatprep.subr.mxu0 0.0
      %5604 = vmatpush1.msra.mxu0 0.0
      %5605 = vmatprep.subr.mxu0 0.0
      %5606 = vmatpush1.msra.mxu0 0.0
      %5607 = vmatprep.subr.mxu0 0.0
      %5608 = vmatpush1.msra.mxu0 0.0
      %5609 = vmatprep.subr.mxu0 0.0
      %5610 = vmatpush1.msra.mxu0 0.0
      %5611 = vmatprep.subr.mxu0 0.0
      %5612 = vmatpush1.msra.mxu0 0.0
      %5613 = vmatprep.subr.mxu0 0.0
      %5614 = vmatpush1.msra.mxu0 0.0
      %5615 = vmatprep.subr.mxu0 0.0
      %5616 = vmatpush1.msra.mxu0 0.0
      %5617 = vmatprep.subr.mxu0 0.0
      %5618 = vmatpush1.msra.mxu0 0.0
      %5619 = vmatprep.subr.mxu0 0.0
      %5620 = vmatpush1.msra.mxu0 0.0
      %5621 = vmatprep.subr.mxu0 0.0
      %5622 = vmatpush1.msra.mxu0 0.0
      %5623 = vmatprep.subr.mxu0 0.0
      %5624 = vmatpush1.msra.mxu0 0.0
      %5625 = vmatprep.subr.mxu0 0.0
      %5626 = vmatpush1.msra.mxu0 0.0
      %5627 = vmatprep.subr.mxu0 0.0
      %5628 = vmatpush1.msra.mxu0 0.0
      %5629 = vmatprep.subr.mxu0 0.0
      %5630 = vmatpush1.msra.mxu0 0.0
      %5631 = vmatprep.subr.mxu0 0.0
      %5632 = vmatpush1.msra.mxu0 0.0
      %5633 = vmatprep.mubr.f32.mxu0 0.0
      %5634 = vmatmul.mubr.f32.gmra.mrb[0].mxu0 %v5546
      %v5635 = vpop.f32.mrb[0].mxu0
      %v5636 = vadd.f32 0.0, %v5635
      %v5637 = vpop.f32.mrb[0].mxu0
      %5638 = vmatprep.mubr.f32.mxu0 0.0
      %5639 = vmatmul.mubr.f32.gmra.mrb[0].mxu0 %v5549
      %v5640 = vpop.f32.mrb[0].mxu0
      %v5641 = vadd.f32 0.0, %v5640
      %v5642 = vpop.f32.mrb[0].mxu0
      %5643 = vmatprep.mubr.f32.mxu0 0.0
      %5644 = vmatmul.mubr.f32.gmra.mrb[0].mxu0 %v5552
      %v5645 = vpop.f32.mrb[0].mxu0
      %v5646 = vadd.f32 0.0, %v5645
      %v5647 = vpop.f32.mrb[0].mxu0
      %5648 = vmatprep.mubr.f32.mxu0 0.0
      %5649 = vmatmul.mubr.f32.gmra.mrb[0].mxu0 %v5555
      %v5650 = vpop.f32.mrb[0].mxu0
      %v5651 = vadd.f32 0.0, %v5650
      %v5652 = vpop.f32.mrb[0].mxu0
      %5653 = vmatprep.mubr.f32.mxu0 0.0
      %5654 = vmatmul.mubr.f32.gmra.mrb[0].mxu0 %v5558
      %v5655 = vpop.f32.mrb[0].mxu0
      %v5656 = vadd.f32 0.0, %v5655
      %v5657 = vpop.f32.mrb[0].mxu0
      %5658 = vmatprep.mubr.f32.mxu0 0.0
      %5659 = vmatmul.mubr.f32.gmra.mrb[0].mxu0 %v5561
      %v5660 = vpop.f32.mrb[0].mxu0
      %v5661 = vadd.f32 0.0, %v5660
      %v5662 = vpop.f32.mrb[0].mxu0
      %5663 = vmatprep.mubr.f32.mxu0 0.0
      %5664 = vmatmul.mubr.f32.gmra.mrb[0].mxu0 %v5564
      %v5665 = vpop.f32.mrb[0].mxu0
      %v5666 = vadd.f32 0.0, %v5665
      %v5667 = vpop.f32.mrb[0].mxu0
      %5668 = vmatprep.mubr.f32.mxu0 0.0
      %5669 = vmatmul.mubr.f32.gmra.mrb[0].mxu0 %v5567
      %v5670 = vpop.f32.mrb[0].mxu0
      %v5671 = vadd.f32 0.0, %v5670
      %v5672 = vpop.f32.mrb[0].mxu0
      %5673 = vdwg.mxu0
      %v5674 = vadd.f32 %v5497, %v5636
      %v5675 = vadd.f32 %v5502, %v5641
      %v5676 = vadd.f32 %v5507, %v5646
      %v5677 = vadd.f32 %v5512, %v5651
      %v5678 = vadd.f32 %v5517, %v5656
      %v5679 = vadd.f32 %v5522, %v5661
      %v5680 = vadd.f32 %v5527, %v5666
      %v5681 = vadd.f32 %v5532, %v5671
      %v5682 = vld [vmem:[%s309] sm:$0xff]
      %v5683 = vld [vmem:[%s309 + $0x10] sm:$0xff]
      %v5684 = vld [vmem:[%s309 + $0x20] sm:$0xff]
      %v5685 = vld [vmem:[%s309 + $0x30] sm:$0xff]
      %v5686 = vld [vmem:[%s309 + $0x40] sm:$0xff]
      %v5687 = vld [vmem:[%s309 + $0x50] sm:$0xff]
      %v5688 = vld [vmem:[%s309 + $0x60] sm:$0xff]
      %v5689 = vld [vmem:[%s309 + $0x70] sm:$0xff]
      %s5690 = scalar_lea.vmem %s1, 240
      %v5691 = vld [vmem:[%s5690] sm:$0xff]
      %v5693 = vsel %vm223, %v5682, 0
      %v5696 = vsel %vm223, %v5683, 0
      %v5699 = vsel %vm223, %v5684, 0
      %v5702 = vsel %vm223, %v5685, 0
      %v5705 = vsel %vm223, %v5686, 0
      %v5708 = vsel %vm223, %v5687, 0
      %v5711 = vsel %vm223, %v5688, 0
      %v5714 = vsel %vm223, %v5689, 0
      %5716 = vmatprep.subr.mxu0 0.0
      %5717 = vmatpush1.msra.mxu0 %v5691
      %5718 = vmatprep.subr.mxu0 0.0
      %5719 = vmatpush1.msra.mxu0 0.0
      %5720 = vmatprep.subr.mxu0 0.0
      %5721 = vmatpush1.msra.mxu0 0.0
      %5722 = vmatprep.subr.mxu0 0.0
      %5723 = vmatpush1.msra.mxu0 0.0
      %5724 = vmatprep.subr.mxu0 0.0
      %5725 = vmatpush1.msra.mxu0 0.0
      %5726 = vmatprep.subr.mxu0 0.0
      %5727 = vmatpush1.msra.mxu0 0.0
      %5728 = vmatprep.subr.mxu0 0.0
      %5729 = vmatpush1.msra.mxu0 0.0
      %5730 = vmatprep.subr.mxu0 0.0
      %5731 = vmatpush1.msra.mxu0 0.0
      %5732 = vmatprep.subr.mxu0 0.0
      %5733 = vmatpush1.msra.mxu0 0.0
      %5734 = vmatprep.subr.mxu0 0.0
      %5735 = vmatpush1.msra.mxu0 0.0
      %5736 = vmatprep.subr.mxu0 0.0
      %5737 = vmatpush1.msra.mxu0 0.0
      %5738 = vmatprep.subr.mxu0 0.0
      %5739 = vmatpush1.msra.mxu0 0.0
      %5740 = vmatprep.subr.mxu0 0.0
      %5741 = vmatpush1.msra.mxu0 0.0
      %5742 = vmatprep.subr.mxu0 0.0
      %5743 = vmatpush1.msra.mxu0 0.0
      %5744 = vmatprep.subr.mxu0 0.0
      %5745 = vmatpush1.msra.mxu0 0.0
      %5746 = vmatprep.subr.mxu0 0.0
      %5747 = vmatpush1.msra.mxu0 0.0
      %5748 = vmatprep.subr.mxu0 0.0
      %5749 = vmatpush1.msra.mxu0 0.0
      %5750 = vmatprep.subr.mxu0 0.0
      %5751 = vmatpush1.msra.mxu0 0.0
      %5752 = vmatprep.subr.mxu0 0.0
      %5753 = vmatpush1.msra.mxu0 0.0
      %5754 = vmatprep.subr.mxu0 0.0
      %5755 = vmatpush1.msra.mxu0 0.0
      %5756 = vmatprep.subr.mxu0 0.0
      %5757 = vmatpush1.msra.mxu0 0.0
      %5758 = vmatprep.subr.mxu0 0.0
      %5759 = vmatpush1.msra.mxu0 0.0
      %5760 = vmatprep.subr.mxu0 0.0
      %5761 = vmatpush1.msra.mxu0 0.0
      %5762 = vmatprep.subr.mxu0 0.0
      %5763 = vmatpush1.msra.mxu0 0.0
      %5764 = vmatprep.subr.mxu0 0.0
      %5765 = vmatpush1.msra.mxu0 0.0
      %5766 = vmatprep.subr.mxu0 0.0
      %5767 = vmatpush1.msra.mxu0 0.0
      %5768 = vmatprep.subr.mxu0 0.0
      %5769 = vmatpush1.msra.mxu0 0.0
      %5770 = vmatprep.subr.mxu0 0.0
      %5771 = vmatpush1.msra.mxu0 0.0
      %5772 = vmatprep.subr.mxu0 0.0
      %5773 = vmatpush1.msra.mxu0 0.0
      %5774 = vmatprep.subr.mxu0 0.0
      %5775 = vmatpush1.msra.mxu0 0.0
      %5776 = vmatprep.subr.mxu0 0.0
      %5777 = vmatpush1.msra.mxu0 0.0
      %5778 = vmatprep.subr.mxu0 0.0
      %5779 = vmatpush1.msra.mxu0 0.0
      %5780 = vmatprep.mubr.f32.mxu0 0.0
      %5781 = vmatmul.mubr.f32.gmra.mrb[0].mxu0 %v5693
      %v5782 = vpop.f32.mrb[0].mxu0
      %v5783 = vadd.f32 0.0, %v5782
      %v5784 = vpop.f32.mrb[0].mxu0
      %5785 = vmatprep.mubr.f32.mxu0 0.0
      %5786 = vmatmul.mubr.f32.gmra.mrb[0].mxu0 %v5696
      %v5787 = vpop.f32.mrb[0].mxu0
      %v5788 = vadd.f32 0.0, %v5787
      %v5789 = vpop.f32.mrb[0].mxu0
      %5790 = vmatprep.mubr.f32.mxu0 0.0
      %5791 = vmatmul.mubr.f32.gmra.mrb[0].mxu0 %v5699
      %v5792 = vpop.f32.mrb[0].mxu0
      %v5793 = vadd.f32 0.0, %v5792
      %v5794 = vpop.f32.mrb[0].mxu0
      %5795 = vmatprep.mubr.f32.mxu0 0.0
      %5796 = vmatmul.mubr.f32.gmra.mrb[0].mxu0 %v5702
      %v5797 = vpop.f32.mrb[0].mxu0
      %v5798 = vadd.f32 0.0, %v5797
      %v5799 = vpop.f32.mrb[0].mxu0
      %5800 = vmatprep.mubr.f32.mxu0 0.0
      %5801 = vmatmul.mubr.f32.gmra.mrb[0].mxu0 %v5705
      %v5802 = vpop.f32.mrb[0].mxu0
      %v5803 = vadd.f32 0.0, %v5802
      %v5804 = vpop.f32.mrb[0].mxu0
      %5805 = vmatprep.mubr.f32.mxu0 0.0
      %5806 = vmatmul.mubr.f32.gmra.mrb[0].mxu0 %v5708
      %v5807 = vpop.f32.mrb[0].mxu0
      %v5808 = vadd.f32 0.0, %v5807
      %v5809 = vpop.f32.mrb[0].mxu0
      %5810 = vmatprep.mubr.f32.mxu0 0.0
      %5811 = vmatmul.mubr.f32.gmra.mrb[0].mxu0 %v5711
      %v5812 = vpop.f32.mrb[0].mxu0
      %v5813 = vadd.f32 0.0, %v5812
      %v5814 = vpop.f32.mrb[0].mxu0
      %5815 = vmatprep.mubr.f32.mxu0 0.0
      %5816 = vmatmul.mubr.f32.gmra.mrb[0].mxu0 %v5714
      %v5817 = vpop.f32.mrb[0].mxu0
      %v5818 = vadd.f32 0.0, %v5817
      %v5819 = vpop.f32.mrb[0].mxu0
      %5820 = vdwg.mxu0
      %v5821 = vadd.f32 %v5674, %v5783
      %v5822 = vadd.f32 %v5675, %v5788
      %v5823 = vadd.f32 %v5676, %v5793
      %v5824 = vadd.f32 %v5677, %v5798
      %v5825 = vadd.f32 %v5678, %v5803
      %v5826 = vadd.f32 %v5679, %v5808
      %v5827 = vadd.f32 %v5680, %v5813
      %v5828 = vadd.f32 %v5681, %v5818
      %v5829 = vld [vmem:[%s309 + $0x1] sm:$0xff]
      %v5830 = vld [vmem:[%s309 + $0x11] sm:$0xff]
      %v5831 = vld [vmem:[%s309 + $0x21] sm:$0xff]
      %v5832 = vld [vmem:[%s309 + $0x31] sm:$0xff]
      %v5833 = vld [vmem:[%s309 + $0x41] sm:$0xff]
      %v5834 = vld [vmem:[%s309 + $0x51] sm:$0xff]
      %v5835 = vld [vmem:[%s309 + $0x61] sm:$0xff]
      %v5836 = vld [vmem:[%s309 + $0x71] sm:$0xff]
      %s5837 = scalar_lea.vmem %s1, 248
      %v5838 = vld [vmem:[%s5837] sm:$0xff]
      %v5840 = vsel %vm223, %v5829, 0
      %v5843 = vsel %vm223, %v5830, 0
      %v5846 = vsel %vm223, %v5831, 0
      %v5849 = vsel %vm223, %v5832, 0
      %v5852 = vsel %vm223, %v5833, 0
      %v5855 = vsel %vm223, %v5834, 0
      %v5858 = vsel %vm223, %v5835, 0
      %v5861 = vsel %vm223, %v5836, 0
      %5863 = vmatprep.subr.mxu0 0.0
      %5864 = vmatpush1.msra.mxu0 %v5838
      %5865 = vmatprep.subr.mxu0 0.0
      %5866 = vmatpush1.msra.mxu0 0.0
      %5867 = vmatprep.subr.mxu0 0.0
      %5868 = vmatpush1.msra.mxu0 0.0
      %5869 = vmatprep.subr.mxu0 0.0
      %5870 = vmatpush1.msra.mxu0 0.0
      %5871 = vmatprep.subr.mxu0 0.0
      %5872 = vmatpush1.msra.mxu0 0.0
      %5873 = vmatprep.subr.mxu0 0.0
      %5874 = vmatpush1.msra.mxu0 0.0
      %5875 = vmatprep.subr.mxu0 0.0
      %5876 = vmatpush1.msra.mxu0 0.0
      %5877 = vmatprep.subr.mxu0 0.0
      %5878 = vmatpush1.msra.mxu0 0.0
      %5879 = vmatprep.subr.mxu0 0.0
      %5880 = vmatpush1.msra.mxu0 0.0
      %5881 = vmatprep.subr.mxu0 0.0
      %5882 = vmatpush1.msra.mxu0 0.0
      %5883 = vmatprep.subr.mxu0 0.0
      %5884 = vmatpush1.msra.mxu0 0.0
      %5885 = vmatprep.subr.mxu0 0.0
      %5886 = vmatpush1.msra.mxu0 0.0
      %5887 = vmatprep.subr.mxu0 0.0
      %5888 = vmatpush1.msra.mxu0 0.0
      %5889 = vmatprep.subr.mxu0 0.0
      %5890 = vmatpush1.msra.mxu0 0.0
      %5891 = vmatprep.subr.mxu0 0.0
      %5892 = vmatpush1.msra.mxu0 0.0
      %5893 = vmatprep.subr.mxu0 0.0
      %5894 = vmatpush1.msra.mxu0 0.0
      %5895 = vmatprep.subr.mxu0 0.0
      %5896 = vmatpush1.msra.mxu0 0.0
      %5897 = vmatprep.subr.mxu0 0.0
      %5898 = vmatpush1.msra.mxu0 0.0
      %5899 = vmatprep.subr.mxu0 0.0
      %5900 = vmatpush1.msra.mxu0 0.0
      %5901 = vmatprep.subr.mxu0 0.0
      %5902 = vmatpush1.msra.mxu0 0.0
      %5903 = vmatprep.subr.mxu0 0.0
      %5904 = vmatpush1.msra.mxu0 0.0
      %5905 = vmatprep.subr.mxu0 0.0
      %5906 = vmatpush1.msra.mxu0 0.0
      %5907 = vmatprep.subr.mxu0 0.0
      %5908 = vmatpush1.msra.mxu0 0.0
      %5909 = vmatprep.subr.mxu0 0.0
      %5910 = vmatpush1.msra.mxu0 0.0
      %5911 = vmatprep.subr.mxu0 0.0
      %5912 = vmatpush1.msra.mxu0 0.0
      %5913 = vmatprep.subr.mxu0 0.0
      %5914 = vmatpush1.msra.mxu0 0.0
      %5915 = vmatprep.subr.mxu0 0.0
      %5916 = vmatpush1.msra.mxu0 0.0
      %5917 = vmatprep.subr.mxu0 0.0
      %5918 = vmatpush1.msra.mxu0 0.0
      %5919 = vmatprep.subr.mxu0 0.0
      %5920 = vmatpush1.msra.mxu0 0.0
      %5921 = vmatprep.subr.mxu0 0.0
      %5922 = vmatpush1.msra.mxu0 0.0
      %5923 = vmatprep.subr.mxu0 0.0
      %5924 = vmatpush1.msra.mxu0 0.0
      %5925 = vmatprep.subr.mxu0 0.0
      %5926 = vmatpush1.msra.mxu0 0.0
      %5927 = vmatprep.mubr.f32.mxu0 0.0
      %5928 = vmatmul.mubr.f32.gmra.mrb[0].mxu0 %v5840
      %v5929 = vpop.f32.mrb[0].mxu0
      %v5930 = vadd.f32 0.0, %v5929
      %v5931 = vpop.f32.mrb[0].mxu0
      %5932 = vmatprep.mubr.f32.mxu0 0.0
      %5933 = vmatmul.mubr.f32.gmra.mrb[0].mxu0 %v5843
      %v5934 = vpop.f32.mrb[0].mxu0
      %v5935 = vadd.f32 0.0, %v5934
      %v5936 = vpop.f32.mrb[0].mxu0
      %5937 = vmatprep.mubr.f32.mxu0 0.0
      %5938 = vmatmul.mubr.f32.gmra.mrb[0].mxu0 %v5846
      %v5939 = vpop.f32.mrb[0].mxu0
      %v5940 = vadd.f32 0.0, %v5939
      %v5941 = vpop.f32.mrb[0].mxu0
      %5942 = vmatprep.mubr.f32.mxu0 0.0
      %5943 = vmatmul.mubr.f32.gmra.mrb[0].mxu0 %v5849
      %v5944 = vpop.f32.mrb[0].mxu0
      %v5945 = vadd.f32 0.0, %v5944
      %v5946 = vpop.f32.mrb[0].mxu0
      %5947 = vmatprep.mubr.f32.mxu0 0.0
      %5948 = vmatmul.mubr.f32.gmra.mrb[0].mxu0 %v5852
      %v5949 = vpop.f32.mrb[0].mxu0
      %v5950 = vadd.f32 0.0, %v5949
      %v5951 = vpop.f32.mrb[0].mxu0
      %5952 = vmatprep.mubr.f32.mxu0 0.0
      %5953 = vmatmul.mubr.f32.gmra.mrb[0].mxu0 %v5855
      %v5954 = vpop.f32.mrb[0].mxu0
      %v5955 = vadd.f32 0.0, %v5954
      %v5956 = vpop.f32.mrb[0].mxu0
      %5957 = vmatprep.mubr.f32.mxu0 0.0
      %5958 = vmatmul.mubr.f32.gmra.mrb[0].mxu0 %v5858
      %v5959 = vpop.f32.mrb[0].mxu0
      %v5960 = vadd.f32 0.0, %v5959
      %v5961 = vpop.f32.mrb[0].mxu0
      %5962 = vmatprep.mubr.f32.mxu0 0.0
      %5963 = vmatmul.mubr.f32.gmra.mrb[0].mxu0 %v5861
      %v5964 = vpop.f32.mrb[0].mxu0
      %v5965 = vadd.f32 0.0, %v5964
      %v5966 = vpop.f32.mrb[0].mxu0
      %5967 = vdwg.mxu0
      %v5968 = vadd.f32 %v5821, %v5930
      %v5969 = vadd.f32 %v5822, %v5935
      %v5970 = vadd.f32 %v5823, %v5940
      %v5971 = vadd.f32 %v5824, %v5945
      %v5972 = vadd.f32 %v5825, %v5950
      %v5973 = vadd.f32 %v5826, %v5955
      %v5974 = vadd.f32 %v5827, %v5960
      %v5975 = vadd.f32 %v5828, %v5965
      %v5976 = vld [vmem:[%s309 + $0x2] sm:$0xff]
      %v5977 = vld [vmem:[%s309 + $0x12] sm:$0xff]
      %v5978 = vld [vmem:[%s309 + $0x22] sm:$0xff]
      %v5979 = vld [vmem:[%s309 + $0x32] sm:$0xff]
      %v5980 = vld [vmem:[%s309 + $0x42] sm:$0xff]
      %v5981 = vld [vmem:[%s309 + $0x52] sm:$0xff]
      %v5982 = vld [vmem:[%s309 + $0x62] sm:$0xff]
      %v5983 = vld [vmem:[%s309 + $0x72] sm:$0xff]
      %s5984 = scalar_lea.vmem %s1, 256
      %v5985 = vld [vmem:[%s5984] sm:$0xff]
      %v5987 = vsel %vm223, %v5976, 0
      %v5990 = vsel %vm223, %v5977, 0
      %v5993 = vsel %vm223, %v5978, 0
      %v5996 = vsel %vm223, %v5979, 0
      %v5999 = vsel %vm223, %v5980, 0
      %v6002 = vsel %vm223, %v5981, 0
      %v6005 = vsel %vm223, %v5982, 0
      %v6008 = vsel %vm223, %v5983, 0
      %6010 = vmatprep.subr.mxu0 0.0
      %6011 = vmatpush1.msra.mxu0 %v5985
      %6012 = vmatprep.subr.mxu0 0.0
      %6013 = vmatpush1.msra.mxu0 0.0
      %6014 = vmatprep.subr.mxu0 0.0
      %6015 = vmatpush1.msra.mxu0 0.0
      %6016 = vmatprep.subr.mxu0 0.0
      %6017 = vmatpush1.msra.mxu0 0.0
      %6018 = vmatprep.subr.mxu0 0.0
      %6019 = vmatpush1.msra.mxu0 0.0
      %6020 = vmatprep.subr.mxu0 0.0
      %6021 = vmatpush1.msra.mxu0 0.0
      %6022 = vmatprep.subr.mxu0 0.0
      %6023 = vmatpush1.msra.mxu0 0.0
      %6024 = vmatprep.subr.mxu0 0.0
      %6025 = vmatpush1.msra.mxu0 0.0
      %6026 = vmatprep.subr.mxu0 0.0
      %6027 = vmatpush1.msra.mxu0 0.0
      %6028 = vmatprep.subr.mxu0 0.0
      %6029 = vmatpush1.msra.mxu0 0.0
      %6030 = vmatprep.subr.mxu0 0.0
      %6031 = vmatpush1.msra.mxu0 0.0
      %6032 = vmatprep.subr.mxu0 0.0
      %6033 = vmatpush1.msra.mxu0 0.0
      %6034 = vmatprep.subr.mxu0 0.0
      %6035 = vmatpush1.msra.mxu0 0.0
      %6036 = vmatprep.subr.mxu0 0.0
      %6037 = vmatpush1.msra.mxu0 0.0
      %6038 = vmatprep.subr.mxu0 0.0
      %6039 = vmatpush1.msra.mxu0 0.0
      %6040 = vmatprep.subr.mxu0 0.0
      %6041 = vmatpush1.msra.mxu0 0.0
      %6042 = vmatprep.subr.mxu0 0.0
      %6043 = vmatpush1.msra.mxu0 0.0
      %6044 = vmatprep.subr.mxu0 0.0
      %6045 = vmatpush1.msra.mxu0 0.0
      %6046 = vmatprep.subr.mxu0 0.0
      %6047 = vmatpush1.msra.mxu0 0.0
      %6048 = vmatprep.subr.mxu0 0.0
      %6049 = vmatpush1.msra.mxu0 0.0
      %6050 = vmatprep.subr.mxu0 0.0
      %6051 = vmatpush1.msra.mxu0 0.0
      %6052 = vmatprep.subr.mxu0 0.0
      %6053 = vmatpush1.msra.mxu0 0.0
      %6054 = vmatprep.subr.mxu0 0.0
      %6055 = vmatpush1.msra.mxu0 0.0
      %6056 = vmatprep.subr.mxu0 0.0
      %6057 = vmatpush1.msra.mxu0 0.0
      %6058 = vmatprep.subr.mxu0 0.0
      %6059 = vmatpush1.msra.mxu0 0.0
      %6060 = vmatprep.subr.mxu0 0.0
      %6061 = vmatpush1.msra.mxu0 0.0
      %6062 = vmatprep.subr.mxu0 0.0
      %6063 = vmatpush1.msra.mxu0 0.0
      %6064 = vmatprep.subr.mxu0 0.0
      %6065 = vmatpush1.msra.mxu0 0.0
      %6066 = vmatprep.subr.mxu0 0.0
      %6067 = vmatpush1.msra.mxu0 0.0
      %6068 = vmatprep.subr.mxu0 0.0
      %6069 = vmatpush1.msra.mxu0 0.0
      %6070 = vmatprep.subr.mxu0 0.0
      %6071 = vmatpush1.msra.mxu0 0.0
      %6072 = vmatprep.subr.mxu0 0.0
      %6073 = vmatpush1.msra.mxu0 0.0
      %6074 = vmatprep.mubr.f32.mxu0 0.0
      %6075 = vmatmul.mubr.f32.gmra.mrb[0].mxu0 %v5987
      %v6076 = vpop.f32.mrb[0].mxu0
      %v6077 = vadd.f32 0.0, %v6076
      %v6078 = vpop.f32.mrb[0].mxu0
      %6079 = vmatprep.mubr.f32.mxu0 0.0
      %6080 = vmatmul.mubr.f32.gmra.mrb[0].mxu0 %v5990
      %v6081 = vpop.f32.mrb[0].mxu0
      %v6082 = vadd.f32 0.0, %v6081
      %v6083 = vpop.f32.mrb[0].mxu0
      %6084 = vmatprep.mubr.f32.mxu0 0.0
      %6085 = vmatmul.mubr.f32.gmra.mrb[0].mxu0 %v5993
      %v6086 = vpop.f32.mrb[0].mxu0
      %v6087 = vadd.f32 0.0, %v6086
      %v6088 = vpop.f32.mrb[0].mxu0
      %6089 = vmatprep.mubr.f32.mxu0 0.0
      %6090 = vmatmul.mubr.f32.gmra.mrb[0].mxu0 %v5996
      %v6091 = vpop.f32.mrb[0].mxu0
      %v6092 = vadd.f32 0.0, %v6091
      %v6093 = vpop.f32.mrb[0].mxu0
      %6094 = vmatprep.mubr.f32.mxu0 0.0
      %6095 = vmatmul.mubr.f32.gmra.mrb[0].mxu0 %v5999
      %v6096 = vpop.f32.mrb[0].mxu0
      %v6097 = vadd.f32 0.0, %v6096
      %v6098 = vpop.f32.mrb[0].mxu0
      %6099 = vmatprep.mubr.f32.mxu0 0.0
      %6100 = vmatmul.mubr.f32.gmra.mrb[0].mxu0 %v6002
      %v6101 = vpop.f32.mrb[0].mxu0
      %v6102 = vadd.f32 0.0, %v6101
      %v6103 = vpop.f32.mrb[0].mxu0
      %6104 = vmatprep.mubr.f32.mxu0 0.0
      %6105 = vmatmul.mubr.f32.gmra.mrb[0].mxu0 %v6005
      %v6106 = vpop.f32.mrb[0].mxu0
      %v6107 = vadd.f32 0.0, %v6106
      %v6108 = vpop.f32.mrb[0].mxu0
      %6109 = vmatprep.mubr.f32.mxu0 0.0
      %6110 = vmatmul.mubr.f32.gmra.mrb[0].mxu0 %v6008
      %v6111 = vpop.f32.mrb[0].mxu0
      %v6112 = vadd.f32 0.0, %v6111
      %v6113 = vpop.f32.mrb[0].mxu0
      %6114 = vdwg.mxu0
      %v6115 = vadd.f32 %v5968, %v6077
      %v6116 = vadd.f32 %v5969, %v6082
      %v6117 = vadd.f32 %v5970, %v6087
      %v6118 = vadd.f32 %v5971, %v6092
      %v6119 = vadd.f32 %v5972, %v6097
      %v6120 = vadd.f32 %v5973, %v6102
      %v6121 = vadd.f32 %v5974, %v6107
      %v6122 = vadd.f32 %v5975, %v6112
      %v6123 = vld [vmem:[%s1203] sm:$0xff]
      %v6124 = vld [vmem:[%s1203 + $0x10] sm:$0xff]
      %v6125 = vld [vmem:[%s1203 + $0x20] sm:$0xff]
      %v6126 = vld [vmem:[%s1203 + $0x30] sm:$0xff]
      %v6127 = vld [vmem:[%s1203 + $0x40] sm:$0xff]
      %v6128 = vld [vmem:[%s1203 + $0x50] sm:$0xff]
      %v6129 = vld [vmem:[%s1203 + $0x60] sm:$0xff]
      %v6130 = vld [vmem:[%s1203 + $0x70] sm:$0xff]
      %s6131 = scalar_lea.vmem %s1, 264
      %v6132 = vld [vmem:[%s6131] sm:$0xff]
      %v6134 = vsel %vm223, %v6123, 0
      %v6137 = vsel %vm223, %v6124, 0
      %v6140 = vsel %vm223, %v6125, 0
      %v6143 = vsel %vm223, %v6126, 0
      %v6146 = vsel %vm223, %v6127, 0
      %v6149 = vsel %vm223, %v6128, 0
      %v6152 = vsel %vm223, %v6129, 0
      %v6155 = vsel %vm223, %v6130, 0
      %6157 = vmatprep.subr.mxu0 0.0
      %6158 = vmatpush1.msra.mxu0 %v6132
      %6159 = vmatprep.subr.mxu0 0.0
      %6160 = vmatpush1.msra.mxu0 0.0
      %6161 = vmatprep.subr.mxu0 0.0
      %6162 = vmatpush1.msra.mxu0 0.0
      %6163 = vmatprep.subr.mxu0 0.0
      %6164 = vmatpush1.msra.mxu0 0.0
      %6165 = vmatprep.subr.mxu0 0.0
      %6166 = vmatpush1.msra.mxu0 0.0
      %6167 = vmatprep.subr.mxu0 0.0
      %6168 = vmatpush1.msra.mxu0 0.0
      %6169 = vmatprep.subr.mxu0 0.0
      %6170 = vmatpush1.msra.mxu0 0.0
      %6171 = vmatprep.subr.mxu0 0.0
      %6172 = vmatpush1.msra.mxu0 0.0
      %6173 = vmatprep.subr.mxu0 0.0
      %6174 = vmatpush1.msra.mxu0 0.0
      %6175 = vmatprep.subr.mxu0 0.0
      %6176 = vmatpush1.msra.mxu0 0.0
      %6177 = vmatprep.subr.mxu0 0.0
      %6178 = vmatpush1.msra.mxu0 0.0
      %6179 = vmatprep.subr.mxu0 0.0
      %6180 = vmatpush1.msra.mxu0 0.0
      %6181 = vmatprep.subr.mxu0 0.0
      %6182 = vmatpush1.msra.mxu0 0.0
      %6183 = vmatprep.subr.mxu0 0.0
      %6184 = vmatpush1.msra.mxu0 0.0
      %6185 = vmatprep.subr.mxu0 0.0
      %6186 = vmatpush1.msra.mxu0 0.0
      %6187 = vmatprep.subr.mxu0 0.0
      %6188 = vmatpush1.msra.mxu0 0.0
      %6189 = vmatprep.subr.mxu0 0.0
      %6190 = vmatpush1.msra.mxu0 0.0
      %6191 = vmatprep.subr.mxu0 0.0
      %6192 = vmatpush1.msra.mxu0 0.0
      %6193 = vmatprep.subr.mxu0 0.0
      %6194 = vmatpush1.msra.mxu0 0.0
      %6195 = vmatprep.subr.mxu0 0.0
      %6196 = vmatpush1.msra.mxu0 0.0
      %6197 = vmatprep.subr.mxu0 0.0
      %6198 = vmatpush1.msra.mxu0 0.0
      %6199 = vmatprep.subr.mxu0 0.0
      %6200 = vmatpush1.msra.mxu0 0.0
      %6201 = vmatprep.subr.mxu0 0.0
      %6202 = vmatpush1.msra.mxu0 0.0
      %6203 = vmatprep.subr.mxu0 0.0
      %6204 = vmatpush1.msra.mxu0 0.0
      %6205 = vmatprep.subr.mxu0 0.0
      %6206 = vmatpush1.msra.mxu0 0.0
      %6207 = vmatprep.subr.mxu0 0.0
      %6208 = vmatpush1.msra.mxu0 0.0
      %6209 = vmatprep.subr.mxu0 0.0
      %6210 = vmatpush1.msra.mxu0 0.0
      %6211 = vmatprep.subr.mxu0 0.0
      %6212 = vmatpush1.msra.mxu0 0.0
      %6213 = vmatprep.subr.mxu0 0.0
      %6214 = vmatpush1.msra.mxu0 0.0
      %6215 = vmatprep.subr.mxu0 0.0
      %6216 = vmatpush1.msra.mxu0 0.0
      %6217 = vmatprep.subr.mxu0 0.0
      %6218 = vmatpush1.msra.mxu0 0.0
      %6219 = vmatprep.subr.mxu0 0.0
      %6220 = vmatpush1.msra.mxu0 0.0
      %6221 = vmatprep.mubr.f32.mxu0 0.0
      %6222 = vmatmul.mubr.f32.gmra.mrb[0].mxu0 %v6134
      %v6223 = vpop.f32.mrb[0].mxu0
      %v6224 = vadd.f32 0.0, %v6223
      %v6225 = vpop.f32.mrb[0].mxu0
      %6226 = vmatprep.mubr.f32.mxu0 0.0
      %6227 = vmatmul.mubr.f32.gmra.mrb[0].mxu0 %v6137
      %v6228 = vpop.f32.mrb[0].mxu0
      %v6229 = vadd.f32 0.0, %v6228
      %v6230 = vpop.f32.mrb[0].mxu0
      %6231 = vmatprep.mubr.f32.mxu0 0.0
      %6232 = vmatmul.mubr.f32.gmra.mrb[0].mxu0 %v6140
      %v6233 = vpop.f32.mrb[0].mxu0
      %v6234 = vadd.f32 0.0, %v6233
      %v6235 = vpop.f32.mrb[0].mxu0
      %6236 = vmatprep.mubr.f32.mxu0 0.0
      %6237 = vmatmul.mubr.f32.gmra.mrb[0].mxu0 %v6143
      %v6238 = vpop.f32.mrb[0].mxu0
      %v6239 = vadd.f32 0.0, %v6238
      %v6240 = vpop.f32.mrb[0].mxu0
      %6241 = vmatprep.mubr.f32.mxu0 0.0
      %6242 = vmatmul.mubr.f32.gmra.mrb[0].mxu0 %v6146
      %v6243 = vpop.f32.mrb[0].mxu0
      %v6244 = vadd.f32 0.0, %v6243
      %v6245 = vpop.f32.mrb[0].mxu0
      %6246 = vmatprep.mubr.f32.mxu0 0.0
      %6247 = vmatmul.mubr.f32.gmra.mrb[0].mxu0 %v6149
      %v6248 = vpop.f32.mrb[0].mxu0
      %v6249 = vadd.f32 0.0, %v6248
      %v6250 = vpop.f32.mrb[0].mxu0
      %6251 = vmatprep.mubr.f32.mxu0 0.0
      %6252 = vmatmul.mubr.f32.gmra.mrb[0].mxu0 %v6152
      %v6253 = vpop.f32.mrb[0].mxu0
      %v6254 = vadd.f32 0.0, %v6253
      %v6255 = vpop.f32.mrb[0].mxu0
      %6256 = vmatprep.mubr.f32.mxu0 0.0
      %6257 = vmatmul.mubr.f32.gmra.mrb[0].mxu0 %v6155
      %v6258 = vpop.f32.mrb[0].mxu0
      %v6259 = vadd.f32 0.0, %v6258
      %v6260 = vpop.f32.mrb[0].mxu0
      %6261 = vdwg.mxu0
      %v6262 = vadd.f32 %v6115, %v6224
      %v6263 = vadd.f32 %v6116, %v6229
      %v6264 = vadd.f32 %v6117, %v6234
      %v6265 = vadd.f32 %v6118, %v6239
      %v6266 = vadd.f32 %v6119, %v6244
      %v6267 = vadd.f32 %v6120, %v6249
      %v6268 = vadd.f32 %v6121, %v6254
      %v6269 = vadd.f32 %v6122, %v6259
      %v6270 = vld [vmem:[%s1203 + $0x1] sm:$0xff]
      %v6271 = vld [vmem:[%s1203 + $0x11] sm:$0xff]
      %v6272 = vld [vmem:[%s1203 + $0x21] sm:$0xff]
      %v6273 = vld [vmem:[%s1203 + $0x31] sm:$0xff]
      %v6274 = vld [vmem:[%s1203 + $0x41] sm:$0xff]
      %v6275 = vld [vmem:[%s1203 + $0x51] sm:$0xff]
      %v6276 = vld [vmem:[%s1203 + $0x61] sm:$0xff]
      %v6277 = vld [vmem:[%s1203 + $0x71] sm:$0xff]
      %s6278 = scalar_lea.vmem %s1, 272
      %v6279 = vld [vmem:[%s6278] sm:$0xff]
      %v6281 = vsel %vm223, %v6270, 0
      %v6284 = vsel %vm223, %v6271, 0
      %v6287 = vsel %vm223, %v6272, 0
      %v6290 = vsel %vm223, %v6273, 0
      %v6293 = vsel %vm223, %v6274, 0
      %v6296 = vsel %vm223, %v6275, 0
      %v6299 = vsel %vm223, %v6276, 0
      %v6302 = vsel %vm223, %v6277, 0
      %6304 = vmatprep.subr.mxu0 0.0
      %6305 = vmatpush1.msra.mxu0 %v6279
      %6306 = vmatprep.subr.mxu0 0.0
      %6307 = vmatpush1.msra.mxu0 0.0
      %6308 = vmatprep.subr.mxu0 0.0
      %6309 = vmatpush1.msra.mxu0 0.0
      %6310 = vmatprep.subr.mxu0 0.0
      %6311 = vmatpush1.msra.mxu0 0.0
      %6312 = vmatprep.subr.mxu0 0.0
      %6313 = vmatpush1.msra.mxu0 0.0
      %6314 = vmatprep.subr.mxu0 0.0
      %6315 = vmatpush1.msra.mxu0 0.0
      %6316 = vmatprep.subr.mxu0 0.0
      %6317 = vmatpush1.msra.mxu0 0.0
      %6318 = vmatprep.subr.mxu0 0.0
      %6319 = vmatpush1.msra.mxu0 0.0
      %6320 = vmatprep.subr.mxu0 0.0
      %6321 = vmatpush1.msra.mxu0 0.0
      %6322 = vmatprep.subr.mxu0 0.0
      %6323 = vmatpush1.msra.mxu0 0.0
      %6324 = vmatprep.subr.mxu0 0.0
      %6325 = vmatpush1.msra.mxu0 0.0
      %6326 = vmatprep.subr.mxu0 0.0
      %6327 = vmatpush1.msra.mxu0 0.0
      %6328 = vmatprep.subr.mxu0 0.0
      %6329 = vmatpush1.msra.mxu0 0.0
      %6330 = vmatprep.subr.mxu0 0.0
      %6331 = vmatpush1.msra.mxu0 0.0
      %6332 = vmatprep.subr.mxu0 0.0
      %6333 = vmatpush1.msra.mxu0 0.0
      %6334 = vmatprep.subr.mxu0 0.0
      %6335 = vmatpush1.msra.mxu0 0.0
      %6336 = vmatprep.subr.mxu0 0.0
      %6337 = vmatpush1.msra.mxu0 0.0
      %6338 = vmatprep.subr.mxu0 0.0
      %6339 = vmatpush1.msra.mxu0 0.0
      %6340 = vmatprep.subr.mxu0 0.0
      %6341 = vmatpush1.msra.mxu0 0.0
      %6342 = vmatprep.subr.mxu0 0.0
      %6343 = vmatpush1.msra.mxu0 0.0
      %6344 = vmatprep.subr.mxu0 0.0
      %6345 = vmatpush1.msra.mxu0 0.0
      %6346 = vmatprep.subr.mxu0 0.0
      %6347 = vmatpush1.msra.mxu0 0.0
      %6348 = vmatprep.subr.mxu0 0.0
      %6349 = vmatpush1.msra.mxu0 0.0
      %6350 = vmatprep.subr.mxu0 0.0
      %6351 = vmatpush1.msra.mxu0 0.0
      %6352 = vmatprep.subr.mxu0 0.0
      %6353 = vmatpush1.msra.mxu0 0.0
      %6354 = vmatprep.subr.mxu0 0.0
      %6355 = vmatpush1.msra.mxu0 0.0
      %6356 = vmatprep.subr.mxu0 0.0
      %6357 = vmatpush1.msra.mxu0 0.0
      %6358 = vmatprep.subr.mxu0 0.0
      %6359 = vmatpush1.msra.mxu0 0.0
      %6360 = vmatprep.subr.mxu0 0.0
      %6361 = vmatpush1.msra.mxu0 0.0
      %6362 = vmatprep.subr.mxu0 0.0
      %6363 = vmatpush1.msra.mxu0 0.0
      %6364 = vmatprep.subr.mxu0 0.0
      %6365 = vmatpush1.msra.mxu0 0.0
      %6366 = vmatprep.subr.mxu0 0.0
      %6367 = vmatpush1.msra.mxu0 0.0
      %6368 = vmatprep.mubr.f32.mxu0 0.0
      %6369 = vmatmul.mubr.f32.gmra.mrb[0].mxu0 %v6281
      %v6370 = vpop.f32.mrb[0].mxu0
      %v6371 = vadd.f32 0.0, %v6370
      %v6372 = vpop.f32.mrb[0].mxu0
      %6373 = vmatprep.mubr.f32.mxu0 0.0
      %6374 = vmatmul.mubr.f32.gmra.mrb[0].mxu0 %v6284
      %v6375 = vpop.f32.mrb[0].mxu0
      %v6376 = vadd.f32 0.0, %v6375
      %v6377 = vpop.f32.mrb[0].mxu0
      %6378 = vmatprep.mubr.f32.mxu0 0.0
      %6379 = vmatmul.mubr.f32.gmra.mrb[0].mxu0 %v6287
      %v6380 = vpop.f32.mrb[0].mxu0
      %v6381 = vadd.f32 0.0, %v6380
      %v6382 = vpop.f32.mrb[0].mxu0
      %6383 = vmatprep.mubr.f32.mxu0 0.0
      %6384 = vmatmul.mubr.f32.gmra.mrb[0].mxu0 %v6290
      %v6385 = vpop.f32.mrb[0].mxu0
      %v6386 = vadd.f32 0.0, %v6385
      %v6387 = vpop.f32.mrb[0].mxu0
      %6388 = vmatprep.mubr.f32.mxu0 0.0
      %6389 = vmatmul.mubr.f32.gmra.mrb[0].mxu0 %v6293
      %v6390 = vpop.f32.mrb[0].mxu0
      %v6391 = vadd.f32 0.0, %v6390
      %v6392 = vpop.f32.mrb[0].mxu0
      %6393 = vmatprep.mubr.f32.mxu0 0.0
      %6394 = vmatmul.mubr.f32.gmra.mrb[0].mxu0 %v6296
      %v6395 = vpop.f32.mrb[0].mxu0
      %v6396 = vadd.f32 0.0, %v6395
      %v6397 = vpop.f32.mrb[0].mxu0
      %6398 = vmatprep.mubr.f32.mxu0 0.0
      %6399 = vmatmul.mubr.f32.gmra.mrb[0].mxu0 %v6299
      %v6400 = vpop.f32.mrb[0].mxu0
      %v6401 = vadd.f32 0.0, %v6400
      %v6402 = vpop.f32.mrb[0].mxu0
      %6403 = vmatprep.mubr.f32.mxu0 0.0
      %6404 = vmatmul.mubr.f32.gmra.mrb[0].mxu0 %v6302
      %v6405 = vpop.f32.mrb[0].mxu0
      %v6406 = vadd.f32 0.0, %v6405
      %v6407 = vpop.f32.mrb[0].mxu0
      %6408 = vdwg.mxu0
      %v6409 = vadd.f32 %v6262, %v6371
      %v6410 = vadd.f32 %v6263, %v6376
      %v6411 = vadd.f32 %v6264, %v6381
      %v6412 = vadd.f32 %v6265, %v6386
      %v6413 = vadd.f32 %v6266, %v6391
      %v6414 = vadd.f32 %v6267, %v6396
      %v6415 = vadd.f32 %v6268, %v6401
      %v6416 = vadd.f32 %v6269, %v6406
      %v6417 = vld [vmem:[%s1203 + $0x2] sm:$0xff]
      %v6418 = vld [vmem:[%s1203 + $0x12] sm:$0xff]
      %v6419 = vld [vmem:[%s1203 + $0x22] sm:$0xff]
      %v6420 = vld [vmem:[%s1203 + $0x32] sm:$0xff]
      %v6421 = vld [vmem:[%s1203 + $0x42] sm:$0xff]
      %v6422 = vld [vmem:[%s1203 + $0x52] sm:$0xff]
      %v6423 = vld [vmem:[%s1203 + $0x62] sm:$0xff]
      %v6424 = vld [vmem:[%s1203 + $0x72] sm:$0xff]
      %s6425 = scalar_lea.vmem %s1, 280
      %v6426 = vld [vmem:[%s6425] sm:$0xff]
      %v6428 = vsel %vm223, %v6417, 0
      %v6431 = vsel %vm223, %v6418, 0
      %v6434 = vsel %vm223, %v6419, 0
      %v6437 = vsel %vm223, %v6420, 0
      %v6440 = vsel %vm223, %v6421, 0
      %v6443 = vsel %vm223, %v6422, 0
      %v6446 = vsel %vm223, %v6423, 0
      %v6449 = vsel %vm223, %v6424, 0
      %6451 = vmatprep.subr.mxu0 0.0
      %6452 = vmatpush1.msra.mxu0 %v6426
      %6453 = vmatprep.subr.mxu0 0.0
      %6454 = vmatpush1.msra.mxu0 0.0
      %6455 = vmatprep.subr.mxu0 0.0
      %6456 = vmatpush1.msra.mxu0 0.0
      %6457 = vmatprep.subr.mxu0 0.0
      %6458 = vmatpush1.msra.mxu0 0.0
      %6459 = vmatprep.subr.mxu0 0.0
      %6460 = vmatpush1.msra.mxu0 0.0
      %6461 = vmatprep.subr.mxu0 0.0
      %6462 = vmatpush1.msra.mxu0 0.0
      %6463 = vmatprep.subr.mxu0 0.0
      %6464 = vmatpush1.msra.mxu0 0.0
      %6465 = vmatprep.subr.mxu0 0.0
      %6466 = vmatpush1.msra.mxu0 0.0
      %6467 = vmatprep.subr.mxu0 0.0
      %6468 = vmatpush1.msra.mxu0 0.0
      %6469 = vmatprep.subr.mxu0 0.0
      %6470 = vmatpush1.msra.mxu0 0.0
      %6471 = vmatprep.subr.mxu0 0.0
      %6472 = vmatpush1.msra.mxu0 0.0
      %6473 = vmatprep.subr.mxu0 0.0
      %6474 = vmatpush1.msra.mxu0 0.0
      %6475 = vmatprep.subr.mxu0 0.0
      %6476 = vmatpush1.msra.mxu0 0.0
      %6477 = vmatprep.subr.mxu0 0.0
      %6478 = vmatpush1.msra.mxu0 0.0
      %6479 = vmatprep.subr.mxu0 0.0
      %6480 = vmatpush1.msra.mxu0 0.0
      %6481 = vmatprep.subr.mxu0 0.0
      %6482 = vmatpush1.msra.mxu0 0.0
      %6483 = vmatprep.subr.mxu0 0.0
      %6484 = vmatpush1.msra.mxu0 0.0
      %6485 = vmatprep.subr.mxu0 0.0
      %6486 = vmatpush1.msra.mxu0 0.0
      %6487 = vmatprep.subr.mxu0 0.0
      %6488 = vmatpush1.msra.mxu0 0.0
      %6489 = vmatprep.subr.mxu0 0.0
      %6490 = vmatpush1.msra.mxu0 0.0
      %6491 = vmatprep.subr.mxu0 0.0
      %6492 = vmatpush1.msra.mxu0 0.0
      %6493 = vmatprep.subr.mxu0 0.0
      %6494 = vmatpush1.msra.mxu0 0.0
      %6495 = vmatprep.subr.mxu0 0.0
      %6496 = vmatpush1.msra.mxu0 0.0
      %6497 = vmatprep.subr.mxu0 0.0
      %6498 = vmatpush1.msra.mxu0 0.0
      %6499 = vmatprep.subr.mxu0 0.0
      %6500 = vmatpush1.msra.mxu0 0.0
      %6501 = vmatprep.subr.mxu0 0.0
      %6502 = vmatpush1.msra.mxu0 0.0
      %6503 = vmatprep.subr.mxu0 0.0
      %6504 = vmatpush1.msra.mxu0 0.0
      %6505 = vmatprep.subr.mxu0 0.0
      %6506 = vmatpush1.msra.mxu0 0.0
      %6507 = vmatprep.subr.mxu0 0.0
      %6508 = vmatpush1.msra.mxu0 0.0
      %6509 = vmatprep.subr.mxu0 0.0
      %6510 = vmatpush1.msra.mxu0 0.0
      %6511 = vmatprep.subr.mxu0 0.0
      %6512 = vmatpush1.msra.mxu0 0.0
      %6513 = vmatprep.subr.mxu0 0.0
      %6514 = vmatpush1.msra.mxu0 0.0
      %6515 = vmatprep.mubr.f32.mxu0 0.0
      %6516 = vmatmul.mubr.f32.gmra.mrb[0].mxu0 %v6428
      %v6517 = vpop.f32.mrb[0].mxu0
      %v6518 = vadd.f32 0.0, %v6517
      %v6519 = vpop.f32.mrb[0].mxu0
      %6520 = vmatprep.mubr.f32.mxu0 0.0
      %6521 = vmatmul.mubr.f32.gmra.mrb[0].mxu0 %v6431
      %v6522 = vpop.f32.mrb[0].mxu0
      %v6523 = vadd.f32 0.0, %v6522
      %v6524 = vpop.f32.mrb[0].mxu0
      %6525 = vmatprep.mubr.f32.mxu0 0.0
      %6526 = vmatmul.mubr.f32.gmra.mrb[0].mxu0 %v6434
      %v6527 = vpop.f32.mrb[0].mxu0
      %v6528 = vadd.f32 0.0, %v6527
      %v6529 = vpop.f32.mrb[0].mxu0
      %6530 = vmatprep.mubr.f32.mxu0 0.0
      %6531 = vmatmul.mubr.f32.gmra.mrb[0].mxu0 %v6437
      %v6532 = vpop.f32.mrb[0].mxu0
      %v6533 = vadd.f32 0.0, %v6532
      %v6534 = vpop.f32.mrb[0].mxu0
      %6535 = vmatprep.mubr.f32.mxu0 0.0
      %6536 = vmatmul.mubr.f32.gmra.mrb[0].mxu0 %v6440
      %v6537 = vpop.f32.mrb[0].mxu0
      %v6538 = vadd.f32 0.0, %v6537
      %v6539 = vpop.f32.mrb[0].mxu0
      %6540 = vmatprep.mubr.f32.mxu0 0.0
      %6541 = vmatmul.mubr.f32.gmra.mrb[0].mxu0 %v6443
      %v6542 = vpop.f32.mrb[0].mxu0
      %v6543 = vadd.f32 0.0, %v6542
      %v6544 = vpop.f32.mrb[0].mxu0
      %6545 = vmatprep.mubr.f32.mxu0 0.0
      %6546 = vmatmul.mubr.f32.gmra.mrb[0].mxu0 %v6446
      %v6547 = vpop.f32.mrb[0].mxu0
      %v6548 = vadd.f32 0.0, %v6547
      %v6549 = vpop.f32.mrb[0].mxu0
      %6550 = vmatprep.mubr.f32.mxu0 0.0
      %6551 = vmatmul.mubr.f32.gmra.mrb[0].mxu0 %v6449
      %v6552 = vpop.f32.mrb[0].mxu0
      %v6553 = vadd.f32 0.0, %v6552
      %v6554 = vpop.f32.mrb[0].mxu0
      %6555 = vdwg.mxu0
      %v6556 = vadd.f32 %v6409, %v6518
      %v6557 = vadd.f32 %v6410, %v6523
      %v6558 = vadd.f32 %v6411, %v6528
      %v6559 = vadd.f32 %v6412, %v6533
      %v6560 = vadd.f32 %v6413, %v6538
      %v6561 = vadd.f32 %v6414, %v6543
      %v6562 = vadd.f32 %v6415, %v6548
      %v6563 = vadd.f32 %v6416, %v6553
      %v6564 = vld [vmem:[%s2 + $0x6] sm:$0x1]
      %v6565 = vld [vmem:[%s2 + $0x7] sm:$0x1]
      %v6566 = vsel %vm310, %v6556, 0.0
      %v6567 = vsel %vm310, %v6557, 0.0
      %v6568 = vadd.f32 %v6566, %v6567
      %v6569 = vsel %vm310, %v6558, 0.0
      %v6570 = vadd.f32 %v6568, %v6569
      %v6571 = vsel %vm310, %v6559, 0.0
      %v6572 = vadd.f32 %v6570, %v6571
      %v6573 = vsel %vm310, %v6560, 0.0
      %v6574 = vadd.f32 %v6572, %v6573
      %v6575 = vsel %vm310, %v6561, 0.0
      %v6576 = vadd.f32 %v6574, %v6575
      %v6577 = vsel %vm310, %v6562, 0.0
      %v6578 = vadd.f32 %v6576, %v6577
      %v6579 = vsel %vm310, %v6563, 0.0
      %v6580 = vadd.f32 %v6578, %v6579
      %6581 = vadd.xlane.f32.xlu0 %v6580
      %v6582 = vpop.xlane.xlu0 %6581
      %v6583 = vrot.slane %v6582, 4
      %v6584 = vadd.f32 %v6582, %v6583
      %v6585 = vrot.slane %v6584, 2
      %v6586 = vadd.f32 %v6584, %v6585
      %v6587 = vrot.slane %v6586, 1
      %v6588 = vadd.f32 %v6586, %v6587
      %v6589 = vmul.f32 %v6556, %v6556
      %v6590 = vmul.f32 %v6557, %v6557
      %v6591 = vmul.f32 %v6558, %v6558
      %v6592 = vmul.f32 %v6559, %v6559
      %v6593 = vmul.f32 %v6560, %v6560
      %v6594 = vmul.f32 %v6561, %v6561
      %v6595 = vmul.f32 %v6562, %v6562
      %v6596 = vmul.f32 %v6563, %v6563
      %v6597 = vsel %vm310, %v6589, 0.0
      %v6598 = vsel %vm310, %v6590, 0.0
      %v6599 = vadd.f32 %v6597, %v6598
      %v6600 = vsel %vm310, %v6591, 0.0
      %v6601 = vadd.f32 %v6599, %v6600
      %v6602 = vsel %vm310, %v6592, 0.0
      %v6603 = vadd.f32 %v6601, %v6602
      %v6604 = vsel %vm310, %v6593, 0.0
      %v6605 = vadd.f32 %v6603, %v6604
      %v6606 = vsel %vm310, %v6594, 0.0
      %v6607 = vadd.f32 %v6605, %v6606
      %v6608 = vsel %vm310, %v6595, 0.0
      %v6609 = vadd.f32 %v6607, %v6608
      %v6610 = vsel %vm310, %v6596, 0.0
      %v6611 = vadd.f32 %v6609, %v6610
      %6612 = vadd.xlane.f32.xlu0 %v6611
      %v6613 = vpop.xlane.xlu0 %6612
      %v6614 = vrot.slane %v6613, 4
      %v6615 = vadd.f32 %v6613, %v6614
      %v6616 = vrot.slane %v6615, 2
      %v6617 = vadd.f32 %v6615, %v6616
      %v6618 = vrot.slane %v6617, 1
      %v6619 = vadd.f32 %v6617, %v6618
      %v6620 = vmul.f32 %v6588, 0.00390625
      %v6621 = vmul.f32 %v6619, 0.00390625
      %v6622 = vmul.f32 %v6620, %v6620
      %v6623 = vsub.f32 %v6621, %v6622
      %v6624 = vsub.f32 %v6556, %v6620
      %v6625 = vsub.f32 %v6557, %v6620
      %v6626 = vsub.f32 %v6558, %v6620
      %v6627 = vsub.f32 %v6559, %v6620
      %v6628 = vsub.f32 %v6560, %v6620
      %v6629 = vsub.f32 %v6561, %v6620
      %v6630 = vsub.f32 %v6562, %v6620
      %v6631 = vsub.f32 %v6563, %v6620
      %v6632 = vadd.f32 %v6623, 1e-05
      %v6633 = vrsqrt.pop %v6632
      %v6634 = vmul.f32 %v6624, %v6633
      %v6635 = vmul.f32 %v6625, %v6633
      %v6636 = vmul.f32 %v6626, %v6633
      %v6637 = vmul.f32 %v6627, %v6633
      %v6638 = vmul.f32 %v6628, %v6633
      %v6639 = vmul.f32 %v6629, %v6633
      %v6640 = vmul.f32 %v6630, %v6633
      %v6641 = vmul.f32 %v6631, %v6633
      %v6642 = vlaneseq
      %v6643 = vshrl.u32 %v6642, 7
      %v6644 = vsub.s32 0, %v6643
      %v6645 = vrot.slane %v6564, %v6644
      %v6646 = vmul.f32 %v6634, %v6645
      %v6647 = vmul.f32 %v6635, %v6645
      %v6648 = vmul.f32 %v6636, %v6645
      %v6649 = vmul.f32 %v6637, %v6645
      %v6650 = vmul.f32 %v6638, %v6645
      %v6651 = vmul.f32 %v6639, %v6645
      %v6652 = vmul.f32 %v6640, %v6645
      %v6653 = vmul.f32 %v6641, %v6645
      %v6654 = vlaneseq
      %v6655 = vshrl.u32 %v6654, 7
      %v6656 = vsub.s32 0, %v6655
      %v6657 = vrot.slane %v6565, %v6656
      %v6658 = vadd.f32 %v6646, %v6657
      %v6659 = vadd.f32 %v6647, %v6657
      %v6660 = vadd.f32 %v6648, %v6657
      %v6661 = vadd.f32 %v6649, %v6657
      %v6662 = vadd.f32 %v6650, %v6657
      %v6663 = vadd.f32 %v6651, %v6657
      %v6664 = vadd.f32 %v6652, %v6657
      %v6665 = vadd.f32 %v6653, %v6657
      %v6666 = vld [vmem:[%s4] sm:$0x1]
      %v6667 = vxor.u32 %v6666, 2147483648
      %v6668 = vmul.f32 %v6667, 1.442695
      %v6669 = vpow.pop %v6668
      %v6670 = vadd.f32 %v6669, 1.0
      %v6671 = vrcp.pop %v6670
      %v6672 = vmul.f32 1.0, %v6671
      %v6673 = vmul.f32 %v6666, %v6672
      %v6674 = vld [vmem:[%s3] sm:$0xff]
      %v6675 = vld [vmem:[%s4 + $0x1] sm:$0x1]
      %v6677 = vsel %vm223, %v6673, 0
      %6679 = vmatprep.subr.mxu0 0.0
      %6680 = vmatpush1.msra.mxu0 %v6674
      %6681 = vmatprep.subr.mxu0 0.0
      %6682 = vmatpush1.msra.mxu0 0.0
      %6683 = vmatprep.subr.mxu0 0.0
      %6684 = vmatpush1.msra.mxu0 0.0
      %6685 = vmatprep.subr.mxu0 0.0
      %6686 = vmatpush1.msra.mxu0 0.0
      %6687 = vmatprep.subr.mxu0 0.0
      %6688 = vmatpush1.msra.mxu0 0.0
      %6689 = vmatprep.subr.mxu0 0.0
      %6690 = vmatpush1.msra.mxu0 0.0
      %6691 = vmatprep.subr.mxu0 0.0
      %6692 = vmatpush1.msra.mxu0 0.0
      %6693 = vmatprep.subr.mxu0 0.0
      %6694 = vmatpush1.msra.mxu0 0.0
      %6695 = vmatprep.subr.mxu0 0.0
      %6696 = vmatpush1.msra.mxu0 0.0
      %6697 = vmatprep.subr.mxu0 0.0
      %6698 = vmatpush1.msra.mxu0 0.0
      %6699 = vmatprep.subr.mxu0 0.0
      %6700 = vmatpush1.msra.mxu0 0.0
      %6701 = vmatprep.subr.mxu0 0.0
      %6702 = vmatpush1.msra.mxu0 0.0
      %6703 = vmatprep.subr.mxu0 0.0
      %6704 = vmatpush1.msra.mxu0 0.0
      %6705 = vmatprep.subr.mxu0 0.0
      %6706 = vmatpush1.msra.mxu0 0.0
      %6707 = vmatprep.subr.mxu0 0.0
      %6708 = vmatpush1.msra.mxu0 0.0
      %6709 = vmatprep.subr.mxu0 0.0
      %6710 = vmatpush1.msra.mxu0 0.0
      %6711 = vmatprep.subr.mxu0 0.0
      %6712 = vmatpush1.msra.mxu0 0.0
      %6713 = vmatprep.subr.mxu0 0.0
      %6714 = vmatpush1.msra.mxu0 0.0
      %6715 = vmatprep.subr.mxu0 0.0
      %6716 = vmatpush1.msra.mxu0 0.0
      %6717 = vmatprep.subr.mxu0 0.0
      %6718 = vmatpush1.msra.mxu0 0.0
      %6719 = vmatprep.subr.mxu0 0.0
      %6720 = vmatpush1.msra.mxu0 0.0
      %6721 = vmatprep.subr.mxu0 0.0
      %6722 = vmatpush1.msra.mxu0 0.0
      %6723 = vmatprep.subr.mxu0 0.0
      %6724 = vmatpush1.msra.mxu0 0.0
      %6725 = vmatprep.subr.mxu0 0.0
      %6726 = vmatpush1.msra.mxu0 0.0
      %6727 = vmatprep.subr.mxu0 0.0
      %6728 = vmatpush1.msra.mxu0 0.0
      %6729 = vmatprep.subr.mxu0 0.0
      %6730 = vmatpush1.msra.mxu0 0.0
      %6731 = vmatprep.subr.mxu0 0.0
      %6732 = vmatpush1.msra.mxu0 0.0
      %6733 = vmatprep.subr.mxu0 0.0
      %6734 = vmatpush1.msra.mxu0 0.0
      %6735 = vmatprep.subr.mxu0 0.0
      %6736 = vmatpush1.msra.mxu0 0.0
      %6737 = vmatprep.subr.mxu0 0.0
      %6738 = vmatpush1.msra.mxu0 0.0
      %6739 = vmatprep.subr.mxu0 0.0
      %6740 = vmatpush1.msra.mxu0 0.0
      %6741 = vmatprep.subr.mxu0 0.0
      %6742 = vmatpush1.msra.mxu0 0.0
      %6743 = vmatprep.mubr.f32.mxu0 0.0
      %6744 = vmatmul.mubr.f32.gmra.mrb[0].mxu0 %v6677
      %v6745 = vpop.f32.mrb[0].mxu0
      %v6746 = vadd.f32 %v6675, %v6745
      %v6747 = vpop.f32.mrb[0].mxu0
      %6748 = vdwg.mxu0
      %v6749 = vlaneseq
      %v6750 = vshrl.u32 %v6749, 7
      %v6751 = vsub.s32 0, %v6750
      %v6752 = vrot.slane %v6746, %v6751
      %6754 = vbcast.lane.b32.xlu0 %v6752, 256
      %v6755 = vpop.permute.xlu0 %6754
      %v6756 = vadd.f32 %v6658, %v6755
      %v6757 = vadd.f32 %v6659, %v6755
      %v6758 = vadd.f32 %v6660, %v6755
      %v6759 = vadd.f32 %v6661, %v6755
      %v6760 = vadd.f32 %v6662, %v6755
      %v6761 = vadd.f32 %v6663, %v6755
      %v6762 = vadd.f32 %v6664, %v6755
      %v6763 = vadd.f32 %v6665, %v6755
      %v6764 = vsel %vm310, %v6756, 0.0
      %v6765 = vsel %vm310, %v6757, 0.0
      %v6766 = vsel %vm310, %v6758, 0.0
      %v6767 = vsel %vm310, %v6759, 0.0
      %v6768 = vsel %vm310, %v6760, 0.0
      %v6769 = vsel %vm310, %v6761, 0.0
      %v6770 = vsel %vm310, %v6762, 0.0
      %v6771 = vsel %vm310, %v6763, 0.0
      %6772 = vxpose.xlu0.b32.start [1/16] %v6764, 128
      %6773 = vxpose.xlu0.b32.cont [2/16] %v6765, 128
      %6774 = vxpose.xlu0.b32.cont [3/16] %v6766, 128
      %6775 = vxpose.xlu0.b32.cont [4/16] %v6767, 128
      %6776 = vxpose.xlu0.b32.cont [5/16] %v6768, 128
      %6777 = vxpose.xlu0.b32.cont [6/16] %v6769, 128
      %6778 = vxpose.xlu0.b32.cont [7/16] %v6770, 128
      %6779 = vxpose.xlu0.b32.cont [8/16] %v6771, 128
      %6780 = vxpose.xlu0.b32.cont [9/16] 0.0, 128
      %6781 = vxpose.xlu0.b32.cont [10/16] 0.0, 128
      %6782 = vxpose.xlu0.b32.cont [11/16] 0.0, 128
      %6783 = vxpose.xlu0.b32.cont [12/16] 0.0, 128
      %6784 = vxpose.xlu0.b32.cont [13/16] 0.0, 128
      %6785 = vxpose.xlu0.b32.cont [14/16] 0.0, 128
      %6786 = vxpose.xlu0.b32.cont [15/16] 0.0, 128
      %6787 = vxpose.xlu0.b32.end [16/16] 0.0, 128
      %v6788 = vpop.trf.xlu0
      %v6789 = vpop.trf.xlu0
      %v6790 = vpop.trf.xlu0
      %v6791 = vpop.trf.xlu0
      %v6792 = vpop.trf.xlu0
      %v6793 = vpop.trf.xlu0
      %v6794 = vpop.trf.xlu0
      %v6795 = vpop.trf.xlu0
      %v6796 = vpop.trf.xlu0
      %v6797 = vpop.trf.xlu0
      %v6798 = vpop.trf.xlu0
      %v6799 = vpop.trf.xlu0
      %v6800 = vpop.trf.xlu0
      %v6801 = vpop.trf.xlu0
      %v6802 = vpop.trf.xlu0
      %v6803 = vpop.trf.xlu0
      %vm6804 = vcmask 519168
      %6805 = vst.msk [vmem:[%s222] sm:$0xf] %vm6804, %v6788
      %p6806 = scmp.lt.s32.totalorder %s16, 1
      %s6807 = scalar_select %p6806, %s16, 1
      %s6808 = smul.addr %s6807, 4
      %s6809 = scalar_lea.vmem %s5, %s6808
      // Predicated region
      $region41: #{down_forward.1} parent=39 // pred_check
        %p6810 = pneg %p144
      $region42: #{down_forward.1} parent=39 // pred_check_branch
        %6812 = sbr.rel (%p6810) target = $region44
      $region43: #{down_forward.1} parent=39 // pred_region
        _
      $region44: #{down_forward.1} parent=39 // pred_fallthru
        _
    $region40: #{down_forward.1} parent=5 // pred_fallthru
      _
    %p6813 = scmp.le.s32.totalorder 2, %s11
    // Predicated region
    $region45: #{down_forward.1} parent=5 // pred_check
      %p6814 = pneg %p6813
    $region46: #{down_forward.1} parent=5 // pred_check_branch
      %6816 = sbr.rel (%p6814) target = $region48
    $region47: #{down_forward.1} parent=5 // pred_region
      %s6817 = ssub.s32 %s11, 2
      // Predicated region
      $region49: #{down_forward.1} parent=47 // pred_check
        %p6818 = pneg %p150
      $region50: #{down_forward.1} parent=47 // pred_check_branch
        %6820 = sbr.rel (%p6818) target = $region52
      $region51: #{down_forward.1} parent=47 // pred_region
        %p6821 = scmp.lt.s32.totalorder %s17, 1
        %s6822 = scalar_select %p6821, %s17, 1
        %s6823 = smul.addr %s6822, 4
        %s6824 = scalar_lea.vmem %s5, %s6823
      $region52: #{down_forward.1} parent=47 // pred_fallthru
        _
    $region48: #{down_forward.1} parent=5 // pred_fallthru
      _
  $region6: #{down_forward.1} parent=0 // loop_footer
    %s15 = sadd.s32 1, %s11
  $region7: #{down_forward.1} parent=0 // loop_footer_branch
    %10 = sbr.rel target = $region3
  $region8: #{down_forward.1} parent=0 // loop_exit
    _

</llo_original>
